<compile_context>
chip_gen: v7x
topology: tpu7x:2x2x1
jax: 0.10.0
libtpu: 0.0.40
codegen_flags: <defaults>
</compile_context>

<pallas_src>
import functools

import jax
import jax.numpy as jnp
from jax.experimental import pallas as pl
from jax.experimental.pallas import tpu as pltpu


def _upsample_conv_kernel(x_ref, w_ref, b_ref, o_ref, *, K, S, U, pad, H, W, Ho, Wo):
    """One image per grid step.

    x_ref: (1, Cin, H*W)      raw input, NCHW order with spatial flattened
    w_ref: (K*K*Cin, Cout)    weights, rows ordered (kh, kw, cin)
    b_ref: (Cout, 1)          bias
    o_ref: (1, Cout, Ho*Wo)   channels-first output, flat (lane-dense) spatial
    """
    Cin = x_ref.shape[1]

    # ---- NCHW -> HWC layout change in VMEM (single 2-D transpose) ----
    x = x_ref[0].T.reshape(H, W, Cin)                      # (H, W, Cin)

    # ---- nearest-neighbour upsample by U (channels stay on the minor axis) ----
    if U > 1:
        x = jnp.broadcast_to(x[:, None], (H, U, W, Cin)).reshape(H * U, W, Cin)
        x = jnp.broadcast_to(x[:, :, None], (H * U, W, U, Cin)).reshape(H * U, W * U, Cin)
    Hu, Wu = H * U, W * U

    # ---- ReflectionPad2d(pad) (no edge duplication), rows then columns ----
    if pad > 0:
        top = [x[p:p + 1] for p in range(pad, 0, -1)]
        bot = [x[Hu - 2 - q:Hu - 1 - q] for q in range(pad)]
        x = jnp.concatenate(top + [x] + bot, axis=0)
        left = [x[:, p:p + 1] for p in range(pad, 0, -1)]
        right = [x[:, Wu - 2 - q:Wu - 1 - q] for q in range(pad)]
        x = jnp.concatenate(left + [x] + right, axis=1)
    # x: (Hp, Wp, Cin) padded, upsampled image in VMEM

    # ---- im2col: all K*K taps fused into one MXU matmul ----
    cols = []
    for kh in range(K):
        for kw in range(K):
            patch = jax.lax.slice(
                x,
                (kh, kw, 0),
                (kh + S * (Ho - 1) + 1, kw + S * (Wo - 1) + 1, Cin),
                (S, S, 1),
            )                                              # (Ho, Wo, Cin)
            cols.append(patch.reshape(Ho * Wo, Cin))
    pmat = jnp.concatenate(cols, axis=1)                   # (Ho*Wo, K*K*Cin)

    acc = jnp.dot(pmat, w_ref[...], preferred_element_type=jnp.float32)  # (Ho*Wo, Cout)

    # channels-first, spatial-on-lanes result; bias added in the dense layout
    out = acc.T + b_ref[...]                               # (Cout, Ho*Wo)
    o_ref[0] = out.astype(o_ref.dtype)


def upsample_conv_layer(x_nchw, weight_oihw, bias, *, kernel_size, stride, upsample=None):
    """Pallas implementation of UpsampleConvLayer.forward (NCHW in, NCHW out)."""
    K = int(kernel_size)
    S = int(stride)
    U = int(upsample) if upsample else 1
    pad = K // 2

    N, Cin, H, W = x_nchw.shape
    Cout = weight_oihw.shape[0]
    Hp = H * U + 2 * pad
    Wp = W * U + 2 * pad
    Ho = (Hp - K) // S + 1
    Wo = (Wp - K) // S + 1

    # Free (metadata-only) reshape: spatial flattened so the kernel does the
    # NCHW->HWC relayout as a single in-VMEM 2-D transpose.
    x_flat = x_nchw.reshape(N, Cin, H * W)
    # Weights to (K*K*Cin, Cout) with rows ordered (kh, kw, cin); bias to (Cout, 1).
    w2 = jnp.transpose(weight_oihw, (2, 3, 1, 0)).reshape(K * K * Cin, Cout)
    b2 = bias.reshape(Cout, 1)

    kernel = functools.partial(
        _upsample_conv_kernel, K=K, S=S, U=U, pad=pad, H=H, W=W, Ho=Ho, Wo=Wo
    )

    out_flat = pl.pallas_call(
        kernel,
        out_shape=jax.ShapeDtypeStruct((N, Cout, Ho * Wo), x_nchw.dtype),
        grid_spec=pltpu.PrefetchScalarGridSpec(
            num_scalar_prefetch=0,
            grid=(N,),
            in_specs=[
                pl.BlockSpec((1, Cin, H * W), lambda n: (n, 0, 0)),
                pl.BlockSpec((K * K * Cin, Cout), lambda n: (0, 0)),
                pl.BlockSpec((Cout, 1), lambda n: (0, 0)),
            ],
            out_specs=pl.BlockSpec((1, Cout, Ho * Wo), lambda n: (n, 0, 0)),
        ),
        compiler_params=pltpu.CompilerParams(
            dimension_semantics=("parallel",),
        ),
    )(x_flat, w2, b2)

    # Free reshape back to NCHW (no data movement).
    return out_flat.reshape(N, Cout, Ho, Wo)


def _reference(x_nchw, weight_oihw, bias, *, kernel_size, stride, upsample=None):
    """Pure-JAX reference (lax.conv) for correctness checking."""
    K = kernel_size
    pad = K // 2
    x = x_nchw
    if upsample:
        x = jnp.repeat(jnp.repeat(x, upsample, axis=2), upsample, axis=3)
    x = jnp.pad(x, ((0, 0), (0, 0), (pad, pad), (pad, pad)), mode="reflect")
    out = jax.lax.conv_general_dilated(
        x, weight_oihw,
        window_strides=(stride, stride),
        padding="VALID",
        dimension_numbers=("NCHW", "OIHW", "NCHW"),
    )
    return out + bias[None, :, None, None]


if __name__ == "__main__":
    # Canonical fast_neural_style usage: upsample=2, stride=1.
    in_channels, out_channels = 4, 8
    kernel_size, stride, upsample = 3, 1, 2

    key = jax.random.PRNGKey(0)
    kx, kw, kb = jax.random.split(key, 3)

    x = jax.random.normal(kx, (2, in_channels, 16, 16), dtype=jnp.float32)
    weight = jax.random.normal(
        kw, (out_channels, in_channels, kernel_size, kernel_size), dtype=jnp.float32
    ) * 0.1
    bias = jax.random.normal(kb, (out_channels,), dtype=jnp.float32) * 0.1

    out = upsample_conv_layer(
        x, weight, bias, kernel_size=kernel_size, stride=stride, upsample=upsample
    )
    out = jax.block_until_ready(out)

    ref = _reference(
        x, weight, bias, kernel_size=kernel_size, stride=stride, upsample=upsample
    )
    assert out.shape == ref.shape == (2, out_channels, 32, 32), out.shape
    assert jnp.allclose(out, ref, atol=1e-4, rtol=1e-4), float(jnp.abs(out - ref).max())

    print("KERNEL_OK")
</pallas_src>

<mosaic_0001>
module attributes {stable_mosaic.version = 11 : i64} {
  func.func @_upsample_conv_kernel(%arg0: i32, %arg1: memref<1x4x256xf32, #tpu.memory_space<vmem>>, %arg2: memref<36x8xf32, #tpu.memory_space<vmem>>, %arg3: memref<8x1xf32, #tpu.memory_space<vmem>>, %arg4: memref<1x8x1024xf32, #tpu.memory_space<vmem>>) attributes {dimension_semantics = [#tpu.dimension_semantics<parallel>], iteration_bounds = array<i64: 2>, scalar_prefetch = 0 : i64, scratch_operands = 0 : i64, tpu.core_type = #tpu.core_type<tc>, window_params = [{transform_indices = @transform_0, window_bounds = array<i64: 1, 4, 256>}, {pipeline_mode = #tpu.pipeline_mode<synchronous>, transform_indices = @transform_1, window_bounds = array<i64: 36, 8>}, {pipeline_mode = #tpu.pipeline_mode<synchronous>, transform_indices = @transform_2, window_bounds = array<i64: 8, 1>}, {transform_indices = @transform_3, window_bounds = array<i64: 1, 8, 1024>}]} {
    %c0 = arith.constant 0 : index
    %c0_0 = arith.constant 0 : index
    %c0_1 = arith.constant 0 : index
    %0 = vector.load %arg1[%c0, %c0_0, %c0_1] : memref<1x4x256xf32, #tpu.memory_space<vmem>>, vector<1x4x256xf32>
    %1 = vector.shape_cast %0 : vector<1x4x256xf32> to vector<4x256xf32>
    %2 = tpu.transpose %1, [1, 0] : vector<4x256xf32> -> vector<256x4xf32>
    %3 = vector.shape_cast %2 : vector<256x4xf32> to vector<16x16x4xf32>
    %4 = vector.shape_cast %3 : vector<16x16x4xf32> to vector<16x1x16x4xf32>
    %5 = vector.shape_cast %4 : vector<16x1x16x4xf32> to vector<16x1x16x4xf32>
    %6 = vector.broadcast %5 : vector<16x1x16x4xf32> to vector<16x2x16x4xf32>
    %7 = vector.shape_cast %6 : vector<16x2x16x4xf32> to vector<32x16x4xf32>
    %8 = vector.shape_cast %7 : vector<32x16x4xf32> to vector<32x16x1x4xf32>
    %9 = vector.shape_cast %8 : vector<32x16x1x4xf32> to vector<32x16x1x4xf32>
    %10 = vector.broadcast %9 : vector<32x16x1x4xf32> to vector<32x16x2x4xf32>
    %11 = vector.shape_cast %10 : vector<32x16x2x4xf32> to vector<32x32x4xf32>
    %12 = vector.extract_strided_slice %11 {offsets = [1, 0, 0], sizes = [1, 32, 4], strides = [1, 1, 1]} : vector<32x32x4xf32> to vector<1x32x4xf32>
    %13 = vector.extract_strided_slice %11 {offsets = [30, 0, 0], sizes = [1, 32, 4], strides = [1, 1, 1]} : vector<32x32x4xf32> to vector<1x32x4xf32>
    %14 = tpu.concatenate %12, %11, %13 in 0 : vector<1x32x4xf32>, vector<32x32x4xf32>, vector<1x32x4xf32> -> vector<34x32x4xf32>
    %15 = vector.extract_strided_slice %14 {offsets = [0, 1, 0], sizes = [34, 1, 4], strides = [1, 1, 1]} : vector<34x32x4xf32> to vector<34x1x4xf32>
    %16 = vector.extract_strided_slice %14 {offsets = [0, 30, 0], sizes = [34, 1, 4], strides = [1, 1, 1]} : vector<34x32x4xf32> to vector<34x1x4xf32>
    %17 = tpu.concatenate %15, %14, %16 in 1 : vector<34x1x4xf32>, vector<34x32x4xf32>, vector<34x1x4xf32> -> vector<34x34x4xf32>
    %18 = vector.extract_strided_slice %17 {offsets = [0, 0, 0], sizes = [32, 32, 4], strides = [1, 1, 1]} : vector<34x34x4xf32> to vector<32x32x4xf32>
    %19 = vector.shape_cast %18 : vector<32x32x4xf32> to vector<1024x4xf32>
    %20 = vector.extract_strided_slice %17 {offsets = [0, 1, 0], sizes = [32, 32, 4], strides = [1, 1, 1]} : vector<34x34x4xf32> to vector<32x32x4xf32>
    %21 = vector.shape_cast %20 : vector<32x32x4xf32> to vector<1024x4xf32>
    %22 = vector.extract_strided_slice %17 {offsets = [0, 2, 0], sizes = [32, 32, 4], strides = [1, 1, 1]} : vector<34x34x4xf32> to vector<32x32x4xf32>
    %23 = vector.shape_cast %22 : vector<32x32x4xf32> to vector<1024x4xf32>
    %24 = vector.extract_strided_slice %17 {offsets = [1, 0, 0], sizes = [32, 32, 4], strides = [1, 1, 1]} : vector<34x34x4xf32> to vector<32x32x4xf32>
    %25 = vector.shape_cast %24 : vector<32x32x4xf32> to vector<1024x4xf32>
    %26 = vector.extract_strided_slice %17 {offsets = [1, 1, 0], sizes = [32, 32, 4], strides = [1, 1, 1]} : vector<34x34x4xf32> to vector<32x32x4xf32>
    %27 = vector.shape_cast %26 : vector<32x32x4xf32> to vector<1024x4xf32>
    %28 = vector.extract_strided_slice %17 {offsets = [1, 2, 0], sizes = [32, 32, 4], strides = [1, 1, 1]} : vector<34x34x4xf32> to vector<32x32x4xf32>
    %29 = vector.shape_cast %28 : vector<32x32x4xf32> to vector<1024x4xf32>
    %30 = vector.extract_strided_slice %17 {offsets = [2, 0, 0], sizes = [32, 32, 4], strides = [1, 1, 1]} : vector<34x34x4xf32> to vector<32x32x4xf32>
    %31 = vector.shape_cast %30 : vector<32x32x4xf32> to vector<1024x4xf32>
    %32 = vector.extract_strided_slice %17 {offsets = [2, 1, 0], sizes = [32, 32, 4], strides = [1, 1, 1]} : vector<34x34x4xf32> to vector<32x32x4xf32>
    %33 = vector.shape_cast %32 : vector<32x32x4xf32> to vector<1024x4xf32>
    %34 = vector.extract_strided_slice %17 {offsets = [2, 2, 0], sizes = [32, 32, 4], strides = [1, 1, 1]} : vector<34x34x4xf32> to vector<32x32x4xf32>
    %35 = vector.shape_cast %34 : vector<32x32x4xf32> to vector<1024x4xf32>
    %36 = tpu.concatenate %19, %21, %23, %25, %27, %29, %31, %33, %35 in 1 : vector<1024x4xf32>, vector<1024x4xf32>, vector<1024x4xf32>, vector<1024x4xf32>, vector<1024x4xf32>, vector<1024x4xf32>, vector<1024x4xf32>, vector<1024x4xf32>, vector<1024x4xf32> -> vector<1024x36xf32>
    %c0_2 = arith.constant 0 : index
    %c0_3 = arith.constant 0 : index
    %37 = vector.load %arg2[%c0_2, %c0_3] : memref<36x8xf32, #tpu.memory_space<vmem>>, vector<36x8xf32>
    %cst = arith.constant dense<0.000000e+00> : vector<1024x8xf32>
    %38 = tpu.matmul %36, %37, %cst {dimension_numbers = #tpu.dot_dimension_numbers<[1], [0], [0], [1], [0, 0, 1, 1], [], []>} : vector<1024x36xf32>, vector<36x8xf32>, vector<1024x8xf32> -> vector<1024x8xf32>
    %39 = tpu.transpose %38, [1, 0] : vector<1024x8xf32> -> vector<8x1024xf32>
    %c0_4 = arith.constant 0 : index
    %c0_5 = arith.constant 0 : index
    %40 = vector.load %arg3[%c0_4, %c0_5] : memref<8x1xf32, #tpu.memory_space<vmem>>, vector<8x1xf32>
    %41 = vector.broadcast %40 : vector<8x1xf32> to vector<8x1024xf32>
    %42 = arith.addf %39, %41 : vector<8x1024xf32>
    %c0_6 = arith.constant 0 : index
    %c0_7 = arith.constant 0 : index
    %c0_8 = arith.constant 0 : index
    %43 = vector.load %arg4[%c0_6, %c0_7, %c0_8] : memref<1x8x1024xf32, #tpu.memory_space<vmem>>, vector<1x8x1024xf32>
    %44 = vector.shape_cast %43 : vector<1x8x1024xf32> to vector<8x1024xf32>
    %45 = vector.shape_cast %42 : vector<8x1024xf32> to vector<1x8x1024xf32>
    tpu.vector_store %arg4[%c0_6, %c0_7, %c0_8], %45 {strides = array<i32>} : memref<1x8x1024xf32, #tpu.memory_space<vmem>>, vector<1x8x1024xf32>,
    return
  }
  func.func @transform_0(%arg0: i32) -> (i32, i32, i32) {
    %c0_i32 = arith.constant 0 : i32
    %c0_i32_0 = arith.constant 0 : i32
    %c0_i32_1 = arith.constant 0 : i32
    return %arg0, %c0_i32, %c0_i32_0 : i32, i32, i32
  }
  func.func @transform_1(%arg0: i32) -> (i32, i32) {
    %c0_i32 = arith.constant 0 : i32
    %c0_i32_0 = arith.constant 0 : i32
    %c0_i32_1 = arith.constant 0 : i32
    return %c0_i32, %c0_i32_0 : i32, i32
  }
  func.func @transform_2(%arg0: i32) -> (i32, i32) {
    %c0_i32 = arith.constant 0 : i32
    %c0_i32_0 = arith.constant 0 : i32
    %c0_i32_1 = arith.constant 0 : i32
    return %c0_i32, %c0_i32_0 : i32, i32
  }
  func.func @transform_3(%arg0: i32) -> (i32, i32, i32) {
    %c0_i32 = arith.constant 0 : i32
    %c0_i32_0 = arith.constant 0 : i32
    %c0_i32_1 = arith.constant 0 : i32
    return %arg0, %c0_i32, %c0_i32_0 : i32, i32, i32
  }
}

</mosaic_0001>

<llo_original>
// kernel: tpu_custom_call.1
$region0: #{tpu_custom_call.1}
  #allocation0 [shape = 'u32[]', space=smem, size = 0x4, offset = 0x4, fixed_abs, tag = 'smem constant byte address 0x4 - core index']
  #allocation1 [shape = 'u32[144,128]{1,0:T(1,128)}', space=vmem, size = 0x12000, scoped, tag = 'internal scratch']
  %s0 = inlined_call_operand.vmem [shape: f32[2,4,256], index: 0, kind: input, shape index: {}]
  %s1 = inlined_call_operand.vmem [shape: f32[36,8], index: 1, kind: input, shape index: {}]
  %s2 = inlined_call_operand.vmem [shape: f32[8,1], index: 2, kind: input, shape index: {}]
  %s3 = inlined_call_operand.hbm [shape: f32[2,8,1024], index: 3, kind: output, shape index: {}]
  %s4 = sld [smem:[#allocation0]]
  $region45: #{tpu_custom_call.1} parent=0
    _
  %s6 = ssub.s32 1, %s4
  %s7 = scalar_select 0, %s6, %s4
  $region1: #{tpu_custom_call.1} parent=0
    #allocation2 [shape = 'u8[65536]{0}', space=vmem, size = 0x10000, scoped, tag = 'output window, operand 0']
    #allocation3 [shape = 's32[2]{0}', space=sflag, size = 0x8, scoped, tag = 'scoped memory for tpu_custom_call.1']
    %8 = vsyncpa [#allocation3], 0
    %s9 = scalar_lea.sflag [#allocation3], 1
    %10 = vsyncpa %s9, 0
    loop: start=0, step=1, limit=4
    $region2: #{tpu_custom_call.1} parent=1 // loop_pre_header
      _
    $region3: #{tpu_custom_call.1} parent=1 // loop_header
      %s12 = sphi 0, %s16
      %p13 = scmp.ge.s32.totalorder %s12, 4
      %s22 = sphi 0, %s24
      %s25 = sphi 0, %s22
      %s26 = sphi 0, %s25
      %s42 = sphi 0, %s26
      %s46 = sphi 0, %s46
      %s48 = sphi 0, %s46
      %s49 = sphi 0, %s48
      %s63 = sphi 0, %s49
      %s67 = sphi 0, %s67
      %s69 = sphi 0, %s67
      %s70 = sphi 0, %s69
      %s84 = sphi 0, %s70
      %s90 = sphi 0, %s92
      %s93 = sphi 0, %s90
      %s94 = sphi 0, %s93
      %s110 = sphi 0, %s94
    $region4: #{tpu_custom_call.1} parent=1 // loop_header_branch
      %15 = sbr.rel (%p13) target = $region8
    $region5: #{tpu_custom_call.1} parent=1 // loop_body
      %s17 = ssub.s32 %s12, 1
      %s18 = ssub.s32 %s12, 2
      %s19 = sadd.s32 %s12, 1
      %s20 = ssub.s32 %s12, %s19
      %p21 = scmp.eq.s32.totalorder %s20, 0
      %s23 = sadd.s32 %s22, 1
      %s24 = scalar_select %p21, %s22, %s23
      %p27 = pneg %p21
      %p28 = scmp.eq.s32.totalorder %s12, 1
      %p29 = por %p27, %p28
      %p30 = scmp.ne.s32.totalorder %s22, %s25
      %p31 = scmp.eq.s32.totalorder %s12, 0
      %p32 = por %p30, %p31
      %p33 = scmp.ne.s32.totalorder %s22, %s25
      %p34 = scmp.eq.s32.totalorder %s17, 1
      %p35 = por %p33, %p34
      %p36 = scmp.ne.s32.totalorder %s25, %s26
      %p37 = scmp.eq.s32.totalorder %s17, 0
      %p38 = por %p36, %p37
      %p39 = scmp.ne.s32.totalorder %s25, %s26
      %p40 = scmp.eq.s32.totalorder %s18, 1
      %p41 = por %p39, %p40
      %p43 = scmp.ne.s32.totalorder %s26, %s42
      %p44 = scmp.eq.s32.totalorder %s18, 0
      %p45 = por %p43, %p44
      %s47 = sadd.s32 %s46, 1
      %p50 = scmp.eq.s32.totalorder %s12, 1
      %p51 = scmp.ne.s32.totalorder %s46, %s48
      %p52 = scmp.eq.s32.totalorder %s12, 0
      %p53 = por %p51, %p52
      %p54 = scmp.ne.s32.totalorder %s46, %s48
      %p55 = scmp.eq.s32.totalorder %s17, 1
      %p56 = por %p54, %p55
      %p57 = scmp.ne.s32.totalorder %s48, %s49
      %p58 = scmp.eq.s32.totalorder %s17, 0
      %p59 = por %p57, %p58
      %p60 = scmp.ne.s32.totalorder %s48, %s49
      %p61 = scmp.eq.s32.totalorder %s18, 1
      %p62 = por %p60, %p61
      %p64 = scmp.ne.s32.totalorder %s49, %s63
      %p65 = scmp.eq.s32.totalorder %s18, 0
      %p66 = por %p64, %p65
      %s68 = sadd.s32 %s67, 1
      %p71 = scmp.eq.s32.totalorder %s12, 1
      %p72 = scmp.ne.s32.totalorder %s67, %s69
      %p73 = scmp.eq.s32.totalorder %s12, 0
      %p74 = por %p72, %p73
      %p75 = scmp.ne.s32.totalorder %s67, %s69
      %p76 = scmp.eq.s32.totalorder %s17, 1
      %p77 = por %p75, %p76
      %p78 = scmp.ne.s32.totalorder %s69, %s70
      %p79 = scmp.eq.s32.totalorder %s17, 0
      %p80 = por %p78, %p79
      %p81 = scmp.ne.s32.totalorder %s69, %s70
      %p82 = scmp.eq.s32.totalorder %s18, 1
      %p83 = por %p81, %p82
      %p85 = scmp.ne.s32.totalorder %s70, %s84
      %p86 = scmp.eq.s32.totalorder %s18, 0
      %p87 = por %p85, %p86
      %s88 = ssub.s32 %s12, %s19
      %p89 = scmp.eq.s32.totalorder %s88, 0
      %s91 = sadd.s32 %s90, 1
      %s92 = scalar_select %p89, %s90, %s91
      %p95 = pneg %p89
      %p96 = scmp.eq.s32.totalorder %s12, 1
      %p97 = por %p95, %p96
      %p98 = scmp.ne.s32.totalorder %s90, %s93
      %p99 = scmp.eq.s32.totalorder %s12, 0
      %p100 = por %p98, %p99
      %p101 = scmp.ne.s32.totalorder %s90, %s93
      %p102 = scmp.eq.s32.totalorder %s17, 1
      %p103 = por %p101, %p102
      %p104 = scmp.ne.s32.totalorder %s93, %s94
      %p105 = scmp.eq.s32.totalorder %s17, 0
      %p106 = por %p104, %p105
      %p107 = scmp.ne.s32.totalorder %s93, %s94
      %p108 = scmp.eq.s32.totalorder %s18, 1
      %p109 = por %p107, %p108
      %p111 = scmp.ne.s32.totalorder %s94, %s110
      %p112 = scmp.eq.s32.totalorder %s18, 0
      %p113 = por %p111, %p112
      %p114 = scmp.le.s32.totalorder 1, %s12
      %p115 = scmp.lt.s32.totalorder %s12, 3
      %p116 = pnand %p114, %p115
      %p117 = pneg %p116
      // Predicated region
      $region9: #{tpu_custom_call.1} parent=5 // pred_check
        _
      $region10: #{tpu_custom_call.1} parent=5 // pred_check_branch
        %119 = sbr.rel (%p116) target = $region12
      $region11: #{tpu_custom_call.1} parent=5 // pred_region
        %s120 = ssub.s32 %s12, 1
        // Predicated region
        $region13: #{tpu_custom_call.1} parent=11 // pred_check
          %p121 = pneg %p59
        $region14: #{tpu_custom_call.1} parent=11 // pred_check_branch
          %123 = sbr.rel (%p121) target = $region16
        $region15: #{tpu_custom_call.1} parent=11 // pred_region
          _
        $region16: #{tpu_custom_call.1} parent=11 // pred_fallthru
          _
        // Predicated region
        $region17: #{tpu_custom_call.1} parent=11 // pred_check
          %p124 = pneg %p80
        $region18: #{tpu_custom_call.1} parent=11 // pred_check_branch
          %126 = sbr.rel (%p124) target = $region20
        $region19: #{tpu_custom_call.1} parent=11 // pred_region
          _
        $region20: #{tpu_custom_call.1} parent=11 // pred_fallthru
          _
      $region12: #{tpu_custom_call.1} parent=5 // pred_fallthru
        _
      %p127 = scmp.lt.s32.totalorder %s12, 2
      // Predicated region
      $region21: #{tpu_custom_call.1} parent=5 // pred_check
        %p128 = pneg %p127
      $region22: #{tpu_custom_call.1} parent=5 // pred_check_branch
        %130 = sbr.rel (%p128) target = $region24
      $region23: #{tpu_custom_call.1} parent=5 // pred_region
        // Predicated region
        $region25: #{tpu_custom_call.1} parent=23 // pred_check
          %p131 = pneg %p32
        $region26: #{tpu_custom_call.1} parent=23 // pred_check_branch
          %133 = sbr.rel (%p131) target = $region28
        $region27: #{tpu_custom_call.1} parent=23 // pred_region
          %p134 = scmp.lt.s32.totalorder %s12, 1
          %s135 = scalar_select %p134, %s12, 1
          %s136 = smul.addr %s135, 2
          %s137 = smul.addr %s136, 4
          %s138 = scalar_lea.vmem %s0, %s137
        $region28: #{tpu_custom_call.1} parent=23 // pred_fallthru
          _
      $region24: #{tpu_custom_call.1} parent=5 // pred_fallthru
        _
      %p139 = scmp.le.s32.totalorder 1, %s12
      %p140 = scmp.lt.s32.totalorder %s12, 3
      %p141 = pnand %p139, %p140
      %p142 = pneg %p141
      // Predicated region
      $region29: #{tpu_custom_call.1} parent=5 // pred_check
        _
      $region30: #{tpu_custom_call.1} parent=5 // pred_check_branch
        %144 = sbr.rel (%p141) target = $region32
      $region31: #{tpu_custom_call.1} parent=5 // pred_region
        %s145 = ssub.s32 %s12, 1
        %p146 = scmp.lt.s32.totalorder %s17, 1
        %s147 = scalar_select %p146, %s17, 1
        %s148 = smul.addr %s147, 2
        %s149 = smul.addr %s148, 4
        %s150 = scalar_lea.vmem %s0, %s149
        %p151 = pneg %p38
        %p152 = pneg %p35
        %p153 = pneg %p59
        %p154 = pneg %p56
        %p155 = pneg %p80
        %p156 = pneg %p77
        %p157 = pneg %p106
        %p158 = pneg %p103
        %s159 = sand.u32 %s93, 1
        %s160 = scalar_lea.sflag [#allocation3], %s159
        %s161 = sand.u32 %s93, 1
        %s162 = smul.addr %s161, 64
        %s163 = scalar_lea.vmem [#allocation2], %s162
        %p164 = scmp.lt.s32.totalorder %s17, 1
        %s165 = scalar_select %p164, %s17, 1
        %s166 = smul.addr %s165, 2
        %s167 = smul.addr %s166, 4
        %s168 = scalar_lea.vmem %s0, %s167
        %v169 = vld [vmem:[%s168] sm:$0xff]
        %v171 = vcombine.high %v169, %v169
        %173 = vxpose.xlu0.b32.start [1/16] %v169, 128
        %174 = vxpose.xlu0.b32.cont [2/16] 0.0, 128
        %175 = vxpose.xlu0.b32.cont [3/16] 0.0, 128
        %176 = vxpose.xlu0.b32.cont [4/16] 0.0, 128
        %177 = vxpose.xlu0.b32.cont [5/16] 0.0, 128
        %178 = vxpose.xlu0.b32.cont [6/16] 0.0, 128
        %179 = vxpose.xlu0.b32.cont [7/16] 0.0, 128
        %180 = vxpose.xlu0.b32.cont [8/16] 0.0, 128
        %181 = vxpose.xlu0.b32.cont [9/16] 0.0, 128
        %182 = vxpose.xlu0.b32.cont [10/16] 0.0, 128
        %183 = vxpose.xlu0.b32.cont [11/16] 0.0, 128
        %184 = vxpose.xlu0.b32.cont [12/16] 0.0, 128
        %185 = vxpose.xlu0.b32.cont [13/16] 0.0, 128
        %186 = vxpose.xlu0.b32.cont [14/16] 0.0, 128
        %187 = vxpose.xlu0.b32.cont [15/16] 0.0, 128
        %188 = vxpose.xlu0.b32.end [16/16] 0.0, 128
        %v189 = vpop.trf.xlu0
        %v190 = vpop.trf.xlu0
        %v191 = vpop.trf.xlu0
        %v192 = vpop.trf.xlu0
        %v193 = vpop.trf.xlu0
        %v194 = vpop.trf.xlu0
        %v195 = vpop.trf.xlu0
        %v196 = vpop.trf.xlu0
        %v197 = vpop.trf.xlu0
        %v198 = vpop.trf.xlu0
        %v199 = vpop.trf.xlu0
        %v200 = vpop.trf.xlu0
        %v201 = vpop.trf.xlu0
        %v202 = vpop.trf.xlu0
        %v203 = vpop.trf.xlu0
        %v204 = vpop.trf.xlu0
        %205 = vxpose.xlu0.b32.start [1/16] %v171, 128
        %206 = vxpose.xlu0.b32.cont [2/16] 0.0, 128
        %207 = vxpose.xlu0.b32.cont [3/16] 0.0, 128
        %208 = vxpose.xlu0.b32.cont [4/16] 0.0, 128
        %209 = vxpose.xlu0.b32.cont [5/16] 0.0, 128
        %210 = vxpose.xlu0.b32.cont [6/16] 0.0, 128
        %211 = vxpose.xlu0.b32.cont [7/16] 0.0, 128
        %212 = vxpose.xlu0.b32.cont [8/16] 0.0, 128
        %213 = vxpose.xlu0.b32.cont [9/16] 0.0, 128
        %214 = vxpose.xlu0.b32.cont [10/16] 0.0, 128
        %215 = vxpose.xlu0.b32.cont [11/16] 0.0, 128
        %216 = vxpose.xlu0.b32.cont [12/16] 0.0, 128
        %217 = vxpose.xlu0.b32.cont [13/16] 0.0, 128
        %218 = vxpose.xlu0.b32.cont [14/16] 0.0, 128
        %219 = vxpose.xlu0.b32.cont [15/16] 0.0, 128
        %220 = vxpose.xlu0.b32.end [16/16] 0.0, 128
        %v221 = vpop.trf.xlu0
        %v222 = vpop.trf.xlu0
        %v223 = vpop.trf.xlu0
        %v224 = vpop.trf.xlu0
        %v225 = vpop.trf.xlu0
        %v226 = vpop.trf.xlu0
        %v227 = vpop.trf.xlu0
        %v228 = vpop.trf.xlu0
        %v229 = vpop.trf.xlu0
        %v230 = vpop.trf.xlu0
        %v231 = vpop.trf.xlu0
        %v232 = vpop.trf.xlu0
        %v233 = vpop.trf.xlu0
        %v234 = vpop.trf.xlu0
        %v235 = vpop.trf.xlu0
        %v236 = vpop.trf.xlu0
        %v269 = vcombine.high %v189, %v189
        %v271 = vunpack.c.l.s4 1966171168
        %v272 = vunpack.c.0.s8 %v271
        %v273 = vlaneseq
        %v274 = vshrl.u32 %v273, 7
        %v275 = vsub.s32 %v272, %v274
        %v276 = vrot.slane %v189, %v275
        %v278 = vunpack.c.l.s4 1966171168
        %v279 = vunpack.c.0.s8 %v278
        %v280 = vlaneseq
        %v281 = vshrl.u32 %v280, 7
        %v282 = vsub.s32 %v279, %v281
        %v283 = vrot.slane %v269, %v282
        %v284 = vcombine.high %v276, %v276
        %v285 = vcombine.high %v283, %v283
        %v287 = vunpack.c.l.s4 1966171168
        %v288 = vunpack.c.0.s8 %v287
        %v289 = vlaneseq
        %v290 = vshrl.u32 %v289, 7
        %v291 = vsub.s32 %v288, %v290
        %v292 = vrot.slane %v276, %v291
        %v294 = vunpack.c.l.s4 1966171168
        %v295 = vunpack.c.0.s8 %v294
        %v296 = vlaneseq
        %v297 = vshrl.u32 %v296, 7
        %v298 = vsub.s32 %v295, %v297
        %v299 = vrot.slane %v283, %v298
        %v301 = vunpack.c.l.s4 1966171168
        %v302 = vunpack.c.0.s8 %v301
        %v303 = vlaneseq
        %v304 = vshrl.u32 %v303, 7
        %v305 = vsub.s32 %v302, %v304
        %v306 = vrot.slane %v284, %v305
        %v308 = vunpack.c.l.s4 1966171168
        %v309 = vunpack.c.0.s8 %v308
        %v310 = vlaneseq
        %v311 = vshrl.u32 %v310, 7
        %v312 = vsub.s32 %v309, %v311
        %v313 = vrot.slane %v285, %v312
        %v314 = vcombine.high %v292, %v292
        %v315 = vcombine.high %v299, %v299
        %v316 = vcombine.high %v306, %v306
        %v317 = vcombine.high %v313, %v313
        %v318 = vcombine.high %v190, %v190
        %v320 = vunpack.c.l.s4 1966171168
        %v321 = vunpack.c.0.s8 %v320
        %v322 = vlaneseq
        %v323 = vshrl.u32 %v322, 7
        %v324 = vsub.s32 %v321, %v323
        %v325 = vrot.slane %v190, %v324
        %v327 = vunpack.c.l.s4 1966171168
        %v328 = vunpack.c.0.s8 %v327
        %v329 = vlaneseq
        %v330 = vshrl.u32 %v329, 7
        %v331 = vsub.s32 %v328, %v330
        %v332 = vrot.slane %v318, %v331
        %v333 = vcombine.high %v325, %v325
        %v334 = vcombine.high %v332, %v332
        %v336 = vunpack.c.l.s4 1966171168
        %v337 = vunpack.c.0.s8 %v336
        %v338 = vlaneseq
        %v339 = vshrl.u32 %v338, 7
        %v340 = vsub.s32 %v337, %v339
        %v341 = vrot.slane %v325, %v340
        %v343 = vunpack.c.l.s4 1966171168
        %v344 = vunpack.c.0.s8 %v343
        %v345 = vlaneseq
        %v346 = vshrl.u32 %v345, 7
        %v347 = vsub.s32 %v344, %v346
        %v348 = vrot.slane %v332, %v347
        %v350 = vunpack.c.l.s4 1966171168
        %v351 = vunpack.c.0.s8 %v350
        %v352 = vlaneseq
        %v353 = vshrl.u32 %v352, 7
        %v354 = vsub.s32 %v351, %v353
        %v355 = vrot.slane %v333, %v354
        %v357 = vunpack.c.l.s4 1966171168
        %v358 = vunpack.c.0.s8 %v357
        %v359 = vlaneseq
        %v360 = vshrl.u32 %v359, 7
        %v361 = vsub.s32 %v358, %v360
        %v362 = vrot.slane %v334, %v361
        %v363 = vcombine.high %v341, %v341
        %v364 = vcombine.high %v348, %v348
        %v365 = vcombine.high %v355, %v355
        %v366 = vcombine.high %v362, %v362
        %v367 = vcombine.high %v191, %v191
        %v369 = vunpack.c.l.s4 1966171168
        %v370 = vunpack.c.0.s8 %v369
        %v371 = vlaneseq
        %v372 = vshrl.u32 %v371, 7
        %v373 = vsub.s32 %v370, %v372
        %v374 = vrot.slane %v191, %v373
        %v376 = vunpack.c.l.s4 1966171168
        %v377 = vunpack.c.0.s8 %v376
        %v378 = vlaneseq
        %v379 = vshrl.u32 %v378, 7
        %v380 = vsub.s32 %v377, %v379
        %v381 = vrot.slane %v367, %v380
        %v382 = vcombine.high %v374, %v374
        %v383 = vcombine.high %v381, %v381
        %v385 = vunpack.c.l.s4 1966171168
        %v386 = vunpack.c.0.s8 %v385
        %v387 = vlaneseq
        %v388 = vshrl.u32 %v387, 7
        %v389 = vsub.s32 %v386, %v388
        %v390 = vrot.slane %v374, %v389
        %v392 = vunpack.c.l.s4 1966171168
        %v393 = vunpack.c.0.s8 %v392
        %v394 = vlaneseq
        %v395 = vshrl.u32 %v394, 7
        %v396 = vsub.s32 %v393, %v395
        %v397 = vrot.slane %v381, %v396
        %v399 = vunpack.c.l.s4 1966171168
        %v400 = vunpack.c.0.s8 %v399
        %v401 = vlaneseq
        %v402 = vshrl.u32 %v401, 7
        %v403 = vsub.s32 %v400, %v402
        %v404 = vrot.slane %v382, %v403
        %v406 = vunpack.c.l.s4 1966171168
        %v407 = vunpack.c.0.s8 %v406
        %v408 = vlaneseq
        %v409 = vshrl.u32 %v408, 7
        %v410 = vsub.s32 %v407, %v409
        %v411 = vrot.slane %v383, %v410
        %v412 = vcombine.high %v390, %v390
        %v413 = vcombine.high %v397, %v397
        %v414 = vcombine.high %v404, %v404
        %v415 = vcombine.high %v411, %v411
        %v416 = vcombine.high %v192, %v192
        %v418 = vunpack.c.l.s4 1966171168
        %v419 = vunpack.c.0.s8 %v418
        %v420 = vlaneseq
        %v421 = vshrl.u32 %v420, 7
        %v422 = vsub.s32 %v419, %v421
        %v423 = vrot.slane %v192, %v422
        %v425 = vunpack.c.l.s4 1966171168
        %v426 = vunpack.c.0.s8 %v425
        %v427 = vlaneseq
        %v428 = vshrl.u32 %v427, 7
        %v429 = vsub.s32 %v426, %v428
        %v430 = vrot.slane %v416, %v429
        %v431 = vcombine.high %v423, %v423
        %v432 = vcombine.high %v430, %v430
        %v434 = vunpack.c.l.s4 1966171168
        %v435 = vunpack.c.0.s8 %v434
        %v436 = vlaneseq
        %v437 = vshrl.u32 %v436, 7
        %v438 = vsub.s32 %v435, %v437
        %v439 = vrot.slane %v423, %v438
        %v441 = vunpack.c.l.s4 1966171168
        %v442 = vunpack.c.0.s8 %v441
        %v443 = vlaneseq
        %v444 = vshrl.u32 %v443, 7
        %v445 = vsub.s32 %v442, %v444
        %v446 = vrot.slane %v430, %v445
        %v448 = vunpack.c.l.s4 1966171168
        %v449 = vunpack.c.0.s8 %v448
        %v450 = vlaneseq
        %v451 = vshrl.u32 %v450, 7
        %v452 = vsub.s32 %v449, %v451
        %v453 = vrot.slane %v431, %v452
        %v455 = vunpack.c.l.s4 1966171168
        %v456 = vunpack.c.0.s8 %v455
        %v457 = vlaneseq
        %v458 = vshrl.u32 %v457, 7
        %v459 = vsub.s32 %v456, %v458
        %v460 = vrot.slane %v432, %v459
        %v461 = vcombine.high %v439, %v439
        %v462 = vcombine.high %v446, %v446
        %v463 = vcombine.high %v453, %v453
        %v464 = vcombine.high %v460, %v460
        %v465 = vcombine.high %v193, %v193
        %v467 = vunpack.c.l.s4 1966171168
        %v468 = vunpack.c.0.s8 %v467
        %v469 = vlaneseq
        %v470 = vshrl.u32 %v469, 7
        %v471 = vsub.s32 %v468, %v470
        %v472 = vrot.slane %v193, %v471
        %v474 = vunpack.c.l.s4 1966171168
        %v475 = vunpack.c.0.s8 %v474
        %v476 = vlaneseq
        %v477 = vshrl.u32 %v476, 7
        %v478 = vsub.s32 %v475, %v477
        %v479 = vrot.slane %v465, %v478
        %v480 = vcombine.high %v472, %v472
        %v481 = vcombine.high %v479, %v479
        %v483 = vunpack.c.l.s4 1966171168
        %v484 = vunpack.c.0.s8 %v483
        %v485 = vlaneseq
        %v486 = vshrl.u32 %v485, 7
        %v487 = vsub.s32 %v484, %v486
        %v488 = vrot.slane %v472, %v487
        %v490 = vunpack.c.l.s4 1966171168
        %v491 = vunpack.c.0.s8 %v490
        %v492 = vlaneseq
        %v493 = vshrl.u32 %v492, 7
        %v494 = vsub.s32 %v491, %v493
        %v495 = vrot.slane %v479, %v494
        %v497 = vunpack.c.l.s4 1966171168
        %v498 = vunpack.c.0.s8 %v497
        %v499 = vlaneseq
        %v500 = vshrl.u32 %v499, 7
        %v501 = vsub.s32 %v498, %v500
        %v502 = vrot.slane %v480, %v501
        %v504 = vunpack.c.l.s4 1966171168
        %v505 = vunpack.c.0.s8 %v504
        %v506 = vlaneseq
        %v507 = vshrl.u32 %v506, 7
        %v508 = vsub.s32 %v505, %v507
        %v509 = vrot.slane %v481, %v508
        %v510 = vcombine.high %v488, %v488
        %v511 = vcombine.high %v495, %v495
        %v512 = vcombine.high %v502, %v502
        %v513 = vcombine.high %v509, %v509
        %v514 = vcombine.high %v194, %v194
        %v516 = vunpack.c.l.s4 1966171168
        %v517 = vunpack.c.0.s8 %v516
        %v518 = vlaneseq
        %v519 = vshrl.u32 %v518, 7
        %v520 = vsub.s32 %v517, %v519
        %v521 = vrot.slane %v194, %v520
        %v523 = vunpack.c.l.s4 1966171168
        %v524 = vunpack.c.0.s8 %v523
        %v525 = vlaneseq
        %v526 = vshrl.u32 %v525, 7
        %v527 = vsub.s32 %v524, %v526
        %v528 = vrot.slane %v514, %v527
        %v529 = vcombine.high %v521, %v521
        %v530 = vcombine.high %v528, %v528
        %v532 = vunpack.c.l.s4 1966171168
        %v533 = vunpack.c.0.s8 %v532
        %v534 = vlaneseq
        %v535 = vshrl.u32 %v534, 7
        %v536 = vsub.s32 %v533, %v535
        %v537 = vrot.slane %v521, %v536
        %v539 = vunpack.c.l.s4 1966171168
        %v540 = vunpack.c.0.s8 %v539
        %v541 = vlaneseq
        %v542 = vshrl.u32 %v541, 7
        %v543 = vsub.s32 %v540, %v542
        %v544 = vrot.slane %v528, %v543
        %v546 = vunpack.c.l.s4 1966171168
        %v547 = vunpack.c.0.s8 %v546
        %v548 = vlaneseq
        %v549 = vshrl.u32 %v548, 7
        %v550 = vsub.s32 %v547, %v549
        %v551 = vrot.slane %v529, %v550
        %v553 = vunpack.c.l.s4 1966171168
        %v554 = vunpack.c.0.s8 %v553
        %v555 = vlaneseq
        %v556 = vshrl.u32 %v555, 7
        %v557 = vsub.s32 %v554, %v556
        %v558 = vrot.slane %v530, %v557
        %v559 = vcombine.high %v537, %v537
        %v560 = vcombine.high %v544, %v544
        %v561 = vcombine.high %v551, %v551
        %v562 = vcombine.high %v558, %v558
        %v563 = vcombine.high %v195, %v195
        %v565 = vunpack.c.l.s4 1966171168
        %v566 = vunpack.c.0.s8 %v565
        %v567 = vlaneseq
        %v568 = vshrl.u32 %v567, 7
        %v569 = vsub.s32 %v566, %v568
        %v570 = vrot.slane %v195, %v569
        %v572 = vunpack.c.l.s4 1966171168
        %v573 = vunpack.c.0.s8 %v572
        %v574 = vlaneseq
        %v575 = vshrl.u32 %v574, 7
        %v576 = vsub.s32 %v573, %v575
        %v577 = vrot.slane %v563, %v576
        %v578 = vcombine.high %v570, %v570
        %v579 = vcombine.high %v577, %v577
        %v581 = vunpack.c.l.s4 1966171168
        %v582 = vunpack.c.0.s8 %v581
        %v583 = vlaneseq
        %v584 = vshrl.u32 %v583, 7
        %v585 = vsub.s32 %v582, %v584
        %v586 = vrot.slane %v570, %v585
        %v588 = vunpack.c.l.s4 1966171168
        %v589 = vunpack.c.0.s8 %v588
        %v590 = vlaneseq
        %v591 = vshrl.u32 %v590, 7
        %v592 = vsub.s32 %v589, %v591
        %v593 = vrot.slane %v577, %v592
        %v595 = vunpack.c.l.s4 1966171168
        %v596 = vunpack.c.0.s8 %v595
        %v597 = vlaneseq
        %v598 = vshrl.u32 %v597, 7
        %v599 = vsub.s32 %v596, %v598
        %v600 = vrot.slane %v578, %v599
        %v602 = vunpack.c.l.s4 1966171168
        %v603 = vunpack.c.0.s8 %v602
        %v604 = vlaneseq
        %v605 = vshrl.u32 %v604, 7
        %v606 = vsub.s32 %v603, %v605
        %v607 = vrot.slane %v579, %v606
        %v608 = vcombine.high %v586, %v586
        %v609 = vcombine.high %v593, %v593
        %v610 = vcombine.high %v600, %v600
        %v611 = vcombine.high %v607, %v607
        %v612 = vcombine.high %v196, %v196
        %v614 = vunpack.c.l.s4 1966171168
        %v615 = vunpack.c.0.s8 %v614
        %v616 = vlaneseq
        %v617 = vshrl.u32 %v616, 7
        %v618 = vsub.s32 %v615, %v617
        %v619 = vrot.slane %v196, %v618
        %v621 = vunpack.c.l.s4 1966171168
        %v622 = vunpack.c.0.s8 %v621
        %v623 = vlaneseq
        %v624 = vshrl.u32 %v623, 7
        %v625 = vsub.s32 %v622, %v624
        %v626 = vrot.slane %v612, %v625
        %v627 = vcombine.high %v619, %v619
        %v628 = vcombine.high %v626, %v626
        %v630 = vunpack.c.l.s4 1966171168
        %v631 = vunpack.c.0.s8 %v630
        %v632 = vlaneseq
        %v633 = vshrl.u32 %v632, 7
        %v634 = vsub.s32 %v631, %v633
        %v635 = vrot.slane %v619, %v634
        %v637 = vunpack.c.l.s4 1966171168
        %v638 = vunpack.c.0.s8 %v637
        %v639 = vlaneseq
        %v640 = vshrl.u32 %v639, 7
        %v641 = vsub.s32 %v638, %v640
        %v642 = vrot.slane %v626, %v641
        %v644 = vunpack.c.l.s4 1966171168
        %v645 = vunpack.c.0.s8 %v644
        %v646 = vlaneseq
        %v647 = vshrl.u32 %v646, 7
        %v648 = vsub.s32 %v645, %v647
        %v649 = vrot.slane %v627, %v648
        %v651 = vunpack.c.l.s4 1966171168
        %v652 = vunpack.c.0.s8 %v651
        %v653 = vlaneseq
        %v654 = vshrl.u32 %v653, 7
        %v655 = vsub.s32 %v652, %v654
        %v656 = vrot.slane %v628, %v655
        %v657 = vcombine.high %v635, %v635
        %v658 = vcombine.high %v642, %v642
        %v659 = vcombine.high %v649, %v649
        %v660 = vcombine.high %v656, %v656
        %v661 = vcombine.high %v197, %v197
        %v663 = vunpack.c.l.s4 1966171168
        %v664 = vunpack.c.0.s8 %v663
        %v665 = vlaneseq
        %v666 = vshrl.u32 %v665, 7
        %v667 = vsub.s32 %v664, %v666
        %v668 = vrot.slane %v197, %v667
        %v670 = vunpack.c.l.s4 1966171168
        %v671 = vunpack.c.0.s8 %v670
        %v672 = vlaneseq
        %v673 = vshrl.u32 %v672, 7
        %v674 = vsub.s32 %v671, %v673
        %v675 = vrot.slane %v661, %v674
        %v676 = vcombine.high %v668, %v668
        %v677 = vcombine.high %v675, %v675
        %v679 = vunpack.c.l.s4 1966171168
        %v680 = vunpack.c.0.s8 %v679
        %v681 = vlaneseq
        %v682 = vshrl.u32 %v681, 7
        %v683 = vsub.s32 %v680, %v682
        %v684 = vrot.slane %v668, %v683
        %v686 = vunpack.c.l.s4 1966171168
        %v687 = vunpack.c.0.s8 %v686
        %v688 = vlaneseq
        %v689 = vshrl.u32 %v688, 7
        %v690 = vsub.s32 %v687, %v689
        %v691 = vrot.slane %v675, %v690
        %v693 = vunpack.c.l.s4 1966171168
        %v694 = vunpack.c.0.s8 %v693
        %v695 = vlaneseq
        %v696 = vshrl.u32 %v695, 7
        %v697 = vsub.s32 %v694, %v696
        %v698 = vrot.slane %v676, %v697
        %v700 = vunpack.c.l.s4 1966171168
        %v701 = vunpack.c.0.s8 %v700
        %v702 = vlaneseq
        %v703 = vshrl.u32 %v702, 7
        %v704 = vsub.s32 %v701, %v703
        %v705 = vrot.slane %v677, %v704
        %v706 = vcombine.high %v684, %v684
        %v707 = vcombine.high %v691, %v691
        %v708 = vcombine.high %v698, %v698
        %v709 = vcombine.high %v705, %v705
        %v710 = vcombine.high %v198, %v198
        %v712 = vunpack.c.l.s4 1966171168
        %v713 = vunpack.c.0.s8 %v712
        %v714 = vlaneseq
        %v715 = vshrl.u32 %v714, 7
        %v716 = vsub.s32 %v713, %v715
        %v717 = vrot.slane %v198, %v716
        %v719 = vunpack.c.l.s4 1966171168
        %v720 = vunpack.c.0.s8 %v719
        %v721 = vlaneseq
        %v722 = vshrl.u32 %v721, 7
        %v723 = vsub.s32 %v720, %v722
        %v724 = vrot.slane %v710, %v723
        %v725 = vcombine.high %v717, %v717
        %v726 = vcombine.high %v724, %v724
        %v728 = vunpack.c.l.s4 1966171168
        %v729 = vunpack.c.0.s8 %v728
        %v730 = vlaneseq
        %v731 = vshrl.u32 %v730, 7
        %v732 = vsub.s32 %v729, %v731
        %v733 = vrot.slane %v717, %v732
        %v735 = vunpack.c.l.s4 1966171168
        %v736 = vunpack.c.0.s8 %v735
        %v737 = vlaneseq
        %v738 = vshrl.u32 %v737, 7
        %v739 = vsub.s32 %v736, %v738
        %v740 = vrot.slane %v724, %v739
        %v742 = vunpack.c.l.s4 1966171168
        %v743 = vunpack.c.0.s8 %v742
        %v744 = vlaneseq
        %v745 = vshrl.u32 %v744, 7
        %v746 = vsub.s32 %v743, %v745
        %v747 = vrot.slane %v725, %v746
        %v749 = vunpack.c.l.s4 1966171168
        %v750 = vunpack.c.0.s8 %v749
        %v751 = vlaneseq
        %v752 = vshrl.u32 %v751, 7
        %v753 = vsub.s32 %v750, %v752
        %v754 = vrot.slane %v726, %v753
        %v755 = vcombine.high %v733, %v733
        %v756 = vcombine.high %v740, %v740
        %v757 = vcombine.high %v747, %v747
        %v758 = vcombine.high %v754, %v754
        %v759 = vcombine.high %v199, %v199
        %v761 = vunpack.c.l.s4 1966171168
        %v762 = vunpack.c.0.s8 %v761
        %v763 = vlaneseq
        %v764 = vshrl.u32 %v763, 7
        %v765 = vsub.s32 %v762, %v764
        %v766 = vrot.slane %v199, %v765
        %v768 = vunpack.c.l.s4 1966171168
        %v769 = vunpack.c.0.s8 %v768
        %v770 = vlaneseq
        %v771 = vshrl.u32 %v770, 7
        %v772 = vsub.s32 %v769, %v771
        %v773 = vrot.slane %v759, %v772
        %v774 = vcombine.high %v766, %v766
        %v775 = vcombine.high %v773, %v773
        %v777 = vunpack.c.l.s4 1966171168
        %v778 = vunpack.c.0.s8 %v777
        %v779 = vlaneseq
        %v780 = vshrl.u32 %v779, 7
        %v781 = vsub.s32 %v778, %v780
        %v782 = vrot.slane %v766, %v781
        %v784 = vunpack.c.l.s4 1966171168
        %v785 = vunpack.c.0.s8 %v784
        %v786 = vlaneseq
        %v787 = vshrl.u32 %v786, 7
        %v788 = vsub.s32 %v785, %v787
        %v789 = vrot.slane %v773, %v788
        %v791 = vunpack.c.l.s4 1966171168
        %v792 = vunpack.c.0.s8 %v791
        %v793 = vlaneseq
        %v794 = vshrl.u32 %v793, 7
        %v795 = vsub.s32 %v792, %v794
        %v796 = vrot.slane %v774, %v795
        %v798 = vunpack.c.l.s4 1966171168
        %v799 = vunpack.c.0.s8 %v798
        %v800 = vlaneseq
        %v801 = vshrl.u32 %v800, 7
        %v802 = vsub.s32 %v799, %v801
        %v803 = vrot.slane %v775, %v802
        %v804 = vcombine.high %v782, %v782
        %v805 = vcombine.high %v789, %v789
        %v806 = vcombine.high %v796, %v796
        %v807 = vcombine.high %v803, %v803
        %v808 = vcombine.high %v200, %v200
        %v810 = vunpack.c.l.s4 1966171168
        %v811 = vunpack.c.0.s8 %v810
        %v812 = vlaneseq
        %v813 = vshrl.u32 %v812, 7
        %v814 = vsub.s32 %v811, %v813
        %v815 = vrot.slane %v200, %v814
        %v817 = vunpack.c.l.s4 1966171168
        %v818 = vunpack.c.0.s8 %v817
        %v819 = vlaneseq
        %v820 = vshrl.u32 %v819, 7
        %v821 = vsub.s32 %v818, %v820
        %v822 = vrot.slane %v808, %v821
        %v823 = vcombine.high %v815, %v815
        %v824 = vcombine.high %v822, %v822
        %v826 = vunpack.c.l.s4 1966171168
        %v827 = vunpack.c.0.s8 %v826
        %v828 = vlaneseq
        %v829 = vshrl.u32 %v828, 7
        %v830 = vsub.s32 %v827, %v829
        %v831 = vrot.slane %v815, %v830
        %v833 = vunpack.c.l.s4 1966171168
        %v834 = vunpack.c.0.s8 %v833
        %v835 = vlaneseq
        %v836 = vshrl.u32 %v835, 7
        %v837 = vsub.s32 %v834, %v836
        %v838 = vrot.slane %v822, %v837
        %v840 = vunpack.c.l.s4 1966171168
        %v841 = vunpack.c.0.s8 %v840
        %v842 = vlaneseq
        %v843 = vshrl.u32 %v842, 7
        %v844 = vsub.s32 %v841, %v843
        %v845 = vrot.slane %v823, %v844
        %v847 = vunpack.c.l.s4 1966171168
        %v848 = vunpack.c.0.s8 %v847
        %v849 = vlaneseq
        %v850 = vshrl.u32 %v849, 7
        %v851 = vsub.s32 %v848, %v850
        %v852 = vrot.slane %v824, %v851
        %v853 = vcombine.high %v831, %v831
        %v854 = vcombine.high %v838, %v838
        %v855 = vcombine.high %v845, %v845
        %v856 = vcombine.high %v852, %v852
        %v857 = vcombine.high %v201, %v201
        %v859 = vunpack.c.l.s4 1966171168
        %v860 = vunpack.c.0.s8 %v859
        %v861 = vlaneseq
        %v862 = vshrl.u32 %v861, 7
        %v863 = vsub.s32 %v860, %v862
        %v864 = vrot.slane %v201, %v863
        %v866 = vunpack.c.l.s4 1966171168
        %v867 = vunpack.c.0.s8 %v866
        %v868 = vlaneseq
        %v869 = vshrl.u32 %v868, 7
        %v870 = vsub.s32 %v867, %v869
        %v871 = vrot.slane %v857, %v870
        %v872 = vcombine.high %v864, %v864
        %v873 = vcombine.high %v871, %v871
        %v875 = vunpack.c.l.s4 1966171168
        %v876 = vunpack.c.0.s8 %v875
        %v877 = vlaneseq
        %v878 = vshrl.u32 %v877, 7
        %v879 = vsub.s32 %v876, %v878
        %v880 = vrot.slane %v864, %v879
        %v882 = vunpack.c.l.s4 1966171168
        %v883 = vunpack.c.0.s8 %v882
        %v884 = vlaneseq
        %v885 = vshrl.u32 %v884, 7
        %v886 = vsub.s32 %v883, %v885
        %v887 = vrot.slane %v871, %v886
        %v889 = vunpack.c.l.s4 1966171168
        %v890 = vunpack.c.0.s8 %v889
        %v891 = vlaneseq
        %v892 = vshrl.u32 %v891, 7
        %v893 = vsub.s32 %v890, %v892
        %v894 = vrot.slane %v872, %v893
        %v896 = vunpack.c.l.s4 1966171168
        %v897 = vunpack.c.0.s8 %v896
        %v898 = vlaneseq
        %v899 = vshrl.u32 %v898, 7
        %v900 = vsub.s32 %v897, %v899
        %v901 = vrot.slane %v873, %v900
        %v902 = vcombine.high %v880, %v880
        %v903 = vcombine.high %v887, %v887
        %v904 = vcombine.high %v894, %v894
        %v905 = vcombine.high %v901, %v901
        %v906 = vcombine.high %v202, %v202
        %v908 = vunpack.c.l.s4 1966171168
        %v909 = vunpack.c.0.s8 %v908
        %v910 = vlaneseq
        %v911 = vshrl.u32 %v910, 7
        %v912 = vsub.s32 %v909, %v911
        %v913 = vrot.slane %v202, %v912
        %v915 = vunpack.c.l.s4 1966171168
        %v916 = vunpack.c.0.s8 %v915
        %v917 = vlaneseq
        %v918 = vshrl.u32 %v917, 7
        %v919 = vsub.s32 %v916, %v918
        %v920 = vrot.slane %v906, %v919
        %v921 = vcombine.high %v913, %v913
        %v922 = vcombine.high %v920, %v920
        %v924 = vunpack.c.l.s4 1966171168
        %v925 = vunpack.c.0.s8 %v924
        %v926 = vlaneseq
        %v927 = vshrl.u32 %v926, 7
        %v928 = vsub.s32 %v925, %v927
        %v929 = vrot.slane %v913, %v928
        %v931 = vunpack.c.l.s4 1966171168
        %v932 = vunpack.c.0.s8 %v931
        %v933 = vlaneseq
        %v934 = vshrl.u32 %v933, 7
        %v935 = vsub.s32 %v932, %v934
        %v936 = vrot.slane %v920, %v935
        %v938 = vunpack.c.l.s4 1966171168
        %v939 = vunpack.c.0.s8 %v938
        %v940 = vlaneseq
        %v941 = vshrl.u32 %v940, 7
        %v942 = vsub.s32 %v939, %v941
        %v943 = vrot.slane %v921, %v942
        %v945 = vunpack.c.l.s4 1966171168
        %v946 = vunpack.c.0.s8 %v945
        %v947 = vlaneseq
        %v948 = vshrl.u32 %v947, 7
        %v949 = vsub.s32 %v946, %v948
        %v950 = vrot.slane %v922, %v949
        %v951 = vcombine.high %v929, %v929
        %v952 = vcombine.high %v936, %v936
        %v953 = vcombine.high %v943, %v943
        %v954 = vcombine.high %v950, %v950
        %v955 = vcombine.high %v203, %v203
        %v957 = vunpack.c.l.s4 1966171168
        %v958 = vunpack.c.0.s8 %v957
        %v959 = vlaneseq
        %v960 = vshrl.u32 %v959, 7
        %v961 = vsub.s32 %v958, %v960
        %v962 = vrot.slane %v203, %v961
        %v964 = vunpack.c.l.s4 1966171168
        %v965 = vunpack.c.0.s8 %v964
        %v966 = vlaneseq
        %v967 = vshrl.u32 %v966, 7
        %v968 = vsub.s32 %v965, %v967
        %v969 = vrot.slane %v955, %v968
        %v970 = vcombine.high %v962, %v962
        %v971 = vcombine.high %v969, %v969
        %v973 = vunpack.c.l.s4 1966171168
        %v974 = vunpack.c.0.s8 %v973
        %v975 = vlaneseq
        %v976 = vshrl.u32 %v975, 7
        %v977 = vsub.s32 %v974, %v976
        %v978 = vrot.slane %v962, %v977
        %v980 = vunpack.c.l.s4 1966171168
        %v981 = vunpack.c.0.s8 %v980
        %v982 = vlaneseq
        %v983 = vshrl.u32 %v982, 7
        %v984 = vsub.s32 %v981, %v983
        %v985 = vrot.slane %v969, %v984
        %v987 = vunpack.c.l.s4 1966171168
        %v988 = vunpack.c.0.s8 %v987
        %v989 = vlaneseq
        %v990 = vshrl.u32 %v989, 7
        %v991 = vsub.s32 %v988, %v990
        %v992 = vrot.slane %v970, %v991
        %v994 = vunpack.c.l.s4 1966171168
        %v995 = vunpack.c.0.s8 %v994
        %v996 = vlaneseq
        %v997 = vshrl.u32 %v996, 7
        %v998 = vsub.s32 %v995, %v997
        %v999 = vrot.slane %v971, %v998
        %v1000 = vcombine.high %v978, %v978
        %v1001 = vcombine.high %v985, %v985
        %v1002 = vcombine.high %v992, %v992
        %v1003 = vcombine.high %v999, %v999
        %v1004 = vcombine.high %v204, %v204
        %v1006 = vunpack.c.l.s4 1966171168
        %v1007 = vunpack.c.0.s8 %v1006
        %v1008 = vlaneseq
        %v1009 = vshrl.u32 %v1008, 7
        %v1010 = vsub.s32 %v1007, %v1009
        %v1011 = vrot.slane %v204, %v1010
        %v1013 = vunpack.c.l.s4 1966171168
        %v1014 = vunpack.c.0.s8 %v1013
        %v1015 = vlaneseq
        %v1016 = vshrl.u32 %v1015, 7
        %v1017 = vsub.s32 %v1014, %v1016
        %v1018 = vrot.slane %v1004, %v1017
        %v1019 = vcombine.high %v1011, %v1011
        %v1020 = vcombine.high %v1018, %v1018
        %v1022 = vunpack.c.l.s4 1966171168
        %v1023 = vunpack.c.0.s8 %v1022
        %v1024 = vlaneseq
        %v1025 = vshrl.u32 %v1024, 7
        %v1026 = vsub.s32 %v1023, %v1025
        %v1027 = vrot.slane %v1011, %v1026
        %v1029 = vunpack.c.l.s4 1966171168
        %v1030 = vunpack.c.0.s8 %v1029
        %v1031 = vlaneseq
        %v1032 = vshrl.u32 %v1031, 7
        %v1033 = vsub.s32 %v1030, %v1032
        %v1034 = vrot.slane %v1018, %v1033
        %v1036 = vunpack.c.l.s4 1966171168
        %v1037 = vunpack.c.0.s8 %v1036
        %v1038 = vlaneseq
        %v1039 = vshrl.u32 %v1038, 7
        %v1040 = vsub.s32 %v1037, %v1039
        %v1041 = vrot.slane %v1019, %v1040
        %v1043 = vunpack.c.l.s4 1966171168
        %v1044 = vunpack.c.0.s8 %v1043
        %v1045 = vlaneseq
        %v1046 = vshrl.u32 %v1045, 7
        %v1047 = vsub.s32 %v1044, %v1046
        %v1048 = vrot.slane %v1020, %v1047
        %v1049 = vcombine.high %v1027, %v1027
        %v1050 = vcombine.high %v1034, %v1034
        %v1051 = vcombine.high %v1041, %v1041
        %v1052 = vcombine.high %v1048, %v1048
        %v1053 = vcombine.high %v221, %v221
        %v1055 = vunpack.c.l.s4 1966171168
        %v1056 = vunpack.c.0.s8 %v1055
        %v1057 = vlaneseq
        %v1058 = vshrl.u32 %v1057, 7
        %v1059 = vsub.s32 %v1056, %v1058
        %v1060 = vrot.slane %v221, %v1059
        %v1062 = vunpack.c.l.s4 1966171168
        %v1063 = vunpack.c.0.s8 %v1062
        %v1064 = vlaneseq
        %v1065 = vshrl.u32 %v1064, 7
        %v1066 = vsub.s32 %v1063, %v1065
        %v1067 = vrot.slane %v1053, %v1066
        %v1068 = vcombine.high %v1060, %v1060
        %v1069 = vcombine.high %v1067, %v1067
        %v1071 = vunpack.c.l.s4 1966171168
        %v1072 = vunpack.c.0.s8 %v1071
        %v1073 = vlaneseq
        %v1074 = vshrl.u32 %v1073, 7
        %v1075 = vsub.s32 %v1072, %v1074
        %v1076 = vrot.slane %v1060, %v1075
        %v1078 = vunpack.c.l.s4 1966171168
        %v1079 = vunpack.c.0.s8 %v1078
        %v1080 = vlaneseq
        %v1081 = vshrl.u32 %v1080, 7
        %v1082 = vsub.s32 %v1079, %v1081
        %v1083 = vrot.slane %v1067, %v1082
        %v1085 = vunpack.c.l.s4 1966171168
        %v1086 = vunpack.c.0.s8 %v1085
        %v1087 = vlaneseq
        %v1088 = vshrl.u32 %v1087, 7
        %v1089 = vsub.s32 %v1086, %v1088
        %v1090 = vrot.slane %v1068, %v1089
        %v1092 = vunpack.c.l.s4 1966171168
        %v1093 = vunpack.c.0.s8 %v1092
        %v1094 = vlaneseq
        %v1095 = vshrl.u32 %v1094, 7
        %v1096 = vsub.s32 %v1093, %v1095
        %v1097 = vrot.slane %v1069, %v1096
        %v1098 = vcombine.high %v1076, %v1076
        %v1099 = vcombine.high %v1083, %v1083
        %v1100 = vcombine.high %v1090, %v1090
        %v1101 = vcombine.high %v1097, %v1097
        %v1102 = vcombine.high %v222, %v222
        %v1104 = vunpack.c.l.s4 1966171168
        %v1105 = vunpack.c.0.s8 %v1104
        %v1106 = vlaneseq
        %v1107 = vshrl.u32 %v1106, 7
        %v1108 = vsub.s32 %v1105, %v1107
        %v1109 = vrot.slane %v222, %v1108
        %v1111 = vunpack.c.l.s4 1966171168
        %v1112 = vunpack.c.0.s8 %v1111
        %v1113 = vlaneseq
        %v1114 = vshrl.u32 %v1113, 7
        %v1115 = vsub.s32 %v1112, %v1114
        %v1116 = vrot.slane %v1102, %v1115
        %v1117 = vcombine.high %v1109, %v1109
        %v1118 = vcombine.high %v1116, %v1116
        %v1120 = vunpack.c.l.s4 1966171168
        %v1121 = vunpack.c.0.s8 %v1120
        %v1122 = vlaneseq
        %v1123 = vshrl.u32 %v1122, 7
        %v1124 = vsub.s32 %v1121, %v1123
        %v1125 = vrot.slane %v1109, %v1124
        %v1127 = vunpack.c.l.s4 1966171168
        %v1128 = vunpack.c.0.s8 %v1127
        %v1129 = vlaneseq
        %v1130 = vshrl.u32 %v1129, 7
        %v1131 = vsub.s32 %v1128, %v1130
        %v1132 = vrot.slane %v1116, %v1131
        %v1134 = vunpack.c.l.s4 1966171168
        %v1135 = vunpack.c.0.s8 %v1134
        %v1136 = vlaneseq
        %v1137 = vshrl.u32 %v1136, 7
        %v1138 = vsub.s32 %v1135, %v1137
        %v1139 = vrot.slane %v1117, %v1138
        %v1141 = vunpack.c.l.s4 1966171168
        %v1142 = vunpack.c.0.s8 %v1141
        %v1143 = vlaneseq
        %v1144 = vshrl.u32 %v1143, 7
        %v1145 = vsub.s32 %v1142, %v1144
        %v1146 = vrot.slane %v1118, %v1145
        %v1147 = vcombine.high %v1125, %v1125
        %v1148 = vcombine.high %v1132, %v1132
        %v1149 = vcombine.high %v1139, %v1139
        %v1150 = vcombine.high %v1146, %v1146
        %v1151 = vcombine.high %v223, %v223
        %v1153 = vunpack.c.l.s4 1966171168
        %v1154 = vunpack.c.0.s8 %v1153
        %v1155 = vlaneseq
        %v1156 = vshrl.u32 %v1155, 7
        %v1157 = vsub.s32 %v1154, %v1156
        %v1158 = vrot.slane %v223, %v1157
        %v1160 = vunpack.c.l.s4 1966171168
        %v1161 = vunpack.c.0.s8 %v1160
        %v1162 = vlaneseq
        %v1163 = vshrl.u32 %v1162, 7
        %v1164 = vsub.s32 %v1161, %v1163
        %v1165 = vrot.slane %v1151, %v1164
        %v1166 = vcombine.high %v1158, %v1158
        %v1167 = vcombine.high %v1165, %v1165
        %v1169 = vunpack.c.l.s4 1966171168
        %v1170 = vunpack.c.0.s8 %v1169
        %v1171 = vlaneseq
        %v1172 = vshrl.u32 %v1171, 7
        %v1173 = vsub.s32 %v1170, %v1172
        %v1174 = vrot.slane %v1158, %v1173
        %v1176 = vunpack.c.l.s4 1966171168
        %v1177 = vunpack.c.0.s8 %v1176
        %v1178 = vlaneseq
        %v1179 = vshrl.u32 %v1178, 7
        %v1180 = vsub.s32 %v1177, %v1179
        %v1181 = vrot.slane %v1165, %v1180
        %v1183 = vunpack.c.l.s4 1966171168
        %v1184 = vunpack.c.0.s8 %v1183
        %v1185 = vlaneseq
        %v1186 = vshrl.u32 %v1185, 7
        %v1187 = vsub.s32 %v1184, %v1186
        %v1188 = vrot.slane %v1166, %v1187
        %v1190 = vunpack.c.l.s4 1966171168
        %v1191 = vunpack.c.0.s8 %v1190
        %v1192 = vlaneseq
        %v1193 = vshrl.u32 %v1192, 7
        %v1194 = vsub.s32 %v1191, %v1193
        %v1195 = vrot.slane %v1167, %v1194
        %v1196 = vcombine.high %v1174, %v1174
        %v1197 = vcombine.high %v1181, %v1181
        %v1198 = vcombine.high %v1188, %v1188
        %v1199 = vcombine.high %v1195, %v1195
        %v1200 = vcombine.high %v224, %v224
        %v1202 = vunpack.c.l.s4 1966171168
        %v1203 = vunpack.c.0.s8 %v1202
        %v1204 = vlaneseq
        %v1205 = vshrl.u32 %v1204, 7
        %v1206 = vsub.s32 %v1203, %v1205
        %v1207 = vrot.slane %v224, %v1206
        %v1209 = vunpack.c.l.s4 1966171168
        %v1210 = vunpack.c.0.s8 %v1209
        %v1211 = vlaneseq
        %v1212 = vshrl.u32 %v1211, 7
        %v1213 = vsub.s32 %v1210, %v1212
        %v1214 = vrot.slane %v1200, %v1213
        %v1215 = vcombine.high %v1207, %v1207
        %v1216 = vcombine.high %v1214, %v1214
        %v1218 = vunpack.c.l.s4 1966171168
        %v1219 = vunpack.c.0.s8 %v1218
        %v1220 = vlaneseq
        %v1221 = vshrl.u32 %v1220, 7
        %v1222 = vsub.s32 %v1219, %v1221
        %v1223 = vrot.slane %v1207, %v1222
        %v1225 = vunpack.c.l.s4 1966171168
        %v1226 = vunpack.c.0.s8 %v1225
        %v1227 = vlaneseq
        %v1228 = vshrl.u32 %v1227, 7
        %v1229 = vsub.s32 %v1226, %v1228
        %v1230 = vrot.slane %v1214, %v1229
        %v1232 = vunpack.c.l.s4 1966171168
        %v1233 = vunpack.c.0.s8 %v1232
        %v1234 = vlaneseq
        %v1235 = vshrl.u32 %v1234, 7
        %v1236 = vsub.s32 %v1233, %v1235
        %v1237 = vrot.slane %v1215, %v1236
        %v1239 = vunpack.c.l.s4 1966171168
        %v1240 = vunpack.c.0.s8 %v1239
        %v1241 = vlaneseq
        %v1242 = vshrl.u32 %v1241, 7
        %v1243 = vsub.s32 %v1240, %v1242
        %v1244 = vrot.slane %v1216, %v1243
        %v1245 = vcombine.high %v1223, %v1223
        %v1246 = vcombine.high %v1230, %v1230
        %v1247 = vcombine.high %v1237, %v1237
        %v1248 = vcombine.high %v1244, %v1244
        %v1249 = vcombine.high %v225, %v225
        %v1251 = vunpack.c.l.s4 1966171168
        %v1252 = vunpack.c.0.s8 %v1251
        %v1253 = vlaneseq
        %v1254 = vshrl.u32 %v1253, 7
        %v1255 = vsub.s32 %v1252, %v1254
        %v1256 = vrot.slane %v225, %v1255
        %v1258 = vunpack.c.l.s4 1966171168
        %v1259 = vunpack.c.0.s8 %v1258
        %v1260 = vlaneseq
        %v1261 = vshrl.u32 %v1260, 7
        %v1262 = vsub.s32 %v1259, %v1261
        %v1263 = vrot.slane %v1249, %v1262
        %v1264 = vcombine.high %v1256, %v1256
        %v1265 = vcombine.high %v1263, %v1263
        %v1267 = vunpack.c.l.s4 1966171168
        %v1268 = vunpack.c.0.s8 %v1267
        %v1269 = vlaneseq
        %v1270 = vshrl.u32 %v1269, 7
        %v1271 = vsub.s32 %v1268, %v1270
        %v1272 = vrot.slane %v1256, %v1271
        %v1274 = vunpack.c.l.s4 1966171168
        %v1275 = vunpack.c.0.s8 %v1274
        %v1276 = vlaneseq
        %v1277 = vshrl.u32 %v1276, 7
        %v1278 = vsub.s32 %v1275, %v1277
        %v1279 = vrot.slane %v1263, %v1278
        %v1281 = vunpack.c.l.s4 1966171168
        %v1282 = vunpack.c.0.s8 %v1281
        %v1283 = vlaneseq
        %v1284 = vshrl.u32 %v1283, 7
        %v1285 = vsub.s32 %v1282, %v1284
        %v1286 = vrot.slane %v1264, %v1285
        %v1288 = vunpack.c.l.s4 1966171168
        %v1289 = vunpack.c.0.s8 %v1288
        %v1290 = vlaneseq
        %v1291 = vshrl.u32 %v1290, 7
        %v1292 = vsub.s32 %v1289, %v1291
        %v1293 = vrot.slane %v1265, %v1292
        %v1294 = vcombine.high %v1272, %v1272
        %v1295 = vcombine.high %v1279, %v1279
        %v1296 = vcombine.high %v1286, %v1286
        %v1297 = vcombine.high %v1293, %v1293
        %v1298 = vcombine.high %v226, %v226
        %v1300 = vunpack.c.l.s4 1966171168
        %v1301 = vunpack.c.0.s8 %v1300
        %v1302 = vlaneseq
        %v1303 = vshrl.u32 %v1302, 7
        %v1304 = vsub.s32 %v1301, %v1303
        %v1305 = vrot.slane %v226, %v1304
        %v1307 = vunpack.c.l.s4 1966171168
        %v1308 = vunpack.c.0.s8 %v1307
        %v1309 = vlaneseq
        %v1310 = vshrl.u32 %v1309, 7
        %v1311 = vsub.s32 %v1308, %v1310
        %v1312 = vrot.slane %v1298, %v1311
        %v1313 = vcombine.high %v1305, %v1305
        %v1314 = vcombine.high %v1312, %v1312
        %v1316 = vunpack.c.l.s4 1966171168
        %v1317 = vunpack.c.0.s8 %v1316
        %v1318 = vlaneseq
        %v1319 = vshrl.u32 %v1318, 7
        %v1320 = vsub.s32 %v1317, %v1319
        %v1321 = vrot.slane %v1305, %v1320
        %v1323 = vunpack.c.l.s4 1966171168
        %v1324 = vunpack.c.0.s8 %v1323
        %v1325 = vlaneseq
        %v1326 = vshrl.u32 %v1325, 7
        %v1327 = vsub.s32 %v1324, %v1326
        %v1328 = vrot.slane %v1312, %v1327
        %v1330 = vunpack.c.l.s4 1966171168
        %v1331 = vunpack.c.0.s8 %v1330
        %v1332 = vlaneseq
        %v1333 = vshrl.u32 %v1332, 7
        %v1334 = vsub.s32 %v1331, %v1333
        %v1335 = vrot.slane %v1313, %v1334
        %v1337 = vunpack.c.l.s4 1966171168
        %v1338 = vunpack.c.0.s8 %v1337
        %v1339 = vlaneseq
        %v1340 = vshrl.u32 %v1339, 7
        %v1341 = vsub.s32 %v1338, %v1340
        %v1342 = vrot.slane %v1314, %v1341
        %v1343 = vcombine.high %v1321, %v1321
        %v1344 = vcombine.high %v1328, %v1328
        %v1345 = vcombine.high %v1335, %v1335
        %v1346 = vcombine.high %v1342, %v1342
        %v1347 = vcombine.high %v227, %v227
        %v1349 = vunpack.c.l.s4 1966171168
        %v1350 = vunpack.c.0.s8 %v1349
        %v1351 = vlaneseq
        %v1352 = vshrl.u32 %v1351, 7
        %v1353 = vsub.s32 %v1350, %v1352
        %v1354 = vrot.slane %v227, %v1353
        %v1356 = vunpack.c.l.s4 1966171168
        %v1357 = vunpack.c.0.s8 %v1356
        %v1358 = vlaneseq
        %v1359 = vshrl.u32 %v1358, 7
        %v1360 = vsub.s32 %v1357, %v1359
        %v1361 = vrot.slane %v1347, %v1360
        %v1362 = vcombine.high %v1354, %v1354
        %v1363 = vcombine.high %v1361, %v1361
        %v1365 = vunpack.c.l.s4 1966171168
        %v1366 = vunpack.c.0.s8 %v1365
        %v1367 = vlaneseq
        %v1368 = vshrl.u32 %v1367, 7
        %v1369 = vsub.s32 %v1366, %v1368
        %v1370 = vrot.slane %v1354, %v1369
        %v1372 = vunpack.c.l.s4 1966171168
        %v1373 = vunpack.c.0.s8 %v1372
        %v1374 = vlaneseq
        %v1375 = vshrl.u32 %v1374, 7
        %v1376 = vsub.s32 %v1373, %v1375
        %v1377 = vrot.slane %v1361, %v1376
        %v1379 = vunpack.c.l.s4 1966171168
        %v1380 = vunpack.c.0.s8 %v1379
        %v1381 = vlaneseq
        %v1382 = vshrl.u32 %v1381, 7
        %v1383 = vsub.s32 %v1380, %v1382
        %v1384 = vrot.slane %v1362, %v1383
        %v1386 = vunpack.c.l.s4 1966171168
        %v1387 = vunpack.c.0.s8 %v1386
        %v1388 = vlaneseq
        %v1389 = vshrl.u32 %v1388, 7
        %v1390 = vsub.s32 %v1387, %v1389
        %v1391 = vrot.slane %v1363, %v1390
        %v1392 = vcombine.high %v1370, %v1370
        %v1393 = vcombine.high %v1377, %v1377
        %v1394 = vcombine.high %v1384, %v1384
        %v1395 = vcombine.high %v1391, %v1391
        %v1396 = vcombine.high %v228, %v228
        %v1398 = vunpack.c.l.s4 1966171168
        %v1399 = vunpack.c.0.s8 %v1398
        %v1400 = vlaneseq
        %v1401 = vshrl.u32 %v1400, 7
        %v1402 = vsub.s32 %v1399, %v1401
        %v1403 = vrot.slane %v228, %v1402
        %v1405 = vunpack.c.l.s4 1966171168
        %v1406 = vunpack.c.0.s8 %v1405
        %v1407 = vlaneseq
        %v1408 = vshrl.u32 %v1407, 7
        %v1409 = vsub.s32 %v1406, %v1408
        %v1410 = vrot.slane %v1396, %v1409
        %v1411 = vcombine.high %v1403, %v1403
        %v1412 = vcombine.high %v1410, %v1410
        %v1414 = vunpack.c.l.s4 1966171168
        %v1415 = vunpack.c.0.s8 %v1414
        %v1416 = vlaneseq
        %v1417 = vshrl.u32 %v1416, 7
        %v1418 = vsub.s32 %v1415, %v1417
        %v1419 = vrot.slane %v1403, %v1418
        %v1421 = vunpack.c.l.s4 1966171168
        %v1422 = vunpack.c.0.s8 %v1421
        %v1423 = vlaneseq
        %v1424 = vshrl.u32 %v1423, 7
        %v1425 = vsub.s32 %v1422, %v1424
        %v1426 = vrot.slane %v1410, %v1425
        %v1428 = vunpack.c.l.s4 1966171168
        %v1429 = vunpack.c.0.s8 %v1428
        %v1430 = vlaneseq
        %v1431 = vshrl.u32 %v1430, 7
        %v1432 = vsub.s32 %v1429, %v1431
        %v1433 = vrot.slane %v1411, %v1432
        %v1435 = vunpack.c.l.s4 1966171168
        %v1436 = vunpack.c.0.s8 %v1435
        %v1437 = vlaneseq
        %v1438 = vshrl.u32 %v1437, 7
        %v1439 = vsub.s32 %v1436, %v1438
        %v1440 = vrot.slane %v1412, %v1439
        %v1441 = vcombine.high %v1419, %v1419
        %v1442 = vcombine.high %v1426, %v1426
        %v1443 = vcombine.high %v1433, %v1433
        %v1444 = vcombine.high %v1440, %v1440
        %v1445 = vcombine.high %v229, %v229
        %v1447 = vunpack.c.l.s4 1966171168
        %v1448 = vunpack.c.0.s8 %v1447
        %v1449 = vlaneseq
        %v1450 = vshrl.u32 %v1449, 7
        %v1451 = vsub.s32 %v1448, %v1450
        %v1452 = vrot.slane %v229, %v1451
        %v1454 = vunpack.c.l.s4 1966171168
        %v1455 = vunpack.c.0.s8 %v1454
        %v1456 = vlaneseq
        %v1457 = vshrl.u32 %v1456, 7
        %v1458 = vsub.s32 %v1455, %v1457
        %v1459 = vrot.slane %v1445, %v1458
        %v1460 = vcombine.high %v1452, %v1452
        %v1461 = vcombine.high %v1459, %v1459
        %v1463 = vunpack.c.l.s4 1966171168
        %v1464 = vunpack.c.0.s8 %v1463
        %v1465 = vlaneseq
        %v1466 = vshrl.u32 %v1465, 7
        %v1467 = vsub.s32 %v1464, %v1466
        %v1468 = vrot.slane %v1452, %v1467
        %v1470 = vunpack.c.l.s4 1966171168
        %v1471 = vunpack.c.0.s8 %v1470
        %v1472 = vlaneseq
        %v1473 = vshrl.u32 %v1472, 7
        %v1474 = vsub.s32 %v1471, %v1473
        %v1475 = vrot.slane %v1459, %v1474
        %v1477 = vunpack.c.l.s4 1966171168
        %v1478 = vunpack.c.0.s8 %v1477
        %v1479 = vlaneseq
        %v1480 = vshrl.u32 %v1479, 7
        %v1481 = vsub.s32 %v1478, %v1480
        %v1482 = vrot.slane %v1460, %v1481
        %v1484 = vunpack.c.l.s4 1966171168
        %v1485 = vunpack.c.0.s8 %v1484
        %v1486 = vlaneseq
        %v1487 = vshrl.u32 %v1486, 7
        %v1488 = vsub.s32 %v1485, %v1487
        %v1489 = vrot.slane %v1461, %v1488
        %v1490 = vcombine.high %v1468, %v1468
        %v1491 = vcombine.high %v1475, %v1475
        %v1492 = vcombine.high %v1482, %v1482
        %v1493 = vcombine.high %v1489, %v1489
        %v1494 = vcombine.high %v230, %v230
        %v1496 = vunpack.c.l.s4 1966171168
        %v1497 = vunpack.c.0.s8 %v1496
        %v1498 = vlaneseq
        %v1499 = vshrl.u32 %v1498, 7
        %v1500 = vsub.s32 %v1497, %v1499
        %v1501 = vrot.slane %v230, %v1500
        %v1503 = vunpack.c.l.s4 1966171168
        %v1504 = vunpack.c.0.s8 %v1503
        %v1505 = vlaneseq
        %v1506 = vshrl.u32 %v1505, 7
        %v1507 = vsub.s32 %v1504, %v1506
        %v1508 = vrot.slane %v1494, %v1507
        %v1509 = vcombine.high %v1501, %v1501
        %v1510 = vcombine.high %v1508, %v1508
        %v1512 = vunpack.c.l.s4 1966171168
        %v1513 = vunpack.c.0.s8 %v1512
        %v1514 = vlaneseq
        %v1515 = vshrl.u32 %v1514, 7
        %v1516 = vsub.s32 %v1513, %v1515
        %v1517 = vrot.slane %v1501, %v1516
        %v1519 = vunpack.c.l.s4 1966171168
        %v1520 = vunpack.c.0.s8 %v1519
        %v1521 = vlaneseq
        %v1522 = vshrl.u32 %v1521, 7
        %v1523 = vsub.s32 %v1520, %v1522
        %v1524 = vrot.slane %v1508, %v1523
        %v1526 = vunpack.c.l.s4 1966171168
        %v1527 = vunpack.c.0.s8 %v1526
        %v1528 = vlaneseq
        %v1529 = vshrl.u32 %v1528, 7
        %v1530 = vsub.s32 %v1527, %v1529
        %v1531 = vrot.slane %v1509, %v1530
        %v1533 = vunpack.c.l.s4 1966171168
        %v1534 = vunpack.c.0.s8 %v1533
        %v1535 = vlaneseq
        %v1536 = vshrl.u32 %v1535, 7
        %v1537 = vsub.s32 %v1534, %v1536
        %v1538 = vrot.slane %v1510, %v1537
        %v1539 = vcombine.high %v1517, %v1517
        %v1540 = vcombine.high %v1524, %v1524
        %v1541 = vcombine.high %v1531, %v1531
        %v1542 = vcombine.high %v1538, %v1538
        %v1543 = vcombine.high %v231, %v231
        %v1545 = vunpack.c.l.s4 1966171168
        %v1546 = vunpack.c.0.s8 %v1545
        %v1547 = vlaneseq
        %v1548 = vshrl.u32 %v1547, 7
        %v1549 = vsub.s32 %v1546, %v1548
        %v1550 = vrot.slane %v231, %v1549
        %v1552 = vunpack.c.l.s4 1966171168
        %v1553 = vunpack.c.0.s8 %v1552
        %v1554 = vlaneseq
        %v1555 = vshrl.u32 %v1554, 7
        %v1556 = vsub.s32 %v1553, %v1555
        %v1557 = vrot.slane %v1543, %v1556
        %v1558 = vcombine.high %v1550, %v1550
        %v1559 = vcombine.high %v1557, %v1557
        %v1561 = vunpack.c.l.s4 1966171168
        %v1562 = vunpack.c.0.s8 %v1561
        %v1563 = vlaneseq
        %v1564 = vshrl.u32 %v1563, 7
        %v1565 = vsub.s32 %v1562, %v1564
        %v1566 = vrot.slane %v1550, %v1565
        %v1568 = vunpack.c.l.s4 1966171168
        %v1569 = vunpack.c.0.s8 %v1568
        %v1570 = vlaneseq
        %v1571 = vshrl.u32 %v1570, 7
        %v1572 = vsub.s32 %v1569, %v1571
        %v1573 = vrot.slane %v1557, %v1572
        %v1575 = vunpack.c.l.s4 1966171168
        %v1576 = vunpack.c.0.s8 %v1575
        %v1577 = vlaneseq
        %v1578 = vshrl.u32 %v1577, 7
        %v1579 = vsub.s32 %v1576, %v1578
        %v1580 = vrot.slane %v1558, %v1579
        %v1582 = vunpack.c.l.s4 1966171168
        %v1583 = vunpack.c.0.s8 %v1582
        %v1584 = vlaneseq
        %v1585 = vshrl.u32 %v1584, 7
        %v1586 = vsub.s32 %v1583, %v1585
        %v1587 = vrot.slane %v1559, %v1586
        %v1588 = vcombine.high %v1566, %v1566
        %v1589 = vcombine.high %v1573, %v1573
        %v1590 = vcombine.high %v1580, %v1580
        %v1591 = vcombine.high %v1587, %v1587
        %v1592 = vcombine.high %v232, %v232
        %v1594 = vunpack.c.l.s4 1966171168
        %v1595 = vunpack.c.0.s8 %v1594
        %v1596 = vlaneseq
        %v1597 = vshrl.u32 %v1596, 7
        %v1598 = vsub.s32 %v1595, %v1597
        %v1599 = vrot.slane %v232, %v1598
        %v1601 = vunpack.c.l.s4 1966171168
        %v1602 = vunpack.c.0.s8 %v1601
        %v1603 = vlaneseq
        %v1604 = vshrl.u32 %v1603, 7
        %v1605 = vsub.s32 %v1602, %v1604
        %v1606 = vrot.slane %v1592, %v1605
        %v1607 = vcombine.high %v1599, %v1599
        %v1608 = vcombine.high %v1606, %v1606
        %v1610 = vunpack.c.l.s4 1966171168
        %v1611 = vunpack.c.0.s8 %v1610
        %v1612 = vlaneseq
        %v1613 = vshrl.u32 %v1612, 7
        %v1614 = vsub.s32 %v1611, %v1613
        %v1615 = vrot.slane %v1599, %v1614
        %v1617 = vunpack.c.l.s4 1966171168
        %v1618 = vunpack.c.0.s8 %v1617
        %v1619 = vlaneseq
        %v1620 = vshrl.u32 %v1619, 7
        %v1621 = vsub.s32 %v1618, %v1620
        %v1622 = vrot.slane %v1606, %v1621
        %v1624 = vunpack.c.l.s4 1966171168
        %v1625 = vunpack.c.0.s8 %v1624
        %v1626 = vlaneseq
        %v1627 = vshrl.u32 %v1626, 7
        %v1628 = vsub.s32 %v1625, %v1627
        %v1629 = vrot.slane %v1607, %v1628
        %v1631 = vunpack.c.l.s4 1966171168
        %v1632 = vunpack.c.0.s8 %v1631
        %v1633 = vlaneseq
        %v1634 = vshrl.u32 %v1633, 7
        %v1635 = vsub.s32 %v1632, %v1634
        %v1636 = vrot.slane %v1608, %v1635
        %v1637 = vcombine.high %v1615, %v1615
        %v1638 = vcombine.high %v1622, %v1622
        %v1639 = vcombine.high %v1629, %v1629
        %v1640 = vcombine.high %v1636, %v1636
        %v1641 = vcombine.high %v233, %v233
        %v1643 = vunpack.c.l.s4 1966171168
        %v1644 = vunpack.c.0.s8 %v1643
        %v1645 = vlaneseq
        %v1646 = vshrl.u32 %v1645, 7
        %v1647 = vsub.s32 %v1644, %v1646
        %v1648 = vrot.slane %v233, %v1647
        %v1650 = vunpack.c.l.s4 1966171168
        %v1651 = vunpack.c.0.s8 %v1650
        %v1652 = vlaneseq
        %v1653 = vshrl.u32 %v1652, 7
        %v1654 = vsub.s32 %v1651, %v1653
        %v1655 = vrot.slane %v1641, %v1654
        %v1656 = vcombine.high %v1648, %v1648
        %v1657 = vcombine.high %v1655, %v1655
        %v1659 = vunpack.c.l.s4 1966171168
        %v1660 = vunpack.c.0.s8 %v1659
        %v1661 = vlaneseq
        %v1662 = vshrl.u32 %v1661, 7
        %v1663 = vsub.s32 %v1660, %v1662
        %v1664 = vrot.slane %v1648, %v1663
        %v1666 = vunpack.c.l.s4 1966171168
        %v1667 = vunpack.c.0.s8 %v1666
        %v1668 = vlaneseq
        %v1669 = vshrl.u32 %v1668, 7
        %v1670 = vsub.s32 %v1667, %v1669
        %v1671 = vrot.slane %v1655, %v1670
        %v1673 = vunpack.c.l.s4 1966171168
        %v1674 = vunpack.c.0.s8 %v1673
        %v1675 = vlaneseq
        %v1676 = vshrl.u32 %v1675, 7
        %v1677 = vsub.s32 %v1674, %v1676
        %v1678 = vrot.slane %v1656, %v1677
        %v1680 = vunpack.c.l.s4 1966171168
        %v1681 = vunpack.c.0.s8 %v1680
        %v1682 = vlaneseq
        %v1683 = vshrl.u32 %v1682, 7
        %v1684 = vsub.s32 %v1681, %v1683
        %v1685 = vrot.slane %v1657, %v1684
        %v1686 = vcombine.high %v1664, %v1664
        %v1687 = vcombine.high %v1671, %v1671
        %v1688 = vcombine.high %v1678, %v1678
        %v1689 = vcombine.high %v1685, %v1685
        %v1690 = vcombine.high %v234, %v234
        %v1692 = vunpack.c.l.s4 1966171168
        %v1693 = vunpack.c.0.s8 %v1692
        %v1694 = vlaneseq
        %v1695 = vshrl.u32 %v1694, 7
        %v1696 = vsub.s32 %v1693, %v1695
        %v1697 = vrot.slane %v234, %v1696
        %v1699 = vunpack.c.l.s4 1966171168
        %v1700 = vunpack.c.0.s8 %v1699
        %v1701 = vlaneseq
        %v1702 = vshrl.u32 %v1701, 7
        %v1703 = vsub.s32 %v1700, %v1702
        %v1704 = vrot.slane %v1690, %v1703
        %v1705 = vcombine.high %v1697, %v1697
        %v1706 = vcombine.high %v1704, %v1704
        %v1708 = vunpack.c.l.s4 1966171168
        %v1709 = vunpack.c.0.s8 %v1708
        %v1710 = vlaneseq
        %v1711 = vshrl.u32 %v1710, 7
        %v1712 = vsub.s32 %v1709, %v1711
        %v1713 = vrot.slane %v1697, %v1712
        %v1715 = vunpack.c.l.s4 1966171168
        %v1716 = vunpack.c.0.s8 %v1715
        %v1717 = vlaneseq
        %v1718 = vshrl.u32 %v1717, 7
        %v1719 = vsub.s32 %v1716, %v1718
        %v1720 = vrot.slane %v1704, %v1719
        %v1722 = vunpack.c.l.s4 1966171168
        %v1723 = vunpack.c.0.s8 %v1722
        %v1724 = vlaneseq
        %v1725 = vshrl.u32 %v1724, 7
        %v1726 = vsub.s32 %v1723, %v1725
        %v1727 = vrot.slane %v1705, %v1726
        %v1729 = vunpack.c.l.s4 1966171168
        %v1730 = vunpack.c.0.s8 %v1729
        %v1731 = vlaneseq
        %v1732 = vshrl.u32 %v1731, 7
        %v1733 = vsub.s32 %v1730, %v1732
        %v1734 = vrot.slane %v1706, %v1733
        %v1735 = vcombine.high %v1713, %v1713
        %v1736 = vcombine.high %v1720, %v1720
        %v1737 = vcombine.high %v1727, %v1727
        %v1738 = vcombine.high %v1734, %v1734
        %v1739 = vcombine.high %v235, %v235
        %v1741 = vunpack.c.l.s4 1966171168
        %v1742 = vunpack.c.0.s8 %v1741
        %v1743 = vlaneseq
        %v1744 = vshrl.u32 %v1743, 7
        %v1745 = vsub.s32 %v1742, %v1744
        %v1746 = vrot.slane %v235, %v1745
        %v1748 = vunpack.c.l.s4 1966171168
        %v1749 = vunpack.c.0.s8 %v1748
        %v1750 = vlaneseq
        %v1751 = vshrl.u32 %v1750, 7
        %v1752 = vsub.s32 %v1749, %v1751
        %v1753 = vrot.slane %v1739, %v1752
        %v1754 = vcombine.high %v1746, %v1746
        %v1755 = vcombine.high %v1753, %v1753
        %v1757 = vunpack.c.l.s4 1966171168
        %v1758 = vunpack.c.0.s8 %v1757
        %v1759 = vlaneseq
        %v1760 = vshrl.u32 %v1759, 7
        %v1761 = vsub.s32 %v1758, %v1760
        %v1762 = vrot.slane %v1746, %v1761
        %v1764 = vunpack.c.l.s4 1966171168
        %v1765 = vunpack.c.0.s8 %v1764
        %v1766 = vlaneseq
        %v1767 = vshrl.u32 %v1766, 7
        %v1768 = vsub.s32 %v1765, %v1767
        %v1769 = vrot.slane %v1753, %v1768
        %v1771 = vunpack.c.l.s4 1966171168
        %v1772 = vunpack.c.0.s8 %v1771
        %v1773 = vlaneseq
        %v1774 = vshrl.u32 %v1773, 7
        %v1775 = vsub.s32 %v1772, %v1774
        %v1776 = vrot.slane %v1754, %v1775
        %v1778 = vunpack.c.l.s4 1966171168
        %v1779 = vunpack.c.0.s8 %v1778
        %v1780 = vlaneseq
        %v1781 = vshrl.u32 %v1780, 7
        %v1782 = vsub.s32 %v1779, %v1781
        %v1783 = vrot.slane %v1755, %v1782
        %v1784 = vcombine.high %v1762, %v1762
        %v1785 = vcombine.high %v1769, %v1769
        %v1786 = vcombine.high %v1776, %v1776
        %v1787 = vcombine.high %v1783, %v1783
        %v1788 = vcombine.high %v236, %v236
        %v1790 = vunpack.c.l.s4 1966171168
        %v1791 = vunpack.c.0.s8 %v1790
        %v1792 = vlaneseq
        %v1793 = vshrl.u32 %v1792, 7
        %v1794 = vsub.s32 %v1791, %v1793
        %v1795 = vrot.slane %v236, %v1794
        %v1797 = vunpack.c.l.s4 1966171168
        %v1798 = vunpack.c.0.s8 %v1797
        %v1799 = vlaneseq
        %v1800 = vshrl.u32 %v1799, 7
        %v1801 = vsub.s32 %v1798, %v1800
        %v1802 = vrot.slane %v1788, %v1801
        %v1803 = vcombine.high %v1795, %v1795
        %v1804 = vcombine.high %v1802, %v1802
        %v1806 = vunpack.c.l.s4 1966171168
        %v1807 = vunpack.c.0.s8 %v1806
        %v1808 = vlaneseq
        %v1809 = vshrl.u32 %v1808, 7
        %v1810 = vsub.s32 %v1807, %v1809
        %v1811 = vrot.slane %v1795, %v1810
        %v1813 = vunpack.c.l.s4 1966171168
        %v1814 = vunpack.c.0.s8 %v1813
        %v1815 = vlaneseq
        %v1816 = vshrl.u32 %v1815, 7
        %v1817 = vsub.s32 %v1814, %v1816
        %v1818 = vrot.slane %v1802, %v1817
        %v1820 = vunpack.c.l.s4 1966171168
        %v1821 = vunpack.c.0.s8 %v1820
        %v1822 = vlaneseq
        %v1823 = vshrl.u32 %v1822, 7
        %v1824 = vsub.s32 %v1821, %v1823
        %v1825 = vrot.slane %v1803, %v1824
        %v1827 = vunpack.c.l.s4 1966171168
        %v1828 = vunpack.c.0.s8 %v1827
        %v1829 = vlaneseq
        %v1830 = vshrl.u32 %v1829, 7
        %v1831 = vsub.s32 %v1828, %v1830
        %v1832 = vrot.slane %v1804, %v1831
        %v1833 = vcombine.high %v1811, %v1811
        %v1834 = vcombine.high %v1818, %v1818
        %v1835 = vcombine.high %v1825, %v1825
        %v1836 = vcombine.high %v1832, %v1832
        %v1837 = vlaneseq
        %v1838 = vshrl.u32 %v1837, 7
        %v1839 = vsub.s32 0, %v1838
        %v1840 = vrot.slane %v292, %v1839
        %v1841 = vlaneseq
        %v1842 = vshrl.u32 %v1841, 7
        %v1843 = vsub.s32 0, %v1842
        %v1844 = vrot.slane %v306, %v1843
        %v1845 = vlaneseq
        %v1846 = vshrl.u32 %v1845, 7
        %v1847 = vsub.s32 0, %v1846
        %v1848 = vrot.slane %v314, %v1847
        %v1849 = vlaneseq
        %v1850 = vshrl.u32 %v1849, 7
        %v1851 = vsub.s32 0, %v1850
        %v1852 = vrot.slane %v316, %v1851
        %v1853 = vlaneseq
        %v1854 = vshrl.u32 %v1853, 7
        %v1855 = vsub.s32 0, %v1854
        %v1856 = vrot.slane %v299, %v1855
        %v1857 = vlaneseq
        %v1858 = vshrl.u32 %v1857, 7
        %v1859 = vsub.s32 0, %v1858
        %v1860 = vrot.slane %v313, %v1859
        %v1861 = vlaneseq
        %v1862 = vshrl.u32 %v1861, 7
        %v1863 = vsub.s32 0, %v1862
        %v1864 = vrot.slane %v315, %v1863
        %v1865 = vlaneseq
        %v1866 = vshrl.u32 %v1865, 7
        %v1867 = vsub.s32 0, %v1866
        %v1868 = vrot.slane %v317, %v1867
        %v1869 = vlaneseq
        %v1870 = vshrl.u32 %v1869, 7
        %v1871 = vsub.s32 0, %v1870
        %v1872 = vrot.slane %v341, %v1871
        %v1873 = vlaneseq
        %v1874 = vshrl.u32 %v1873, 7
        %v1875 = vsub.s32 0, %v1874
        %v1876 = vrot.slane %v355, %v1875
        %v1877 = vlaneseq
        %v1878 = vshrl.u32 %v1877, 7
        %v1879 = vsub.s32 0, %v1878
        %v1880 = vrot.slane %v363, %v1879
        %v1881 = vlaneseq
        %v1882 = vshrl.u32 %v1881, 7
        %v1883 = vsub.s32 0, %v1882
        %v1884 = vrot.slane %v365, %v1883
        %v1885 = vlaneseq
        %v1886 = vshrl.u32 %v1885, 7
        %v1887 = vsub.s32 0, %v1886
        %v1888 = vrot.slane %v348, %v1887
        %v1889 = vlaneseq
        %v1890 = vshrl.u32 %v1889, 7
        %v1891 = vsub.s32 0, %v1890
        %v1892 = vrot.slane %v362, %v1891
        %v1893 = vlaneseq
        %v1894 = vshrl.u32 %v1893, 7
        %v1895 = vsub.s32 0, %v1894
        %v1896 = vrot.slane %v364, %v1895
        %v1897 = vlaneseq
        %v1898 = vshrl.u32 %v1897, 7
        %v1899 = vsub.s32 0, %v1898
        %v1900 = vrot.slane %v366, %v1899
        %v1901 = vlaneseq
        %v1902 = vshrl.u32 %v1901, 7
        %v1903 = vsub.s32 0, %v1902
        %v1904 = vrot.slane %v390, %v1903
        %v1905 = vlaneseq
        %v1906 = vshrl.u32 %v1905, 7
        %v1907 = vsub.s32 0, %v1906
        %v1908 = vrot.slane %v404, %v1907
        %v1909 = vlaneseq
        %v1910 = vshrl.u32 %v1909, 7
        %v1911 = vsub.s32 0, %v1910
        %v1912 = vrot.slane %v412, %v1911
        %v1913 = vlaneseq
        %v1914 = vshrl.u32 %v1913, 7
        %v1915 = vsub.s32 0, %v1914
        %v1916 = vrot.slane %v414, %v1915
        %v1917 = vlaneseq
        %v1918 = vshrl.u32 %v1917, 7
        %v1919 = vsub.s32 0, %v1918
        %v1920 = vrot.slane %v397, %v1919
        %v1921 = vlaneseq
        %v1922 = vshrl.u32 %v1921, 7
        %v1923 = vsub.s32 0, %v1922
        %v1924 = vrot.slane %v411, %v1923
        %v1925 = vlaneseq
        %v1926 = vshrl.u32 %v1925, 7
        %v1927 = vsub.s32 0, %v1926
        %v1928 = vrot.slane %v413, %v1927
        %v1929 = vlaneseq
        %v1930 = vshrl.u32 %v1929, 7
        %v1931 = vsub.s32 0, %v1930
        %v1932 = vrot.slane %v415, %v1931
        %v1933 = vlaneseq
        %v1934 = vshrl.u32 %v1933, 7
        %v1935 = vsub.s32 0, %v1934
        %v1936 = vrot.slane %v439, %v1935
        %v1937 = vlaneseq
        %v1938 = vshrl.u32 %v1937, 7
        %v1939 = vsub.s32 0, %v1938
        %v1940 = vrot.slane %v453, %v1939
        %v1941 = vlaneseq
        %v1942 = vshrl.u32 %v1941, 7
        %v1943 = vsub.s32 0, %v1942
        %v1944 = vrot.slane %v461, %v1943
        %v1945 = vlaneseq
        %v1946 = vshrl.u32 %v1945, 7
        %v1947 = vsub.s32 0, %v1946
        %v1948 = vrot.slane %v463, %v1947
        %v1949 = vlaneseq
        %v1950 = vshrl.u32 %v1949, 7
        %v1951 = vsub.s32 0, %v1950
        %v1952 = vrot.slane %v446, %v1951
        %v1953 = vlaneseq
        %v1954 = vshrl.u32 %v1953, 7
        %v1955 = vsub.s32 0, %v1954
        %v1956 = vrot.slane %v460, %v1955
        %v1957 = vlaneseq
        %v1958 = vshrl.u32 %v1957, 7
        %v1959 = vsub.s32 0, %v1958
        %v1960 = vrot.slane %v462, %v1959
        %v1961 = vlaneseq
        %v1962 = vshrl.u32 %v1961, 7
        %v1963 = vsub.s32 0, %v1962
        %v1964 = vrot.slane %v464, %v1963
        %v1965 = vlaneseq
        %v1966 = vshrl.u32 %v1965, 7
        %v1967 = vsub.s32 0, %v1966
        %v1968 = vrot.slane %v488, %v1967
        %v1969 = vlaneseq
        %v1970 = vshrl.u32 %v1969, 7
        %v1971 = vsub.s32 0, %v1970
        %v1972 = vrot.slane %v502, %v1971
        %v1973 = vlaneseq
        %v1974 = vshrl.u32 %v1973, 7
        %v1975 = vsub.s32 0, %v1974
        %v1976 = vrot.slane %v510, %v1975
        %v1977 = vlaneseq
        %v1978 = vshrl.u32 %v1977, 7
        %v1979 = vsub.s32 0, %v1978
        %v1980 = vrot.slane %v512, %v1979
        %v1981 = vlaneseq
        %v1982 = vshrl.u32 %v1981, 7
        %v1983 = vsub.s32 0, %v1982
        %v1984 = vrot.slane %v495, %v1983
        %v1985 = vlaneseq
        %v1986 = vshrl.u32 %v1985, 7
        %v1987 = vsub.s32 0, %v1986
        %v1988 = vrot.slane %v509, %v1987
        %v1989 = vlaneseq
        %v1990 = vshrl.u32 %v1989, 7
        %v1991 = vsub.s32 0, %v1990
        %v1992 = vrot.slane %v511, %v1991
        %v1993 = vlaneseq
        %v1994 = vshrl.u32 %v1993, 7
        %v1995 = vsub.s32 0, %v1994
        %v1996 = vrot.slane %v513, %v1995
        %v1997 = vlaneseq
        %v1998 = vshrl.u32 %v1997, 7
        %v1999 = vsub.s32 0, %v1998
        %v2000 = vrot.slane %v537, %v1999
        %v2001 = vlaneseq
        %v2002 = vshrl.u32 %v2001, 7
        %v2003 = vsub.s32 0, %v2002
        %v2004 = vrot.slane %v551, %v2003
        %v2005 = vlaneseq
        %v2006 = vshrl.u32 %v2005, 7
        %v2007 = vsub.s32 0, %v2006
        %v2008 = vrot.slane %v559, %v2007
        %v2009 = vlaneseq
        %v2010 = vshrl.u32 %v2009, 7
        %v2011 = vsub.s32 0, %v2010
        %v2012 = vrot.slane %v561, %v2011
        %v2013 = vlaneseq
        %v2014 = vshrl.u32 %v2013, 7
        %v2015 = vsub.s32 0, %v2014
        %v2016 = vrot.slane %v544, %v2015
        %v2017 = vlaneseq
        %v2018 = vshrl.u32 %v2017, 7
        %v2019 = vsub.s32 0, %v2018
        %v2020 = vrot.slane %v558, %v2019
        %v2021 = vlaneseq
        %v2022 = vshrl.u32 %v2021, 7
        %v2023 = vsub.s32 0, %v2022
        %v2024 = vrot.slane %v560, %v2023
        %v2025 = vlaneseq
        %v2026 = vshrl.u32 %v2025, 7
        %v2027 = vsub.s32 0, %v2026
        %v2028 = vrot.slane %v562, %v2027
        %v2029 = vlaneseq
        %v2030 = vshrl.u32 %v2029, 7
        %v2031 = vsub.s32 0, %v2030
        %v2032 = vrot.slane %v586, %v2031
        %v2033 = vlaneseq
        %v2034 = vshrl.u32 %v2033, 7
        %v2035 = vsub.s32 0, %v2034
        %v2036 = vrot.slane %v600, %v2035
        %v2037 = vlaneseq
        %v2038 = vshrl.u32 %v2037, 7
        %v2039 = vsub.s32 0, %v2038
        %v2040 = vrot.slane %v608, %v2039
        %v2041 = vlaneseq
        %v2042 = vshrl.u32 %v2041, 7
        %v2043 = vsub.s32 0, %v2042
        %v2044 = vrot.slane %v610, %v2043
        %v2045 = vlaneseq
        %v2046 = vshrl.u32 %v2045, 7
        %v2047 = vsub.s32 0, %v2046
        %v2048 = vrot.slane %v593, %v2047
        %v2049 = vlaneseq
        %v2050 = vshrl.u32 %v2049, 7
        %v2051 = vsub.s32 0, %v2050
        %v2052 = vrot.slane %v607, %v2051
        %v2053 = vlaneseq
        %v2054 = vshrl.u32 %v2053, 7
        %v2055 = vsub.s32 0, %v2054
        %v2056 = vrot.slane %v609, %v2055
        %v2057 = vlaneseq
        %v2058 = vshrl.u32 %v2057, 7
        %v2059 = vsub.s32 0, %v2058
        %v2060 = vrot.slane %v611, %v2059
        %v2061 = vlaneseq
        %v2062 = vshrl.u32 %v2061, 7
        %v2063 = vsub.s32 0, %v2062
        %v2064 = vrot.slane %v635, %v2063
        %v2065 = vlaneseq
        %v2066 = vshrl.u32 %v2065, 7
        %v2067 = vsub.s32 0, %v2066
        %v2068 = vrot.slane %v649, %v2067
        %v2069 = vlaneseq
        %v2070 = vshrl.u32 %v2069, 7
        %v2071 = vsub.s32 0, %v2070
        %v2072 = vrot.slane %v657, %v2071
        %v2073 = vlaneseq
        %v2074 = vshrl.u32 %v2073, 7
        %v2075 = vsub.s32 0, %v2074
        %v2076 = vrot.slane %v659, %v2075
        %v2077 = vlaneseq
        %v2078 = vshrl.u32 %v2077, 7
        %v2079 = vsub.s32 0, %v2078
        %v2080 = vrot.slane %v642, %v2079
        %v2081 = vlaneseq
        %v2082 = vshrl.u32 %v2081, 7
        %v2083 = vsub.s32 0, %v2082
        %v2084 = vrot.slane %v656, %v2083
        %v2085 = vlaneseq
        %v2086 = vshrl.u32 %v2085, 7
        %v2087 = vsub.s32 0, %v2086
        %v2088 = vrot.slane %v658, %v2087
        %v2089 = vlaneseq
        %v2090 = vshrl.u32 %v2089, 7
        %v2091 = vsub.s32 0, %v2090
        %v2092 = vrot.slane %v660, %v2091
        %v2093 = vlaneseq
        %v2094 = vshrl.u32 %v2093, 7
        %v2095 = vsub.s32 0, %v2094
        %v2096 = vrot.slane %v684, %v2095
        %v2097 = vlaneseq
        %v2098 = vshrl.u32 %v2097, 7
        %v2099 = vsub.s32 0, %v2098
        %v2100 = vrot.slane %v698, %v2099
        %v2101 = vlaneseq
        %v2102 = vshrl.u32 %v2101, 7
        %v2103 = vsub.s32 0, %v2102
        %v2104 = vrot.slane %v706, %v2103
        %v2105 = vlaneseq
        %v2106 = vshrl.u32 %v2105, 7
        %v2107 = vsub.s32 0, %v2106
        %v2108 = vrot.slane %v708, %v2107
        %v2109 = vlaneseq
        %v2110 = vshrl.u32 %v2109, 7
        %v2111 = vsub.s32 0, %v2110
        %v2112 = vrot.slane %v691, %v2111
        %v2113 = vlaneseq
        %v2114 = vshrl.u32 %v2113, 7
        %v2115 = vsub.s32 0, %v2114
        %v2116 = vrot.slane %v705, %v2115
        %v2117 = vlaneseq
        %v2118 = vshrl.u32 %v2117, 7
        %v2119 = vsub.s32 0, %v2118
        %v2120 = vrot.slane %v707, %v2119
        %v2121 = vlaneseq
        %v2122 = vshrl.u32 %v2121, 7
        %v2123 = vsub.s32 0, %v2122
        %v2124 = vrot.slane %v709, %v2123
        %v2125 = vlaneseq
        %v2126 = vshrl.u32 %v2125, 7
        %v2127 = vsub.s32 0, %v2126
        %v2128 = vrot.slane %v733, %v2127
        %v2129 = vlaneseq
        %v2130 = vshrl.u32 %v2129, 7
        %v2131 = vsub.s32 0, %v2130
        %v2132 = vrot.slane %v747, %v2131
        %v2133 = vlaneseq
        %v2134 = vshrl.u32 %v2133, 7
        %v2135 = vsub.s32 0, %v2134
        %v2136 = vrot.slane %v755, %v2135
        %v2137 = vlaneseq
        %v2138 = vshrl.u32 %v2137, 7
        %v2139 = vsub.s32 0, %v2138
        %v2140 = vrot.slane %v757, %v2139
        %v2141 = vlaneseq
        %v2142 = vshrl.u32 %v2141, 7
        %v2143 = vsub.s32 0, %v2142
        %v2144 = vrot.slane %v740, %v2143
        %v2145 = vlaneseq
        %v2146 = vshrl.u32 %v2145, 7
        %v2147 = vsub.s32 0, %v2146
        %v2148 = vrot.slane %v754, %v2147
        %v2149 = vlaneseq
        %v2150 = vshrl.u32 %v2149, 7
        %v2151 = vsub.s32 0, %v2150
        %v2152 = vrot.slane %v756, %v2151
        %v2153 = vlaneseq
        %v2154 = vshrl.u32 %v2153, 7
        %v2155 = vsub.s32 0, %v2154
        %v2156 = vrot.slane %v758, %v2155
        %v2157 = vlaneseq
        %v2158 = vshrl.u32 %v2157, 7
        %v2159 = vsub.s32 0, %v2158
        %v2160 = vrot.slane %v782, %v2159
        %v2161 = vlaneseq
        %v2162 = vshrl.u32 %v2161, 7
        %v2163 = vsub.s32 0, %v2162
        %v2164 = vrot.slane %v796, %v2163
        %v2165 = vlaneseq
        %v2166 = vshrl.u32 %v2165, 7
        %v2167 = vsub.s32 0, %v2166
        %v2168 = vrot.slane %v804, %v2167
        %v2169 = vlaneseq
        %v2170 = vshrl.u32 %v2169, 7
        %v2171 = vsub.s32 0, %v2170
        %v2172 = vrot.slane %v806, %v2171
        %v2173 = vlaneseq
        %v2174 = vshrl.u32 %v2173, 7
        %v2175 = vsub.s32 0, %v2174
        %v2176 = vrot.slane %v789, %v2175
        %v2177 = vlaneseq
        %v2178 = vshrl.u32 %v2177, 7
        %v2179 = vsub.s32 0, %v2178
        %v2180 = vrot.slane %v803, %v2179
        %v2181 = vlaneseq
        %v2182 = vshrl.u32 %v2181, 7
        %v2183 = vsub.s32 0, %v2182
        %v2184 = vrot.slane %v805, %v2183
        %v2185 = vlaneseq
        %v2186 = vshrl.u32 %v2185, 7
        %v2187 = vsub.s32 0, %v2186
        %v2188 = vrot.slane %v807, %v2187
        %v2189 = vlaneseq
        %v2190 = vshrl.u32 %v2189, 7
        %v2191 = vsub.s32 0, %v2190
        %v2192 = vrot.slane %v831, %v2191
        %v2193 = vlaneseq
        %v2194 = vshrl.u32 %v2193, 7
        %v2195 = vsub.s32 0, %v2194
        %v2196 = vrot.slane %v845, %v2195
        %v2197 = vlaneseq
        %v2198 = vshrl.u32 %v2197, 7
        %v2199 = vsub.s32 0, %v2198
        %v2200 = vrot.slane %v853, %v2199
        %v2201 = vlaneseq
        %v2202 = vshrl.u32 %v2201, 7
        %v2203 = vsub.s32 0, %v2202
        %v2204 = vrot.slane %v855, %v2203
        %v2205 = vlaneseq
        %v2206 = vshrl.u32 %v2205, 7
        %v2207 = vsub.s32 0, %v2206
        %v2208 = vrot.slane %v838, %v2207
        %v2209 = vlaneseq
        %v2210 = vshrl.u32 %v2209, 7
        %v2211 = vsub.s32 0, %v2210
        %v2212 = vrot.slane %v852, %v2211
        %v2213 = vlaneseq
        %v2214 = vshrl.u32 %v2213, 7
        %v2215 = vsub.s32 0, %v2214
        %v2216 = vrot.slane %v854, %v2215
        %v2217 = vlaneseq
        %v2218 = vshrl.u32 %v2217, 7
        %v2219 = vsub.s32 0, %v2218
        %v2220 = vrot.slane %v856, %v2219
        %v2221 = vlaneseq
        %v2222 = vshrl.u32 %v2221, 7
        %v2223 = vsub.s32 0, %v2222
        %v2224 = vrot.slane %v880, %v2223
        %v2225 = vlaneseq
        %v2226 = vshrl.u32 %v2225, 7
        %v2227 = vsub.s32 0, %v2226
        %v2228 = vrot.slane %v894, %v2227
        %v2229 = vlaneseq
        %v2230 = vshrl.u32 %v2229, 7
        %v2231 = vsub.s32 0, %v2230
        %v2232 = vrot.slane %v902, %v2231
        %v2233 = vlaneseq
        %v2234 = vshrl.u32 %v2233, 7
        %v2235 = vsub.s32 0, %v2234
        %v2236 = vrot.slane %v904, %v2235
        %v2237 = vlaneseq
        %v2238 = vshrl.u32 %v2237, 7
        %v2239 = vsub.s32 0, %v2238
        %v2240 = vrot.slane %v887, %v2239
        %v2241 = vlaneseq
        %v2242 = vshrl.u32 %v2241, 7
        %v2243 = vsub.s32 0, %v2242
        %v2244 = vrot.slane %v901, %v2243
        %v2245 = vlaneseq
        %v2246 = vshrl.u32 %v2245, 7
        %v2247 = vsub.s32 0, %v2246
        %v2248 = vrot.slane %v903, %v2247
        %v2249 = vlaneseq
        %v2250 = vshrl.u32 %v2249, 7
        %v2251 = vsub.s32 0, %v2250
        %v2252 = vrot.slane %v905, %v2251
        %v2253 = vlaneseq
        %v2254 = vshrl.u32 %v2253, 7
        %v2255 = vsub.s32 0, %v2254
        %v2256 = vrot.slane %v929, %v2255
        %v2257 = vlaneseq
        %v2258 = vshrl.u32 %v2257, 7
        %v2259 = vsub.s32 0, %v2258
        %v2260 = vrot.slane %v943, %v2259
        %v2261 = vlaneseq
        %v2262 = vshrl.u32 %v2261, 7
        %v2263 = vsub.s32 0, %v2262
        %v2264 = vrot.slane %v951, %v2263
        %v2265 = vlaneseq
        %v2266 = vshrl.u32 %v2265, 7
        %v2267 = vsub.s32 0, %v2266
        %v2268 = vrot.slane %v953, %v2267
        %v2269 = vlaneseq
        %v2270 = vshrl.u32 %v2269, 7
        %v2271 = vsub.s32 0, %v2270
        %v2272 = vrot.slane %v936, %v2271
        %v2273 = vlaneseq
        %v2274 = vshrl.u32 %v2273, 7
        %v2275 = vsub.s32 0, %v2274
        %v2276 = vrot.slane %v950, %v2275
        %v2277 = vlaneseq
        %v2278 = vshrl.u32 %v2277, 7
        %v2279 = vsub.s32 0, %v2278
        %v2280 = vrot.slane %v952, %v2279
        %v2281 = vlaneseq
        %v2282 = vshrl.u32 %v2281, 7
        %v2283 = vsub.s32 0, %v2282
        %v2284 = vrot.slane %v954, %v2283
        %v2285 = vlaneseq
        %v2286 = vshrl.u32 %v2285, 7
        %v2287 = vsub.s32 0, %v2286
        %v2288 = vrot.slane %v978, %v2287
        %v2289 = vlaneseq
        %v2290 = vshrl.u32 %v2289, 7
        %v2291 = vsub.s32 0, %v2290
        %v2292 = vrot.slane %v992, %v2291
        %v2293 = vlaneseq
        %v2294 = vshrl.u32 %v2293, 7
        %v2295 = vsub.s32 0, %v2294
        %v2296 = vrot.slane %v1000, %v2295
        %v2297 = vlaneseq
        %v2298 = vshrl.u32 %v2297, 7
        %v2299 = vsub.s32 0, %v2298
        %v2300 = vrot.slane %v1002, %v2299
        %v2301 = vlaneseq
        %v2302 = vshrl.u32 %v2301, 7
        %v2303 = vsub.s32 0, %v2302
        %v2304 = vrot.slane %v985, %v2303
        %v2305 = vlaneseq
        %v2306 = vshrl.u32 %v2305, 7
        %v2307 = vsub.s32 0, %v2306
        %v2308 = vrot.slane %v999, %v2307
        %v2309 = vlaneseq
        %v2310 = vshrl.u32 %v2309, 7
        %v2311 = vsub.s32 0, %v2310
        %v2312 = vrot.slane %v1001, %v2311
        %v2313 = vlaneseq
        %v2314 = vshrl.u32 %v2313, 7
        %v2315 = vsub.s32 0, %v2314
        %v2316 = vrot.slane %v1003, %v2315
        %v2317 = vlaneseq
        %v2318 = vshrl.u32 %v2317, 7
        %v2319 = vsub.s32 0, %v2318
        %v2320 = vrot.slane %v1027, %v2319
        %v2321 = vlaneseq
        %v2322 = vshrl.u32 %v2321, 7
        %v2323 = vsub.s32 0, %v2322
        %v2324 = vrot.slane %v1041, %v2323
        %v2325 = vlaneseq
        %v2326 = vshrl.u32 %v2325, 7
        %v2327 = vsub.s32 0, %v2326
        %v2328 = vrot.slane %v1049, %v2327
        %v2329 = vlaneseq
        %v2330 = vshrl.u32 %v2329, 7
        %v2331 = vsub.s32 0, %v2330
        %v2332 = vrot.slane %v1051, %v2331
        %v2333 = vlaneseq
        %v2334 = vshrl.u32 %v2333, 7
        %v2335 = vsub.s32 0, %v2334
        %v2336 = vrot.slane %v1034, %v2335
        %v2337 = vlaneseq
        %v2338 = vshrl.u32 %v2337, 7
        %v2339 = vsub.s32 0, %v2338
        %v2340 = vrot.slane %v1048, %v2339
        %v2341 = vlaneseq
        %v2342 = vshrl.u32 %v2341, 7
        %v2343 = vsub.s32 0, %v2342
        %v2344 = vrot.slane %v1050, %v2343
        %v2345 = vlaneseq
        %v2346 = vshrl.u32 %v2345, 7
        %v2347 = vsub.s32 0, %v2346
        %v2348 = vrot.slane %v1052, %v2347
        %v2349 = vlaneseq
        %v2350 = vshrl.u32 %v2349, 7
        %v2351 = vsub.s32 0, %v2350
        %v2352 = vrot.slane %v1076, %v2351
        %v2353 = vlaneseq
        %v2354 = vshrl.u32 %v2353, 7
        %v2355 = vsub.s32 0, %v2354
        %v2356 = vrot.slane %v1090, %v2355
        %v2357 = vlaneseq
        %v2358 = vshrl.u32 %v2357, 7
        %v2359 = vsub.s32 0, %v2358
        %v2360 = vrot.slane %v1098, %v2359
        %v2361 = vlaneseq
        %v2362 = vshrl.u32 %v2361, 7
        %v2363 = vsub.s32 0, %v2362
        %v2364 = vrot.slane %v1100, %v2363
        %v2365 = vlaneseq
        %v2366 = vshrl.u32 %v2365, 7
        %v2367 = vsub.s32 0, %v2366
        %v2368 = vrot.slane %v1083, %v2367
        %v2369 = vlaneseq
        %v2370 = vshrl.u32 %v2369, 7
        %v2371 = vsub.s32 0, %v2370
        %v2372 = vrot.slane %v1097, %v2371
        %v2373 = vlaneseq
        %v2374 = vshrl.u32 %v2373, 7
        %v2375 = vsub.s32 0, %v2374
        %v2376 = vrot.slane %v1099, %v2375
        %v2377 = vlaneseq
        %v2378 = vshrl.u32 %v2377, 7
        %v2379 = vsub.s32 0, %v2378
        %v2380 = vrot.slane %v1101, %v2379
        %v2381 = vlaneseq
        %v2382 = vshrl.u32 %v2381, 7
        %v2383 = vsub.s32 0, %v2382
        %v2384 = vrot.slane %v1125, %v2383
        %v2385 = vlaneseq
        %v2386 = vshrl.u32 %v2385, 7
        %v2387 = vsub.s32 0, %v2386
        %v2388 = vrot.slane %v1139, %v2387
        %v2389 = vlaneseq
        %v2390 = vshrl.u32 %v2389, 7
        %v2391 = vsub.s32 0, %v2390
        %v2392 = vrot.slane %v1147, %v2391
        %v2393 = vlaneseq
        %v2394 = vshrl.u32 %v2393, 7
        %v2395 = vsub.s32 0, %v2394
        %v2396 = vrot.slane %v1149, %v2395
        %v2397 = vlaneseq
        %v2398 = vshrl.u32 %v2397, 7
        %v2399 = vsub.s32 0, %v2398
        %v2400 = vrot.slane %v1132, %v2399
        %v2401 = vlaneseq
        %v2402 = vshrl.u32 %v2401, 7
        %v2403 = vsub.s32 0, %v2402
        %v2404 = vrot.slane %v1146, %v2403
        %v2405 = vlaneseq
        %v2406 = vshrl.u32 %v2405, 7
        %v2407 = vsub.s32 0, %v2406
        %v2408 = vrot.slane %v1148, %v2407
        %v2409 = vlaneseq
        %v2410 = vshrl.u32 %v2409, 7
        %v2411 = vsub.s32 0, %v2410
        %v2412 = vrot.slane %v1150, %v2411
        %v2413 = vlaneseq
        %v2414 = vshrl.u32 %v2413, 7
        %v2415 = vsub.s32 0, %v2414
        %v2416 = vrot.slane %v1174, %v2415
        %v2417 = vlaneseq
        %v2418 = vshrl.u32 %v2417, 7
        %v2419 = vsub.s32 0, %v2418
        %v2420 = vrot.slane %v1188, %v2419
        %v2421 = vlaneseq
        %v2422 = vshrl.u32 %v2421, 7
        %v2423 = vsub.s32 0, %v2422
        %v2424 = vrot.slane %v1196, %v2423
        %v2425 = vlaneseq
        %v2426 = vshrl.u32 %v2425, 7
        %v2427 = vsub.s32 0, %v2426
        %v2428 = vrot.slane %v1198, %v2427
        %v2429 = vlaneseq
        %v2430 = vshrl.u32 %v2429, 7
        %v2431 = vsub.s32 0, %v2430
        %v2432 = vrot.slane %v1181, %v2431
        %v2433 = vlaneseq
        %v2434 = vshrl.u32 %v2433, 7
        %v2435 = vsub.s32 0, %v2434
        %v2436 = vrot.slane %v1195, %v2435
        %v2437 = vlaneseq
        %v2438 = vshrl.u32 %v2437, 7
        %v2439 = vsub.s32 0, %v2438
        %v2440 = vrot.slane %v1197, %v2439
        %v2441 = vlaneseq
        %v2442 = vshrl.u32 %v2441, 7
        %v2443 = vsub.s32 0, %v2442
        %v2444 = vrot.slane %v1199, %v2443
        %v2445 = vlaneseq
        %v2446 = vshrl.u32 %v2445, 7
        %v2447 = vsub.s32 0, %v2446
        %v2448 = vrot.slane %v1223, %v2447
        %v2449 = vlaneseq
        %v2450 = vshrl.u32 %v2449, 7
        %v2451 = vsub.s32 0, %v2450
        %v2452 = vrot.slane %v1237, %v2451
        %v2453 = vlaneseq
        %v2454 = vshrl.u32 %v2453, 7
        %v2455 = vsub.s32 0, %v2454
        %v2456 = vrot.slane %v1245, %v2455
        %v2457 = vlaneseq
        %v2458 = vshrl.u32 %v2457, 7
        %v2459 = vsub.s32 0, %v2458
        %v2460 = vrot.slane %v1247, %v2459
        %v2461 = vlaneseq
        %v2462 = vshrl.u32 %v2461, 7
        %v2463 = vsub.s32 0, %v2462
        %v2464 = vrot.slane %v1230, %v2463
        %v2465 = vlaneseq
        %v2466 = vshrl.u32 %v2465, 7
        %v2467 = vsub.s32 0, %v2466
        %v2468 = vrot.slane %v1244, %v2467
        %v2469 = vlaneseq
        %v2470 = vshrl.u32 %v2469, 7
        %v2471 = vsub.s32 0, %v2470
        %v2472 = vrot.slane %v1246, %v2471
        %v2473 = vlaneseq
        %v2474 = vshrl.u32 %v2473, 7
        %v2475 = vsub.s32 0, %v2474
        %v2476 = vrot.slane %v1248, %v2475
        %v2477 = vlaneseq
        %v2478 = vshrl.u32 %v2477, 7
        %v2479 = vsub.s32 0, %v2478
        %v2480 = vrot.slane %v1272, %v2479
        %v2481 = vlaneseq
        %v2482 = vshrl.u32 %v2481, 7
        %v2483 = vsub.s32 0, %v2482
        %v2484 = vrot.slane %v1286, %v2483
        %v2485 = vlaneseq
        %v2486 = vshrl.u32 %v2485, 7
        %v2487 = vsub.s32 0, %v2486
        %v2488 = vrot.slane %v1294, %v2487
        %v2489 = vlaneseq
        %v2490 = vshrl.u32 %v2489, 7
        %v2491 = vsub.s32 0, %v2490
        %v2492 = vrot.slane %v1296, %v2491
        %v2493 = vlaneseq
        %v2494 = vshrl.u32 %v2493, 7
        %v2495 = vsub.s32 0, %v2494
        %v2496 = vrot.slane %v1279, %v2495
        %v2497 = vlaneseq
        %v2498 = vshrl.u32 %v2497, 7
        %v2499 = vsub.s32 0, %v2498
        %v2500 = vrot.slane %v1293, %v2499
        %v2501 = vlaneseq
        %v2502 = vshrl.u32 %v2501, 7
        %v2503 = vsub.s32 0, %v2502
        %v2504 = vrot.slane %v1295, %v2503
        %v2505 = vlaneseq
        %v2506 = vshrl.u32 %v2505, 7
        %v2507 = vsub.s32 0, %v2506
        %v2508 = vrot.slane %v1297, %v2507
        %v2509 = vlaneseq
        %v2510 = vshrl.u32 %v2509, 7
        %v2511 = vsub.s32 0, %v2510
        %v2512 = vrot.slane %v1321, %v2511
        %v2513 = vlaneseq
        %v2514 = vshrl.u32 %v2513, 7
        %v2515 = vsub.s32 0, %v2514
        %v2516 = vrot.slane %v1335, %v2515
        %v2517 = vlaneseq
        %v2518 = vshrl.u32 %v2517, 7
        %v2519 = vsub.s32 0, %v2518
        %v2520 = vrot.slane %v1343, %v2519
        %v2521 = vlaneseq
        %v2522 = vshrl.u32 %v2521, 7
        %v2523 = vsub.s32 0, %v2522
        %v2524 = vrot.slane %v1345, %v2523
        %v2525 = vlaneseq
        %v2526 = vshrl.u32 %v2525, 7
        %v2527 = vsub.s32 0, %v2526
        %v2528 = vrot.slane %v1328, %v2527
        %v2529 = vlaneseq
        %v2530 = vshrl.u32 %v2529, 7
        %v2531 = vsub.s32 0, %v2530
        %v2532 = vrot.slane %v1342, %v2531
        %v2533 = vlaneseq
        %v2534 = vshrl.u32 %v2533, 7
        %v2535 = vsub.s32 0, %v2534
        %v2536 = vrot.slane %v1344, %v2535
        %v2537 = vlaneseq
        %v2538 = vshrl.u32 %v2537, 7
        %v2539 = vsub.s32 0, %v2538
        %v2540 = vrot.slane %v1346, %v2539
        %v2541 = vlaneseq
        %v2542 = vshrl.u32 %v2541, 7
        %v2543 = vsub.s32 0, %v2542
        %v2544 = vrot.slane %v1370, %v2543
        %v2545 = vlaneseq
        %v2546 = vshrl.u32 %v2545, 7
        %v2547 = vsub.s32 0, %v2546
        %v2548 = vrot.slane %v1384, %v2547
        %v2549 = vlaneseq
        %v2550 = vshrl.u32 %v2549, 7
        %v2551 = vsub.s32 0, %v2550
        %v2552 = vrot.slane %v1392, %v2551
        %v2553 = vlaneseq
        %v2554 = vshrl.u32 %v2553, 7
        %v2555 = vsub.s32 0, %v2554
        %v2556 = vrot.slane %v1394, %v2555
        %v2557 = vlaneseq
        %v2558 = vshrl.u32 %v2557, 7
        %v2559 = vsub.s32 0, %v2558
        %v2560 = vrot.slane %v1377, %v2559
        %v2561 = vlaneseq
        %v2562 = vshrl.u32 %v2561, 7
        %v2563 = vsub.s32 0, %v2562
        %v2564 = vrot.slane %v1391, %v2563
        %v2565 = vlaneseq
        %v2566 = vshrl.u32 %v2565, 7
        %v2567 = vsub.s32 0, %v2566
        %v2568 = vrot.slane %v1393, %v2567
        %v2569 = vlaneseq
        %v2570 = vshrl.u32 %v2569, 7
        %v2571 = vsub.s32 0, %v2570
        %v2572 = vrot.slane %v1395, %v2571
        %v2573 = vlaneseq
        %v2574 = vshrl.u32 %v2573, 7
        %v2575 = vsub.s32 0, %v2574
        %v2576 = vrot.slane %v1419, %v2575
        %v2577 = vlaneseq
        %v2578 = vshrl.u32 %v2577, 7
        %v2579 = vsub.s32 0, %v2578
        %v2580 = vrot.slane %v1433, %v2579
        %v2581 = vlaneseq
        %v2582 = vshrl.u32 %v2581, 7
        %v2583 = vsub.s32 0, %v2582
        %v2584 = vrot.slane %v1441, %v2583
        %v2585 = vlaneseq
        %v2586 = vshrl.u32 %v2585, 7
        %v2587 = vsub.s32 0, %v2586
        %v2588 = vrot.slane %v1443, %v2587
        %v2589 = vlaneseq
        %v2590 = vshrl.u32 %v2589, 7
        %v2591 = vsub.s32 0, %v2590
        %v2592 = vrot.slane %v1426, %v2591
        %v2593 = vlaneseq
        %v2594 = vshrl.u32 %v2593, 7
        %v2595 = vsub.s32 0, %v2594
        %v2596 = vrot.slane %v1440, %v2595
        %v2597 = vlaneseq
        %v2598 = vshrl.u32 %v2597, 7
        %v2599 = vsub.s32 0, %v2598
        %v2600 = vrot.slane %v1442, %v2599
        %v2601 = vlaneseq
        %v2602 = vshrl.u32 %v2601, 7
        %v2603 = vsub.s32 0, %v2602
        %v2604 = vrot.slane %v1444, %v2603
        %v2605 = vlaneseq
        %v2606 = vshrl.u32 %v2605, 7
        %v2607 = vsub.s32 0, %v2606
        %v2608 = vrot.slane %v1468, %v2607
        %v2609 = vlaneseq
        %v2610 = vshrl.u32 %v2609, 7
        %v2611 = vsub.s32 0, %v2610
        %v2612 = vrot.slane %v1482, %v2611
        %v2613 = vlaneseq
        %v2614 = vshrl.u32 %v2613, 7
        %v2615 = vsub.s32 0, %v2614
        %v2616 = vrot.slane %v1490, %v2615
        %v2617 = vlaneseq
        %v2618 = vshrl.u32 %v2617, 7
        %v2619 = vsub.s32 0, %v2618
        %v2620 = vrot.slane %v1492, %v2619
        %v2621 = vlaneseq
        %v2622 = vshrl.u32 %v2621, 7
        %v2623 = vsub.s32 0, %v2622
        %v2624 = vrot.slane %v1475, %v2623
        %v2625 = vlaneseq
        %v2626 = vshrl.u32 %v2625, 7
        %v2627 = vsub.s32 0, %v2626
        %v2628 = vrot.slane %v1489, %v2627
        %v2629 = vlaneseq
        %v2630 = vshrl.u32 %v2629, 7
        %v2631 = vsub.s32 0, %v2630
        %v2632 = vrot.slane %v1491, %v2631
        %v2633 = vlaneseq
        %v2634 = vshrl.u32 %v2633, 7
        %v2635 = vsub.s32 0, %v2634
        %v2636 = vrot.slane %v1493, %v2635
        %v2637 = vlaneseq
        %v2638 = vshrl.u32 %v2637, 7
        %v2639 = vsub.s32 0, %v2638
        %v2640 = vrot.slane %v1517, %v2639
        %v2641 = vlaneseq
        %v2642 = vshrl.u32 %v2641, 7
        %v2643 = vsub.s32 0, %v2642
        %v2644 = vrot.slane %v1531, %v2643
        %v2645 = vlaneseq
        %v2646 = vshrl.u32 %v2645, 7
        %v2647 = vsub.s32 0, %v2646
        %v2648 = vrot.slane %v1539, %v2647
        %v2649 = vlaneseq
        %v2650 = vshrl.u32 %v2649, 7
        %v2651 = vsub.s32 0, %v2650
        %v2652 = vrot.slane %v1541, %v2651
        %v2653 = vlaneseq
        %v2654 = vshrl.u32 %v2653, 7
        %v2655 = vsub.s32 0, %v2654
        %v2656 = vrot.slane %v1524, %v2655
        %v2657 = vlaneseq
        %v2658 = vshrl.u32 %v2657, 7
        %v2659 = vsub.s32 0, %v2658
        %v2660 = vrot.slane %v1538, %v2659
        %v2661 = vlaneseq
        %v2662 = vshrl.u32 %v2661, 7
        %v2663 = vsub.s32 0, %v2662
        %v2664 = vrot.slane %v1540, %v2663
        %v2665 = vlaneseq
        %v2666 = vshrl.u32 %v2665, 7
        %v2667 = vsub.s32 0, %v2666
        %v2668 = vrot.slane %v1542, %v2667
        %v2669 = vlaneseq
        %v2670 = vshrl.u32 %v2669, 7
        %v2671 = vsub.s32 0, %v2670
        %v2672 = vrot.slane %v1566, %v2671
        %v2673 = vlaneseq
        %v2674 = vshrl.u32 %v2673, 7
        %v2675 = vsub.s32 0, %v2674
        %v2676 = vrot.slane %v1580, %v2675
        %v2677 = vlaneseq
        %v2678 = vshrl.u32 %v2677, 7
        %v2679 = vsub.s32 0, %v2678
        %v2680 = vrot.slane %v1588, %v2679
        %v2681 = vlaneseq
        %v2682 = vshrl.u32 %v2681, 7
        %v2683 = vsub.s32 0, %v2682
        %v2684 = vrot.slane %v1590, %v2683
        %v2685 = vlaneseq
        %v2686 = vshrl.u32 %v2685, 7
        %v2687 = vsub.s32 0, %v2686
        %v2688 = vrot.slane %v1573, %v2687
        %v2689 = vlaneseq
        %v2690 = vshrl.u32 %v2689, 7
        %v2691 = vsub.s32 0, %v2690
        %v2692 = vrot.slane %v1587, %v2691
        %v2693 = vlaneseq
        %v2694 = vshrl.u32 %v2693, 7
        %v2695 = vsub.s32 0, %v2694
        %v2696 = vrot.slane %v1589, %v2695
        %v2697 = vlaneseq
        %v2698 = vshrl.u32 %v2697, 7
        %v2699 = vsub.s32 0, %v2698
        %v2700 = vrot.slane %v1591, %v2699
        %v2701 = vlaneseq
        %v2702 = vshrl.u32 %v2701, 7
        %v2703 = vsub.s32 0, %v2702
        %v2704 = vrot.slane %v1615, %v2703
        %v2705 = vlaneseq
        %v2706 = vshrl.u32 %v2705, 7
        %v2707 = vsub.s32 0, %v2706
        %v2708 = vrot.slane %v1629, %v2707
        %v2709 = vlaneseq
        %v2710 = vshrl.u32 %v2709, 7
        %v2711 = vsub.s32 0, %v2710
        %v2712 = vrot.slane %v1637, %v2711
        %v2713 = vlaneseq
        %v2714 = vshrl.u32 %v2713, 7
        %v2715 = vsub.s32 0, %v2714
        %v2716 = vrot.slane %v1639, %v2715
        %v2717 = vlaneseq
        %v2718 = vshrl.u32 %v2717, 7
        %v2719 = vsub.s32 0, %v2718
        %v2720 = vrot.slane %v1622, %v2719
        %v2721 = vlaneseq
        %v2722 = vshrl.u32 %v2721, 7
        %v2723 = vsub.s32 0, %v2722
        %v2724 = vrot.slane %v1636, %v2723
        %v2725 = vlaneseq
        %v2726 = vshrl.u32 %v2725, 7
        %v2727 = vsub.s32 0, %v2726
        %v2728 = vrot.slane %v1638, %v2727
        %v2729 = vlaneseq
        %v2730 = vshrl.u32 %v2729, 7
        %v2731 = vsub.s32 0, %v2730
        %v2732 = vrot.slane %v1640, %v2731
        %v2733 = vlaneseq
        %v2734 = vshrl.u32 %v2733, 7
        %v2735 = vsub.s32 0, %v2734
        %v2736 = vrot.slane %v1664, %v2735
        %v2737 = vlaneseq
        %v2738 = vshrl.u32 %v2737, 7
        %v2739 = vsub.s32 0, %v2738
        %v2740 = vrot.slane %v1678, %v2739
        %v2741 = vlaneseq
        %v2742 = vshrl.u32 %v2741, 7
        %v2743 = vsub.s32 0, %v2742
        %v2744 = vrot.slane %v1686, %v2743
        %v2745 = vlaneseq
        %v2746 = vshrl.u32 %v2745, 7
        %v2747 = vsub.s32 0, %v2746
        %v2748 = vrot.slane %v1688, %v2747
        %v2749 = vlaneseq
        %v2750 = vshrl.u32 %v2749, 7
        %v2751 = vsub.s32 0, %v2750
        %v2752 = vrot.slane %v1671, %v2751
        %v2753 = vlaneseq
        %v2754 = vshrl.u32 %v2753, 7
        %v2755 = vsub.s32 0, %v2754
        %v2756 = vrot.slane %v1685, %v2755
        %v2757 = vlaneseq
        %v2758 = vshrl.u32 %v2757, 7
        %v2759 = vsub.s32 0, %v2758
        %v2760 = vrot.slane %v1687, %v2759
        %v2761 = vlaneseq
        %v2762 = vshrl.u32 %v2761, 7
        %v2763 = vsub.s32 0, %v2762
        %v2764 = vrot.slane %v1689, %v2763
        %v2765 = vlaneseq
        %v2766 = vshrl.u32 %v2765, 7
        %v2767 = vsub.s32 0, %v2766
        %v2768 = vrot.slane %v1713, %v2767
        %v2769 = vlaneseq
        %v2770 = vshrl.u32 %v2769, 7
        %v2771 = vsub.s32 0, %v2770
        %v2772 = vrot.slane %v1727, %v2771
        %v2773 = vlaneseq
        %v2774 = vshrl.u32 %v2773, 7
        %v2775 = vsub.s32 0, %v2774
        %v2776 = vrot.slane %v1735, %v2775
        %v2777 = vlaneseq
        %v2778 = vshrl.u32 %v2777, 7
        %v2779 = vsub.s32 0, %v2778
        %v2780 = vrot.slane %v1737, %v2779
        %v2781 = vlaneseq
        %v2782 = vshrl.u32 %v2781, 7
        %v2783 = vsub.s32 0, %v2782
        %v2784 = vrot.slane %v1720, %v2783
        %v2785 = vlaneseq
        %v2786 = vshrl.u32 %v2785, 7
        %v2787 = vsub.s32 0, %v2786
        %v2788 = vrot.slane %v1734, %v2787
        %v2789 = vlaneseq
        %v2790 = vshrl.u32 %v2789, 7
        %v2791 = vsub.s32 0, %v2790
        %v2792 = vrot.slane %v1736, %v2791
        %v2793 = vlaneseq
        %v2794 = vshrl.u32 %v2793, 7
        %v2795 = vsub.s32 0, %v2794
        %v2796 = vrot.slane %v1738, %v2795
        %v2797 = vlaneseq
        %v2798 = vshrl.u32 %v2797, 7
        %v2799 = vsub.s32 0, %v2798
        %v2800 = vrot.slane %v1762, %v2799
        %v2801 = vlaneseq
        %v2802 = vshrl.u32 %v2801, 7
        %v2803 = vsub.s32 0, %v2802
        %v2804 = vrot.slane %v1776, %v2803
        %v2805 = vlaneseq
        %v2806 = vshrl.u32 %v2805, 7
        %v2807 = vsub.s32 0, %v2806
        %v2808 = vrot.slane %v1784, %v2807
        %v2809 = vlaneseq
        %v2810 = vshrl.u32 %v2809, 7
        %v2811 = vsub.s32 0, %v2810
        %v2812 = vrot.slane %v1786, %v2811
        %v2813 = vlaneseq
        %v2814 = vshrl.u32 %v2813, 7
        %v2815 = vsub.s32 0, %v2814
        %v2816 = vrot.slane %v1769, %v2815
        %v2817 = vlaneseq
        %v2818 = vshrl.u32 %v2817, 7
        %v2819 = vsub.s32 0, %v2818
        %v2820 = vrot.slane %v1783, %v2819
        %v2821 = vlaneseq
        %v2822 = vshrl.u32 %v2821, 7
        %v2823 = vsub.s32 0, %v2822
        %v2824 = vrot.slane %v1785, %v2823
        %v2825 = vlaneseq
        %v2826 = vshrl.u32 %v2825, 7
        %v2827 = vsub.s32 0, %v2826
        %v2828 = vrot.slane %v1787, %v2827
        %v2829 = vlaneseq
        %v2830 = vshrl.u32 %v2829, 7
        %v2831 = vsub.s32 0, %v2830
        %v2832 = vrot.slane %v1811, %v2831
        %v2833 = vlaneseq
        %v2834 = vshrl.u32 %v2833, 7
        %v2835 = vsub.s32 0, %v2834
        %v2836 = vrot.slane %v1825, %v2835
        %v2837 = vlaneseq
        %v2838 = vshrl.u32 %v2837, 7
        %v2839 = vsub.s32 0, %v2838
        %v2840 = vrot.slane %v1833, %v2839
        %v2841 = vlaneseq
        %v2842 = vshrl.u32 %v2841, 7
        %v2843 = vsub.s32 0, %v2842
        %v2844 = vrot.slane %v1835, %v2843
        %v2845 = vlaneseq
        %v2846 = vshrl.u32 %v2845, 7
        %v2847 = vsub.s32 0, %v2846
        %v2848 = vrot.slane %v1818, %v2847
        %v2849 = vlaneseq
        %v2850 = vshrl.u32 %v2849, 7
        %v2851 = vsub.s32 0, %v2850
        %v2852 = vrot.slane %v1832, %v2851
        %v2853 = vlaneseq
        %v2854 = vshrl.u32 %v2853, 7
        %v2855 = vsub.s32 0, %v2854
        %v2856 = vrot.slane %v1834, %v2855
        %v2857 = vlaneseq
        %v2858 = vshrl.u32 %v2857, 7
        %v2859 = vsub.s32 0, %v2858
        %v2860 = vrot.slane %v1836, %v2859
        %v2861 = vlaneseq
        %v2862 = vshrl.u32 %v2861, 7
        %v2863 = vsub.s32 1, %v2862
        %v2864 = vrot.slane %v1840, %v2863
        %v2865 = vlaneseq
        %v2866 = vshrl.u32 %v2865, 7
        %v2867 = vsub.s32 1, %v2866
        %v2868 = vrot.slane %v1904, %v2867
        %v2869 = vlaneseq
        %v2870 = vshrl.u32 %v2869, 7
        %v2871 = vsub.s32 1, %v2870
        %v2872 = vrot.slane %v1968, %v2871
        %v2873 = vlaneseq
        %v2874 = vshrl.u32 %v2873, 7
        %v2875 = vsub.s32 1, %v2874
        %v2876 = vrot.slane %v2032, %v2875
        %v2877 = vlaneseq
        %v2878 = vshrl.u32 %v2877, 7
        %v2879 = vsub.s32 1, %v2878
        %v2880 = vrot.slane %v2096, %v2879
        %v2881 = vlaneseq
        %v2882 = vshrl.u32 %v2881, 7
        %v2883 = vsub.s32 1, %v2882
        %v2884 = vrot.slane %v2160, %v2883
        %v2885 = vlaneseq
        %v2886 = vshrl.u32 %v2885, 7
        %v2887 = vsub.s32 1, %v2886
        %v2888 = vrot.slane %v2224, %v2887
        %v2889 = vlaneseq
        %v2890 = vshrl.u32 %v2889, 7
        %v2891 = vsub.s32 1, %v2890
        %v2892 = vrot.slane %v2288, %v2891
        %v2893 = vlaneseq
        %v2894 = vshrl.u32 %v2893, 7
        %v2895 = vsub.s32 1, %v2894
        %v2896 = vrot.slane %v2352, %v2895
        %v2897 = vlaneseq
        %v2898 = vshrl.u32 %v2897, 7
        %v2899 = vsub.s32 1, %v2898
        %v2900 = vrot.slane %v2416, %v2899
        %v2901 = vlaneseq
        %v2902 = vshrl.u32 %v2901, 7
        %v2903 = vsub.s32 1, %v2902
        %v2904 = vrot.slane %v2480, %v2903
        %v2905 = vlaneseq
        %v2906 = vshrl.u32 %v2905, 7
        %v2907 = vsub.s32 1, %v2906
        %v2908 = vrot.slane %v2544, %v2907
        %v2909 = vlaneseq
        %v2910 = vshrl.u32 %v2909, 7
        %v2911 = vsub.s32 1, %v2910
        %v2912 = vrot.slane %v2608, %v2911
        %v2913 = vlaneseq
        %v2914 = vshrl.u32 %v2913, 7
        %v2915 = vsub.s32 1, %v2914
        %v2916 = vrot.slane %v2672, %v2915
        %v2917 = vlaneseq
        %v2918 = vshrl.u32 %v2917, 7
        %v2919 = vsub.s32 1, %v2918
        %v2920 = vrot.slane %v2736, %v2919
        %v2921 = vlaneseq
        %v2922 = vshrl.u32 %v2921, 7
        %v2923 = vsub.s32 1, %v2922
        %v2924 = vrot.slane %v2800, %v2923
        %v2941 = vcombine.low %v1840, %v1844
        %v2942 = vcombine.low %v1848, %v1852
        %v2944 = vunpack.c.l.s4 1983009808
        %v2945 = vunpack.c.0.s8 %v2944
        %v2946 = vlaneseq
        %v2947 = vshrl.u32 %v2946, 7
        %v2948 = vsub.s32 %v2945, %v2947
        %v2949 = vrot.slane %v2941, %v2948
        %v2951 = vunpack.c.l.s4 1983009808
        %v2952 = vunpack.c.0.s8 %v2951
        %v2953 = vlaneseq
        %v2954 = vshrl.u32 %v2953, 7
        %v2955 = vsub.s32 %v2952, %v2954
        %v2956 = vrot.slane %v2942, %v2955
        %v2957 = vcombine.low %v2949, %v2956
        %v2958 = vcombine.low %v1856, %v1860
        %v2959 = vcombine.low %v1864, %v1868
        %v2961 = vunpack.c.l.s4 1983009808
        %v2962 = vunpack.c.0.s8 %v2961
        %v2963 = vlaneseq
        %v2964 = vshrl.u32 %v2963, 7
        %v2965 = vsub.s32 %v2962, %v2964
        %v2966 = vrot.slane %v2958, %v2965
        %v2968 = vunpack.c.l.s4 1983009808
        %v2969 = vunpack.c.0.s8 %v2968
        %v2970 = vlaneseq
        %v2971 = vshrl.u32 %v2970, 7
        %v2972 = vsub.s32 %v2969, %v2971
        %v2973 = vrot.slane %v2959, %v2972
        %v2974 = vcombine.low %v2966, %v2973
        %v2975 = vcombine.low %v1872, %v1876
        %v2976 = vcombine.low %v1880, %v1884
        %v2978 = vunpack.c.l.s4 1983009808
        %v2979 = vunpack.c.0.s8 %v2978
        %v2980 = vlaneseq
        %v2981 = vshrl.u32 %v2980, 7
        %v2982 = vsub.s32 %v2979, %v2981
        %v2983 = vrot.slane %v2975, %v2982
        %v2985 = vunpack.c.l.s4 1983009808
        %v2986 = vunpack.c.0.s8 %v2985
        %v2987 = vlaneseq
        %v2988 = vshrl.u32 %v2987, 7
        %v2989 = vsub.s32 %v2986, %v2988
        %v2990 = vrot.slane %v2976, %v2989
        %v2991 = vcombine.low %v2983, %v2990
        %v2992 = vcombine.low %v1888, %v1892
        %v2993 = vcombine.low %v1896, %v1900
        %v2995 = vunpack.c.l.s4 1983009808
        %v2996 = vunpack.c.0.s8 %v2995
        %v2997 = vlaneseq
        %v2998 = vshrl.u32 %v2997, 7
        %v2999 = vsub.s32 %v2996, %v2998
        %v3000 = vrot.slane %v2992, %v2999
        %v3002 = vunpack.c.l.s4 1983009808
        %v3003 = vunpack.c.0.s8 %v3002
        %v3004 = vlaneseq
        %v3005 = vshrl.u32 %v3004, 7
        %v3006 = vsub.s32 %v3003, %v3005
        %v3007 = vrot.slane %v2993, %v3006
        %v3008 = vcombine.low %v3000, %v3007
        %v3009 = vcombine.low %v1904, %v1908
        %v3010 = vcombine.low %v1912, %v1916
        %v3012 = vunpack.c.l.s4 1983009808
        %v3013 = vunpack.c.0.s8 %v3012
        %v3014 = vlaneseq
        %v3015 = vshrl.u32 %v3014, 7
        %v3016 = vsub.s32 %v3013, %v3015
        %v3017 = vrot.slane %v3009, %v3016
        %v3019 = vunpack.c.l.s4 1983009808
        %v3020 = vunpack.c.0.s8 %v3019
        %v3021 = vlaneseq
        %v3022 = vshrl.u32 %v3021, 7
        %v3023 = vsub.s32 %v3020, %v3022
        %v3024 = vrot.slane %v3010, %v3023
        %v3025 = vcombine.low %v3017, %v3024
        %v3026 = vcombine.low %v1920, %v1924
        %v3027 = vcombine.low %v1928, %v1932
        %v3029 = vunpack.c.l.s4 1983009808
        %v3030 = vunpack.c.0.s8 %v3029
        %v3031 = vlaneseq
        %v3032 = vshrl.u32 %v3031, 7
        %v3033 = vsub.s32 %v3030, %v3032
        %v3034 = vrot.slane %v3026, %v3033
        %v3036 = vunpack.c.l.s4 1983009808
        %v3037 = vunpack.c.0.s8 %v3036
        %v3038 = vlaneseq
        %v3039 = vshrl.u32 %v3038, 7
        %v3040 = vsub.s32 %v3037, %v3039
        %v3041 = vrot.slane %v3027, %v3040
        %v3042 = vcombine.low %v3034, %v3041
        %v3043 = vcombine.low %v1936, %v1940
        %v3044 = vcombine.low %v1944, %v1948
        %v3046 = vunpack.c.l.s4 1983009808
        %v3047 = vunpack.c.0.s8 %v3046
        %v3048 = vlaneseq
        %v3049 = vshrl.u32 %v3048, 7
        %v3050 = vsub.s32 %v3047, %v3049
        %v3051 = vrot.slane %v3043, %v3050
        %v3053 = vunpack.c.l.s4 1983009808
        %v3054 = vunpack.c.0.s8 %v3053
        %v3055 = vlaneseq
        %v3056 = vshrl.u32 %v3055, 7
        %v3057 = vsub.s32 %v3054, %v3056
        %v3058 = vrot.slane %v3044, %v3057
        %v3059 = vcombine.low %v3051, %v3058
        %v3060 = vcombine.low %v1952, %v1956
        %v3061 = vcombine.low %v1960, %v1964
        %v3063 = vunpack.c.l.s4 1983009808
        %v3064 = vunpack.c.0.s8 %v3063
        %v3065 = vlaneseq
        %v3066 = vshrl.u32 %v3065, 7
        %v3067 = vsub.s32 %v3064, %v3066
        %v3068 = vrot.slane %v3060, %v3067
        %v3070 = vunpack.c.l.s4 1983009808
        %v3071 = vunpack.c.0.s8 %v3070
        %v3072 = vlaneseq
        %v3073 = vshrl.u32 %v3072, 7
        %v3074 = vsub.s32 %v3071, %v3073
        %v3075 = vrot.slane %v3061, %v3074
        %v3076 = vcombine.low %v3068, %v3075
        %v3077 = vcombine.low %v1968, %v1972
        %v3078 = vcombine.low %v1976, %v1980
        %v3080 = vunpack.c.l.s4 1983009808
        %v3081 = vunpack.c.0.s8 %v3080
        %v3082 = vlaneseq
        %v3083 = vshrl.u32 %v3082, 7
        %v3084 = vsub.s32 %v3081, %v3083
        %v3085 = vrot.slane %v3077, %v3084
        %v3087 = vunpack.c.l.s4 1983009808
        %v3088 = vunpack.c.0.s8 %v3087
        %v3089 = vlaneseq
        %v3090 = vshrl.u32 %v3089, 7
        %v3091 = vsub.s32 %v3088, %v3090
        %v3092 = vrot.slane %v3078, %v3091
        %v3093 = vcombine.low %v3085, %v3092
        %v3094 = vcombine.low %v1984, %v1988
        %v3095 = vcombine.low %v1992, %v1996
        %v3097 = vunpack.c.l.s4 1983009808
        %v3098 = vunpack.c.0.s8 %v3097
        %v3099 = vlaneseq
        %v3100 = vshrl.u32 %v3099, 7
        %v3101 = vsub.s32 %v3098, %v3100
        %v3102 = vrot.slane %v3094, %v3101
        %v3104 = vunpack.c.l.s4 1983009808
        %v3105 = vunpack.c.0.s8 %v3104
        %v3106 = vlaneseq
        %v3107 = vshrl.u32 %v3106, 7
        %v3108 = vsub.s32 %v3105, %v3107
        %v3109 = vrot.slane %v3095, %v3108
        %v3110 = vcombine.low %v3102, %v3109
        %v3111 = vcombine.low %v2000, %v2004
        %v3112 = vcombine.low %v2008, %v2012
        %v3114 = vunpack.c.l.s4 1983009808
        %v3115 = vunpack.c.0.s8 %v3114
        %v3116 = vlaneseq
        %v3117 = vshrl.u32 %v3116, 7
        %v3118 = vsub.s32 %v3115, %v3117
        %v3119 = vrot.slane %v3111, %v3118
        %v3121 = vunpack.c.l.s4 1983009808
        %v3122 = vunpack.c.0.s8 %v3121
        %v3123 = vlaneseq
        %v3124 = vshrl.u32 %v3123, 7
        %v3125 = vsub.s32 %v3122, %v3124
        %v3126 = vrot.slane %v3112, %v3125
        %v3127 = vcombine.low %v3119, %v3126
        %v3128 = vcombine.low %v2016, %v2020
        %v3129 = vcombine.low %v2024, %v2028
        %v3131 = vunpack.c.l.s4 1983009808
        %v3132 = vunpack.c.0.s8 %v3131
        %v3133 = vlaneseq
        %v3134 = vshrl.u32 %v3133, 7
        %v3135 = vsub.s32 %v3132, %v3134
        %v3136 = vrot.slane %v3128, %v3135
        %v3138 = vunpack.c.l.s4 1983009808
        %v3139 = vunpack.c.0.s8 %v3138
        %v3140 = vlaneseq
        %v3141 = vshrl.u32 %v3140, 7
        %v3142 = vsub.s32 %v3139, %v3141
        %v3143 = vrot.slane %v3129, %v3142
        %v3144 = vcombine.low %v3136, %v3143
        %v3145 = vcombine.low %v2032, %v2036
        %v3146 = vcombine.low %v2040, %v2044
        %v3148 = vunpack.c.l.s4 1983009808
        %v3149 = vunpack.c.0.s8 %v3148
        %v3150 = vlaneseq
        %v3151 = vshrl.u32 %v3150, 7
        %v3152 = vsub.s32 %v3149, %v3151
        %v3153 = vrot.slane %v3145, %v3152
        %v3155 = vunpack.c.l.s4 1983009808
        %v3156 = vunpack.c.0.s8 %v3155
        %v3157 = vlaneseq
        %v3158 = vshrl.u32 %v3157, 7
        %v3159 = vsub.s32 %v3156, %v3158
        %v3160 = vrot.slane %v3146, %v3159
        %v3161 = vcombine.low %v3153, %v3160
        %v3162 = vcombine.low %v2048, %v2052
        %v3163 = vcombine.low %v2056, %v2060
        %v3165 = vunpack.c.l.s4 1983009808
        %v3166 = vunpack.c.0.s8 %v3165
        %v3167 = vlaneseq
        %v3168 = vshrl.u32 %v3167, 7
        %v3169 = vsub.s32 %v3166, %v3168
        %v3170 = vrot.slane %v3162, %v3169
        %v3172 = vunpack.c.l.s4 1983009808
        %v3173 = vunpack.c.0.s8 %v3172
        %v3174 = vlaneseq
        %v3175 = vshrl.u32 %v3174, 7
        %v3176 = vsub.s32 %v3173, %v3175
        %v3177 = vrot.slane %v3163, %v3176
        %v3178 = vcombine.low %v3170, %v3177
        %v3179 = vcombine.low %v2064, %v2068
        %v3180 = vcombine.low %v2072, %v2076
        %v3182 = vunpack.c.l.s4 1983009808
        %v3183 = vunpack.c.0.s8 %v3182
        %v3184 = vlaneseq
        %v3185 = vshrl.u32 %v3184, 7
        %v3186 = vsub.s32 %v3183, %v3185
        %v3187 = vrot.slane %v3179, %v3186
        %v3189 = vunpack.c.l.s4 1983009808
        %v3190 = vunpack.c.0.s8 %v3189
        %v3191 = vlaneseq
        %v3192 = vshrl.u32 %v3191, 7
        %v3193 = vsub.s32 %v3190, %v3192
        %v3194 = vrot.slane %v3180, %v3193
        %v3195 = vcombine.low %v3187, %v3194
        %v3196 = vcombine.low %v2080, %v2084
        %v3197 = vcombine.low %v2088, %v2092
        %v3199 = vunpack.c.l.s4 1983009808
        %v3200 = vunpack.c.0.s8 %v3199
        %v3201 = vlaneseq
        %v3202 = vshrl.u32 %v3201, 7
        %v3203 = vsub.s32 %v3200, %v3202
        %v3204 = vrot.slane %v3196, %v3203
        %v3206 = vunpack.c.l.s4 1983009808
        %v3207 = vunpack.c.0.s8 %v3206
        %v3208 = vlaneseq
        %v3209 = vshrl.u32 %v3208, 7
        %v3210 = vsub.s32 %v3207, %v3209
        %v3211 = vrot.slane %v3197, %v3210
        %v3212 = vcombine.low %v3204, %v3211
        %v3213 = vcombine.low %v2096, %v2100
        %v3214 = vcombine.low %v2104, %v2108
        %v3216 = vunpack.c.l.s4 1983009808
        %v3217 = vunpack.c.0.s8 %v3216
        %v3218 = vlaneseq
        %v3219 = vshrl.u32 %v3218, 7
        %v3220 = vsub.s32 %v3217, %v3219
        %v3221 = vrot.slane %v3213, %v3220
        %v3223 = vunpack.c.l.s4 1983009808
        %v3224 = vunpack.c.0.s8 %v3223
        %v3225 = vlaneseq
        %v3226 = vshrl.u32 %v3225, 7
        %v3227 = vsub.s32 %v3224, %v3226
        %v3228 = vrot.slane %v3214, %v3227
        %v3229 = vcombine.low %v3221, %v3228
        %v3230 = vcombine.low %v2112, %v2116
        %v3231 = vcombine.low %v2120, %v2124
        %v3233 = vunpack.c.l.s4 1983009808
        %v3234 = vunpack.c.0.s8 %v3233
        %v3235 = vlaneseq
        %v3236 = vshrl.u32 %v3235, 7
        %v3237 = vsub.s32 %v3234, %v3236
        %v3238 = vrot.slane %v3230, %v3237
        %v3240 = vunpack.c.l.s4 1983009808
        %v3241 = vunpack.c.0.s8 %v3240
        %v3242 = vlaneseq
        %v3243 = vshrl.u32 %v3242, 7
        %v3244 = vsub.s32 %v3241, %v3243
        %v3245 = vrot.slane %v3231, %v3244
        %v3246 = vcombine.low %v3238, %v3245
        %v3247 = vcombine.low %v2128, %v2132
        %v3248 = vcombine.low %v2136, %v2140
        %v3250 = vunpack.c.l.s4 1983009808
        %v3251 = vunpack.c.0.s8 %v3250
        %v3252 = vlaneseq
        %v3253 = vshrl.u32 %v3252, 7
        %v3254 = vsub.s32 %v3251, %v3253
        %v3255 = vrot.slane %v3247, %v3254
        %v3257 = vunpack.c.l.s4 1983009808
        %v3258 = vunpack.c.0.s8 %v3257
        %v3259 = vlaneseq
        %v3260 = vshrl.u32 %v3259, 7
        %v3261 = vsub.s32 %v3258, %v3260
        %v3262 = vrot.slane %v3248, %v3261
        %v3263 = vcombine.low %v3255, %v3262
        %v3264 = vcombine.low %v2144, %v2148
        %v3265 = vcombine.low %v2152, %v2156
        %v3267 = vunpack.c.l.s4 1983009808
        %v3268 = vunpack.c.0.s8 %v3267
        %v3269 = vlaneseq
        %v3270 = vshrl.u32 %v3269, 7
        %v3271 = vsub.s32 %v3268, %v3270
        %v3272 = vrot.slane %v3264, %v3271
        %v3274 = vunpack.c.l.s4 1983009808
        %v3275 = vunpack.c.0.s8 %v3274
        %v3276 = vlaneseq
        %v3277 = vshrl.u32 %v3276, 7
        %v3278 = vsub.s32 %v3275, %v3277
        %v3279 = vrot.slane %v3265, %v3278
        %v3280 = vcombine.low %v3272, %v3279
        %v3281 = vcombine.low %v2160, %v2164
        %v3282 = vcombine.low %v2168, %v2172
        %v3284 = vunpack.c.l.s4 1983009808
        %v3285 = vunpack.c.0.s8 %v3284
        %v3286 = vlaneseq
        %v3287 = vshrl.u32 %v3286, 7
        %v3288 = vsub.s32 %v3285, %v3287
        %v3289 = vrot.slane %v3281, %v3288
        %v3291 = vunpack.c.l.s4 1983009808
        %v3292 = vunpack.c.0.s8 %v3291
        %v3293 = vlaneseq
        %v3294 = vshrl.u32 %v3293, 7
        %v3295 = vsub.s32 %v3292, %v3294
        %v3296 = vrot.slane %v3282, %v3295
        %v3297 = vcombine.low %v3289, %v3296
        %v3298 = vcombine.low %v2176, %v2180
        %v3299 = vcombine.low %v2184, %v2188
        %v3301 = vunpack.c.l.s4 1983009808
        %v3302 = vunpack.c.0.s8 %v3301
        %v3303 = vlaneseq
        %v3304 = vshrl.u32 %v3303, 7
        %v3305 = vsub.s32 %v3302, %v3304
        %v3306 = vrot.slane %v3298, %v3305
        %v3308 = vunpack.c.l.s4 1983009808
        %v3309 = vunpack.c.0.s8 %v3308
        %v3310 = vlaneseq
        %v3311 = vshrl.u32 %v3310, 7
        %v3312 = vsub.s32 %v3309, %v3311
        %v3313 = vrot.slane %v3299, %v3312
        %v3314 = vcombine.low %v3306, %v3313
        %v3315 = vcombine.low %v2192, %v2196
        %v3316 = vcombine.low %v2200, %v2204
        %v3318 = vunpack.c.l.s4 1983009808
        %v3319 = vunpack.c.0.s8 %v3318
        %v3320 = vlaneseq
        %v3321 = vshrl.u32 %v3320, 7
        %v3322 = vsub.s32 %v3319, %v3321
        %v3323 = vrot.slane %v3315, %v3322
        %v3325 = vunpack.c.l.s4 1983009808
        %v3326 = vunpack.c.0.s8 %v3325
        %v3327 = vlaneseq
        %v3328 = vshrl.u32 %v3327, 7
        %v3329 = vsub.s32 %v3326, %v3328
        %v3330 = vrot.slane %v3316, %v3329
        %v3331 = vcombine.low %v3323, %v3330
        %v3332 = vcombine.low %v2208, %v2212
        %v3333 = vcombine.low %v2216, %v2220
        %v3335 = vunpack.c.l.s4 1983009808
        %v3336 = vunpack.c.0.s8 %v3335
        %v3337 = vlaneseq
        %v3338 = vshrl.u32 %v3337, 7
        %v3339 = vsub.s32 %v3336, %v3338
        %v3340 = vrot.slane %v3332, %v3339
        %v3342 = vunpack.c.l.s4 1983009808
        %v3343 = vunpack.c.0.s8 %v3342
        %v3344 = vlaneseq
        %v3345 = vshrl.u32 %v3344, 7
        %v3346 = vsub.s32 %v3343, %v3345
        %v3347 = vrot.slane %v3333, %v3346
        %v3348 = vcombine.low %v3340, %v3347
        %v3349 = vcombine.low %v2224, %v2228
        %v3350 = vcombine.low %v2232, %v2236
        %v3352 = vunpack.c.l.s4 1983009808
        %v3353 = vunpack.c.0.s8 %v3352
        %v3354 = vlaneseq
        %v3355 = vshrl.u32 %v3354, 7
        %v3356 = vsub.s32 %v3353, %v3355
        %v3357 = vrot.slane %v3349, %v3356
        %v3359 = vunpack.c.l.s4 1983009808
        %v3360 = vunpack.c.0.s8 %v3359
        %v3361 = vlaneseq
        %v3362 = vshrl.u32 %v3361, 7
        %v3363 = vsub.s32 %v3360, %v3362
        %v3364 = vrot.slane %v3350, %v3363
        %v3365 = vcombine.low %v3357, %v3364
        %v3366 = vcombine.low %v2240, %v2244
        %v3367 = vcombine.low %v2248, %v2252
        %v3369 = vunpack.c.l.s4 1983009808
        %v3370 = vunpack.c.0.s8 %v3369
        %v3371 = vlaneseq
        %v3372 = vshrl.u32 %v3371, 7
        %v3373 = vsub.s32 %v3370, %v3372
        %v3374 = vrot.slane %v3366, %v3373
        %v3376 = vunpack.c.l.s4 1983009808
        %v3377 = vunpack.c.0.s8 %v3376
        %v3378 = vlaneseq
        %v3379 = vshrl.u32 %v3378, 7
        %v3380 = vsub.s32 %v3377, %v3379
        %v3381 = vrot.slane %v3367, %v3380
        %v3382 = vcombine.low %v3374, %v3381
        %v3383 = vcombine.low %v2256, %v2260
        %v3384 = vcombine.low %v2264, %v2268
        %v3386 = vunpack.c.l.s4 1983009808
        %v3387 = vunpack.c.0.s8 %v3386
        %v3388 = vlaneseq
        %v3389 = vshrl.u32 %v3388, 7
        %v3390 = vsub.s32 %v3387, %v3389
        %v3391 = vrot.slane %v3383, %v3390
        %v3393 = vunpack.c.l.s4 1983009808
        %v3394 = vunpack.c.0.s8 %v3393
        %v3395 = vlaneseq
        %v3396 = vshrl.u32 %v3395, 7
        %v3397 = vsub.s32 %v3394, %v3396
        %v3398 = vrot.slane %v3384, %v3397
        %v3399 = vcombine.low %v3391, %v3398
        %v3400 = vcombine.low %v2272, %v2276
        %v3401 = vcombine.low %v2280, %v2284
        %v3403 = vunpack.c.l.s4 1983009808
        %v3404 = vunpack.c.0.s8 %v3403
        %v3405 = vlaneseq
        %v3406 = vshrl.u32 %v3405, 7
        %v3407 = vsub.s32 %v3404, %v3406
        %v3408 = vrot.slane %v3400, %v3407
        %v3410 = vunpack.c.l.s4 1983009808
        %v3411 = vunpack.c.0.s8 %v3410
        %v3412 = vlaneseq
        %v3413 = vshrl.u32 %v3412, 7
        %v3414 = vsub.s32 %v3411, %v3413
        %v3415 = vrot.slane %v3401, %v3414
        %v3416 = vcombine.low %v3408, %v3415
        %v3417 = vcombine.low %v2288, %v2292
        %v3418 = vcombine.low %v2296, %v2300
        %v3420 = vunpack.c.l.s4 1983009808
        %v3421 = vunpack.c.0.s8 %v3420
        %v3422 = vlaneseq
        %v3423 = vshrl.u32 %v3422, 7
        %v3424 = vsub.s32 %v3421, %v3423
        %v3425 = vrot.slane %v3417, %v3424
        %v3427 = vunpack.c.l.s4 1983009808
        %v3428 = vunpack.c.0.s8 %v3427
        %v3429 = vlaneseq
        %v3430 = vshrl.u32 %v3429, 7
        %v3431 = vsub.s32 %v3428, %v3430
        %v3432 = vrot.slane %v3418, %v3431
        %v3433 = vcombine.low %v3425, %v3432
        %v3434 = vcombine.low %v2304, %v2308
        %v3435 = vcombine.low %v2312, %v2316
        %v3437 = vunpack.c.l.s4 1983009808
        %v3438 = vunpack.c.0.s8 %v3437
        %v3439 = vlaneseq
        %v3440 = vshrl.u32 %v3439, 7
        %v3441 = vsub.s32 %v3438, %v3440
        %v3442 = vrot.slane %v3434, %v3441
        %v3444 = vunpack.c.l.s4 1983009808
        %v3445 = vunpack.c.0.s8 %v3444
        %v3446 = vlaneseq
        %v3447 = vshrl.u32 %v3446, 7
        %v3448 = vsub.s32 %v3445, %v3447
        %v3449 = vrot.slane %v3435, %v3448
        %v3450 = vcombine.low %v3442, %v3449
        %v3451 = vcombine.low %v2320, %v2324
        %v3452 = vcombine.low %v2328, %v2332
        %v3454 = vunpack.c.l.s4 1983009808
        %v3455 = vunpack.c.0.s8 %v3454
        %v3456 = vlaneseq
        %v3457 = vshrl.u32 %v3456, 7
        %v3458 = vsub.s32 %v3455, %v3457
        %v3459 = vrot.slane %v3451, %v3458
        %v3461 = vunpack.c.l.s4 1983009808
        %v3462 = vunpack.c.0.s8 %v3461
        %v3463 = vlaneseq
        %v3464 = vshrl.u32 %v3463, 7
        %v3465 = vsub.s32 %v3462, %v3464
        %v3466 = vrot.slane %v3452, %v3465
        %v3467 = vcombine.low %v3459, %v3466
        %v3468 = vcombine.low %v2336, %v2340
        %v3469 = vcombine.low %v2344, %v2348
        %v3471 = vunpack.c.l.s4 1983009808
        %v3472 = vunpack.c.0.s8 %v3471
        %v3473 = vlaneseq
        %v3474 = vshrl.u32 %v3473, 7
        %v3475 = vsub.s32 %v3472, %v3474
        %v3476 = vrot.slane %v3468, %v3475
        %v3478 = vunpack.c.l.s4 1983009808
        %v3479 = vunpack.c.0.s8 %v3478
        %v3480 = vlaneseq
        %v3481 = vshrl.u32 %v3480, 7
        %v3482 = vsub.s32 %v3479, %v3481
        %v3483 = vrot.slane %v3469, %v3482
        %v3484 = vcombine.low %v3476, %v3483
        %v3485 = vcombine.low %v2352, %v2356
        %v3486 = vcombine.low %v2360, %v2364
        %v3488 = vunpack.c.l.s4 1983009808
        %v3489 = vunpack.c.0.s8 %v3488
        %v3490 = vlaneseq
        %v3491 = vshrl.u32 %v3490, 7
        %v3492 = vsub.s32 %v3489, %v3491
        %v3493 = vrot.slane %v3485, %v3492
        %v3495 = vunpack.c.l.s4 1983009808
        %v3496 = vunpack.c.0.s8 %v3495
        %v3497 = vlaneseq
        %v3498 = vshrl.u32 %v3497, 7
        %v3499 = vsub.s32 %v3496, %v3498
        %v3500 = vrot.slane %v3486, %v3499
        %v3501 = vcombine.low %v3493, %v3500
        %v3502 = vcombine.low %v2368, %v2372
        %v3503 = vcombine.low %v2376, %v2380
        %v3505 = vunpack.c.l.s4 1983009808
        %v3506 = vunpack.c.0.s8 %v3505
        %v3507 = vlaneseq
        %v3508 = vshrl.u32 %v3507, 7
        %v3509 = vsub.s32 %v3506, %v3508
        %v3510 = vrot.slane %v3502, %v3509
        %v3512 = vunpack.c.l.s4 1983009808
        %v3513 = vunpack.c.0.s8 %v3512
        %v3514 = vlaneseq
        %v3515 = vshrl.u32 %v3514, 7
        %v3516 = vsub.s32 %v3513, %v3515
        %v3517 = vrot.slane %v3503, %v3516
        %v3518 = vcombine.low %v3510, %v3517
        %v3519 = vcombine.low %v2384, %v2388
        %v3520 = vcombine.low %v2392, %v2396
        %v3522 = vunpack.c.l.s4 1983009808
        %v3523 = vunpack.c.0.s8 %v3522
        %v3524 = vlaneseq
        %v3525 = vshrl.u32 %v3524, 7
        %v3526 = vsub.s32 %v3523, %v3525
        %v3527 = vrot.slane %v3519, %v3526
        %v3529 = vunpack.c.l.s4 1983009808
        %v3530 = vunpack.c.0.s8 %v3529
        %v3531 = vlaneseq
        %v3532 = vshrl.u32 %v3531, 7
        %v3533 = vsub.s32 %v3530, %v3532
        %v3534 = vrot.slane %v3520, %v3533
        %v3535 = vcombine.low %v3527, %v3534
        %v3536 = vcombine.low %v2400, %v2404
        %v3537 = vcombine.low %v2408, %v2412
        %v3539 = vunpack.c.l.s4 1983009808
        %v3540 = vunpack.c.0.s8 %v3539
        %v3541 = vlaneseq
        %v3542 = vshrl.u32 %v3541, 7
        %v3543 = vsub.s32 %v3540, %v3542
        %v3544 = vrot.slane %v3536, %v3543
        %v3546 = vunpack.c.l.s4 1983009808
        %v3547 = vunpack.c.0.s8 %v3546
        %v3548 = vlaneseq
        %v3549 = vshrl.u32 %v3548, 7
        %v3550 = vsub.s32 %v3547, %v3549
        %v3551 = vrot.slane %v3537, %v3550
        %v3552 = vcombine.low %v3544, %v3551
        %v3553 = vcombine.low %v2416, %v2420
        %v3554 = vcombine.low %v2424, %v2428
        %v3556 = vunpack.c.l.s4 1983009808
        %v3557 = vunpack.c.0.s8 %v3556
        %v3558 = vlaneseq
        %v3559 = vshrl.u32 %v3558, 7
        %v3560 = vsub.s32 %v3557, %v3559
        %v3561 = vrot.slane %v3553, %v3560
        %v3563 = vunpack.c.l.s4 1983009808
        %v3564 = vunpack.c.0.s8 %v3563
        %v3565 = vlaneseq
        %v3566 = vshrl.u32 %v3565, 7
        %v3567 = vsub.s32 %v3564, %v3566
        %v3568 = vrot.slane %v3554, %v3567
        %v3569 = vcombine.low %v3561, %v3568
        %v3570 = vcombine.low %v2432, %v2436
        %v3571 = vcombine.low %v2440, %v2444
        %v3573 = vunpack.c.l.s4 1983009808
        %v3574 = vunpack.c.0.s8 %v3573
        %v3575 = vlaneseq
        %v3576 = vshrl.u32 %v3575, 7
        %v3577 = vsub.s32 %v3574, %v3576
        %v3578 = vrot.slane %v3570, %v3577
        %v3580 = vunpack.c.l.s4 1983009808
        %v3581 = vunpack.c.0.s8 %v3580
        %v3582 = vlaneseq
        %v3583 = vshrl.u32 %v3582, 7
        %v3584 = vsub.s32 %v3581, %v3583
        %v3585 = vrot.slane %v3571, %v3584
        %v3586 = vcombine.low %v3578, %v3585
        %v3587 = vcombine.low %v2448, %v2452
        %v3588 = vcombine.low %v2456, %v2460
        %v3590 = vunpack.c.l.s4 1983009808
        %v3591 = vunpack.c.0.s8 %v3590
        %v3592 = vlaneseq
        %v3593 = vshrl.u32 %v3592, 7
        %v3594 = vsub.s32 %v3591, %v3593
        %v3595 = vrot.slane %v3587, %v3594
        %v3597 = vunpack.c.l.s4 1983009808
        %v3598 = vunpack.c.0.s8 %v3597
        %v3599 = vlaneseq
        %v3600 = vshrl.u32 %v3599, 7
        %v3601 = vsub.s32 %v3598, %v3600
        %v3602 = vrot.slane %v3588, %v3601
        %v3603 = vcombine.low %v3595, %v3602
        %v3604 = vcombine.low %v2464, %v2468
        %v3605 = vcombine.low %v2472, %v2476
        %v3607 = vunpack.c.l.s4 1983009808
        %v3608 = vunpack.c.0.s8 %v3607
        %v3609 = vlaneseq
        %v3610 = vshrl.u32 %v3609, 7
        %v3611 = vsub.s32 %v3608, %v3610
        %v3612 = vrot.slane %v3604, %v3611
        %v3614 = vunpack.c.l.s4 1983009808
        %v3615 = vunpack.c.0.s8 %v3614
        %v3616 = vlaneseq
        %v3617 = vshrl.u32 %v3616, 7
        %v3618 = vsub.s32 %v3615, %v3617
        %v3619 = vrot.slane %v3605, %v3618
        %v3620 = vcombine.low %v3612, %v3619
        %v3621 = vcombine.low %v2480, %v2484
        %v3622 = vcombine.low %v2488, %v2492
        %v3624 = vunpack.c.l.s4 1983009808
        %v3625 = vunpack.c.0.s8 %v3624
        %v3626 = vlaneseq
        %v3627 = vshrl.u32 %v3626, 7
        %v3628 = vsub.s32 %v3625, %v3627
        %v3629 = vrot.slane %v3621, %v3628
        %v3631 = vunpack.c.l.s4 1983009808
        %v3632 = vunpack.c.0.s8 %v3631
        %v3633 = vlaneseq
        %v3634 = vshrl.u32 %v3633, 7
        %v3635 = vsub.s32 %v3632, %v3634
        %v3636 = vrot.slane %v3622, %v3635
        %v3637 = vcombine.low %v3629, %v3636
        %v3638 = vcombine.low %v2496, %v2500
        %v3639 = vcombine.low %v2504, %v2508
        %v3641 = vunpack.c.l.s4 1983009808
        %v3642 = vunpack.c.0.s8 %v3641
        %v3643 = vlaneseq
        %v3644 = vshrl.u32 %v3643, 7
        %v3645 = vsub.s32 %v3642, %v3644
        %v3646 = vrot.slane %v3638, %v3645
        %v3648 = vunpack.c.l.s4 1983009808
        %v3649 = vunpack.c.0.s8 %v3648
        %v3650 = vlaneseq
        %v3651 = vshrl.u32 %v3650, 7
        %v3652 = vsub.s32 %v3649, %v3651
        %v3653 = vrot.slane %v3639, %v3652
        %v3654 = vcombine.low %v3646, %v3653
        %v3655 = vcombine.low %v2512, %v2516
        %v3656 = vcombine.low %v2520, %v2524
        %v3658 = vunpack.c.l.s4 1983009808
        %v3659 = vunpack.c.0.s8 %v3658
        %v3660 = vlaneseq
        %v3661 = vshrl.u32 %v3660, 7
        %v3662 = vsub.s32 %v3659, %v3661
        %v3663 = vrot.slane %v3655, %v3662
        %v3665 = vunpack.c.l.s4 1983009808
        %v3666 = vunpack.c.0.s8 %v3665
        %v3667 = vlaneseq
        %v3668 = vshrl.u32 %v3667, 7
        %v3669 = vsub.s32 %v3666, %v3668
        %v3670 = vrot.slane %v3656, %v3669
        %v3671 = vcombine.low %v3663, %v3670
        %v3672 = vcombine.low %v2528, %v2532
        %v3673 = vcombine.low %v2536, %v2540
        %v3675 = vunpack.c.l.s4 1983009808
        %v3676 = vunpack.c.0.s8 %v3675
        %v3677 = vlaneseq
        %v3678 = vshrl.u32 %v3677, 7
        %v3679 = vsub.s32 %v3676, %v3678
        %v3680 = vrot.slane %v3672, %v3679
        %v3682 = vunpack.c.l.s4 1983009808
        %v3683 = vunpack.c.0.s8 %v3682
        %v3684 = vlaneseq
        %v3685 = vshrl.u32 %v3684, 7
        %v3686 = vsub.s32 %v3683, %v3685
        %v3687 = vrot.slane %v3673, %v3686
        %v3688 = vcombine.low %v3680, %v3687
        %v3689 = vcombine.low %v2544, %v2548
        %v3690 = vcombine.low %v2552, %v2556
        %v3692 = vunpack.c.l.s4 1983009808
        %v3693 = vunpack.c.0.s8 %v3692
        %v3694 = vlaneseq
        %v3695 = vshrl.u32 %v3694, 7
        %v3696 = vsub.s32 %v3693, %v3695
        %v3697 = vrot.slane %v3689, %v3696
        %v3699 = vunpack.c.l.s4 1983009808
        %v3700 = vunpack.c.0.s8 %v3699
        %v3701 = vlaneseq
        %v3702 = vshrl.u32 %v3701, 7
        %v3703 = vsub.s32 %v3700, %v3702
        %v3704 = vrot.slane %v3690, %v3703
        %v3705 = vcombine.low %v3697, %v3704
        %v3706 = vcombine.low %v2560, %v2564
        %v3707 = vcombine.low %v2568, %v2572
        %v3709 = vunpack.c.l.s4 1983009808
        %v3710 = vunpack.c.0.s8 %v3709
        %v3711 = vlaneseq
        %v3712 = vshrl.u32 %v3711, 7
        %v3713 = vsub.s32 %v3710, %v3712
        %v3714 = vrot.slane %v3706, %v3713
        %v3716 = vunpack.c.l.s4 1983009808
        %v3717 = vunpack.c.0.s8 %v3716
        %v3718 = vlaneseq
        %v3719 = vshrl.u32 %v3718, 7
        %v3720 = vsub.s32 %v3717, %v3719
        %v3721 = vrot.slane %v3707, %v3720
        %v3722 = vcombine.low %v3714, %v3721
        %v3723 = vcombine.low %v2576, %v2580
        %v3724 = vcombine.low %v2584, %v2588
        %v3726 = vunpack.c.l.s4 1983009808
        %v3727 = vunpack.c.0.s8 %v3726
        %v3728 = vlaneseq
        %v3729 = vshrl.u32 %v3728, 7
        %v3730 = vsub.s32 %v3727, %v3729
        %v3731 = vrot.slane %v3723, %v3730
        %v3733 = vunpack.c.l.s4 1983009808
        %v3734 = vunpack.c.0.s8 %v3733
        %v3735 = vlaneseq
        %v3736 = vshrl.u32 %v3735, 7
        %v3737 = vsub.s32 %v3734, %v3736
        %v3738 = vrot.slane %v3724, %v3737
        %v3739 = vcombine.low %v3731, %v3738
        %v3740 = vcombine.low %v2592, %v2596
        %v3741 = vcombine.low %v2600, %v2604
        %v3743 = vunpack.c.l.s4 1983009808
        %v3744 = vunpack.c.0.s8 %v3743
        %v3745 = vlaneseq
        %v3746 = vshrl.u32 %v3745, 7
        %v3747 = vsub.s32 %v3744, %v3746
        %v3748 = vrot.slane %v3740, %v3747
        %v3750 = vunpack.c.l.s4 1983009808
        %v3751 = vunpack.c.0.s8 %v3750
        %v3752 = vlaneseq
        %v3753 = vshrl.u32 %v3752, 7
        %v3754 = vsub.s32 %v3751, %v3753
        %v3755 = vrot.slane %v3741, %v3754
        %v3756 = vcombine.low %v3748, %v3755
        %v3757 = vcombine.low %v2608, %v2612
        %v3758 = vcombine.low %v2616, %v2620
        %v3760 = vunpack.c.l.s4 1983009808
        %v3761 = vunpack.c.0.s8 %v3760
        %v3762 = vlaneseq
        %v3763 = vshrl.u32 %v3762, 7
        %v3764 = vsub.s32 %v3761, %v3763
        %v3765 = vrot.slane %v3757, %v3764
        %v3767 = vunpack.c.l.s4 1983009808
        %v3768 = vunpack.c.0.s8 %v3767
        %v3769 = vlaneseq
        %v3770 = vshrl.u32 %v3769, 7
        %v3771 = vsub.s32 %v3768, %v3770
        %v3772 = vrot.slane %v3758, %v3771
        %v3773 = vcombine.low %v3765, %v3772
        %v3774 = vcombine.low %v2624, %v2628
        %v3775 = vcombine.low %v2632, %v2636
        %v3777 = vunpack.c.l.s4 1983009808
        %v3778 = vunpack.c.0.s8 %v3777
        %v3779 = vlaneseq
        %v3780 = vshrl.u32 %v3779, 7
        %v3781 = vsub.s32 %v3778, %v3780
        %v3782 = vrot.slane %v3774, %v3781
        %v3784 = vunpack.c.l.s4 1983009808
        %v3785 = vunpack.c.0.s8 %v3784
        %v3786 = vlaneseq
        %v3787 = vshrl.u32 %v3786, 7
        %v3788 = vsub.s32 %v3785, %v3787
        %v3789 = vrot.slane %v3775, %v3788
        %v3790 = vcombine.low %v3782, %v3789
        %v3791 = vcombine.low %v2640, %v2644
        %v3792 = vcombine.low %v2648, %v2652
        %v3794 = vunpack.c.l.s4 1983009808
        %v3795 = vunpack.c.0.s8 %v3794
        %v3796 = vlaneseq
        %v3797 = vshrl.u32 %v3796, 7
        %v3798 = vsub.s32 %v3795, %v3797
        %v3799 = vrot.slane %v3791, %v3798
        %v3801 = vunpack.c.l.s4 1983009808
        %v3802 = vunpack.c.0.s8 %v3801
        %v3803 = vlaneseq
        %v3804 = vshrl.u32 %v3803, 7
        %v3805 = vsub.s32 %v3802, %v3804
        %v3806 = vrot.slane %v3792, %v3805
        %v3807 = vcombine.low %v3799, %v3806
        %v3808 = vcombine.low %v2656, %v2660
        %v3809 = vcombine.low %v2664, %v2668
        %v3811 = vunpack.c.l.s4 1983009808
        %v3812 = vunpack.c.0.s8 %v3811
        %v3813 = vlaneseq
        %v3814 = vshrl.u32 %v3813, 7
        %v3815 = vsub.s32 %v3812, %v3814
        %v3816 = vrot.slane %v3808, %v3815
        %v3818 = vunpack.c.l.s4 1983009808
        %v3819 = vunpack.c.0.s8 %v3818
        %v3820 = vlaneseq
        %v3821 = vshrl.u32 %v3820, 7
        %v3822 = vsub.s32 %v3819, %v3821
        %v3823 = vrot.slane %v3809, %v3822
        %v3824 = vcombine.low %v3816, %v3823
        %v3825 = vcombine.low %v2672, %v2676
        %v3826 = vcombine.low %v2680, %v2684
        %v3828 = vunpack.c.l.s4 1983009808
        %v3829 = vunpack.c.0.s8 %v3828
        %v3830 = vlaneseq
        %v3831 = vshrl.u32 %v3830, 7
        %v3832 = vsub.s32 %v3829, %v3831
        %v3833 = vrot.slane %v3825, %v3832
        %v3835 = vunpack.c.l.s4 1983009808
        %v3836 = vunpack.c.0.s8 %v3835
        %v3837 = vlaneseq
        %v3838 = vshrl.u32 %v3837, 7
        %v3839 = vsub.s32 %v3836, %v3838
        %v3840 = vrot.slane %v3826, %v3839
        %v3841 = vcombine.low %v3833, %v3840
        %v3842 = vcombine.low %v2688, %v2692
        %v3843 = vcombine.low %v2696, %v2700
        %v3845 = vunpack.c.l.s4 1983009808
        %v3846 = vunpack.c.0.s8 %v3845
        %v3847 = vlaneseq
        %v3848 = vshrl.u32 %v3847, 7
        %v3849 = vsub.s32 %v3846, %v3848
        %v3850 = vrot.slane %v3842, %v3849
        %v3852 = vunpack.c.l.s4 1983009808
        %v3853 = vunpack.c.0.s8 %v3852
        %v3854 = vlaneseq
        %v3855 = vshrl.u32 %v3854, 7
        %v3856 = vsub.s32 %v3853, %v3855
        %v3857 = vrot.slane %v3843, %v3856
        %v3858 = vcombine.low %v3850, %v3857
        %v3859 = vcombine.low %v2704, %v2708
        %v3860 = vcombine.low %v2712, %v2716
        %v3862 = vunpack.c.l.s4 1983009808
        %v3863 = vunpack.c.0.s8 %v3862
        %v3864 = vlaneseq
        %v3865 = vshrl.u32 %v3864, 7
        %v3866 = vsub.s32 %v3863, %v3865
        %v3867 = vrot.slane %v3859, %v3866
        %v3869 = vunpack.c.l.s4 1983009808
        %v3870 = vunpack.c.0.s8 %v3869
        %v3871 = vlaneseq
        %v3872 = vshrl.u32 %v3871, 7
        %v3873 = vsub.s32 %v3870, %v3872
        %v3874 = vrot.slane %v3860, %v3873
        %v3875 = vcombine.low %v3867, %v3874
        %v3876 = vcombine.low %v2720, %v2724
        %v3877 = vcombine.low %v2728, %v2732
        %v3879 = vunpack.c.l.s4 1983009808
        %v3880 = vunpack.c.0.s8 %v3879
        %v3881 = vlaneseq
        %v3882 = vshrl.u32 %v3881, 7
        %v3883 = vsub.s32 %v3880, %v3882
        %v3884 = vrot.slane %v3876, %v3883
        %v3886 = vunpack.c.l.s4 1983009808
        %v3887 = vunpack.c.0.s8 %v3886
        %v3888 = vlaneseq
        %v3889 = vshrl.u32 %v3888, 7
        %v3890 = vsub.s32 %v3887, %v3889
        %v3891 = vrot.slane %v3877, %v3890
        %v3892 = vcombine.low %v3884, %v3891
        %v3893 = vcombine.low %v2736, %v2740
        %v3894 = vcombine.low %v2744, %v2748
        %v3896 = vunpack.c.l.s4 1983009808
        %v3897 = vunpack.c.0.s8 %v3896
        %v3898 = vlaneseq
        %v3899 = vshrl.u32 %v3898, 7
        %v3900 = vsub.s32 %v3897, %v3899
        %v3901 = vrot.slane %v3893, %v3900
        %v3903 = vunpack.c.l.s4 1983009808
        %v3904 = vunpack.c.0.s8 %v3903
        %v3905 = vlaneseq
        %v3906 = vshrl.u32 %v3905, 7
        %v3907 = vsub.s32 %v3904, %v3906
        %v3908 = vrot.slane %v3894, %v3907
        %v3909 = vcombine.low %v3901, %v3908
        %v3910 = vcombine.low %v2752, %v2756
        %v3911 = vcombine.low %v2760, %v2764
        %v3913 = vunpack.c.l.s4 1983009808
        %v3914 = vunpack.c.0.s8 %v3913
        %v3915 = vlaneseq
        %v3916 = vshrl.u32 %v3915, 7
        %v3917 = vsub.s32 %v3914, %v3916
        %v3918 = vrot.slane %v3910, %v3917
        %v3920 = vunpack.c.l.s4 1983009808
        %v3921 = vunpack.c.0.s8 %v3920
        %v3922 = vlaneseq
        %v3923 = vshrl.u32 %v3922, 7
        %v3924 = vsub.s32 %v3921, %v3923
        %v3925 = vrot.slane %v3911, %v3924
        %v3926 = vcombine.low %v3918, %v3925
        %v3927 = vcombine.low %v2768, %v2772
        %v3928 = vcombine.low %v2776, %v2780
        %v3930 = vunpack.c.l.s4 1983009808
        %v3931 = vunpack.c.0.s8 %v3930
        %v3932 = vlaneseq
        %v3933 = vshrl.u32 %v3932, 7
        %v3934 = vsub.s32 %v3931, %v3933
        %v3935 = vrot.slane %v3927, %v3934
        %v3937 = vunpack.c.l.s4 1983009808
        %v3938 = vunpack.c.0.s8 %v3937
        %v3939 = vlaneseq
        %v3940 = vshrl.u32 %v3939, 7
        %v3941 = vsub.s32 %v3938, %v3940
        %v3942 = vrot.slane %v3928, %v3941
        %v3943 = vcombine.low %v3935, %v3942
        %v3944 = vcombine.low %v2784, %v2788
        %v3945 = vcombine.low %v2792, %v2796
        %v3947 = vunpack.c.l.s4 1983009808
        %v3948 = vunpack.c.0.s8 %v3947
        %v3949 = vlaneseq
        %v3950 = vshrl.u32 %v3949, 7
        %v3951 = vsub.s32 %v3948, %v3950
        %v3952 = vrot.slane %v3944, %v3951
        %v3954 = vunpack.c.l.s4 1983009808
        %v3955 = vunpack.c.0.s8 %v3954
        %v3956 = vlaneseq
        %v3957 = vshrl.u32 %v3956, 7
        %v3958 = vsub.s32 %v3955, %v3957
        %v3959 = vrot.slane %v3945, %v3958
        %v3960 = vcombine.low %v3952, %v3959
        %v3961 = vcombine.low %v2800, %v2804
        %v3962 = vcombine.low %v2808, %v2812
        %v3964 = vunpack.c.l.s4 1983009808
        %v3965 = vunpack.c.0.s8 %v3964
        %v3966 = vlaneseq
        %v3967 = vshrl.u32 %v3966, 7
        %v3968 = vsub.s32 %v3965, %v3967
        %v3969 = vrot.slane %v3961, %v3968
        %v3971 = vunpack.c.l.s4 1983009808
        %v3972 = vunpack.c.0.s8 %v3971
        %v3973 = vlaneseq
        %v3974 = vshrl.u32 %v3973, 7
        %v3975 = vsub.s32 %v3972, %v3974
        %v3976 = vrot.slane %v3962, %v3975
        %v3977 = vcombine.low %v3969, %v3976
        %v3978 = vcombine.low %v2816, %v2820
        %v3979 = vcombine.low %v2824, %v2828
        %v3981 = vunpack.c.l.s4 1983009808
        %v3982 = vunpack.c.0.s8 %v3981
        %v3983 = vlaneseq
        %v3984 = vshrl.u32 %v3983, 7
        %v3985 = vsub.s32 %v3982, %v3984
        %v3986 = vrot.slane %v3978, %v3985
        %v3988 = vunpack.c.l.s4 1983009808
        %v3989 = vunpack.c.0.s8 %v3988
        %v3990 = vlaneseq
        %v3991 = vshrl.u32 %v3990, 7
        %v3992 = vsub.s32 %v3989, %v3991
        %v3993 = vrot.slane %v3979, %v3992
        %v3994 = vcombine.low %v3986, %v3993
        %v3995 = vcombine.low %v2832, %v2836
        %v3996 = vcombine.low %v2840, %v2844
        %v3998 = vunpack.c.l.s4 1983009808
        %v3999 = vunpack.c.0.s8 %v3998
        %v4000 = vlaneseq
        %v4001 = vshrl.u32 %v4000, 7
        %v4002 = vsub.s32 %v3999, %v4001
        %v4003 = vrot.slane %v3995, %v4002
        %v4005 = vunpack.c.l.s4 1983009808
        %v4006 = vunpack.c.0.s8 %v4005
        %v4007 = vlaneseq
        %v4008 = vshrl.u32 %v4007, 7
        %v4009 = vsub.s32 %v4006, %v4008
        %v4010 = vrot.slane %v3996, %v4009
        %v4011 = vcombine.low %v4003, %v4010
        %v4012 = vcombine.low %v2848, %v2852
        %v4013 = vcombine.low %v2856, %v2860
        %v4015 = vunpack.c.l.s4 1983009808
        %v4016 = vunpack.c.0.s8 %v4015
        %v4017 = vlaneseq
        %v4018 = vshrl.u32 %v4017, 7
        %v4019 = vsub.s32 %v4016, %v4018
        %v4020 = vrot.slane %v4012, %v4019
        %v4022 = vunpack.c.l.s4 1983009808
        %v4023 = vunpack.c.0.s8 %v4022
        %v4024 = vlaneseq
        %v4025 = vshrl.u32 %v4024, 7
        %v4026 = vsub.s32 %v4023, %v4025
        %v4027 = vrot.slane %v4013, %v4026
        %v4028 = vcombine.low %v4020, %v4027
        %vm4029 = vcmask 1040384
        %v4030 = vrot.slane %v2957, 7
        %v4031 = vrot.slane %v2974, 7
        %v4032 = vsel %vm4029, %v4030, %v4031
        %v4033 = vrot.slane %v2991, 7
        %v4034 = vsel %vm4029, %v4031, %v4033
        %v4035 = vrot.slane %v3008, 7
        %v4036 = vsel %vm4029, %v4033, %v4035
        %v4037 = vrot.slane %v3025, 7
        %v4038 = vrot.slane %v3042, 7
        %v4039 = vsel %vm4029, %v4037, %v4038
        %v4040 = vrot.slane %v3059, 7
        %v4041 = vsel %vm4029, %v4038, %v4040
        %v4042 = vrot.slane %v3076, 7
        %v4043 = vsel %vm4029, %v4040, %v4042
        %v4044 = vrot.slane %v3093, 7
        %v4045 = vrot.slane %v3110, 7
        %v4046 = vsel %vm4029, %v4044, %v4045
        %v4047 = vrot.slane %v3127, 7
        %v4048 = vsel %vm4029, %v4045, %v4047
        %v4049 = vrot.slane %v3144, 7
        %v4050 = vsel %vm4029, %v4047, %v4049
        %v4051 = vrot.slane %v3161, 7
        %v4052 = vrot.slane %v3178, 7
        %v4053 = vsel %vm4029, %v4051, %v4052
        %v4054 = vrot.slane %v3195, 7
        %v4055 = vsel %vm4029, %v4052, %v4054
        %v4056 = vrot.slane %v3212, 7
        %v4057 = vsel %vm4029, %v4054, %v4056
        %v4058 = vrot.slane %v3229, 7
        %v4059 = vrot.slane %v3246, 7
        %v4060 = vsel %vm4029, %v4058, %v4059
        %v4061 = vrot.slane %v3263, 7
        %v4062 = vsel %vm4029, %v4059, %v4061
        %v4063 = vrot.slane %v3280, 7
        %v4064 = vsel %vm4029, %v4061, %v4063
        %v4065 = vrot.slane %v3297, 7
        %v4066 = vrot.slane %v3314, 7
        %v4067 = vsel %vm4029, %v4065, %v4066
        %v4068 = vrot.slane %v3331, 7
        %v4069 = vsel %vm4029, %v4066, %v4068
        %v4070 = vrot.slane %v3348, 7
        %v4071 = vsel %vm4029, %v4068, %v4070
        %v4072 = vrot.slane %v3365, 7
        %v4073 = vrot.slane %v3382, 7
        %v4074 = vsel %vm4029, %v4072, %v4073
        %v4075 = vrot.slane %v3399, 7
        %v4076 = vsel %vm4029, %v4073, %v4075
        %v4077 = vrot.slane %v3416, 7
        %v4078 = vsel %vm4029, %v4075, %v4077
        %v4079 = vrot.slane %v3433, 7
        %v4080 = vrot.slane %v3450, 7
        %v4081 = vsel %vm4029, %v4079, %v4080
        %v4082 = vrot.slane %v3467, 7
        %v4083 = vsel %vm4029, %v4080, %v4082
        %v4084 = vrot.slane %v3484, 7
        %v4085 = vsel %vm4029, %v4082, %v4084
        %v4086 = vrot.slane %v3501, 7
        %v4087 = vrot.slane %v3518, 7
        %v4088 = vsel %vm4029, %v4086, %v4087
        %v4089 = vrot.slane %v3535, 7
        %v4090 = vsel %vm4029, %v4087, %v4089
        %v4091 = vrot.slane %v3552, 7
        %v4092 = vsel %vm4029, %v4089, %v4091
        %v4093 = vrot.slane %v3569, 7
        %v4094 = vrot.slane %v3586, 7
        %v4095 = vsel %vm4029, %v4093, %v4094
        %v4096 = vrot.slane %v3603, 7
        %v4097 = vsel %vm4029, %v4094, %v4096
        %v4098 = vrot.slane %v3620, 7
        %v4099 = vsel %vm4029, %v4096, %v4098
        %v4100 = vrot.slane %v3637, 7
        %v4101 = vrot.slane %v3654, 7
        %v4102 = vsel %vm4029, %v4100, %v4101
        %v4103 = vrot.slane %v3671, 7
        %v4104 = vsel %vm4029, %v4101, %v4103
        %v4105 = vrot.slane %v3688, 7
        %v4106 = vsel %vm4029, %v4103, %v4105
        %v4107 = vrot.slane %v3705, 7
        %v4108 = vrot.slane %v3722, 7
        %v4109 = vsel %vm4029, %v4107, %v4108
        %v4110 = vrot.slane %v3739, 7
        %v4111 = vsel %vm4029, %v4108, %v4110
        %v4112 = vrot.slane %v3756, 7
        %v4113 = vsel %vm4029, %v4110, %v4112
        %v4114 = vrot.slane %v3773, 7
        %v4115 = vrot.slane %v3790, 7
        %v4116 = vsel %vm4029, %v4114, %v4115
        %v4117 = vrot.slane %v3807, 7
        %v4118 = vsel %vm4029, %v4115, %v4117
        %v4119 = vrot.slane %v3824, 7
        %v4120 = vsel %vm4029, %v4117, %v4119
        %v4121 = vrot.slane %v3841, 7
        %v4122 = vrot.slane %v3858, 7
        %v4123 = vsel %vm4029, %v4121, %v4122
        %v4124 = vrot.slane %v3875, 7
        %v4125 = vsel %vm4029, %v4122, %v4124
        %v4126 = vrot.slane %v3892, 7
        %v4127 = vsel %vm4029, %v4124, %v4126
        %v4128 = vrot.slane %v3909, 7
        %v4129 = vrot.slane %v3926, 7
        %v4130 = vsel %vm4029, %v4128, %v4129
        %v4131 = vrot.slane %v3943, 7
        %v4132 = vsel %vm4029, %v4129, %v4131
        %v4133 = vrot.slane %v3960, 7
        %v4134 = vsel %vm4029, %v4131, %v4133
        %v4135 = vrot.slane %v3977, 7
        %v4136 = vrot.slane %v3994, 7
        %v4137 = vsel %vm4029, %v4135, %v4136
        %v4138 = vrot.slane %v4011, 7
        %v4139 = vsel %vm4029, %v4136, %v4138
        %v4140 = vrot.slane %v4028, 7
        %v4141 = vsel %vm4029, %v4138, %v4140
        %v4222 = vlaneseq
        %v4223 = vshrl.u32 %v4222, 7
        %v4224 = vsub.s32 0, %v4223
        %v4225 = vrot.slane %v1900, %v4224
        %v4226 = vlaneseq
        %v4227 = vshrl.u32 %v4226, 7
        %v4228 = vsub.s32 0, %v4227
        %v4229 = vrot.slane %v1964, %v4228
        %v4230 = vlaneseq
        %v4231 = vshrl.u32 %v4230, 7
        %v4232 = vsub.s32 0, %v4231
        %v4233 = vrot.slane %v2028, %v4232
        %v4234 = vlaneseq
        %v4235 = vshrl.u32 %v4234, 7
        %v4236 = vsub.s32 0, %v4235
        %v4237 = vrot.slane %v2092, %v4236
        %v4238 = vlaneseq
        %v4239 = vshrl.u32 %v4238, 7
        %v4240 = vsub.s32 0, %v4239
        %v4241 = vrot.slane %v2156, %v4240
        %v4242 = vlaneseq
        %v4243 = vshrl.u32 %v4242, 7
        %v4244 = vsub.s32 0, %v4243
        %v4245 = vrot.slane %v2220, %v4244
        %v4246 = vlaneseq
        %v4247 = vshrl.u32 %v4246, 7
        %v4248 = vsub.s32 0, %v4247
        %v4249 = vrot.slane %v2284, %v4248
        %v4250 = vlaneseq
        %v4251 = vshrl.u32 %v4250, 7
        %v4252 = vsub.s32 0, %v4251
        %v4253 = vrot.slane %v2348, %v4252
        %v4254 = vlaneseq
        %v4255 = vshrl.u32 %v4254, 7
        %v4256 = vsub.s32 0, %v4255
        %v4257 = vrot.slane %v2412, %v4256
        %v4258 = vlaneseq
        %v4259 = vshrl.u32 %v4258, 7
        %v4260 = vsub.s32 0, %v4259
        %v4261 = vrot.slane %v2476, %v4260
        %v4262 = vlaneseq
        %v4263 = vshrl.u32 %v4262, 7
        %v4264 = vsub.s32 0, %v4263
        %v4265 = vrot.slane %v2540, %v4264
        %v4266 = vlaneseq
        %v4267 = vshrl.u32 %v4266, 7
        %v4268 = vsub.s32 0, %v4267
        %v4269 = vrot.slane %v2604, %v4268
        %v4270 = vlaneseq
        %v4271 = vshrl.u32 %v4270, 7
        %v4272 = vsub.s32 0, %v4271
        %v4273 = vrot.slane %v2668, %v4272
        %v4274 = vlaneseq
        %v4275 = vshrl.u32 %v4274, 7
        %v4276 = vsub.s32 0, %v4275
        %v4277 = vrot.slane %v2732, %v4276
        %v4278 = vlaneseq
        %v4279 = vshrl.u32 %v4278, 7
        %v4280 = vsub.s32 0, %v4279
        %v4281 = vrot.slane %v2796, %v4280
        %v4282 = vlaneseq
        %v4283 = vshrl.u32 %v4282, 7
        %v4284 = vsub.s32 0, %v4283
        %v4285 = vrot.slane %v2860, %v4284
        %v4302 = vsel %vm4029, %v2864, %v4030
        %v4303 = vsel %vm4029, %v2868, %v4037
        %v4304 = vsel %vm4029, %v2872, %v4044
        %v4305 = vsel %vm4029, %v2876, %v4051
        %v4306 = vsel %vm4029, %v2880, %v4058
        %v4307 = vsel %vm4029, %v2884, %v4065
        %v4308 = vsel %vm4029, %v2888, %v4072
        %v4309 = vsel %vm4029, %v2892, %v4079
        %v4310 = vsel %vm4029, %v2896, %v4086
        %v4311 = vsel %vm4029, %v2900, %v4093
        %v4312 = vsel %vm4029, %v2904, %v4100
        %v4313 = vsel %vm4029, %v2908, %v4107
        %v4314 = vsel %vm4029, %v2912, %v4114
        %v4315 = vsel %vm4029, %v2916, %v4121
        %v4316 = vsel %vm4029, %v2920, %v4128
        %v4317 = vsel %vm4029, %v2924, %v4135
        %v4318 = vsel %vm4029, %v4035, %v4225
        %v4319 = vsel %vm4029, %v4042, %v4229
        %v4320 = vsel %vm4029, %v4049, %v4233
        %v4321 = vsel %vm4029, %v4056, %v4237
        %v4322 = vsel %vm4029, %v4063, %v4241
        %v4323 = vsel %vm4029, %v4070, %v4245
        %v4324 = vsel %vm4029, %v4077, %v4249
        %v4325 = vsel %vm4029, %v4084, %v4253
        %v4326 = vsel %vm4029, %v4091, %v4257
        %v4327 = vsel %vm4029, %v4098, %v4261
        %v4328 = vsel %vm4029, %v4105, %v4265
        %v4329 = vsel %vm4029, %v4112, %v4269
        %v4330 = vsel %vm4029, %v4119, %v4273
        %v4331 = vsel %vm4029, %v4126, %v4277
        %v4332 = vsel %vm4029, %v4133, %v4281
        %v4333 = vsel %vm4029, %v4140, %v4285
        %vm4366 = vcmask 1046528
        %v4367 = vrot.slane %v4302, 1
        %v4368 = vrot.slane %v4032, 1
        %v4369 = vsel %vm4366, %v4367, %v4368
        %v4370 = vrot.slane %v4034, 1
        %v4371 = vsel %vm4366, %v4368, %v4370
        %v4372 = vrot.slane %v4036, 1
        %v4373 = vsel %vm4366, %v4370, %v4372
        %v4374 = vrot.slane %v4318, 1
        %v4375 = vsel %vm4366, %v4372, %v4374
        %v4376 = vrot.slane %v4303, 1
        %v4377 = vrot.slane %v4039, 1
        %v4378 = vsel %vm4366, %v4376, %v4377
        %v4379 = vrot.slane %v4041, 1
        %v4380 = vsel %vm4366, %v4377, %v4379
        %v4381 = vrot.slane %v4043, 1
        %v4382 = vsel %vm4366, %v4379, %v4381
        %v4383 = vrot.slane %v4319, 1
        %v4384 = vsel %vm4366, %v4381, %v4383
        %v4385 = vrot.slane %v4304, 1
        %v4386 = vrot.slane %v4046, 1
        %v4387 = vsel %vm4366, %v4385, %v4386
        %v4388 = vrot.slane %v4048, 1
        %v4389 = vsel %vm4366, %v4386, %v4388
        %v4390 = vrot.slane %v4050, 1
        %v4391 = vsel %vm4366, %v4388, %v4390
        %v4392 = vrot.slane %v4320, 1
        %v4393 = vsel %vm4366, %v4390, %v4392
        %v4394 = vrot.slane %v4305, 1
        %v4395 = vrot.slane %v4053, 1
        %v4396 = vsel %vm4366, %v4394, %v4395
        %v4397 = vrot.slane %v4055, 1
        %v4398 = vsel %vm4366, %v4395, %v4397
        %v4399 = vrot.slane %v4057, 1
        %v4400 = vsel %vm4366, %v4397, %v4399
        %v4401 = vrot.slane %v4321, 1
        %v4402 = vsel %vm4366, %v4399, %v4401
        %v4403 = vrot.slane %v4306, 1
        %v4404 = vrot.slane %v4060, 1
        %v4405 = vsel %vm4366, %v4403, %v4404
        %v4406 = vrot.slane %v4062, 1
        %v4407 = vsel %vm4366, %v4404, %v4406
        %v4408 = vrot.slane %v4064, 1
        %v4409 = vsel %vm4366, %v4406, %v4408
        %v4410 = vrot.slane %v4322, 1
        %v4411 = vsel %vm4366, %v4408, %v4410
        %v4412 = vrot.slane %v4307, 1
        %v4413 = vrot.slane %v4067, 1
        %v4414 = vsel %vm4366, %v4412, %v4413
        %v4415 = vrot.slane %v4069, 1
        %v4416 = vsel %vm4366, %v4413, %v4415
        %v4417 = vrot.slane %v4071, 1
        %v4418 = vsel %vm4366, %v4415, %v4417
        %v4419 = vrot.slane %v4323, 1
        %v4420 = vsel %vm4366, %v4417, %v4419
        %v4421 = vrot.slane %v4308, 1
        %v4422 = vrot.slane %v4074, 1
        %v4423 = vsel %vm4366, %v4421, %v4422
        %v4424 = vrot.slane %v4076, 1
        %v4425 = vsel %vm4366, %v4422, %v4424
        %v4426 = vrot.slane %v4078, 1
        %v4427 = vsel %vm4366, %v4424, %v4426
        %v4428 = vrot.slane %v4324, 1
        %v4429 = vsel %vm4366, %v4426, %v4428
        %v4430 = vrot.slane %v4309, 1
        %v4431 = vrot.slane %v4081, 1
        %v4432 = vsel %vm4366, %v4430, %v4431
        %v4433 = vrot.slane %v4083, 1
        %v4434 = vsel %vm4366, %v4431, %v4433
        %v4435 = vrot.slane %v4085, 1
        %v4436 = vsel %vm4366, %v4433, %v4435
        %v4437 = vrot.slane %v4325, 1
        %v4438 = vsel %vm4366, %v4435, %v4437
        %v4439 = vrot.slane %v4310, 1
        %v4440 = vrot.slane %v4088, 1
        %v4441 = vsel %vm4366, %v4439, %v4440
        %v4442 = vrot.slane %v4090, 1
        %v4443 = vsel %vm4366, %v4440, %v4442
        %v4444 = vrot.slane %v4092, 1
        %v4445 = vsel %vm4366, %v4442, %v4444
        %v4446 = vrot.slane %v4326, 1
        %v4447 = vsel %vm4366, %v4444, %v4446
        %v4448 = vrot.slane %v4311, 1
        %v4449 = vrot.slane %v4095, 1
        %v4450 = vsel %vm4366, %v4448, %v4449
        %v4451 = vrot.slane %v4097, 1
        %v4452 = vsel %vm4366, %v4449, %v4451
        %v4453 = vrot.slane %v4099, 1
        %v4454 = vsel %vm4366, %v4451, %v4453
        %v4455 = vrot.slane %v4327, 1
        %v4456 = vsel %vm4366, %v4453, %v4455
        %v4457 = vrot.slane %v4312, 1
        %v4458 = vrot.slane %v4102, 1
        %v4459 = vsel %vm4366, %v4457, %v4458
        %v4460 = vrot.slane %v4104, 1
        %v4461 = vsel %vm4366, %v4458, %v4460
        %v4462 = vrot.slane %v4106, 1
        %v4463 = vsel %vm4366, %v4460, %v4462
        %v4464 = vrot.slane %v4328, 1
        %v4465 = vsel %vm4366, %v4462, %v4464
        %v4466 = vrot.slane %v4313, 1
        %v4467 = vrot.slane %v4109, 1
        %v4468 = vsel %vm4366, %v4466, %v4467
        %v4469 = vrot.slane %v4111, 1
        %v4470 = vsel %vm4366, %v4467, %v4469
        %v4471 = vrot.slane %v4113, 1
        %v4472 = vsel %vm4366, %v4469, %v4471
        %v4473 = vrot.slane %v4329, 1
        %v4474 = vsel %vm4366, %v4471, %v4473
        %v4475 = vrot.slane %v4314, 1
        %v4476 = vrot.slane %v4116, 1
        %v4477 = vsel %vm4366, %v4475, %v4476
        %v4478 = vrot.slane %v4118, 1
        %v4479 = vsel %vm4366, %v4476, %v4478
        %v4480 = vrot.slane %v4120, 1
        %v4481 = vsel %vm4366, %v4478, %v4480
        %v4482 = vrot.slane %v4330, 1
        %v4483 = vsel %vm4366, %v4480, %v4482
        %v4484 = vrot.slane %v4315, 1
        %v4485 = vrot.slane %v4123, 1
        %v4486 = vsel %vm4366, %v4484, %v4485
        %v4487 = vrot.slane %v4125, 1
        %v4488 = vsel %vm4366, %v4485, %v4487
        %v4489 = vrot.slane %v4127, 1
        %v4490 = vsel %vm4366, %v4487, %v4489
        %v4491 = vrot.slane %v4331, 1
        %v4492 = vsel %vm4366, %v4489, %v4491
        %v4493 = vrot.slane %v4316, 1
        %v4494 = vrot.slane %v4130, 1
        %v4495 = vsel %vm4366, %v4493, %v4494
        %v4496 = vrot.slane %v4132, 1
        %v4497 = vsel %vm4366, %v4494, %v4496
        %v4498 = vrot.slane %v4134, 1
        %v4499 = vsel %vm4366, %v4496, %v4498
        %v4500 = vrot.slane %v4332, 1
        %v4501 = vsel %vm4366, %v4498, %v4500
        %v4502 = vrot.slane %v4317, 1
        %v4503 = vrot.slane %v4137, 1
        %v4504 = vsel %vm4366, %v4502, %v4503
        %v4505 = vrot.slane %v4139, 1
        %v4506 = vsel %vm4366, %v4503, %v4505
        %v4507 = vrot.slane %v4141, 1
        %v4508 = vsel %vm4366, %v4505, %v4507
        %v4509 = vrot.slane %v4333, 1
        %v4510 = vsel %vm4366, %v4507, %v4509
        %vm4511 = vcmask 1045504
        %v4512 = vrot.slane %v4302, 2
        %v4513 = vrot.slane %v4032, 2
        %v4514 = vsel %vm4511, %v4512, %v4513
        %v4515 = vrot.slane %v4034, 2
        %v4516 = vsel %vm4511, %v4513, %v4515
        %v4517 = vrot.slane %v4036, 2
        %v4518 = vsel %vm4511, %v4515, %v4517
        %v4519 = vrot.slane %v4318, 2
        %v4520 = vsel %vm4511, %v4517, %v4519
        %v4521 = vrot.slane %v4303, 2
        %v4522 = vrot.slane %v4039, 2
        %v4523 = vsel %vm4511, %v4521, %v4522
        %v4524 = vrot.slane %v4041, 2
        %v4525 = vsel %vm4511, %v4522, %v4524
        %v4526 = vrot.slane %v4043, 2
        %v4527 = vsel %vm4511, %v4524, %v4526
        %v4528 = vrot.slane %v4319, 2
        %v4529 = vsel %vm4511, %v4526, %v4528
        %v4530 = vrot.slane %v4304, 2
        %v4531 = vrot.slane %v4046, 2
        %v4532 = vsel %vm4511, %v4530, %v4531
        %v4533 = vrot.slane %v4048, 2
        %v4534 = vsel %vm4511, %v4531, %v4533
        %v4535 = vrot.slane %v4050, 2
        %v4536 = vsel %vm4511, %v4533, %v4535
        %v4537 = vrot.slane %v4320, 2
        %v4538 = vsel %vm4511, %v4535, %v4537
        %v4539 = vrot.slane %v4305, 2
        %v4540 = vrot.slane %v4053, 2
        %v4541 = vsel %vm4511, %v4539, %v4540
        %v4542 = vrot.slane %v4055, 2
        %v4543 = vsel %vm4511, %v4540, %v4542
        %v4544 = vrot.slane %v4057, 2
        %v4545 = vsel %vm4511, %v4542, %v4544
        %v4546 = vrot.slane %v4321, 2
        %v4547 = vsel %vm4511, %v4544, %v4546
        %v4548 = vrot.slane %v4306, 2
        %v4549 = vrot.slane %v4060, 2
        %v4550 = vsel %vm4511, %v4548, %v4549
        %v4551 = vrot.slane %v4062, 2
        %v4552 = vsel %vm4511, %v4549, %v4551
        %v4553 = vrot.slane %v4064, 2
        %v4554 = vsel %vm4511, %v4551, %v4553
        %v4555 = vrot.slane %v4322, 2
        %v4556 = vsel %vm4511, %v4553, %v4555
        %v4557 = vrot.slane %v4307, 2
        %v4558 = vrot.slane %v4067, 2
        %v4559 = vsel %vm4511, %v4557, %v4558
        %v4560 = vrot.slane %v4069, 2
        %v4561 = vsel %vm4511, %v4558, %v4560
        %v4562 = vrot.slane %v4071, 2
        %v4563 = vsel %vm4511, %v4560, %v4562
        %v4564 = vrot.slane %v4323, 2
        %v4565 = vsel %vm4511, %v4562, %v4564
        %v4566 = vrot.slane %v4308, 2
        %v4567 = vrot.slane %v4074, 2
        %v4568 = vsel %vm4511, %v4566, %v4567
        %v4569 = vrot.slane %v4076, 2
        %v4570 = vsel %vm4511, %v4567, %v4569
        %v4571 = vrot.slane %v4078, 2
        %v4572 = vsel %vm4511, %v4569, %v4571
        %v4573 = vrot.slane %v4324, 2
        %v4574 = vsel %vm4511, %v4571, %v4573
        %v4575 = vrot.slane %v4309, 2
        %v4576 = vrot.slane %v4081, 2
        %v4577 = vsel %vm4511, %v4575, %v4576
        %v4578 = vrot.slane %v4083, 2
        %v4579 = vsel %vm4511, %v4576, %v4578
        %v4580 = vrot.slane %v4085, 2
        %v4581 = vsel %vm4511, %v4578, %v4580
        %v4582 = vrot.slane %v4325, 2
        %v4583 = vsel %vm4511, %v4580, %v4582
        %v4584 = vrot.slane %v4310, 2
        %v4585 = vrot.slane %v4088, 2
        %v4586 = vsel %vm4511, %v4584, %v4585
        %v4587 = vrot.slane %v4090, 2
        %v4588 = vsel %vm4511, %v4585, %v4587
        %v4589 = vrot.slane %v4092, 2
        %v4590 = vsel %vm4511, %v4587, %v4589
        %v4591 = vrot.slane %v4326, 2
        %v4592 = vsel %vm4511, %v4589, %v4591
        %v4593 = vrot.slane %v4311, 2
        %v4594 = vrot.slane %v4095, 2
        %v4595 = vsel %vm4511, %v4593, %v4594
        %v4596 = vrot.slane %v4097, 2
        %v4597 = vsel %vm4511, %v4594, %v4596
        %v4598 = vrot.slane %v4099, 2
        %v4599 = vsel %vm4511, %v4596, %v4598
        %v4600 = vrot.slane %v4327, 2
        %v4601 = vsel %vm4511, %v4598, %v4600
        %v4602 = vrot.slane %v4312, 2
        %v4603 = vrot.slane %v4102, 2
        %v4604 = vsel %vm4511, %v4602, %v4603
        %v4605 = vrot.slane %v4104, 2
        %v4606 = vsel %vm4511, %v4603, %v4605
        %v4607 = vrot.slane %v4106, 2
        %v4608 = vsel %vm4511, %v4605, %v4607
        %v4609 = vrot.slane %v4328, 2
        %v4610 = vsel %vm4511, %v4607, %v4609
        %v4611 = vrot.slane %v4313, 2
        %v4612 = vrot.slane %v4109, 2
        %v4613 = vsel %vm4511, %v4611, %v4612
        %v4614 = vrot.slane %v4111, 2
        %v4615 = vsel %vm4511, %v4612, %v4614
        %v4616 = vrot.slane %v4113, 2
        %v4617 = vsel %vm4511, %v4614, %v4616
        %v4618 = vrot.slane %v4329, 2
        %v4619 = vsel %vm4511, %v4616, %v4618
        %v4620 = vrot.slane %v4314, 2
        %v4621 = vrot.slane %v4116, 2
        %v4622 = vsel %vm4511, %v4620, %v4621
        %v4623 = vrot.slane %v4118, 2
        %v4624 = vsel %vm4511, %v4621, %v4623
        %v4625 = vrot.slane %v4120, 2
        %v4626 = vsel %vm4511, %v4623, %v4625
        %v4627 = vrot.slane %v4330, 2
        %v4628 = vsel %vm4511, %v4625, %v4627
        %v4629 = vrot.slane %v4315, 2
        %v4630 = vrot.slane %v4123, 2
        %v4631 = vsel %vm4511, %v4629, %v4630
        %v4632 = vrot.slane %v4125, 2
        %v4633 = vsel %vm4511, %v4630, %v4632
        %v4634 = vrot.slane %v4127, 2
        %v4635 = vsel %vm4511, %v4632, %v4634
        %v4636 = vrot.slane %v4331, 2
        %v4637 = vsel %vm4511, %v4634, %v4636
        %v4638 = vrot.slane %v4316, 2
        %v4639 = vrot.slane %v4130, 2
        %v4640 = vsel %vm4511, %v4638, %v4639
        %v4641 = vrot.slane %v4132, 2
        %v4642 = vsel %vm4511, %v4639, %v4641
        %v4643 = vrot.slane %v4134, 2
        %v4644 = vsel %vm4511, %v4641, %v4643
        %v4645 = vrot.slane %v4332, 2
        %v4646 = vsel %vm4511, %v4643, %v4645
        %v4647 = vrot.slane %v4317, 2
        %v4648 = vrot.slane %v4137, 2
        %v4649 = vsel %vm4511, %v4647, %v4648
        %v4650 = vrot.slane %v4139, 2
        %v4651 = vsel %vm4511, %v4648, %v4650
        %v4652 = vrot.slane %v4141, 2
        %v4653 = vsel %vm4511, %v4650, %v4652
        %v4654 = vrot.slane %v4333, 2
        %v4655 = vsel %vm4511, %v4652, %v4654
        %4656 = vrot.lane.b32.xlu0 %v4369, 4
        %v4657 = vpop.permute.xlu0 %4656
        %4658 = vrot.lane.b32.xlu0 %v4371, 4
        %v4659 = vpop.permute.xlu0 %4658
        %4660 = vrot.lane.b32.xlu0 %v4373, 4
        %v4661 = vpop.permute.xlu0 %4660
        %4662 = vrot.lane.b32.xlu0 %v4375, 4
        %v4663 = vpop.permute.xlu0 %4662
        %4664 = vrot.lane.b32.xlu0 %v4378, 4
        %v4665 = vpop.permute.xlu0 %4664
        %4666 = vrot.lane.b32.xlu0 %v4380, 4
        %v4667 = vpop.permute.xlu0 %4666
        %4668 = vrot.lane.b32.xlu0 %v4382, 4
        %v4669 = vpop.permute.xlu0 %4668
        %4670 = vrot.lane.b32.xlu0 %v4384, 4
        %v4671 = vpop.permute.xlu0 %4670
        %4672 = vrot.lane.b32.xlu0 %v4387, 4
        %v4673 = vpop.permute.xlu0 %4672
        %4674 = vrot.lane.b32.xlu0 %v4389, 4
        %v4675 = vpop.permute.xlu0 %4674
        %4676 = vrot.lane.b32.xlu0 %v4391, 4
        %v4677 = vpop.permute.xlu0 %4676
        %4678 = vrot.lane.b32.xlu0 %v4393, 4
        %v4679 = vpop.permute.xlu0 %4678
        %4680 = vrot.lane.b32.xlu0 %v4396, 4
        %v4681 = vpop.permute.xlu0 %4680
        %4682 = vrot.lane.b32.xlu0 %v4398, 4
        %v4683 = vpop.permute.xlu0 %4682
        %4684 = vrot.lane.b32.xlu0 %v4400, 4
        %v4685 = vpop.permute.xlu0 %4684
        %4686 = vrot.lane.b32.xlu0 %v4402, 4
        %v4687 = vpop.permute.xlu0 %4686
        %4688 = vrot.lane.b32.xlu0 %v4405, 4
        %v4689 = vpop.permute.xlu0 %4688
        %4690 = vrot.lane.b32.xlu0 %v4407, 4
        %v4691 = vpop.permute.xlu0 %4690
        %4692 = vrot.lane.b32.xlu0 %v4409, 4
        %v4693 = vpop.permute.xlu0 %4692
        %4694 = vrot.lane.b32.xlu0 %v4411, 4
        %v4695 = vpop.permute.xlu0 %4694
        %4696 = vrot.lane.b32.xlu0 %v4414, 4
        %v4697 = vpop.permute.xlu0 %4696
        %4698 = vrot.lane.b32.xlu0 %v4416, 4
        %v4699 = vpop.permute.xlu0 %4698
        %4700 = vrot.lane.b32.xlu0 %v4418, 4
        %v4701 = vpop.permute.xlu0 %4700
        %4702 = vrot.lane.b32.xlu0 %v4420, 4
        %v4703 = vpop.permute.xlu0 %4702
        %4704 = vrot.lane.b32.xlu0 %v4423, 4
        %v4705 = vpop.permute.xlu0 %4704
        %4706 = vrot.lane.b32.xlu0 %v4425, 4
        %v4707 = vpop.permute.xlu0 %4706
        %4708 = vrot.lane.b32.xlu0 %v4427, 4
        %v4709 = vpop.permute.xlu0 %4708
        %4710 = vrot.lane.b32.xlu0 %v4429, 4
        %v4711 = vpop.permute.xlu0 %4710
        %4712 = vrot.lane.b32.xlu0 %v4432, 4
        %v4713 = vpop.permute.xlu0 %4712
        %4714 = vrot.lane.b32.xlu0 %v4434, 4
        %v4715 = vpop.permute.xlu0 %4714
        %4716 = vrot.lane.b32.xlu0 %v4436, 4
        %v4717 = vpop.permute.xlu0 %4716
        %4718 = vrot.lane.b32.xlu0 %v4438, 4
        %v4719 = vpop.permute.xlu0 %4718
        %4720 = vrot.lane.b32.xlu0 %v4441, 4
        %v4721 = vpop.permute.xlu0 %4720
        %4722 = vrot.lane.b32.xlu0 %v4443, 4
        %v4723 = vpop.permute.xlu0 %4722
        %4724 = vrot.lane.b32.xlu0 %v4445, 4
        %v4725 = vpop.permute.xlu0 %4724
        %4726 = vrot.lane.b32.xlu0 %v4447, 4
        %v4727 = vpop.permute.xlu0 %4726
        %4728 = vrot.lane.b32.xlu0 %v4450, 4
        %v4729 = vpop.permute.xlu0 %4728
        %4730 = vrot.lane.b32.xlu0 %v4452, 4
        %v4731 = vpop.permute.xlu0 %4730
        %4732 = vrot.lane.b32.xlu0 %v4454, 4
        %v4733 = vpop.permute.xlu0 %4732
        %4734 = vrot.lane.b32.xlu0 %v4456, 4
        %v4735 = vpop.permute.xlu0 %4734
        %4736 = vrot.lane.b32.xlu0 %v4459, 4
        %v4737 = vpop.permute.xlu0 %4736
        %4738 = vrot.lane.b32.xlu0 %v4461, 4
        %v4739 = vpop.permute.xlu0 %4738
        %4740 = vrot.lane.b32.xlu0 %v4463, 4
        %v4741 = vpop.permute.xlu0 %4740
        %4742 = vrot.lane.b32.xlu0 %v4465, 4
        %v4743 = vpop.permute.xlu0 %4742
        %4744 = vrot.lane.b32.xlu0 %v4468, 4
        %v4745 = vpop.permute.xlu0 %4744
        %4746 = vrot.lane.b32.xlu0 %v4470, 4
        %v4747 = vpop.permute.xlu0 %4746
        %4748 = vrot.lane.b32.xlu0 %v4472, 4
        %v4749 = vpop.permute.xlu0 %4748
        %4750 = vrot.lane.b32.xlu0 %v4474, 4
        %v4751 = vpop.permute.xlu0 %4750
        %4752 = vrot.lane.b32.xlu0 %v4477, 4
        %v4753 = vpop.permute.xlu0 %4752
        %4754 = vrot.lane.b32.xlu0 %v4479, 4
        %v4755 = vpop.permute.xlu0 %4754
        %4756 = vrot.lane.b32.xlu0 %v4481, 4
        %v4757 = vpop.permute.xlu0 %4756
        %4758 = vrot.lane.b32.xlu0 %v4483, 4
        %v4759 = vpop.permute.xlu0 %4758
        %4760 = vrot.lane.b32.xlu0 %v4486, 4
        %v4761 = vpop.permute.xlu0 %4760
        %4762 = vrot.lane.b32.xlu0 %v4488, 4
        %v4763 = vpop.permute.xlu0 %4762
        %4764 = vrot.lane.b32.xlu0 %v4490, 4
        %v4765 = vpop.permute.xlu0 %4764
        %4766 = vrot.lane.b32.xlu0 %v4492, 4
        %v4767 = vpop.permute.xlu0 %4766
        %4768 = vrot.lane.b32.xlu0 %v4495, 4
        %v4769 = vpop.permute.xlu0 %4768
        %4770 = vrot.lane.b32.xlu0 %v4497, 4
        %v4771 = vpop.permute.xlu0 %4770
        %4772 = vrot.lane.b32.xlu0 %v4499, 4
        %v4773 = vpop.permute.xlu0 %4772
        %4774 = vrot.lane.b32.xlu0 %v4501, 4
        %v4775 = vpop.permute.xlu0 %4774
        %4776 = vrot.lane.b32.xlu0 %v4504, 4
        %v4777 = vpop.permute.xlu0 %4776
        %4778 = vrot.lane.b32.xlu0 %v4506, 4
        %v4779 = vpop.permute.xlu0 %4778
        %4780 = vrot.lane.b32.xlu0 %v4508, 4
        %v4781 = vpop.permute.xlu0 %4780
        %4782 = vrot.lane.b32.xlu0 %v4510, 4
        %v4783 = vpop.permute.xlu0 %4782
        %4848 = vrot.lane.b32.xlu0 %v4514, 8
        %v4849 = vpop.permute.xlu0 %4848
        %4850 = vrot.lane.b32.xlu0 %v4516, 8
        %v4851 = vpop.permute.xlu0 %4850
        %4852 = vrot.lane.b32.xlu0 %v4518, 8
        %v4853 = vpop.permute.xlu0 %4852
        %4854 = vrot.lane.b32.xlu0 %v4520, 8
        %v4855 = vpop.permute.xlu0 %4854
        %4856 = vrot.lane.b32.xlu0 %v4523, 8
        %v4857 = vpop.permute.xlu0 %4856
        %4858 = vrot.lane.b32.xlu0 %v4525, 8
        %v4859 = vpop.permute.xlu0 %4858
        %4860 = vrot.lane.b32.xlu0 %v4527, 8
        %v4861 = vpop.permute.xlu0 %4860
        %4862 = vrot.lane.b32.xlu0 %v4529, 8
        %v4863 = vpop.permute.xlu0 %4862
        %4864 = vrot.lane.b32.xlu0 %v4532, 8
        %v4865 = vpop.permute.xlu0 %4864
        %4866 = vrot.lane.b32.xlu0 %v4534, 8
        %v4867 = vpop.permute.xlu0 %4866
        %4868 = vrot.lane.b32.xlu0 %v4536, 8
        %v4869 = vpop.permute.xlu0 %4868
        %4870 = vrot.lane.b32.xlu0 %v4538, 8
        %v4871 = vpop.permute.xlu0 %4870
        %4872 = vrot.lane.b32.xlu0 %v4541, 8
        %v4873 = vpop.permute.xlu0 %4872
        %4874 = vrot.lane.b32.xlu0 %v4543, 8
        %v4875 = vpop.permute.xlu0 %4874
        %4876 = vrot.lane.b32.xlu0 %v4545, 8
        %v4877 = vpop.permute.xlu0 %4876
        %4878 = vrot.lane.b32.xlu0 %v4547, 8
        %v4879 = vpop.permute.xlu0 %4878
        %4880 = vrot.lane.b32.xlu0 %v4550, 8
        %v4881 = vpop.permute.xlu0 %4880
        %4882 = vrot.lane.b32.xlu0 %v4552, 8
        %v4883 = vpop.permute.xlu0 %4882
        %4884 = vrot.lane.b32.xlu0 %v4554, 8
        %v4885 = vpop.permute.xlu0 %4884
        %4886 = vrot.lane.b32.xlu0 %v4556, 8
        %v4887 = vpop.permute.xlu0 %4886
        %4888 = vrot.lane.b32.xlu0 %v4559, 8
        %v4889 = vpop.permute.xlu0 %4888
        %4890 = vrot.lane.b32.xlu0 %v4561, 8
        %v4891 = vpop.permute.xlu0 %4890
        %4892 = vrot.lane.b32.xlu0 %v4563, 8
        %v4893 = vpop.permute.xlu0 %4892
        %4894 = vrot.lane.b32.xlu0 %v4565, 8
        %v4895 = vpop.permute.xlu0 %4894
        %4896 = vrot.lane.b32.xlu0 %v4568, 8
        %v4897 = vpop.permute.xlu0 %4896
        %4898 = vrot.lane.b32.xlu0 %v4570, 8
        %v4899 = vpop.permute.xlu0 %4898
        %4900 = vrot.lane.b32.xlu0 %v4572, 8
        %v4901 = vpop.permute.xlu0 %4900
        %4902 = vrot.lane.b32.xlu0 %v4574, 8
        %v4903 = vpop.permute.xlu0 %4902
        %4904 = vrot.lane.b32.xlu0 %v4577, 8
        %v4905 = vpop.permute.xlu0 %4904
        %4906 = vrot.lane.b32.xlu0 %v4579, 8
        %v4907 = vpop.permute.xlu0 %4906
        %4908 = vrot.lane.b32.xlu0 %v4581, 8
        %v4909 = vpop.permute.xlu0 %4908
        %4910 = vrot.lane.b32.xlu0 %v4583, 8
        %v4911 = vpop.permute.xlu0 %4910
        %4912 = vrot.lane.b32.xlu0 %v4586, 8
        %v4913 = vpop.permute.xlu0 %4912
        %4914 = vrot.lane.b32.xlu0 %v4588, 8
        %v4915 = vpop.permute.xlu0 %4914
        %4916 = vrot.lane.b32.xlu0 %v4590, 8
        %v4917 = vpop.permute.xlu0 %4916
        %4918 = vrot.lane.b32.xlu0 %v4592, 8
        %v4919 = vpop.permute.xlu0 %4918
        %4920 = vrot.lane.b32.xlu0 %v4595, 8
        %v4921 = vpop.permute.xlu0 %4920
        %4922 = vrot.lane.b32.xlu0 %v4597, 8
        %v4923 = vpop.permute.xlu0 %4922
        %4924 = vrot.lane.b32.xlu0 %v4599, 8
        %v4925 = vpop.permute.xlu0 %4924
        %4926 = vrot.lane.b32.xlu0 %v4601, 8
        %v4927 = vpop.permute.xlu0 %4926
        %4928 = vrot.lane.b32.xlu0 %v4604, 8
        %v4929 = vpop.permute.xlu0 %4928
        %4930 = vrot.lane.b32.xlu0 %v4606, 8
        %v4931 = vpop.permute.xlu0 %4930
        %4932 = vrot.lane.b32.xlu0 %v4608, 8
        %v4933 = vpop.permute.xlu0 %4932
        %4934 = vrot.lane.b32.xlu0 %v4610, 8
        %v4935 = vpop.permute.xlu0 %4934
        %4936 = vrot.lane.b32.xlu0 %v4613, 8
        %v4937 = vpop.permute.xlu0 %4936
        %4938 = vrot.lane.b32.xlu0 %v4615, 8
        %v4939 = vpop.permute.xlu0 %4938
        %4940 = vrot.lane.b32.xlu0 %v4617, 8
        %v4941 = vpop.permute.xlu0 %4940
        %4942 = vrot.lane.b32.xlu0 %v4619, 8
        %v4943 = vpop.permute.xlu0 %4942
        %4944 = vrot.lane.b32.xlu0 %v4622, 8
        %v4945 = vpop.permute.xlu0 %4944
        %4946 = vrot.lane.b32.xlu0 %v4624, 8
        %v4947 = vpop.permute.xlu0 %4946
        %4948 = vrot.lane.b32.xlu0 %v4626, 8
        %v4949 = vpop.permute.xlu0 %4948
        %4950 = vrot.lane.b32.xlu0 %v4628, 8
        %v4951 = vpop.permute.xlu0 %4950
        %4952 = vrot.lane.b32.xlu0 %v4631, 8
        %v4953 = vpop.permute.xlu0 %4952
        %4954 = vrot.lane.b32.xlu0 %v4633, 8
        %v4955 = vpop.permute.xlu0 %4954
        %4956 = vrot.lane.b32.xlu0 %v4635, 8
        %v4957 = vpop.permute.xlu0 %4956
        %4958 = vrot.lane.b32.xlu0 %v4637, 8
        %v4959 = vpop.permute.xlu0 %4958
        %4960 = vrot.lane.b32.xlu0 %v4640, 8
        %v4961 = vpop.permute.xlu0 %4960
        %4962 = vrot.lane.b32.xlu0 %v4642, 8
        %v4963 = vpop.permute.xlu0 %4962
        %4964 = vrot.lane.b32.xlu0 %v4644, 8
        %v4965 = vpop.permute.xlu0 %4964
        %4966 = vrot.lane.b32.xlu0 %v4646, 8
        %v4967 = vpop.permute.xlu0 %4966
        %4968 = vrot.lane.b32.xlu0 %v4649, 8
        %v4969 = vpop.permute.xlu0 %4968
        %4970 = vrot.lane.b32.xlu0 %v4651, 8
        %v4971 = vpop.permute.xlu0 %4970
        %4972 = vrot.lane.b32.xlu0 %v4653, 8
        %v4973 = vpop.permute.xlu0 %4972
        %4974 = vrot.lane.b32.xlu0 %v4655, 8
        %v4975 = vpop.permute.xlu0 %4974
        %5040 = vrot.lane.b32.xlu0 %v4302, 12
        %v5041 = vpop.permute.xlu0 %5040
        %5042 = vrot.lane.b32.xlu0 %v4032, 12
        %v5043 = vpop.permute.xlu0 %5042
        %5044 = vrot.lane.b32.xlu0 %v4034, 12
        %v5045 = vpop.permute.xlu0 %5044
        %5046 = vrot.lane.b32.xlu0 %v4036, 12
        %v5047 = vpop.permute.xlu0 %5046
        %5048 = vrot.lane.b32.xlu0 %v4303, 12
        %v5049 = vpop.permute.xlu0 %5048
        %5050 = vrot.lane.b32.xlu0 %v4039, 12
        %v5051 = vpop.permute.xlu0 %5050
        %5052 = vrot.lane.b32.xlu0 %v4041, 12
        %v5053 = vpop.permute.xlu0 %5052
        %5054 = vrot.lane.b32.xlu0 %v4043, 12
        %v5055 = vpop.permute.xlu0 %5054
        %5056 = vrot.lane.b32.xlu0 %v4304, 12
        %v5057 = vpop.permute.xlu0 %5056
        %5058 = vrot.lane.b32.xlu0 %v4046, 12
        %v5059 = vpop.permute.xlu0 %5058
        %5060 = vrot.lane.b32.xlu0 %v4048, 12
        %v5061 = vpop.permute.xlu0 %5060
        %5062 = vrot.lane.b32.xlu0 %v4050, 12
        %v5063 = vpop.permute.xlu0 %5062
        %5064 = vrot.lane.b32.xlu0 %v4305, 12
        %v5065 = vpop.permute.xlu0 %5064
        %5066 = vrot.lane.b32.xlu0 %v4053, 12
        %v5067 = vpop.permute.xlu0 %5066
        %5068 = vrot.lane.b32.xlu0 %v4055, 12
        %v5069 = vpop.permute.xlu0 %5068
        %5070 = vrot.lane.b32.xlu0 %v4057, 12
        %v5071 = vpop.permute.xlu0 %5070
        %5072 = vrot.lane.b32.xlu0 %v4306, 12
        %v5073 = vpop.permute.xlu0 %5072
        %5074 = vrot.lane.b32.xlu0 %v4060, 12
        %v5075 = vpop.permute.xlu0 %5074
        %5076 = vrot.lane.b32.xlu0 %v4062, 12
        %v5077 = vpop.permute.xlu0 %5076
        %5078 = vrot.lane.b32.xlu0 %v4064, 12
        %v5079 = vpop.permute.xlu0 %5078
        %5080 = vrot.lane.b32.xlu0 %v4307, 12
        %v5081 = vpop.permute.xlu0 %5080
        %5082 = vrot.lane.b32.xlu0 %v4067, 12
        %v5083 = vpop.permute.xlu0 %5082
        %5084 = vrot.lane.b32.xlu0 %v4069, 12
        %v5085 = vpop.permute.xlu0 %5084
        %5086 = vrot.lane.b32.xlu0 %v4071, 12
        %v5087 = vpop.permute.xlu0 %5086
        %5088 = vrot.lane.b32.xlu0 %v4308, 12
        %v5089 = vpop.permute.xlu0 %5088
        %5090 = vrot.lane.b32.xlu0 %v4074, 12
        %v5091 = vpop.permute.xlu0 %5090
        %5092 = vrot.lane.b32.xlu0 %v4076, 12
        %v5093 = vpop.permute.xlu0 %5092
        %5094 = vrot.lane.b32.xlu0 %v4078, 12
        %v5095 = vpop.permute.xlu0 %5094
        %5096 = vrot.lane.b32.xlu0 %v4309, 12
        %v5097 = vpop.permute.xlu0 %5096
        %5098 = vrot.lane.b32.xlu0 %v4081, 12
        %v5099 = vpop.permute.xlu0 %5098
        %5100 = vrot.lane.b32.xlu0 %v4083, 12
        %v5101 = vpop.permute.xlu0 %5100
        %5102 = vrot.lane.b32.xlu0 %v4085, 12
        %v5103 = vpop.permute.xlu0 %5102
        %5104 = vrot.lane.b32.xlu0 %v4310, 12
        %v5105 = vpop.permute.xlu0 %5104
        %5106 = vrot.lane.b32.xlu0 %v4088, 12
        %v5107 = vpop.permute.xlu0 %5106
        %5108 = vrot.lane.b32.xlu0 %v4090, 12
        %v5109 = vpop.permute.xlu0 %5108
        %5110 = vrot.lane.b32.xlu0 %v4092, 12
        %v5111 = vpop.permute.xlu0 %5110
        %5112 = vrot.lane.b32.xlu0 %v4311, 12
        %v5113 = vpop.permute.xlu0 %5112
        %5114 = vrot.lane.b32.xlu0 %v4095, 12
        %v5115 = vpop.permute.xlu0 %5114
        %5116 = vrot.lane.b32.xlu0 %v4097, 12
        %v5117 = vpop.permute.xlu0 %5116
        %5118 = vrot.lane.b32.xlu0 %v4099, 12
        %v5119 = vpop.permute.xlu0 %5118
        %5120 = vrot.lane.b32.xlu0 %v4312, 12
        %v5121 = vpop.permute.xlu0 %5120
        %5122 = vrot.lane.b32.xlu0 %v4102, 12
        %v5123 = vpop.permute.xlu0 %5122
        %5124 = vrot.lane.b32.xlu0 %v4104, 12
        %v5125 = vpop.permute.xlu0 %5124
        %5126 = vrot.lane.b32.xlu0 %v4106, 12
        %v5127 = vpop.permute.xlu0 %5126
        %5128 = vrot.lane.b32.xlu0 %v4313, 12
        %v5129 = vpop.permute.xlu0 %5128
        %5130 = vrot.lane.b32.xlu0 %v4109, 12
        %v5131 = vpop.permute.xlu0 %5130
        %5132 = vrot.lane.b32.xlu0 %v4111, 12
        %v5133 = vpop.permute.xlu0 %5132
        %5134 = vrot.lane.b32.xlu0 %v4113, 12
        %v5135 = vpop.permute.xlu0 %5134
        %5136 = vrot.lane.b32.xlu0 %v4314, 12
        %v5137 = vpop.permute.xlu0 %5136
        %5138 = vrot.lane.b32.xlu0 %v4116, 12
        %v5139 = vpop.permute.xlu0 %5138
        %5140 = vrot.lane.b32.xlu0 %v4118, 12
        %v5141 = vpop.permute.xlu0 %5140
        %5142 = vrot.lane.b32.xlu0 %v4120, 12
        %v5143 = vpop.permute.xlu0 %5142
        %5144 = vrot.lane.b32.xlu0 %v4315, 12
        %v5145 = vpop.permute.xlu0 %5144
        %5146 = vrot.lane.b32.xlu0 %v4123, 12
        %v5147 = vpop.permute.xlu0 %5146
        %5148 = vrot.lane.b32.xlu0 %v4125, 12
        %v5149 = vpop.permute.xlu0 %5148
        %5150 = vrot.lane.b32.xlu0 %v4127, 12
        %v5151 = vpop.permute.xlu0 %5150
        %5152 = vrot.lane.b32.xlu0 %v4316, 12
        %v5153 = vpop.permute.xlu0 %5152
        %5154 = vrot.lane.b32.xlu0 %v4130, 12
        %v5155 = vpop.permute.xlu0 %5154
        %5156 = vrot.lane.b32.xlu0 %v4132, 12
        %v5157 = vpop.permute.xlu0 %5156
        %5158 = vrot.lane.b32.xlu0 %v4134, 12
        %v5159 = vpop.permute.xlu0 %5158
        %5160 = vrot.lane.b32.xlu0 %v4317, 12
        %v5161 = vpop.permute.xlu0 %5160
        %5162 = vrot.lane.b32.xlu0 %v4137, 12
        %v5163 = vpop.permute.xlu0 %5162
        %5164 = vrot.lane.b32.xlu0 %v4139, 12
        %v5165 = vpop.permute.xlu0 %5164
        %5166 = vrot.lane.b32.xlu0 %v4141, 12
        %v5167 = vpop.permute.xlu0 %5166
        %5232 = vrot.lane.b32.xlu0 %v4369, 16
        %v5233 = vpop.permute.xlu0 %5232
        %5234 = vrot.lane.b32.xlu0 %v4371, 16
        %v5235 = vpop.permute.xlu0 %5234
        %5236 = vrot.lane.b32.xlu0 %v4373, 16
        %v5237 = vpop.permute.xlu0 %5236
        %5238 = vrot.lane.b32.xlu0 %v4375, 16
        %v5239 = vpop.permute.xlu0 %5238
        %5240 = vrot.lane.b32.xlu0 %v4378, 16
        %v5241 = vpop.permute.xlu0 %5240
        %5242 = vrot.lane.b32.xlu0 %v4380, 16
        %v5243 = vpop.permute.xlu0 %5242
        %5244 = vrot.lane.b32.xlu0 %v4382, 16
        %v5245 = vpop.permute.xlu0 %5244
        %5246 = vrot.lane.b32.xlu0 %v4384, 16
        %v5247 = vpop.permute.xlu0 %5246
        %5248 = vrot.lane.b32.xlu0 %v4387, 16
        %v5249 = vpop.permute.xlu0 %5248
        %5250 = vrot.lane.b32.xlu0 %v4389, 16
        %v5251 = vpop.permute.xlu0 %5250
        %5252 = vrot.lane.b32.xlu0 %v4391, 16
        %v5253 = vpop.permute.xlu0 %5252
        %5254 = vrot.lane.b32.xlu0 %v4393, 16
        %v5255 = vpop.permute.xlu0 %5254
        %5256 = vrot.lane.b32.xlu0 %v4396, 16
        %v5257 = vpop.permute.xlu0 %5256
        %5258 = vrot.lane.b32.xlu0 %v4398, 16
        %v5259 = vpop.permute.xlu0 %5258
        %5260 = vrot.lane.b32.xlu0 %v4400, 16
        %v5261 = vpop.permute.xlu0 %5260
        %5262 = vrot.lane.b32.xlu0 %v4402, 16
        %v5263 = vpop.permute.xlu0 %5262
        %5264 = vrot.lane.b32.xlu0 %v4405, 16
        %v5265 = vpop.permute.xlu0 %5264
        %5266 = vrot.lane.b32.xlu0 %v4407, 16
        %v5267 = vpop.permute.xlu0 %5266
        %5268 = vrot.lane.b32.xlu0 %v4409, 16
        %v5269 = vpop.permute.xlu0 %5268
        %5270 = vrot.lane.b32.xlu0 %v4411, 16
        %v5271 = vpop.permute.xlu0 %5270
        %5272 = vrot.lane.b32.xlu0 %v4414, 16
        %v5273 = vpop.permute.xlu0 %5272
        %5274 = vrot.lane.b32.xlu0 %v4416, 16
        %v5275 = vpop.permute.xlu0 %5274
        %5276 = vrot.lane.b32.xlu0 %v4418, 16
        %v5277 = vpop.permute.xlu0 %5276
        %5278 = vrot.lane.b32.xlu0 %v4420, 16
        %v5279 = vpop.permute.xlu0 %5278
        %5280 = vrot.lane.b32.xlu0 %v4423, 16
        %v5281 = vpop.permute.xlu0 %5280
        %5282 = vrot.lane.b32.xlu0 %v4425, 16
        %v5283 = vpop.permute.xlu0 %5282
        %5284 = vrot.lane.b32.xlu0 %v4427, 16
        %v5285 = vpop.permute.xlu0 %5284
        %5286 = vrot.lane.b32.xlu0 %v4429, 16
        %v5287 = vpop.permute.xlu0 %5286
        %5288 = vrot.lane.b32.xlu0 %v4432, 16
        %v5289 = vpop.permute.xlu0 %5288
        %5290 = vrot.lane.b32.xlu0 %v4434, 16
        %v5291 = vpop.permute.xlu0 %5290
        %5292 = vrot.lane.b32.xlu0 %v4436, 16
        %v5293 = vpop.permute.xlu0 %5292
        %5294 = vrot.lane.b32.xlu0 %v4438, 16
        %v5295 = vpop.permute.xlu0 %5294
        %5296 = vrot.lane.b32.xlu0 %v4441, 16
        %v5297 = vpop.permute.xlu0 %5296
        %5298 = vrot.lane.b32.xlu0 %v4443, 16
        %v5299 = vpop.permute.xlu0 %5298
        %5300 = vrot.lane.b32.xlu0 %v4445, 16
        %v5301 = vpop.permute.xlu0 %5300
        %5302 = vrot.lane.b32.xlu0 %v4447, 16
        %v5303 = vpop.permute.xlu0 %5302
        %5304 = vrot.lane.b32.xlu0 %v4450, 16
        %v5305 = vpop.permute.xlu0 %5304
        %5306 = vrot.lane.b32.xlu0 %v4452, 16
        %v5307 = vpop.permute.xlu0 %5306
        %5308 = vrot.lane.b32.xlu0 %v4454, 16
        %v5309 = vpop.permute.xlu0 %5308
        %5310 = vrot.lane.b32.xlu0 %v4456, 16
        %v5311 = vpop.permute.xlu0 %5310
        %5312 = vrot.lane.b32.xlu0 %v4459, 16
        %v5313 = vpop.permute.xlu0 %5312
        %5314 = vrot.lane.b32.xlu0 %v4461, 16
        %v5315 = vpop.permute.xlu0 %5314
        %5316 = vrot.lane.b32.xlu0 %v4463, 16
        %v5317 = vpop.permute.xlu0 %5316
        %5318 = vrot.lane.b32.xlu0 %v4465, 16
        %v5319 = vpop.permute.xlu0 %5318
        %5320 = vrot.lane.b32.xlu0 %v4468, 16
        %v5321 = vpop.permute.xlu0 %5320
        %5322 = vrot.lane.b32.xlu0 %v4470, 16
        %v5323 = vpop.permute.xlu0 %5322
        %5324 = vrot.lane.b32.xlu0 %v4472, 16
        %v5325 = vpop.permute.xlu0 %5324
        %5326 = vrot.lane.b32.xlu0 %v4474, 16
        %v5327 = vpop.permute.xlu0 %5326
        %5328 = vrot.lane.b32.xlu0 %v4477, 16
        %v5329 = vpop.permute.xlu0 %5328
        %5330 = vrot.lane.b32.xlu0 %v4479, 16
        %v5331 = vpop.permute.xlu0 %5330
        %5332 = vrot.lane.b32.xlu0 %v4481, 16
        %v5333 = vpop.permute.xlu0 %5332
        %5334 = vrot.lane.b32.xlu0 %v4483, 16
        %v5335 = vpop.permute.xlu0 %5334
        %5336 = vrot.lane.b32.xlu0 %v4486, 16
        %v5337 = vpop.permute.xlu0 %5336
        %5338 = vrot.lane.b32.xlu0 %v4488, 16
        %v5339 = vpop.permute.xlu0 %5338
        %5340 = vrot.lane.b32.xlu0 %v4490, 16
        %v5341 = vpop.permute.xlu0 %5340
        %5342 = vrot.lane.b32.xlu0 %v4492, 16
        %v5343 = vpop.permute.xlu0 %5342
        %5344 = vrot.lane.b32.xlu0 %v4495, 16
        %v5345 = vpop.permute.xlu0 %5344
        %5346 = vrot.lane.b32.xlu0 %v4497, 16
        %v5347 = vpop.permute.xlu0 %5346
        %5348 = vrot.lane.b32.xlu0 %v4499, 16
        %v5349 = vpop.permute.xlu0 %5348
        %5350 = vrot.lane.b32.xlu0 %v4501, 16
        %v5351 = vpop.permute.xlu0 %5350
        %5352 = vrot.lane.b32.xlu0 %v4504, 16
        %v5353 = vpop.permute.xlu0 %5352
        %5354 = vrot.lane.b32.xlu0 %v4506, 16
        %v5355 = vpop.permute.xlu0 %5354
        %5356 = vrot.lane.b32.xlu0 %v4508, 16
        %v5357 = vpop.permute.xlu0 %5356
        %5358 = vrot.lane.b32.xlu0 %v4510, 16
        %v5359 = vpop.permute.xlu0 %5358
        %5424 = vrot.lane.b32.xlu0 %v4514, 20
        %v5425 = vpop.permute.xlu0 %5424
        %5426 = vrot.lane.b32.xlu0 %v4516, 20
        %v5427 = vpop.permute.xlu0 %5426
        %5428 = vrot.lane.b32.xlu0 %v4518, 20
        %v5429 = vpop.permute.xlu0 %5428
        %5430 = vrot.lane.b32.xlu0 %v4520, 20
        %v5431 = vpop.permute.xlu0 %5430
        %5432 = vrot.lane.b32.xlu0 %v4523, 20
        %v5433 = vpop.permute.xlu0 %5432
        %5434 = vrot.lane.b32.xlu0 %v4525, 20
        %v5435 = vpop.permute.xlu0 %5434
        %5436 = vrot.lane.b32.xlu0 %v4527, 20
        %v5437 = vpop.permute.xlu0 %5436
        %5438 = vrot.lane.b32.xlu0 %v4529, 20
        %v5439 = vpop.permute.xlu0 %5438
        %5440 = vrot.lane.b32.xlu0 %v4532, 20
        %v5441 = vpop.permute.xlu0 %5440
        %5442 = vrot.lane.b32.xlu0 %v4534, 20
        %v5443 = vpop.permute.xlu0 %5442
        %5444 = vrot.lane.b32.xlu0 %v4536, 20
        %v5445 = vpop.permute.xlu0 %5444
        %5446 = vrot.lane.b32.xlu0 %v4538, 20
        %v5447 = vpop.permute.xlu0 %5446
        %5448 = vrot.lane.b32.xlu0 %v4541, 20
        %v5449 = vpop.permute.xlu0 %5448
        %5450 = vrot.lane.b32.xlu0 %v4543, 20
        %v5451 = vpop.permute.xlu0 %5450
        %5452 = vrot.lane.b32.xlu0 %v4545, 20
        %v5453 = vpop.permute.xlu0 %5452
        %5454 = vrot.lane.b32.xlu0 %v4547, 20
        %v5455 = vpop.permute.xlu0 %5454
        %5456 = vrot.lane.b32.xlu0 %v4550, 20
        %v5457 = vpop.permute.xlu0 %5456
        %5458 = vrot.lane.b32.xlu0 %v4552, 20
        %v5459 = vpop.permute.xlu0 %5458
        %5460 = vrot.lane.b32.xlu0 %v4554, 20
        %v5461 = vpop.permute.xlu0 %5460
        %5462 = vrot.lane.b32.xlu0 %v4556, 20
        %v5463 = vpop.permute.xlu0 %5462
        %5464 = vrot.lane.b32.xlu0 %v4559, 20
        %v5465 = vpop.permute.xlu0 %5464
        %5466 = vrot.lane.b32.xlu0 %v4561, 20
        %v5467 = vpop.permute.xlu0 %5466
        %5468 = vrot.lane.b32.xlu0 %v4563, 20
        %v5469 = vpop.permute.xlu0 %5468
        %5470 = vrot.lane.b32.xlu0 %v4565, 20
        %v5471 = vpop.permute.xlu0 %5470
        %5472 = vrot.lane.b32.xlu0 %v4568, 20
        %v5473 = vpop.permute.xlu0 %5472
        %5474 = vrot.lane.b32.xlu0 %v4570, 20
        %v5475 = vpop.permute.xlu0 %5474
        %5476 = vrot.lane.b32.xlu0 %v4572, 20
        %v5477 = vpop.permute.xlu0 %5476
        %5478 = vrot.lane.b32.xlu0 %v4574, 20
        %v5479 = vpop.permute.xlu0 %5478
        %5480 = vrot.lane.b32.xlu0 %v4577, 20
        %v5481 = vpop.permute.xlu0 %5480
        %5482 = vrot.lane.b32.xlu0 %v4579, 20
        %v5483 = vpop.permute.xlu0 %5482
        %5484 = vrot.lane.b32.xlu0 %v4581, 20
        %v5485 = vpop.permute.xlu0 %5484
        %5486 = vrot.lane.b32.xlu0 %v4583, 20
        %v5487 = vpop.permute.xlu0 %5486
        %5488 = vrot.lane.b32.xlu0 %v4586, 20
        %v5489 = vpop.permute.xlu0 %5488
        %5490 = vrot.lane.b32.xlu0 %v4588, 20
        %v5491 = vpop.permute.xlu0 %5490
        %5492 = vrot.lane.b32.xlu0 %v4590, 20
        %v5493 = vpop.permute.xlu0 %5492
        %5494 = vrot.lane.b32.xlu0 %v4592, 20
        %v5495 = vpop.permute.xlu0 %5494
        %5496 = vrot.lane.b32.xlu0 %v4595, 20
        %v5497 = vpop.permute.xlu0 %5496
        %5498 = vrot.lane.b32.xlu0 %v4597, 20
        %v5499 = vpop.permute.xlu0 %5498
        %5500 = vrot.lane.b32.xlu0 %v4599, 20
        %v5501 = vpop.permute.xlu0 %5500
        %5502 = vrot.lane.b32.xlu0 %v4601, 20
        %v5503 = vpop.permute.xlu0 %5502
        %5504 = vrot.lane.b32.xlu0 %v4604, 20
        %v5505 = vpop.permute.xlu0 %5504
        %5506 = vrot.lane.b32.xlu0 %v4606, 20
        %v5507 = vpop.permute.xlu0 %5506
        %5508 = vrot.lane.b32.xlu0 %v4608, 20
        %v5509 = vpop.permute.xlu0 %5508
        %5510 = vrot.lane.b32.xlu0 %v4610, 20
        %v5511 = vpop.permute.xlu0 %5510
        %5512 = vrot.lane.b32.xlu0 %v4613, 20
        %v5513 = vpop.permute.xlu0 %5512
        %5514 = vrot.lane.b32.xlu0 %v4615, 20
        %v5515 = vpop.permute.xlu0 %5514
        %5516 = vrot.lane.b32.xlu0 %v4617, 20
        %v5517 = vpop.permute.xlu0 %5516
        %5518 = vrot.lane.b32.xlu0 %v4619, 20
        %v5519 = vpop.permute.xlu0 %5518
        %5520 = vrot.lane.b32.xlu0 %v4622, 20
        %v5521 = vpop.permute.xlu0 %5520
        %5522 = vrot.lane.b32.xlu0 %v4624, 20
        %v5523 = vpop.permute.xlu0 %5522
        %5524 = vrot.lane.b32.xlu0 %v4626, 20
        %v5525 = vpop.permute.xlu0 %5524
        %5526 = vrot.lane.b32.xlu0 %v4628, 20
        %v5527 = vpop.permute.xlu0 %5526
        %5528 = vrot.lane.b32.xlu0 %v4631, 20
        %v5529 = vpop.permute.xlu0 %5528
        %5530 = vrot.lane.b32.xlu0 %v4633, 20
        %v5531 = vpop.permute.xlu0 %5530
        %5532 = vrot.lane.b32.xlu0 %v4635, 20
        %v5533 = vpop.permute.xlu0 %5532
        %5534 = vrot.lane.b32.xlu0 %v4637, 20
        %v5535 = vpop.permute.xlu0 %5534
        %5536 = vrot.lane.b32.xlu0 %v4640, 20
        %v5537 = vpop.permute.xlu0 %5536
        %5538 = vrot.lane.b32.xlu0 %v4642, 20
        %v5539 = vpop.permute.xlu0 %5538
        %5540 = vrot.lane.b32.xlu0 %v4644, 20
        %v5541 = vpop.permute.xlu0 %5540
        %5542 = vrot.lane.b32.xlu0 %v4646, 20
        %v5543 = vpop.permute.xlu0 %5542
        %5544 = vrot.lane.b32.xlu0 %v4649, 20
        %v5545 = vpop.permute.xlu0 %5544
        %5546 = vrot.lane.b32.xlu0 %v4651, 20
        %v5547 = vpop.permute.xlu0 %5546
        %5548 = vrot.lane.b32.xlu0 %v4653, 20
        %v5549 = vpop.permute.xlu0 %5548
        %5550 = vrot.lane.b32.xlu0 %v4655, 20
        %v5551 = vpop.permute.xlu0 %5550
        %5616 = vrot.lane.b32.xlu0 %v4302, 24
        %v5617 = vpop.permute.xlu0 %5616
        %5618 = vrot.lane.b32.xlu0 %v4032, 24
        %v5619 = vpop.permute.xlu0 %5618
        %5620 = vrot.lane.b32.xlu0 %v4034, 24
        %v5621 = vpop.permute.xlu0 %5620
        %5622 = vrot.lane.b32.xlu0 %v4036, 24
        %v5623 = vpop.permute.xlu0 %5622
        %5624 = vrot.lane.b32.xlu0 %v4303, 24
        %v5625 = vpop.permute.xlu0 %5624
        %5626 = vrot.lane.b32.xlu0 %v4039, 24
        %v5627 = vpop.permute.xlu0 %5626
        %5628 = vrot.lane.b32.xlu0 %v4041, 24
        %v5629 = vpop.permute.xlu0 %5628
        %5630 = vrot.lane.b32.xlu0 %v4043, 24
        %v5631 = vpop.permute.xlu0 %5630
        %5632 = vrot.lane.b32.xlu0 %v4304, 24
        %v5633 = vpop.permute.xlu0 %5632
        %5634 = vrot.lane.b32.xlu0 %v4046, 24
        %v5635 = vpop.permute.xlu0 %5634
        %5636 = vrot.lane.b32.xlu0 %v4048, 24
        %v5637 = vpop.permute.xlu0 %5636
        %5638 = vrot.lane.b32.xlu0 %v4050, 24
        %v5639 = vpop.permute.xlu0 %5638
        %5640 = vrot.lane.b32.xlu0 %v4305, 24
        %v5641 = vpop.permute.xlu0 %5640
        %5642 = vrot.lane.b32.xlu0 %v4053, 24
        %v5643 = vpop.permute.xlu0 %5642
        %5644 = vrot.lane.b32.xlu0 %v4055, 24
        %v5645 = vpop.permute.xlu0 %5644
        %5646 = vrot.lane.b32.xlu0 %v4057, 24
        %v5647 = vpop.permute.xlu0 %5646
        %5648 = vrot.lane.b32.xlu0 %v4306, 24
        %v5649 = vpop.permute.xlu0 %5648
        %5650 = vrot.lane.b32.xlu0 %v4060, 24
        %v5651 = vpop.permute.xlu0 %5650
        %5652 = vrot.lane.b32.xlu0 %v4062, 24
        %v5653 = vpop.permute.xlu0 %5652
        %5654 = vrot.lane.b32.xlu0 %v4064, 24
        %v5655 = vpop.permute.xlu0 %5654
        %5656 = vrot.lane.b32.xlu0 %v4307, 24
        %v5657 = vpop.permute.xlu0 %5656
        %5658 = vrot.lane.b32.xlu0 %v4067, 24
        %v5659 = vpop.permute.xlu0 %5658
        %5660 = vrot.lane.b32.xlu0 %v4069, 24
        %v5661 = vpop.permute.xlu0 %5660
        %5662 = vrot.lane.b32.xlu0 %v4071, 24
        %v5663 = vpop.permute.xlu0 %5662
        %5664 = vrot.lane.b32.xlu0 %v4308, 24
        %v5665 = vpop.permute.xlu0 %5664
        %5666 = vrot.lane.b32.xlu0 %v4074, 24
        %v5667 = vpop.permute.xlu0 %5666
        %5668 = vrot.lane.b32.xlu0 %v4076, 24
        %v5669 = vpop.permute.xlu0 %5668
        %5670 = vrot.lane.b32.xlu0 %v4078, 24
        %v5671 = vpop.permute.xlu0 %5670
        %5672 = vrot.lane.b32.xlu0 %v4309, 24
        %v5673 = vpop.permute.xlu0 %5672
        %5674 = vrot.lane.b32.xlu0 %v4081, 24
        %v5675 = vpop.permute.xlu0 %5674
        %5676 = vrot.lane.b32.xlu0 %v4083, 24
        %v5677 = vpop.permute.xlu0 %5676
        %5678 = vrot.lane.b32.xlu0 %v4085, 24
        %v5679 = vpop.permute.xlu0 %5678
        %5680 = vrot.lane.b32.xlu0 %v4310, 24
        %v5681 = vpop.permute.xlu0 %5680
        %5682 = vrot.lane.b32.xlu0 %v4088, 24
        %v5683 = vpop.permute.xlu0 %5682
        %5684 = vrot.lane.b32.xlu0 %v4090, 24
        %v5685 = vpop.permute.xlu0 %5684
        %5686 = vrot.lane.b32.xlu0 %v4092, 24
        %v5687 = vpop.permute.xlu0 %5686
        %5688 = vrot.lane.b32.xlu0 %v4311, 24
        %v5689 = vpop.permute.xlu0 %5688
        %5690 = vrot.lane.b32.xlu0 %v4095, 24
        %v5691 = vpop.permute.xlu0 %5690
        %5692 = vrot.lane.b32.xlu0 %v4097, 24
        %v5693 = vpop.permute.xlu0 %5692
        %5694 = vrot.lane.b32.xlu0 %v4099, 24
        %v5695 = vpop.permute.xlu0 %5694
        %5696 = vrot.lane.b32.xlu0 %v4312, 24
        %v5697 = vpop.permute.xlu0 %5696
        %5698 = vrot.lane.b32.xlu0 %v4102, 24
        %v5699 = vpop.permute.xlu0 %5698
        %5700 = vrot.lane.b32.xlu0 %v4104, 24
        %v5701 = vpop.permute.xlu0 %5700
        %5702 = vrot.lane.b32.xlu0 %v4106, 24
        %v5703 = vpop.permute.xlu0 %5702
        %5704 = vrot.lane.b32.xlu0 %v4313, 24
        %v5705 = vpop.permute.xlu0 %5704
        %5706 = vrot.lane.b32.xlu0 %v4109, 24
        %v5707 = vpop.permute.xlu0 %5706
        %5708 = vrot.lane.b32.xlu0 %v4111, 24
        %v5709 = vpop.permute.xlu0 %5708
        %5710 = vrot.lane.b32.xlu0 %v4113, 24
        %v5711 = vpop.permute.xlu0 %5710
        %5712 = vrot.lane.b32.xlu0 %v4314, 24
        %v5713 = vpop.permute.xlu0 %5712
        %5714 = vrot.lane.b32.xlu0 %v4116, 24
        %v5715 = vpop.permute.xlu0 %5714
        %5716 = vrot.lane.b32.xlu0 %v4118, 24
        %v5717 = vpop.permute.xlu0 %5716
        %5718 = vrot.lane.b32.xlu0 %v4120, 24
        %v5719 = vpop.permute.xlu0 %5718
        %5720 = vrot.lane.b32.xlu0 %v4315, 24
        %v5721 = vpop.permute.xlu0 %5720
        %5722 = vrot.lane.b32.xlu0 %v4123, 24
        %v5723 = vpop.permute.xlu0 %5722
        %5724 = vrot.lane.b32.xlu0 %v4125, 24
        %v5725 = vpop.permute.xlu0 %5724
        %5726 = vrot.lane.b32.xlu0 %v4127, 24
        %v5727 = vpop.permute.xlu0 %5726
        %5728 = vrot.lane.b32.xlu0 %v4316, 24
        %v5729 = vpop.permute.xlu0 %5728
        %5730 = vrot.lane.b32.xlu0 %v4130, 24
        %v5731 = vpop.permute.xlu0 %5730
        %5732 = vrot.lane.b32.xlu0 %v4132, 24
        %v5733 = vpop.permute.xlu0 %5732
        %5734 = vrot.lane.b32.xlu0 %v4134, 24
        %v5735 = vpop.permute.xlu0 %5734
        %5736 = vrot.lane.b32.xlu0 %v4317, 24
        %v5737 = vpop.permute.xlu0 %5736
        %5738 = vrot.lane.b32.xlu0 %v4137, 24
        %v5739 = vpop.permute.xlu0 %5738
        %5740 = vrot.lane.b32.xlu0 %v4139, 24
        %v5741 = vpop.permute.xlu0 %5740
        %5742 = vrot.lane.b32.xlu0 %v4141, 24
        %v5743 = vpop.permute.xlu0 %5742
        %5808 = vrot.lane.b32.xlu0 %v4369, 28
        %v5809 = vpop.permute.xlu0 %5808
        %5810 = vrot.lane.b32.xlu0 %v4371, 28
        %v5811 = vpop.permute.xlu0 %5810
        %5812 = vrot.lane.b32.xlu0 %v4373, 28
        %v5813 = vpop.permute.xlu0 %5812
        %5814 = vrot.lane.b32.xlu0 %v4375, 28
        %v5815 = vpop.permute.xlu0 %5814
        %5816 = vrot.lane.b32.xlu0 %v4378, 28
        %v5817 = vpop.permute.xlu0 %5816
        %5818 = vrot.lane.b32.xlu0 %v4380, 28
        %v5819 = vpop.permute.xlu0 %5818
        %5820 = vrot.lane.b32.xlu0 %v4382, 28
        %v5821 = vpop.permute.xlu0 %5820
        %5822 = vrot.lane.b32.xlu0 %v4384, 28
        %v5823 = vpop.permute.xlu0 %5822
        %5824 = vrot.lane.b32.xlu0 %v4387, 28
        %v5825 = vpop.permute.xlu0 %5824
        %5826 = vrot.lane.b32.xlu0 %v4389, 28
        %v5827 = vpop.permute.xlu0 %5826
        %5828 = vrot.lane.b32.xlu0 %v4391, 28
        %v5829 = vpop.permute.xlu0 %5828
        %5830 = vrot.lane.b32.xlu0 %v4393, 28
        %v5831 = vpop.permute.xlu0 %5830
        %5832 = vrot.lane.b32.xlu0 %v4396, 28
        %v5833 = vpop.permute.xlu0 %5832
        %5834 = vrot.lane.b32.xlu0 %v4398, 28
        %v5835 = vpop.permute.xlu0 %5834
        %5836 = vrot.lane.b32.xlu0 %v4400, 28
        %v5837 = vpop.permute.xlu0 %5836
        %5838 = vrot.lane.b32.xlu0 %v4402, 28
        %v5839 = vpop.permute.xlu0 %5838
        %5840 = vrot.lane.b32.xlu0 %v4405, 28
        %v5841 = vpop.permute.xlu0 %5840
        %5842 = vrot.lane.b32.xlu0 %v4407, 28
        %v5843 = vpop.permute.xlu0 %5842
        %5844 = vrot.lane.b32.xlu0 %v4409, 28
        %v5845 = vpop.permute.xlu0 %5844
        %5846 = vrot.lane.b32.xlu0 %v4411, 28
        %v5847 = vpop.permute.xlu0 %5846
        %5848 = vrot.lane.b32.xlu0 %v4414, 28
        %v5849 = vpop.permute.xlu0 %5848
        %5850 = vrot.lane.b32.xlu0 %v4416, 28
        %v5851 = vpop.permute.xlu0 %5850
        %5852 = vrot.lane.b32.xlu0 %v4418, 28
        %v5853 = vpop.permute.xlu0 %5852
        %5854 = vrot.lane.b32.xlu0 %v4420, 28
        %v5855 = vpop.permute.xlu0 %5854
        %5856 = vrot.lane.b32.xlu0 %v4423, 28
        %v5857 = vpop.permute.xlu0 %5856
        %5858 = vrot.lane.b32.xlu0 %v4425, 28
        %v5859 = vpop.permute.xlu0 %5858
        %5860 = vrot.lane.b32.xlu0 %v4427, 28
        %v5861 = vpop.permute.xlu0 %5860
        %5862 = vrot.lane.b32.xlu0 %v4429, 28
        %v5863 = vpop.permute.xlu0 %5862
        %5864 = vrot.lane.b32.xlu0 %v4432, 28
        %v5865 = vpop.permute.xlu0 %5864
        %5866 = vrot.lane.b32.xlu0 %v4434, 28
        %v5867 = vpop.permute.xlu0 %5866
        %5868 = vrot.lane.b32.xlu0 %v4436, 28
        %v5869 = vpop.permute.xlu0 %5868
        %5870 = vrot.lane.b32.xlu0 %v4438, 28
        %v5871 = vpop.permute.xlu0 %5870
        %5872 = vrot.lane.b32.xlu0 %v4441, 28
        %v5873 = vpop.permute.xlu0 %5872
        %5874 = vrot.lane.b32.xlu0 %v4443, 28
        %v5875 = vpop.permute.xlu0 %5874
        %5876 = vrot.lane.b32.xlu0 %v4445, 28
        %v5877 = vpop.permute.xlu0 %5876
        %5878 = vrot.lane.b32.xlu0 %v4447, 28
        %v5879 = vpop.permute.xlu0 %5878
        %5880 = vrot.lane.b32.xlu0 %v4450, 28
        %v5881 = vpop.permute.xlu0 %5880
        %5882 = vrot.lane.b32.xlu0 %v4452, 28
        %v5883 = vpop.permute.xlu0 %5882
        %5884 = vrot.lane.b32.xlu0 %v4454, 28
        %v5885 = vpop.permute.xlu0 %5884
        %5886 = vrot.lane.b32.xlu0 %v4456, 28
        %v5887 = vpop.permute.xlu0 %5886
        %5888 = vrot.lane.b32.xlu0 %v4459, 28
        %v5889 = vpop.permute.xlu0 %5888
        %5890 = vrot.lane.b32.xlu0 %v4461, 28
        %v5891 = vpop.permute.xlu0 %5890
        %5892 = vrot.lane.b32.xlu0 %v4463, 28
        %v5893 = vpop.permute.xlu0 %5892
        %5894 = vrot.lane.b32.xlu0 %v4465, 28
        %v5895 = vpop.permute.xlu0 %5894
        %5896 = vrot.lane.b32.xlu0 %v4468, 28
        %v5897 = vpop.permute.xlu0 %5896
        %5898 = vrot.lane.b32.xlu0 %v4470, 28
        %v5899 = vpop.permute.xlu0 %5898
        %5900 = vrot.lane.b32.xlu0 %v4472, 28
        %v5901 = vpop.permute.xlu0 %5900
        %5902 = vrot.lane.b32.xlu0 %v4474, 28
        %v5903 = vpop.permute.xlu0 %5902
        %5904 = vrot.lane.b32.xlu0 %v4477, 28
        %v5905 = vpop.permute.xlu0 %5904
        %5906 = vrot.lane.b32.xlu0 %v4479, 28
        %v5907 = vpop.permute.xlu0 %5906
        %5908 = vrot.lane.b32.xlu0 %v4481, 28
        %v5909 = vpop.permute.xlu0 %5908
        %5910 = vrot.lane.b32.xlu0 %v4483, 28
        %v5911 = vpop.permute.xlu0 %5910
        %5912 = vrot.lane.b32.xlu0 %v4486, 28
        %v5913 = vpop.permute.xlu0 %5912
        %5914 = vrot.lane.b32.xlu0 %v4488, 28
        %v5915 = vpop.permute.xlu0 %5914
        %5916 = vrot.lane.b32.xlu0 %v4490, 28
        %v5917 = vpop.permute.xlu0 %5916
        %5918 = vrot.lane.b32.xlu0 %v4492, 28
        %v5919 = vpop.permute.xlu0 %5918
        %5920 = vrot.lane.b32.xlu0 %v4495, 28
        %v5921 = vpop.permute.xlu0 %5920
        %5922 = vrot.lane.b32.xlu0 %v4497, 28
        %v5923 = vpop.permute.xlu0 %5922
        %5924 = vrot.lane.b32.xlu0 %v4499, 28
        %v5925 = vpop.permute.xlu0 %5924
        %5926 = vrot.lane.b32.xlu0 %v4501, 28
        %v5927 = vpop.permute.xlu0 %5926
        %5928 = vrot.lane.b32.xlu0 %v4504, 28
        %v5929 = vpop.permute.xlu0 %5928
        %5930 = vrot.lane.b32.xlu0 %v4506, 28
        %v5931 = vpop.permute.xlu0 %5930
        %5932 = vrot.lane.b32.xlu0 %v4508, 28
        %v5933 = vpop.permute.xlu0 %5932
        %5934 = vrot.lane.b32.xlu0 %v4510, 28
        %v5935 = vpop.permute.xlu0 %5934
        %6000 = vrot.lane.b32.xlu0 %v4514, 32
        %v6001 = vpop.permute.xlu0 %6000
        %6002 = vrot.lane.b32.xlu0 %v4516, 32
        %v6003 = vpop.permute.xlu0 %6002
        %6004 = vrot.lane.b32.xlu0 %v4518, 32
        %v6005 = vpop.permute.xlu0 %6004
        %6006 = vrot.lane.b32.xlu0 %v4520, 32
        %v6007 = vpop.permute.xlu0 %6006
        %6008 = vrot.lane.b32.xlu0 %v4523, 32
        %v6009 = vpop.permute.xlu0 %6008
        %6010 = vrot.lane.b32.xlu0 %v4525, 32
        %v6011 = vpop.permute.xlu0 %6010
        %6012 = vrot.lane.b32.xlu0 %v4527, 32
        %v6013 = vpop.permute.xlu0 %6012
        %6014 = vrot.lane.b32.xlu0 %v4529, 32
        %v6015 = vpop.permute.xlu0 %6014
        %6016 = vrot.lane.b32.xlu0 %v4532, 32
        %v6017 = vpop.permute.xlu0 %6016
        %6018 = vrot.lane.b32.xlu0 %v4534, 32
        %v6019 = vpop.permute.xlu0 %6018
        %6020 = vrot.lane.b32.xlu0 %v4536, 32
        %v6021 = vpop.permute.xlu0 %6020
        %6022 = vrot.lane.b32.xlu0 %v4538, 32
        %v6023 = vpop.permute.xlu0 %6022
        %6024 = vrot.lane.b32.xlu0 %v4541, 32
        %v6025 = vpop.permute.xlu0 %6024
        %6026 = vrot.lane.b32.xlu0 %v4543, 32
        %v6027 = vpop.permute.xlu0 %6026
        %6028 = vrot.lane.b32.xlu0 %v4545, 32
        %v6029 = vpop.permute.xlu0 %6028
        %6030 = vrot.lane.b32.xlu0 %v4547, 32
        %v6031 = vpop.permute.xlu0 %6030
        %6032 = vrot.lane.b32.xlu0 %v4550, 32
        %v6033 = vpop.permute.xlu0 %6032
        %6034 = vrot.lane.b32.xlu0 %v4552, 32
        %v6035 = vpop.permute.xlu0 %6034
        %6036 = vrot.lane.b32.xlu0 %v4554, 32
        %v6037 = vpop.permute.xlu0 %6036
        %6038 = vrot.lane.b32.xlu0 %v4556, 32
        %v6039 = vpop.permute.xlu0 %6038
        %6040 = vrot.lane.b32.xlu0 %v4559, 32
        %v6041 = vpop.permute.xlu0 %6040
        %6042 = vrot.lane.b32.xlu0 %v4561, 32
        %v6043 = vpop.permute.xlu0 %6042
        %6044 = vrot.lane.b32.xlu0 %v4563, 32
        %v6045 = vpop.permute.xlu0 %6044
        %6046 = vrot.lane.b32.xlu0 %v4565, 32
        %v6047 = vpop.permute.xlu0 %6046
        %6048 = vrot.lane.b32.xlu0 %v4568, 32
        %v6049 = vpop.permute.xlu0 %6048
        %6050 = vrot.lane.b32.xlu0 %v4570, 32
        %v6051 = vpop.permute.xlu0 %6050
        %6052 = vrot.lane.b32.xlu0 %v4572, 32
        %v6053 = vpop.permute.xlu0 %6052
        %6054 = vrot.lane.b32.xlu0 %v4574, 32
        %v6055 = vpop.permute.xlu0 %6054
        %6056 = vrot.lane.b32.xlu0 %v4577, 32
        %v6057 = vpop.permute.xlu0 %6056
        %6058 = vrot.lane.b32.xlu0 %v4579, 32
        %v6059 = vpop.permute.xlu0 %6058
        %6060 = vrot.lane.b32.xlu0 %v4581, 32
        %v6061 = vpop.permute.xlu0 %6060
        %6062 = vrot.lane.b32.xlu0 %v4583, 32
        %v6063 = vpop.permute.xlu0 %6062
        %6064 = vrot.lane.b32.xlu0 %v4586, 32
        %v6065 = vpop.permute.xlu0 %6064
        %6066 = vrot.lane.b32.xlu0 %v4588, 32
        %v6067 = vpop.permute.xlu0 %6066
        %6068 = vrot.lane.b32.xlu0 %v4590, 32
        %v6069 = vpop.permute.xlu0 %6068
        %6070 = vrot.lane.b32.xlu0 %v4592, 32
        %v6071 = vpop.permute.xlu0 %6070
        %6072 = vrot.lane.b32.xlu0 %v4595, 32
        %v6073 = vpop.permute.xlu0 %6072
        %6074 = vrot.lane.b32.xlu0 %v4597, 32
        %v6075 = vpop.permute.xlu0 %6074
        %6076 = vrot.lane.b32.xlu0 %v4599, 32
        %v6077 = vpop.permute.xlu0 %6076
        %6078 = vrot.lane.b32.xlu0 %v4601, 32
        %v6079 = vpop.permute.xlu0 %6078
        %6080 = vrot.lane.b32.xlu0 %v4604, 32
        %v6081 = vpop.permute.xlu0 %6080
        %6082 = vrot.lane.b32.xlu0 %v4606, 32
        %v6083 = vpop.permute.xlu0 %6082
        %6084 = vrot.lane.b32.xlu0 %v4608, 32
        %v6085 = vpop.permute.xlu0 %6084
        %6086 = vrot.lane.b32.xlu0 %v4610, 32
        %v6087 = vpop.permute.xlu0 %6086
        %6088 = vrot.lane.b32.xlu0 %v4613, 32
        %v6089 = vpop.permute.xlu0 %6088
        %6090 = vrot.lane.b32.xlu0 %v4615, 32
        %v6091 = vpop.permute.xlu0 %6090
        %6092 = vrot.lane.b32.xlu0 %v4617, 32
        %v6093 = vpop.permute.xlu0 %6092
        %6094 = vrot.lane.b32.xlu0 %v4619, 32
        %v6095 = vpop.permute.xlu0 %6094
        %6096 = vrot.lane.b32.xlu0 %v4622, 32
        %v6097 = vpop.permute.xlu0 %6096
        %6098 = vrot.lane.b32.xlu0 %v4624, 32
        %v6099 = vpop.permute.xlu0 %6098
        %6100 = vrot.lane.b32.xlu0 %v4626, 32
        %v6101 = vpop.permute.xlu0 %6100
        %6102 = vrot.lane.b32.xlu0 %v4628, 32
        %v6103 = vpop.permute.xlu0 %6102
        %6104 = vrot.lane.b32.xlu0 %v4631, 32
        %v6105 = vpop.permute.xlu0 %6104
        %6106 = vrot.lane.b32.xlu0 %v4633, 32
        %v6107 = vpop.permute.xlu0 %6106
        %6108 = vrot.lane.b32.xlu0 %v4635, 32
        %v6109 = vpop.permute.xlu0 %6108
        %6110 = vrot.lane.b32.xlu0 %v4637, 32
        %v6111 = vpop.permute.xlu0 %6110
        %6112 = vrot.lane.b32.xlu0 %v4640, 32
        %v6113 = vpop.permute.xlu0 %6112
        %6114 = vrot.lane.b32.xlu0 %v4642, 32
        %v6115 = vpop.permute.xlu0 %6114
        %6116 = vrot.lane.b32.xlu0 %v4644, 32
        %v6117 = vpop.permute.xlu0 %6116
        %6118 = vrot.lane.b32.xlu0 %v4646, 32
        %v6119 = vpop.permute.xlu0 %6118
        %6120 = vrot.lane.b32.xlu0 %v4649, 32
        %v6121 = vpop.permute.xlu0 %6120
        %6122 = vrot.lane.b32.xlu0 %v4651, 32
        %v6123 = vpop.permute.xlu0 %6122
        %6124 = vrot.lane.b32.xlu0 %v4653, 32
        %v6125 = vpop.permute.xlu0 %6124
        %6126 = vrot.lane.b32.xlu0 %v4655, 32
        %v6127 = vpop.permute.xlu0 %6126
        %vm6192 = vcmask 31744
        %v6193 = vsel %vm6192, %v4302, %v4657
        %v6194 = vsel %vm6192, %v4032, %v4659
        %v6195 = vsel %vm6192, %v4034, %v4661
        %v6196 = vsel %vm6192, %v4036, %v4663
        %v6197 = vsel %vm6192, %v4303, %v4665
        %v6198 = vsel %vm6192, %v4039, %v4667
        %v6199 = vsel %vm6192, %v4041, %v4669
        %v6200 = vsel %vm6192, %v4043, %v4671
        %v6201 = vsel %vm6192, %v4304, %v4673
        %v6202 = vsel %vm6192, %v4046, %v4675
        %v6203 = vsel %vm6192, %v4048, %v4677
        %v6204 = vsel %vm6192, %v4050, %v4679
        %v6205 = vsel %vm6192, %v4305, %v4681
        %v6206 = vsel %vm6192, %v4053, %v4683
        %v6207 = vsel %vm6192, %v4055, %v4685
        %v6208 = vsel %vm6192, %v4057, %v4687
        %v6209 = vsel %vm6192, %v4306, %v4689
        %v6210 = vsel %vm6192, %v4060, %v4691
        %v6211 = vsel %vm6192, %v4062, %v4693
        %v6212 = vsel %vm6192, %v4064, %v4695
        %v6213 = vsel %vm6192, %v4307, %v4697
        %v6214 = vsel %vm6192, %v4067, %v4699
        %v6215 = vsel %vm6192, %v4069, %v4701
        %v6216 = vsel %vm6192, %v4071, %v4703
        %v6217 = vsel %vm6192, %v4308, %v4705
        %v6218 = vsel %vm6192, %v4074, %v4707
        %v6219 = vsel %vm6192, %v4076, %v4709
        %v6220 = vsel %vm6192, %v4078, %v4711
        %v6221 = vsel %vm6192, %v4309, %v4713
        %v6222 = vsel %vm6192, %v4081, %v4715
        %v6223 = vsel %vm6192, %v4083, %v4717
        %v6224 = vsel %vm6192, %v4085, %v4719
        %v6225 = vsel %vm6192, %v4310, %v4721
        %v6226 = vsel %vm6192, %v4088, %v4723
        %v6227 = vsel %vm6192, %v4090, %v4725
        %v6228 = vsel %vm6192, %v4092, %v4727
        %v6229 = vsel %vm6192, %v4311, %v4729
        %v6230 = vsel %vm6192, %v4095, %v4731
        %v6231 = vsel %vm6192, %v4097, %v4733
        %v6232 = vsel %vm6192, %v4099, %v4735
        %v6233 = vsel %vm6192, %v4312, %v4737
        %v6234 = vsel %vm6192, %v4102, %v4739
        %v6235 = vsel %vm6192, %v4104, %v4741
        %v6236 = vsel %vm6192, %v4106, %v4743
        %v6237 = vsel %vm6192, %v4313, %v4745
        %v6238 = vsel %vm6192, %v4109, %v4747
        %v6239 = vsel %vm6192, %v4111, %v4749
        %v6240 = vsel %vm6192, %v4113, %v4751
        %v6241 = vsel %vm6192, %v4314, %v4753
        %v6242 = vsel %vm6192, %v4116, %v4755
        %v6243 = vsel %vm6192, %v4118, %v4757
        %v6244 = vsel %vm6192, %v4120, %v4759
        %v6245 = vsel %vm6192, %v4315, %v4761
        %v6246 = vsel %vm6192, %v4123, %v4763
        %v6247 = vsel %vm6192, %v4125, %v4765
        %v6248 = vsel %vm6192, %v4127, %v4767
        %v6249 = vsel %vm6192, %v4316, %v4769
        %v6250 = vsel %vm6192, %v4130, %v4771
        %v6251 = vsel %vm6192, %v4132, %v4773
        %v6252 = vsel %vm6192, %v4134, %v4775
        %v6253 = vsel %vm6192, %v4317, %v4777
        %v6254 = vsel %vm6192, %v4137, %v4779
        %v6255 = vsel %vm6192, %v4139, %v4781
        %v6256 = vsel %vm6192, %v4141, %v4783
        %vm6257 = vcmask 64512
        %v6258 = vsel %vm6257, %v6193, %v4849
        %v6259 = vsel %vm6257, %v6194, %v4851
        %v6260 = vsel %vm6257, %v6195, %v4853
        %v6261 = vsel %vm6257, %v6196, %v4855
        %v6262 = vsel %vm6257, %v6197, %v4857
        %v6263 = vsel %vm6257, %v6198, %v4859
        %v6264 = vsel %vm6257, %v6199, %v4861
        %v6265 = vsel %vm6257, %v6200, %v4863
        %v6266 = vsel %vm6257, %v6201, %v4865
        %v6267 = vsel %vm6257, %v6202, %v4867
        %v6268 = vsel %vm6257, %v6203, %v4869
        %v6269 = vsel %vm6257, %v6204, %v4871
        %v6270 = vsel %vm6257, %v6205, %v4873
        %v6271 = vsel %vm6257, %v6206, %v4875
        %v6272 = vsel %vm6257, %v6207, %v4877
        %v6273 = vsel %vm6257, %v6208, %v4879
        %v6274 = vsel %vm6257, %v6209, %v4881
        %v6275 = vsel %vm6257, %v6210, %v4883
        %v6276 = vsel %vm6257, %v6211, %v4885
        %v6277 = vsel %vm6257, %v6212, %v4887
        %v6278 = vsel %vm6257, %v6213, %v4889
        %v6279 = vsel %vm6257, %v6214, %v4891
        %v6280 = vsel %vm6257, %v6215, %v4893
        %v6281 = vsel %vm6257, %v6216, %v4895
        %v6282 = vsel %vm6257, %v6217, %v4897
        %v6283 = vsel %vm6257, %v6218, %v4899
        %v6284 = vsel %vm6257, %v6219, %v4901
        %v6285 = vsel %vm6257, %v6220, %v4903
        %v6286 = vsel %vm6257, %v6221, %v4905
        %v6287 = vsel %vm6257, %v6222, %v4907
        %v6288 = vsel %vm6257, %v6223, %v4909
        %v6289 = vsel %vm6257, %v6224, %v4911
        %v6290 = vsel %vm6257, %v6225, %v4913
        %v6291 = vsel %vm6257, %v6226, %v4915
        %v6292 = vsel %vm6257, %v6227, %v4917
        %v6293 = vsel %vm6257, %v6228, %v4919
        %v6294 = vsel %vm6257, %v6229, %v4921
        %v6295 = vsel %vm6257, %v6230, %v4923
        %v6296 = vsel %vm6257, %v6231, %v4925
        %v6297 = vsel %vm6257, %v6232, %v4927
        %v6298 = vsel %vm6257, %v6233, %v4929
        %v6299 = vsel %vm6257, %v6234, %v4931
        %v6300 = vsel %vm6257, %v6235, %v4933
        %v6301 = vsel %vm6257, %v6236, %v4935
        %v6302 = vsel %vm6257, %v6237, %v4937
        %v6303 = vsel %vm6257, %v6238, %v4939
        %v6304 = vsel %vm6257, %v6239, %v4941
        %v6305 = vsel %vm6257, %v6240, %v4943
        %v6306 = vsel %vm6257, %v6241, %v4945
        %v6307 = vsel %vm6257, %v6242, %v4947
        %v6308 = vsel %vm6257, %v6243, %v4949
        %v6309 = vsel %vm6257, %v6244, %v4951
        %v6310 = vsel %vm6257, %v6245, %v4953
        %v6311 = vsel %vm6257, %v6246, %v4955
        %v6312 = vsel %vm6257, %v6247, %v4957
        %v6313 = vsel %vm6257, %v6248, %v4959
        %v6314 = vsel %vm6257, %v6249, %v4961
        %v6315 = vsel %vm6257, %v6250, %v4963
        %v6316 = vsel %vm6257, %v6251, %v4965
        %v6317 = vsel %vm6257, %v6252, %v4967
        %v6318 = vsel %vm6257, %v6253, %v4969
        %v6319 = vsel %vm6257, %v6254, %v4971
        %v6320 = vsel %vm6257, %v6255, %v4973
        %v6321 = vsel %vm6257, %v6256, %v4975
        %vm6322 = vcmask 97280
        %v6323 = vsel %vm6322, %v6258, %v5041
        %v6324 = vsel %vm6322, %v6259, %v5043
        %v6325 = vsel %vm6322, %v6260, %v5045
        %v6326 = vsel %vm6322, %v6261, %v5047
        %v6327 = vsel %vm6322, %v6258, %v5049
        %v6328 = vsel %vm6322, %v6259, %v5051
        %v6329 = vsel %vm6322, %v6260, %v5053
        %v6330 = vsel %vm6322, %v6261, %v5055
        %v6331 = vsel %vm6322, %v6262, %v5049
        %v6332 = vsel %vm6322, %v6263, %v5051
        %v6333 = vsel %vm6322, %v6264, %v5053
        %v6334 = vsel %vm6322, %v6265, %v5055
        %v6335 = vsel %vm6322, %v6262, %v5057
        %v6336 = vsel %vm6322, %v6263, %v5059
        %v6337 = vsel %vm6322, %v6264, %v5061
        %v6338 = vsel %vm6322, %v6265, %v5063
        %v6339 = vsel %vm6322, %v6266, %v5057
        %v6340 = vsel %vm6322, %v6267, %v5059
        %v6341 = vsel %vm6322, %v6268, %v5061
        %v6342 = vsel %vm6322, %v6269, %v5063
        %v6343 = vsel %vm6322, %v6266, %v5065
        %v6344 = vsel %vm6322, %v6267, %v5067
        %v6345 = vsel %vm6322, %v6268, %v5069
        %v6346 = vsel %vm6322, %v6269, %v5071
        %v6347 = vsel %vm6322, %v6270, %v5065
        %v6348 = vsel %vm6322, %v6271, %v5067
        %v6349 = vsel %vm6322, %v6272, %v5069
        %v6350 = vsel %vm6322, %v6273, %v5071
        %v6351 = vsel %vm6322, %v6270, %v5073
        %v6352 = vsel %vm6322, %v6271, %v5075
        %v6353 = vsel %vm6322, %v6272, %v5077
        %v6354 = vsel %vm6322, %v6273, %v5079
        %v6355 = vsel %vm6322, %v6274, %v5073
        %v6356 = vsel %vm6322, %v6275, %v5075
        %v6357 = vsel %vm6322, %v6276, %v5077
        %v6358 = vsel %vm6322, %v6277, %v5079
        %v6359 = vsel %vm6322, %v6274, %v5081
        %v6360 = vsel %vm6322, %v6275, %v5083
        %v6361 = vsel %vm6322, %v6276, %v5085
        %v6362 = vsel %vm6322, %v6277, %v5087
        %v6363 = vsel %vm6322, %v6278, %v5081
        %v6364 = vsel %vm6322, %v6279, %v5083
        %v6365 = vsel %vm6322, %v6280, %v5085
        %v6366 = vsel %vm6322, %v6281, %v5087
        %v6367 = vsel %vm6322, %v6278, %v5089
        %v6368 = vsel %vm6322, %v6279, %v5091
        %v6369 = vsel %vm6322, %v6280, %v5093
        %v6370 = vsel %vm6322, %v6281, %v5095
        %v6371 = vsel %vm6322, %v6282, %v5089
        %v6372 = vsel %vm6322, %v6283, %v5091
        %v6373 = vsel %vm6322, %v6284, %v5093
        %v6374 = vsel %vm6322, %v6285, %v5095
        %v6375 = vsel %vm6322, %v6282, %v5097
        %v6376 = vsel %vm6322, %v6283, %v5099
        %v6377 = vsel %vm6322, %v6284, %v5101
        %v6378 = vsel %vm6322, %v6285, %v5103
        %v6379 = vsel %vm6322, %v6286, %v5097
        %v6380 = vsel %vm6322, %v6287, %v5099
        %v6381 = vsel %vm6322, %v6288, %v5101
        %v6382 = vsel %vm6322, %v6289, %v5103
        %v6383 = vsel %vm6322, %v6286, %v5105
        %v6384 = vsel %vm6322, %v6287, %v5107
        %v6385 = vsel %vm6322, %v6288, %v5109
        %v6386 = vsel %vm6322, %v6289, %v5111
        %v6387 = vsel %vm6322, %v6290, %v5105
        %v6388 = vsel %vm6322, %v6291, %v5107
        %v6389 = vsel %vm6322, %v6292, %v5109
        %v6390 = vsel %vm6322, %v6293, %v5111
        %v6391 = vsel %vm6322, %v6290, %v5113
        %v6392 = vsel %vm6322, %v6291, %v5115
        %v6393 = vsel %vm6322, %v6292, %v5117
        %v6394 = vsel %vm6322, %v6293, %v5119
        %v6395 = vsel %vm6322, %v6294, %v5113
        %v6396 = vsel %vm6322, %v6295, %v5115
        %v6397 = vsel %vm6322, %v6296, %v5117
        %v6398 = vsel %vm6322, %v6297, %v5119
        %v6399 = vsel %vm6322, %v6294, %v5121
        %v6400 = vsel %vm6322, %v6295, %v5123
        %v6401 = vsel %vm6322, %v6296, %v5125
        %v6402 = vsel %vm6322, %v6297, %v5127
        %v6403 = vsel %vm6322, %v6298, %v5121
        %v6404 = vsel %vm6322, %v6299, %v5123
        %v6405 = vsel %vm6322, %v6300, %v5125
        %v6406 = vsel %vm6322, %v6301, %v5127
        %v6407 = vsel %vm6322, %v6298, %v5129
        %v6408 = vsel %vm6322, %v6299, %v5131
        %v6409 = vsel %vm6322, %v6300, %v5133
        %v6410 = vsel %vm6322, %v6301, %v5135
        %v6411 = vsel %vm6322, %v6302, %v5129
        %v6412 = vsel %vm6322, %v6303, %v5131
        %v6413 = vsel %vm6322, %v6304, %v5133
        %v6414 = vsel %vm6322, %v6305, %v5135
        %v6415 = vsel %vm6322, %v6302, %v5137
        %v6416 = vsel %vm6322, %v6303, %v5139
        %v6417 = vsel %vm6322, %v6304, %v5141
        %v6418 = vsel %vm6322, %v6305, %v5143
        %v6419 = vsel %vm6322, %v6306, %v5137
        %v6420 = vsel %vm6322, %v6307, %v5139
        %v6421 = vsel %vm6322, %v6308, %v5141
        %v6422 = vsel %vm6322, %v6309, %v5143
        %v6423 = vsel %vm6322, %v6306, %v5145
        %v6424 = vsel %vm6322, %v6307, %v5147
        %v6425 = vsel %vm6322, %v6308, %v5149
        %v6426 = vsel %vm6322, %v6309, %v5151
        %v6427 = vsel %vm6322, %v6310, %v5145
        %v6428 = vsel %vm6322, %v6311, %v5147
        %v6429 = vsel %vm6322, %v6312, %v5149
        %v6430 = vsel %vm6322, %v6313, %v5151
        %v6431 = vsel %vm6322, %v6310, %v5153
        %v6432 = vsel %vm6322, %v6311, %v5155
        %v6433 = vsel %vm6322, %v6312, %v5157
        %v6434 = vsel %vm6322, %v6313, %v5159
        %v6435 = vsel %vm6322, %v6314, %v5153
        %v6436 = vsel %vm6322, %v6315, %v5155
        %v6437 = vsel %vm6322, %v6316, %v5157
        %v6438 = vsel %vm6322, %v6317, %v5159
        %v6439 = vsel %vm6322, %v6314, %v5161
        %v6440 = vsel %vm6322, %v6315, %v5163
        %v6441 = vsel %vm6322, %v6316, %v5165
        %v6442 = vsel %vm6322, %v6317, %v5167
        %v6443 = vsel %vm6322, %v6318, %v5161
        %v6444 = vsel %vm6322, %v6319, %v5163
        %v6445 = vsel %vm6322, %v6320, %v5165
        %v6446 = vsel %vm6322, %v6321, %v5167
        %vm6447 = vcmask 130048
        %v6448 = vsel %vm6447, %v6323, %v5233
        %v6449 = vsel %vm6447, %v6324, %v5235
        %v6450 = vsel %vm6447, %v6325, %v5237
        %v6451 = vsel %vm6447, %v6326, %v5239
        %v6452 = vsel %vm6447, %v6327, %v5241
        %v6453 = vsel %vm6447, %v6328, %v5243
        %v6454 = vsel %vm6447, %v6329, %v5245
        %v6455 = vsel %vm6447, %v6330, %v5247
        %v6456 = vsel %vm6447, %v6331, %v5241
        %v6457 = vsel %vm6447, %v6332, %v5243
        %v6458 = vsel %vm6447, %v6333, %v5245
        %v6459 = vsel %vm6447, %v6334, %v5247
        %v6460 = vsel %vm6447, %v6335, %v5249
        %v6461 = vsel %vm6447, %v6336, %v5251
        %v6462 = vsel %vm6447, %v6337, %v5253
        %v6463 = vsel %vm6447, %v6338, %v5255
        %v6464 = vsel %vm6447, %v6339, %v5249
        %v6465 = vsel %vm6447, %v6340, %v5251
        %v6466 = vsel %vm6447, %v6341, %v5253
        %v6467 = vsel %vm6447, %v6342, %v5255
        %v6468 = vsel %vm6447, %v6343, %v5257
        %v6469 = vsel %vm6447, %v6344, %v5259
        %v6470 = vsel %vm6447, %v6345, %v5261
        %v6471 = vsel %vm6447, %v6346, %v5263
        %v6472 = vsel %vm6447, %v6347, %v5257
        %v6473 = vsel %vm6447, %v6348, %v5259
        %v6474 = vsel %vm6447, %v6349, %v5261
        %v6475 = vsel %vm6447, %v6350, %v5263
        %v6476 = vsel %vm6447, %v6351, %v5265
        %v6477 = vsel %vm6447, %v6352, %v5267
        %v6478 = vsel %vm6447, %v6353, %v5269
        %v6479 = vsel %vm6447, %v6354, %v5271
        %v6480 = vsel %vm6447, %v6355, %v5265
        %v6481 = vsel %vm6447, %v6356, %v5267
        %v6482 = vsel %vm6447, %v6357, %v5269
        %v6483 = vsel %vm6447, %v6358, %v5271
        %v6484 = vsel %vm6447, %v6359, %v5273
        %v6485 = vsel %vm6447, %v6360, %v5275
        %v6486 = vsel %vm6447, %v6361, %v5277
        %v6487 = vsel %vm6447, %v6362, %v5279
        %v6488 = vsel %vm6447, %v6363, %v5273
        %v6489 = vsel %vm6447, %v6364, %v5275
        %v6490 = vsel %vm6447, %v6365, %v5277
        %v6491 = vsel %vm6447, %v6366, %v5279
        %v6492 = vsel %vm6447, %v6367, %v5281
        %v6493 = vsel %vm6447, %v6368, %v5283
        %v6494 = vsel %vm6447, %v6369, %v5285
        %v6495 = vsel %vm6447, %v6370, %v5287
        %v6496 = vsel %vm6447, %v6371, %v5281
        %v6497 = vsel %vm6447, %v6372, %v5283
        %v6498 = vsel %vm6447, %v6373, %v5285
        %v6499 = vsel %vm6447, %v6374, %v5287
        %v6500 = vsel %vm6447, %v6375, %v5289
        %v6501 = vsel %vm6447, %v6376, %v5291
        %v6502 = vsel %vm6447, %v6377, %v5293
        %v6503 = vsel %vm6447, %v6378, %v5295
        %v6504 = vsel %vm6447, %v6379, %v5289
        %v6505 = vsel %vm6447, %v6380, %v5291
        %v6506 = vsel %vm6447, %v6381, %v5293
        %v6507 = vsel %vm6447, %v6382, %v5295
        %v6508 = vsel %vm6447, %v6383, %v5297
        %v6509 = vsel %vm6447, %v6384, %v5299
        %v6510 = vsel %vm6447, %v6385, %v5301
        %v6511 = vsel %vm6447, %v6386, %v5303
        %v6512 = vsel %vm6447, %v6387, %v5297
        %v6513 = vsel %vm6447, %v6388, %v5299
        %v6514 = vsel %vm6447, %v6389, %v5301
        %v6515 = vsel %vm6447, %v6390, %v5303
        %v6516 = vsel %vm6447, %v6391, %v5305
        %v6517 = vsel %vm6447, %v6392, %v5307
        %v6518 = vsel %vm6447, %v6393, %v5309
        %v6519 = vsel %vm6447, %v6394, %v5311
        %v6520 = vsel %vm6447, %v6395, %v5305
        %v6521 = vsel %vm6447, %v6396, %v5307
        %v6522 = vsel %vm6447, %v6397, %v5309
        %v6523 = vsel %vm6447, %v6398, %v5311
        %v6524 = vsel %vm6447, %v6399, %v5313
        %v6525 = vsel %vm6447, %v6400, %v5315
        %v6526 = vsel %vm6447, %v6401, %v5317
        %v6527 = vsel %vm6447, %v6402, %v5319
        %v6528 = vsel %vm6447, %v6403, %v5313
        %v6529 = vsel %vm6447, %v6404, %v5315
        %v6530 = vsel %vm6447, %v6405, %v5317
        %v6531 = vsel %vm6447, %v6406, %v5319
        %v6532 = vsel %vm6447, %v6407, %v5321
        %v6533 = vsel %vm6447, %v6408, %v5323
        %v6534 = vsel %vm6447, %v6409, %v5325
        %v6535 = vsel %vm6447, %v6410, %v5327
        %v6536 = vsel %vm6447, %v6411, %v5321
        %v6537 = vsel %vm6447, %v6412, %v5323
        %v6538 = vsel %vm6447, %v6413, %v5325
        %v6539 = vsel %vm6447, %v6414, %v5327
        %v6540 = vsel %vm6447, %v6415, %v5329
        %v6541 = vsel %vm6447, %v6416, %v5331
        %v6542 = vsel %vm6447, %v6417, %v5333
        %v6543 = vsel %vm6447, %v6418, %v5335
        %v6544 = vsel %vm6447, %v6419, %v5329
        %v6545 = vsel %vm6447, %v6420, %v5331
        %v6546 = vsel %vm6447, %v6421, %v5333
        %v6547 = vsel %vm6447, %v6422, %v5335
        %v6548 = vsel %vm6447, %v6423, %v5337
        %v6549 = vsel %vm6447, %v6424, %v5339
        %v6550 = vsel %vm6447, %v6425, %v5341
        %v6551 = vsel %vm6447, %v6426, %v5343
        %v6552 = vsel %vm6447, %v6427, %v5337
        %v6553 = vsel %vm6447, %v6428, %v5339
        %v6554 = vsel %vm6447, %v6429, %v5341
        %v6555 = vsel %vm6447, %v6430, %v5343
        %v6556 = vsel %vm6447, %v6431, %v5345
        %v6557 = vsel %vm6447, %v6432, %v5347
        %v6558 = vsel %vm6447, %v6433, %v5349
        %v6559 = vsel %vm6447, %v6434, %v5351
        %v6560 = vsel %vm6447, %v6435, %v5345
        %v6561 = vsel %vm6447, %v6436, %v5347
        %v6562 = vsel %vm6447, %v6437, %v5349
        %v6563 = vsel %vm6447, %v6438, %v5351
        %v6564 = vsel %vm6447, %v6439, %v5353
        %v6565 = vsel %vm6447, %v6440, %v5355
        %v6566 = vsel %vm6447, %v6441, %v5357
        %v6567 = vsel %vm6447, %v6442, %v5359
        %v6568 = vsel %vm6447, %v6443, %v5353
        %v6569 = vsel %vm6447, %v6444, %v5355
        %v6570 = vsel %vm6447, %v6445, %v5357
        %v6571 = vsel %vm6447, %v6446, %v5359
        %vm6572 = vcmask 162816
        %v6573 = vsel %vm6572, %v6448, %v5425
        %v6574 = vsel %vm6572, %v6449, %v5427
        %v6575 = vsel %vm6572, %v6450, %v5429
        %v6576 = vsel %vm6572, %v6451, %v5431
        %v6577 = vsel %vm6572, %v6452, %v5433
        %v6578 = vsel %vm6572, %v6453, %v5435
        %v6579 = vsel %vm6572, %v6454, %v5437
        %v6580 = vsel %vm6572, %v6455, %v5439
        %v6581 = vsel %vm6572, %v6456, %v5433
        %v6582 = vsel %vm6572, %v6457, %v5435
        %v6583 = vsel %vm6572, %v6458, %v5437
        %v6584 = vsel %vm6572, %v6459, %v5439
        %v6585 = vsel %vm6572, %v6460, %v5441
        %v6586 = vsel %vm6572, %v6461, %v5443
        %v6587 = vsel %vm6572, %v6462, %v5445
        %v6588 = vsel %vm6572, %v6463, %v5447
        %v6589 = vsel %vm6572, %v6464, %v5441
        %v6590 = vsel %vm6572, %v6465, %v5443
        %v6591 = vsel %vm6572, %v6466, %v5445
        %v6592 = vsel %vm6572, %v6467, %v5447
        %v6593 = vsel %vm6572, %v6468, %v5449
        %v6594 = vsel %vm6572, %v6469, %v5451
        %v6595 = vsel %vm6572, %v6470, %v5453
        %v6596 = vsel %vm6572, %v6471, %v5455
        %v6597 = vsel %vm6572, %v6472, %v5449
        %v6598 = vsel %vm6572, %v6473, %v5451
        %v6599 = vsel %vm6572, %v6474, %v5453
        %v6600 = vsel %vm6572, %v6475, %v5455
        %v6601 = vsel %vm6572, %v6476, %v5457
        %v6602 = vsel %vm6572, %v6477, %v5459
        %v6603 = vsel %vm6572, %v6478, %v5461
        %v6604 = vsel %vm6572, %v6479, %v5463
        %v6605 = vsel %vm6572, %v6480, %v5457
        %v6606 = vsel %vm6572, %v6481, %v5459
        %v6607 = vsel %vm6572, %v6482, %v5461
        %v6608 = vsel %vm6572, %v6483, %v5463
        %v6609 = vsel %vm6572, %v6484, %v5465
        %v6610 = vsel %vm6572, %v6485, %v5467
        %v6611 = vsel %vm6572, %v6486, %v5469
        %v6612 = vsel %vm6572, %v6487, %v5471
        %v6613 = vsel %vm6572, %v6488, %v5465
        %v6614 = vsel %vm6572, %v6489, %v5467
        %v6615 = vsel %vm6572, %v6490, %v5469
        %v6616 = vsel %vm6572, %v6491, %v5471
        %v6617 = vsel %vm6572, %v6492, %v5473
        %v6618 = vsel %vm6572, %v6493, %v5475
        %v6619 = vsel %vm6572, %v6494, %v5477
        %v6620 = vsel %vm6572, %v6495, %v5479
        %v6621 = vsel %vm6572, %v6496, %v5473
        %v6622 = vsel %vm6572, %v6497, %v5475
        %v6623 = vsel %vm6572, %v6498, %v5477
        %v6624 = vsel %vm6572, %v6499, %v5479
        %v6625 = vsel %vm6572, %v6500, %v5481
        %v6626 = vsel %vm6572, %v6501, %v5483
        %v6627 = vsel %vm6572, %v6502, %v5485
        %v6628 = vsel %vm6572, %v6503, %v5487
        %v6629 = vsel %vm6572, %v6504, %v5481
        %v6630 = vsel %vm6572, %v6505, %v5483
        %v6631 = vsel %vm6572, %v6506, %v5485
        %v6632 = vsel %vm6572, %v6507, %v5487
        %v6633 = vsel %vm6572, %v6508, %v5489
        %v6634 = vsel %vm6572, %v6509, %v5491
        %v6635 = vsel %vm6572, %v6510, %v5493
        %v6636 = vsel %vm6572, %v6511, %v5495
        %v6637 = vsel %vm6572, %v6512, %v5489
        %v6638 = vsel %vm6572, %v6513, %v5491
        %v6639 = vsel %vm6572, %v6514, %v5493
        %v6640 = vsel %vm6572, %v6515, %v5495
        %v6641 = vsel %vm6572, %v6516, %v5497
        %v6642 = vsel %vm6572, %v6517, %v5499
        %v6643 = vsel %vm6572, %v6518, %v5501
        %v6644 = vsel %vm6572, %v6519, %v5503
        %v6645 = vsel %vm6572, %v6520, %v5497
        %v6646 = vsel %vm6572, %v6521, %v5499
        %v6647 = vsel %vm6572, %v6522, %v5501
        %v6648 = vsel %vm6572, %v6523, %v5503
        %v6649 = vsel %vm6572, %v6524, %v5505
        %v6650 = vsel %vm6572, %v6525, %v5507
        %v6651 = vsel %vm6572, %v6526, %v5509
        %v6652 = vsel %vm6572, %v6527, %v5511
        %v6653 = vsel %vm6572, %v6528, %v5505
        %v6654 = vsel %vm6572, %v6529, %v5507
        %v6655 = vsel %vm6572, %v6530, %v5509
        %v6656 = vsel %vm6572, %v6531, %v5511
        %v6657 = vsel %vm6572, %v6532, %v5513
        %v6658 = vsel %vm6572, %v6533, %v5515
        %v6659 = vsel %vm6572, %v6534, %v5517
        %v6660 = vsel %vm6572, %v6535, %v5519
        %v6661 = vsel %vm6572, %v6536, %v5513
        %v6662 = vsel %vm6572, %v6537, %v5515
        %v6663 = vsel %vm6572, %v6538, %v5517
        %v6664 = vsel %vm6572, %v6539, %v5519
        %v6665 = vsel %vm6572, %v6540, %v5521
        %v6666 = vsel %vm6572, %v6541, %v5523
        %v6667 = vsel %vm6572, %v6542, %v5525
        %v6668 = vsel %vm6572, %v6543, %v5527
        %v6669 = vsel %vm6572, %v6544, %v5521
        %v6670 = vsel %vm6572, %v6545, %v5523
        %v6671 = vsel %vm6572, %v6546, %v5525
        %v6672 = vsel %vm6572, %v6547, %v5527
        %v6673 = vsel %vm6572, %v6548, %v5529
        %v6674 = vsel %vm6572, %v6549, %v5531
        %v6675 = vsel %vm6572, %v6550, %v5533
        %v6676 = vsel %vm6572, %v6551, %v5535
        %v6677 = vsel %vm6572, %v6552, %v5529
        %v6678 = vsel %vm6572, %v6553, %v5531
        %v6679 = vsel %vm6572, %v6554, %v5533
        %v6680 = vsel %vm6572, %v6555, %v5535
        %v6681 = vsel %vm6572, %v6556, %v5537
        %v6682 = vsel %vm6572, %v6557, %v5539
        %v6683 = vsel %vm6572, %v6558, %v5541
        %v6684 = vsel %vm6572, %v6559, %v5543
        %v6685 = vsel %vm6572, %v6560, %v5537
        %v6686 = vsel %vm6572, %v6561, %v5539
        %v6687 = vsel %vm6572, %v6562, %v5541
        %v6688 = vsel %vm6572, %v6563, %v5543
        %v6689 = vsel %vm6572, %v6564, %v5545
        %v6690 = vsel %vm6572, %v6565, %v5547
        %v6691 = vsel %vm6572, %v6566, %v5549
        %v6692 = vsel %vm6572, %v6567, %v5551
        %v6693 = vsel %vm6572, %v6568, %v5545
        %v6694 = vsel %vm6572, %v6569, %v5547
        %v6695 = vsel %vm6572, %v6570, %v5549
        %v6696 = vsel %vm6572, %v6571, %v5551
        %vm6697 = vcmask 195584
        %v6698 = vsel %vm6697, %v6573, %v5617
        %v6699 = vsel %vm6697, %v6574, %v5619
        %v6700 = vsel %vm6697, %v6575, %v5621
        %v6701 = vsel %vm6697, %v6576, %v5623
        %v6702 = vsel %vm6697, %v6573, %v5625
        %v6703 = vsel %vm6697, %v6574, %v5627
        %v6704 = vsel %vm6697, %v6575, %v5629
        %v6705 = vsel %vm6697, %v6576, %v5631
        %v6706 = vsel %vm6697, %v6577, %v5625
        %v6707 = vsel %vm6697, %v6578, %v5627
        %v6708 = vsel %vm6697, %v6579, %v5629
        %v6709 = vsel %vm6697, %v6580, %v5631
        %v6710 = vsel %vm6697, %v6581, %v5633
        %v6711 = vsel %vm6697, %v6582, %v5635
        %v6712 = vsel %vm6697, %v6583, %v5637
        %v6713 = vsel %vm6697, %v6584, %v5639
        %v6714 = vsel %vm6697, %v6585, %v5633
        %v6715 = vsel %vm6697, %v6586, %v5635
        %v6716 = vsel %vm6697, %v6587, %v5637
        %v6717 = vsel %vm6697, %v6588, %v5639
        %v6718 = vsel %vm6697, %v6589, %v5641
        %v6719 = vsel %vm6697, %v6590, %v5643
        %v6720 = vsel %vm6697, %v6591, %v5645
        %v6721 = vsel %vm6697, %v6592, %v5647
        %v6722 = vsel %vm6697, %v6593, %v5641
        %v6723 = vsel %vm6697, %v6594, %v5643
        %v6724 = vsel %vm6697, %v6595, %v5645
        %v6725 = vsel %vm6697, %v6596, %v5647
        %v6726 = vsel %vm6697, %v6597, %v5649
        %v6727 = vsel %vm6697, %v6598, %v5651
        %v6728 = vsel %vm6697, %v6599, %v5653
        %v6729 = vsel %vm6697, %v6600, %v5655
        %v6730 = vsel %vm6697, %v6601, %v5649
        %v6731 = vsel %vm6697, %v6602, %v5651
        %v6732 = vsel %vm6697, %v6603, %v5653
        %v6733 = vsel %vm6697, %v6604, %v5655
        %v6734 = vsel %vm6697, %v6605, %v5657
        %v6735 = vsel %vm6697, %v6606, %v5659
        %v6736 = vsel %vm6697, %v6607, %v5661
        %v6737 = vsel %vm6697, %v6608, %v5663
        %v6738 = vsel %vm6697, %v6609, %v5657
        %v6739 = vsel %vm6697, %v6610, %v5659
        %v6740 = vsel %vm6697, %v6611, %v5661
        %v6741 = vsel %vm6697, %v6612, %v5663
        %v6742 = vsel %vm6697, %v6613, %v5665
        %v6743 = vsel %vm6697, %v6614, %v5667
        %v6744 = vsel %vm6697, %v6615, %v5669
        %v6745 = vsel %vm6697, %v6616, %v5671
        %v6746 = vsel %vm6697, %v6617, %v5665
        %v6747 = vsel %vm6697, %v6618, %v5667
        %v6748 = vsel %vm6697, %v6619, %v5669
        %v6749 = vsel %vm6697, %v6620, %v5671
        %v6750 = vsel %vm6697, %v6621, %v5673
        %v6751 = vsel %vm6697, %v6622, %v5675
        %v6752 = vsel %vm6697, %v6623, %v5677
        %v6753 = vsel %vm6697, %v6624, %v5679
        %v6754 = vsel %vm6697, %v6625, %v5673
        %v6755 = vsel %vm6697, %v6626, %v5675
        %v6756 = vsel %vm6697, %v6627, %v5677
        %v6757 = vsel %vm6697, %v6628, %v5679
        %v6758 = vsel %vm6697, %v6629, %v5681
        %v6759 = vsel %vm6697, %v6630, %v5683
        %v6760 = vsel %vm6697, %v6631, %v5685
        %v6761 = vsel %vm6697, %v6632, %v5687
        %v6762 = vsel %vm6697, %v6633, %v5681
        %v6763 = vsel %vm6697, %v6634, %v5683
        %v6764 = vsel %vm6697, %v6635, %v5685
        %v6765 = vsel %vm6697, %v6636, %v5687
        %v6766 = vsel %vm6697, %v6637, %v5689
        %v6767 = vsel %vm6697, %v6638, %v5691
        %v6768 = vsel %vm6697, %v6639, %v5693
        %v6769 = vsel %vm6697, %v6640, %v5695
        %v6770 = vsel %vm6697, %v6641, %v5689
        %v6771 = vsel %vm6697, %v6642, %v5691
        %v6772 = vsel %vm6697, %v6643, %v5693
        %v6773 = vsel %vm6697, %v6644, %v5695
        %v6774 = vsel %vm6697, %v6645, %v5697
        %v6775 = vsel %vm6697, %v6646, %v5699
        %v6776 = vsel %vm6697, %v6647, %v5701
        %v6777 = vsel %vm6697, %v6648, %v5703
        %v6778 = vsel %vm6697, %v6649, %v5697
        %v6779 = vsel %vm6697, %v6650, %v5699
        %v6780 = vsel %vm6697, %v6651, %v5701
        %v6781 = vsel %vm6697, %v6652, %v5703
        %v6782 = vsel %vm6697, %v6653, %v5705
        %v6783 = vsel %vm6697, %v6654, %v5707
        %v6784 = vsel %vm6697, %v6655, %v5709
        %v6785 = vsel %vm6697, %v6656, %v5711
        %v6786 = vsel %vm6697, %v6657, %v5705
        %v6787 = vsel %vm6697, %v6658, %v5707
        %v6788 = vsel %vm6697, %v6659, %v5709
        %v6789 = vsel %vm6697, %v6660, %v5711
        %v6790 = vsel %vm6697, %v6661, %v5713
        %v6791 = vsel %vm6697, %v6662, %v5715
        %v6792 = vsel %vm6697, %v6663, %v5717
        %v6793 = vsel %vm6697, %v6664, %v5719
        %v6794 = vsel %vm6697, %v6665, %v5713
        %v6795 = vsel %vm6697, %v6666, %v5715
        %v6796 = vsel %vm6697, %v6667, %v5717
        %v6797 = vsel %vm6697, %v6668, %v5719
        %v6798 = vsel %vm6697, %v6669, %v5721
        %v6799 = vsel %vm6697, %v6670, %v5723
        %v6800 = vsel %vm6697, %v6671, %v5725
        %v6801 = vsel %vm6697, %v6672, %v5727
        %v6802 = vsel %vm6697, %v6673, %v5721
        %v6803 = vsel %vm6697, %v6674, %v5723
        %v6804 = vsel %vm6697, %v6675, %v5725
        %v6805 = vsel %vm6697, %v6676, %v5727
        %v6806 = vsel %vm6697, %v6677, %v5729
        %v6807 = vsel %vm6697, %v6678, %v5731
        %v6808 = vsel %vm6697, %v6679, %v5733
        %v6809 = vsel %vm6697, %v6680, %v5735
        %v6810 = vsel %vm6697, %v6681, %v5729
        %v6811 = vsel %vm6697, %v6682, %v5731
        %v6812 = vsel %vm6697, %v6683, %v5733
        %v6813 = vsel %vm6697, %v6684, %v5735
        %v6814 = vsel %vm6697, %v6685, %v5737
        %v6815 = vsel %vm6697, %v6686, %v5739
        %v6816 = vsel %vm6697, %v6687, %v5741
        %v6817 = vsel %vm6697, %v6688, %v5743
        %v6818 = vsel %vm6697, %v6689, %v5737
        %v6819 = vsel %vm6697, %v6690, %v5739
        %v6820 = vsel %vm6697, %v6691, %v5741
        %v6821 = vsel %vm6697, %v6692, %v5743
        %v6822 = vsel %vm6697, %v6693, %v5737
        %v6823 = vsel %vm6697, %v6694, %v5739
        %v6824 = vsel %vm6697, %v6695, %v5741
        %v6825 = vsel %vm6697, %v6696, %v5743
        %vm6826 = vcmask 228352
        %v6827 = vsel %vm6826, %v6698, %v5809
        %v6828 = vsel %vm6826, %v6699, %v5811
        %v6829 = vsel %vm6826, %v6700, %v5813
        %v6830 = vsel %vm6826, %v6701, %v5815
        %v6831 = vsel %vm6826, %v6702, %v5817
        %v6832 = vsel %vm6826, %v6703, %v5819
        %v6833 = vsel %vm6826, %v6704, %v5821
        %v6834 = vsel %vm6826, %v6705, %v5823
        %v6835 = vsel %vm6826, %v6706, %v5817
        %v6836 = vsel %vm6826, %v6707, %v5819
        %v6837 = vsel %vm6826, %v6708, %v5821
        %v6838 = vsel %vm6826, %v6709, %v5823
        %v6839 = vsel %vm6826, %v6710, %v5825
        %v6840 = vsel %vm6826, %v6711, %v5827
        %v6841 = vsel %vm6826, %v6712, %v5829
        %v6842 = vsel %vm6826, %v6713, %v5831
        %v6843 = vsel %vm6826, %v6714, %v5825
        %v6844 = vsel %vm6826, %v6715, %v5827
        %v6845 = vsel %vm6826, %v6716, %v5829
        %v6846 = vsel %vm6826, %v6717, %v5831
        %v6847 = vsel %vm6826, %v6718, %v5833
        %v6848 = vsel %vm6826, %v6719, %v5835
        %v6849 = vsel %vm6826, %v6720, %v5837
        %v6850 = vsel %vm6826, %v6721, %v5839
        %v6851 = vsel %vm6826, %v6722, %v5833
        %v6852 = vsel %vm6826, %v6723, %v5835
        %v6853 = vsel %vm6826, %v6724, %v5837
        %v6854 = vsel %vm6826, %v6725, %v5839
        %v6855 = vsel %vm6826, %v6726, %v5841
        %v6856 = vsel %vm6826, %v6727, %v5843
        %v6857 = vsel %vm6826, %v6728, %v5845
        %v6858 = vsel %vm6826, %v6729, %v5847
        %v6859 = vsel %vm6826, %v6730, %v5841
        %v6860 = vsel %vm6826, %v6731, %v5843
        %v6861 = vsel %vm6826, %v6732, %v5845
        %v6862 = vsel %vm6826, %v6733, %v5847
        %v6863 = vsel %vm6826, %v6734, %v5849
        %v6864 = vsel %vm6826, %v6735, %v5851
        %v6865 = vsel %vm6826, %v6736, %v5853
        %v6866 = vsel %vm6826, %v6737, %v5855
        %v6867 = vsel %vm6826, %v6738, %v5849
        %v6868 = vsel %vm6826, %v6739, %v5851
        %v6869 = vsel %vm6826, %v6740, %v5853
        %v6870 = vsel %vm6826, %v6741, %v5855
        %v6871 = vsel %vm6826, %v6742, %v5857
        %v6872 = vsel %vm6826, %v6743, %v5859
        %v6873 = vsel %vm6826, %v6744, %v5861
        %v6874 = vsel %vm6826, %v6745, %v5863
        %v6875 = vsel %vm6826, %v6746, %v5857
        %v6876 = vsel %vm6826, %v6747, %v5859
        %v6877 = vsel %vm6826, %v6748, %v5861
        %v6878 = vsel %vm6826, %v6749, %v5863
        %v6879 = vsel %vm6826, %v6750, %v5865
        %v6880 = vsel %vm6826, %v6751, %v5867
        %v6881 = vsel %vm6826, %v6752, %v5869
        %v6882 = vsel %vm6826, %v6753, %v5871
        %v6883 = vsel %vm6826, %v6754, %v5865
        %v6884 = vsel %vm6826, %v6755, %v5867
        %v6885 = vsel %vm6826, %v6756, %v5869
        %v6886 = vsel %vm6826, %v6757, %v5871
        %v6887 = vsel %vm6826, %v6758, %v5873
        %v6888 = vsel %vm6826, %v6759, %v5875
        %v6889 = vsel %vm6826, %v6760, %v5877
        %v6890 = vsel %vm6826, %v6761, %v5879
        %v6891 = vsel %vm6826, %v6762, %v5873
        %v6892 = vsel %vm6826, %v6763, %v5875
        %v6893 = vsel %vm6826, %v6764, %v5877
        %v6894 = vsel %vm6826, %v6765, %v5879
        %v6895 = vsel %vm6826, %v6766, %v5881
        %v6896 = vsel %vm6826, %v6767, %v5883
        %v6897 = vsel %vm6826, %v6768, %v5885
        %v6898 = vsel %vm6826, %v6769, %v5887
        %v6899 = vsel %vm6826, %v6770, %v5881
        %v6900 = vsel %vm6826, %v6771, %v5883
        %v6901 = vsel %vm6826, %v6772, %v5885
        %v6902 = vsel %vm6826, %v6773, %v5887
        %v6903 = vsel %vm6826, %v6774, %v5889
        %v6904 = vsel %vm6826, %v6775, %v5891
        %v6905 = vsel %vm6826, %v6776, %v5893
        %v6906 = vsel %vm6826, %v6777, %v5895
        %v6907 = vsel %vm6826, %v6778, %v5889
        %v6908 = vsel %vm6826, %v6779, %v5891
        %v6909 = vsel %vm6826, %v6780, %v5893
        %v6910 = vsel %vm6826, %v6781, %v5895
        %v6911 = vsel %vm6826, %v6782, %v5897
        %v6912 = vsel %vm6826, %v6783, %v5899
        %v6913 = vsel %vm6826, %v6784, %v5901
        %v6914 = vsel %vm6826, %v6785, %v5903
        %v6915 = vsel %vm6826, %v6786, %v5897
        %v6916 = vsel %vm6826, %v6787, %v5899
        %v6917 = vsel %vm6826, %v6788, %v5901
        %v6918 = vsel %vm6826, %v6789, %v5903
        %v6919 = vsel %vm6826, %v6790, %v5905
        %v6920 = vsel %vm6826, %v6791, %v5907
        %v6921 = vsel %vm6826, %v6792, %v5909
        %v6922 = vsel %vm6826, %v6793, %v5911
        %v6923 = vsel %vm6826, %v6794, %v5905
        %v6924 = vsel %vm6826, %v6795, %v5907
        %v6925 = vsel %vm6826, %v6796, %v5909
        %v6926 = vsel %vm6826, %v6797, %v5911
        %v6927 = vsel %vm6826, %v6798, %v5913
        %v6928 = vsel %vm6826, %v6799, %v5915
        %v6929 = vsel %vm6826, %v6800, %v5917
        %v6930 = vsel %vm6826, %v6801, %v5919
        %v6931 = vsel %vm6826, %v6802, %v5913
        %v6932 = vsel %vm6826, %v6803, %v5915
        %v6933 = vsel %vm6826, %v6804, %v5917
        %v6934 = vsel %vm6826, %v6805, %v5919
        %v6935 = vsel %vm6826, %v6806, %v5921
        %v6936 = vsel %vm6826, %v6807, %v5923
        %v6937 = vsel %vm6826, %v6808, %v5925
        %v6938 = vsel %vm6826, %v6809, %v5927
        %v6939 = vsel %vm6826, %v6810, %v5921
        %v6940 = vsel %vm6826, %v6811, %v5923
        %v6941 = vsel %vm6826, %v6812, %v5925
        %v6942 = vsel %vm6826, %v6813, %v5927
        %v6943 = vsel %vm6826, %v6814, %v5929
        %v6944 = vsel %vm6826, %v6815, %v5931
        %v6945 = vsel %vm6826, %v6816, %v5933
        %v6946 = vsel %vm6826, %v6817, %v5935
        %v6947 = vsel %vm6826, %v6818, %v5929
        %v6948 = vsel %vm6826, %v6819, %v5931
        %v6949 = vsel %vm6826, %v6820, %v5933
        %v6950 = vsel %vm6826, %v6821, %v5935
        %v6951 = vsel %vm6826, %v6822, %v5929
        %v6952 = vsel %vm6826, %v6823, %v5931
        %v6953 = vsel %vm6826, %v6824, %v5933
        %v6954 = vsel %vm6826, %v6825, %v5935
        %vm6955 = vcmask 261120
        %v6956 = vsel %vm6955, %v6827, %v6001
        %v6957 = vsel %vm6955, %v6828, %v6003
        %v6958 = vsel %vm6955, %v6829, %v6005
        %v6959 = vsel %vm6955, %v6830, %v6007
        %v6960 = vsel %vm6955, %v6831, %v6009
        %v6961 = vsel %vm6955, %v6832, %v6011
        %v6962 = vsel %vm6955, %v6833, %v6013
        %v6963 = vsel %vm6955, %v6834, %v6015
        %v6964 = vsel %vm6955, %v6835, %v6009
        %v6965 = vsel %vm6955, %v6836, %v6011
        %v6966 = vsel %vm6955, %v6837, %v6013
        %v6967 = vsel %vm6955, %v6838, %v6015
        %v6968 = vsel %vm6955, %v6839, %v6017
        %v6969 = vsel %vm6955, %v6840, %v6019
        %v6970 = vsel %vm6955, %v6841, %v6021
        %v6971 = vsel %vm6955, %v6842, %v6023
        %v6972 = vsel %vm6955, %v6843, %v6017
        %v6973 = vsel %vm6955, %v6844, %v6019
        %v6974 = vsel %vm6955, %v6845, %v6021
        %v6975 = vsel %vm6955, %v6846, %v6023
        %v6976 = vsel %vm6955, %v6847, %v6025
        %v6977 = vsel %vm6955, %v6848, %v6027
        %v6978 = vsel %vm6955, %v6849, %v6029
        %v6979 = vsel %vm6955, %v6850, %v6031
        %v6980 = vsel %vm6955, %v6851, %v6025
        %v6981 = vsel %vm6955, %v6852, %v6027
        %v6982 = vsel %vm6955, %v6853, %v6029
        %v6983 = vsel %vm6955, %v6854, %v6031
        %v6984 = vsel %vm6955, %v6855, %v6033
        %v6985 = vsel %vm6955, %v6856, %v6035
        %v6986 = vsel %vm6955, %v6857, %v6037
        %v6987 = vsel %vm6955, %v6858, %v6039
        %v6988 = vsel %vm6955, %v6859, %v6033
        %v6989 = vsel %vm6955, %v6860, %v6035
        %v6990 = vsel %vm6955, %v6861, %v6037
        %v6991 = vsel %vm6955, %v6862, %v6039
        %v6992 = vsel %vm6955, %v6863, %v6041
        %v6993 = vsel %vm6955, %v6864, %v6043
        %v6994 = vsel %vm6955, %v6865, %v6045
        %v6995 = vsel %vm6955, %v6866, %v6047
        %v6996 = vsel %vm6955, %v6867, %v6041
        %v6997 = vsel %vm6955, %v6868, %v6043
        %v6998 = vsel %vm6955, %v6869, %v6045
        %v6999 = vsel %vm6955, %v6870, %v6047
        %v7000 = vsel %vm6955, %v6871, %v6049
        %v7001 = vsel %vm6955, %v6872, %v6051
        %v7002 = vsel %vm6955, %v6873, %v6053
        %v7003 = vsel %vm6955, %v6874, %v6055
        %v7004 = vsel %vm6955, %v6875, %v6049
        %v7005 = vsel %vm6955, %v6876, %v6051
        %v7006 = vsel %vm6955, %v6877, %v6053
        %v7007 = vsel %vm6955, %v6878, %v6055
        %v7008 = vsel %vm6955, %v6879, %v6057
        %v7009 = vsel %vm6955, %v6880, %v6059
        %v7010 = vsel %vm6955, %v6881, %v6061
        %v7011 = vsel %vm6955, %v6882, %v6063
        %v7012 = vsel %vm6955, %v6883, %v6057
        %v7013 = vsel %vm6955, %v6884, %v6059
        %v7014 = vsel %vm6955, %v6885, %v6061
        %v7015 = vsel %vm6955, %v6886, %v6063
        %v7016 = vsel %vm6955, %v6887, %v6065
        %v7017 = vsel %vm6955, %v6888, %v6067
        %v7018 = vsel %vm6955, %v6889, %v6069
        %v7019 = vsel %vm6955, %v6890, %v6071
        %v7020 = vsel %vm6955, %v6891, %v6065
        %v7021 = vsel %vm6955, %v6892, %v6067
        %v7022 = vsel %vm6955, %v6893, %v6069
        %v7023 = vsel %vm6955, %v6894, %v6071
        %v7024 = vsel %vm6955, %v6895, %v6073
        %v7025 = vsel %vm6955, %v6896, %v6075
        %v7026 = vsel %vm6955, %v6897, %v6077
        %v7027 = vsel %vm6955, %v6898, %v6079
        %v7028 = vsel %vm6955, %v6899, %v6073
        %v7029 = vsel %vm6955, %v6900, %v6075
        %v7030 = vsel %vm6955, %v6901, %v6077
        %v7031 = vsel %vm6955, %v6902, %v6079
        %v7032 = vsel %vm6955, %v6903, %v6081
        %v7033 = vsel %vm6955, %v6904, %v6083
        %v7034 = vsel %vm6955, %v6905, %v6085
        %v7035 = vsel %vm6955, %v6906, %v6087
        %v7036 = vsel %vm6955, %v6907, %v6081
        %v7037 = vsel %vm6955, %v6908, %v6083
        %v7038 = vsel %vm6955, %v6909, %v6085
        %v7039 = vsel %vm6955, %v6910, %v6087
        %v7040 = vsel %vm6955, %v6911, %v6089
        %v7041 = vsel %vm6955, %v6912, %v6091
        %v7042 = vsel %vm6955, %v6913, %v6093
        %v7043 = vsel %vm6955, %v6914, %v6095
        %v7044 = vsel %vm6955, %v6915, %v6089
        %v7045 = vsel %vm6955, %v6916, %v6091
        %v7046 = vsel %vm6955, %v6917, %v6093
        %v7047 = vsel %vm6955, %v6918, %v6095
        %v7048 = vsel %vm6955, %v6919, %v6097
        %v7049 = vsel %vm6955, %v6920, %v6099
        %v7050 = vsel %vm6955, %v6921, %v6101
        %v7051 = vsel %vm6955, %v6922, %v6103
        %v7052 = vsel %vm6955, %v6923, %v6097
        %v7053 = vsel %vm6955, %v6924, %v6099
        %v7054 = vsel %vm6955, %v6925, %v6101
        %v7055 = vsel %vm6955, %v6926, %v6103
        %v7056 = vsel %vm6955, %v6927, %v6105
        %v7057 = vsel %vm6955, %v6928, %v6107
        %v7058 = vsel %vm6955, %v6929, %v6109
        %v7059 = vsel %vm6955, %v6930, %v6111
        %v7060 = vsel %vm6955, %v6931, %v6105
        %v7061 = vsel %vm6955, %v6932, %v6107
        %v7062 = vsel %vm6955, %v6933, %v6109
        %v7063 = vsel %vm6955, %v6934, %v6111
        %v7064 = vsel %vm6955, %v6935, %v6113
        %v7065 = vsel %vm6955, %v6936, %v6115
        %v7066 = vsel %vm6955, %v6937, %v6117
        %v7067 = vsel %vm6955, %v6938, %v6119
        %v7068 = vsel %vm6955, %v6939, %v6113
        %v7069 = vsel %vm6955, %v6940, %v6115
        %v7070 = vsel %vm6955, %v6941, %v6117
        %v7071 = vsel %vm6955, %v6942, %v6119
        %v7072 = vsel %vm6955, %v6943, %v6121
        %v7073 = vsel %vm6955, %v6944, %v6123
        %v7074 = vsel %vm6955, %v6945, %v6125
        %v7075 = vsel %vm6955, %v6946, %v6127
        %v7076 = vsel %vm6955, %v6947, %v6121
        %v7077 = vsel %vm6955, %v6948, %v6123
        %v7078 = vsel %vm6955, %v6949, %v6125
        %v7079 = vsel %vm6955, %v6950, %v6127
        %v7080 = vsel %vm6955, %v6951, %v6121
        %v7081 = vsel %vm6955, %v6952, %v6123
        %v7082 = vsel %vm6955, %v6953, %v6125
        %v7083 = vsel %vm6955, %v6954, %v6127
        %v7084 = vld [vmem:[%s1] sm:$0xff]
        %v7085 = vld [vmem:[%s1 + $0x8] sm:$0xff]
        %v7086 = vld [vmem:[%s1 + $0x10] sm:$0xff]
        %v7087 = vld [vmem:[%s1 + $0x18] sm:$0xff]
        %v7088 = vld [vmem:[%s1 + $0x20] sm:$0xf]
        %vm7089 = vcmask 293888
        %v7091 = vsel %vm7089, %v6956, 0
        %v7094 = vsel %vm7089, %v6957, 0
        %v7097 = vsel %vm7089, %v6958, 0
        %v7100 = vsel %vm7089, %v6959, 0
        %v7103 = vsel %vm7089, %v6960, 0
        %v7106 = vsel %vm7089, %v6961, 0
        %v7109 = vsel %vm7089, %v6962, 0
        %v7112 = vsel %vm7089, %v6963, 0
        %v7115 = vsel %vm7089, %v6964, 0
        %v7118 = vsel %vm7089, %v6965, 0
        %v7121 = vsel %vm7089, %v6966, 0
        %v7124 = vsel %vm7089, %v6967, 0
        %v7127 = vsel %vm7089, %v6968, 0
        %v7130 = vsel %vm7089, %v6969, 0
        %v7133 = vsel %vm7089, %v6970, 0
        %v7136 = vsel %vm7089, %v6971, 0
        %v7139 = vsel %vm7089, %v6972, 0
        %v7142 = vsel %vm7089, %v6973, 0
        %v7145 = vsel %vm7089, %v6974, 0
        %v7148 = vsel %vm7089, %v6975, 0
        %v7151 = vsel %vm7089, %v6976, 0
        %v7154 = vsel %vm7089, %v6977, 0
        %v7157 = vsel %vm7089, %v6978, 0
        %v7160 = vsel %vm7089, %v6979, 0
        %v7163 = vsel %vm7089, %v6980, 0
        %v7166 = vsel %vm7089, %v6981, 0
        %v7169 = vsel %vm7089, %v6982, 0
        %v7172 = vsel %vm7089, %v6983, 0
        %v7175 = vsel %vm7089, %v6984, 0
        %v7178 = vsel %vm7089, %v6985, 0
        %v7181 = vsel %vm7089, %v6986, 0
        %v7184 = vsel %vm7089, %v6987, 0
        %v7187 = vsel %vm7089, %v6988, 0
        %v7190 = vsel %vm7089, %v6989, 0
        %v7193 = vsel %vm7089, %v6990, 0
        %v7196 = vsel %vm7089, %v6991, 0
        %v7199 = vsel %vm7089, %v6992, 0
        %v7202 = vsel %vm7089, %v6993, 0
        %v7205 = vsel %vm7089, %v6994, 0
        %v7208 = vsel %vm7089, %v6995, 0
        %v7211 = vsel %vm7089, %v6996, 0
        %v7214 = vsel %vm7089, %v6997, 0
        %v7217 = vsel %vm7089, %v6998, 0
        %v7220 = vsel %vm7089, %v6999, 0
        %v7223 = vsel %vm7089, %v7000, 0
        %v7226 = vsel %vm7089, %v7001, 0
        %v7229 = vsel %vm7089, %v7002, 0
        %v7232 = vsel %vm7089, %v7003, 0
        %v7235 = vsel %vm7089, %v7004, 0
        %v7238 = vsel %vm7089, %v7005, 0
        %v7241 = vsel %vm7089, %v7006, 0
        %v7244 = vsel %vm7089, %v7007, 0
        %v7247 = vsel %vm7089, %v7008, 0
        %v7250 = vsel %vm7089, %v7009, 0
        %v7253 = vsel %vm7089, %v7010, 0
        %v7256 = vsel %vm7089, %v7011, 0
        %v7259 = vsel %vm7089, %v7012, 0
        %v7262 = vsel %vm7089, %v7013, 0
        %v7265 = vsel %vm7089, %v7014, 0
        %v7268 = vsel %vm7089, %v7015, 0
        %v7271 = vsel %vm7089, %v7016, 0
        %v7274 = vsel %vm7089, %v7017, 0
        %v7277 = vsel %vm7089, %v7018, 0
        %v7280 = vsel %vm7089, %v7019, 0
        %v7283 = vsel %vm7089, %v7020, 0
        %v7286 = vsel %vm7089, %v7021, 0
        %v7289 = vsel %vm7089, %v7022, 0
        %v7292 = vsel %vm7089, %v7023, 0
        %v7295 = vsel %vm7089, %v7024, 0
        %v7298 = vsel %vm7089, %v7025, 0
        %v7301 = vsel %vm7089, %v7026, 0
        %v7304 = vsel %vm7089, %v7027, 0
        %v7307 = vsel %vm7089, %v7028, 0
        %v7310 = vsel %vm7089, %v7029, 0
        %v7313 = vsel %vm7089, %v7030, 0
        %v7316 = vsel %vm7089, %v7031, 0
        %v7319 = vsel %vm7089, %v7032, 0
        %v7322 = vsel %vm7089, %v7033, 0
        %v7325 = vsel %vm7089, %v7034, 0
        %v7328 = vsel %vm7089, %v7035, 0
        %v7331 = vsel %vm7089, %v7036, 0
        %v7334 = vsel %vm7089, %v7037, 0
        %v7337 = vsel %vm7089, %v7038, 0
        %v7340 = vsel %vm7089, %v7039, 0
        %v7343 = vsel %vm7089, %v7040, 0
        %v7346 = vsel %vm7089, %v7041, 0
        %v7349 = vsel %vm7089, %v7042, 0
        %v7352 = vsel %vm7089, %v7043, 0
        %v7355 = vsel %vm7089, %v7044, 0
        %v7358 = vsel %vm7089, %v7045, 0
        %v7361 = vsel %vm7089, %v7046, 0
        %v7364 = vsel %vm7089, %v7047, 0
        %v7367 = vsel %vm7089, %v7048, 0
        %v7370 = vsel %vm7089, %v7049, 0
        %v7373 = vsel %vm7089, %v7050, 0
        %v7376 = vsel %vm7089, %v7051, 0
        %v7379 = vsel %vm7089, %v7052, 0
        %v7382 = vsel %vm7089, %v7053, 0
        %v7385 = vsel %vm7089, %v7054, 0
        %v7388 = vsel %vm7089, %v7055, 0
        %v7391 = vsel %vm7089, %v7056, 0
        %v7394 = vsel %vm7089, %v7057, 0
        %v7397 = vsel %vm7089, %v7058, 0
        %v7400 = vsel %vm7089, %v7059, 0
        %v7403 = vsel %vm7089, %v7060, 0
        %v7406 = vsel %vm7089, %v7061, 0
        %v7409 = vsel %vm7089, %v7062, 0
        %v7412 = vsel %vm7089, %v7063, 0
        %v7415 = vsel %vm7089, %v7064, 0
        %v7418 = vsel %vm7089, %v7065, 0
        %v7421 = vsel %vm7089, %v7066, 0
        %v7424 = vsel %vm7089, %v7067, 0
        %v7427 = vsel %vm7089, %v7068, 0
        %v7430 = vsel %vm7089, %v7069, 0
        %v7433 = vsel %vm7089, %v7070, 0
        %v7436 = vsel %vm7089, %v7071, 0
        %v7439 = vsel %vm7089, %v7072, 0
        %v7442 = vsel %vm7089, %v7073, 0
        %v7445 = vsel %vm7089, %v7074, 0
        %v7448 = vsel %vm7089, %v7075, 0
        %v7451 = vsel %vm7089, %v7076, 0
        %v7454 = vsel %vm7089, %v7077, 0
        %v7457 = vsel %vm7089, %v7078, 0
        %v7460 = vsel %vm7089, %v7079, 0
        %v7463 = vsel %vm7089, %v7080, 0
        %v7466 = vsel %vm7089, %v7081, 0
        %v7469 = vsel %vm7089, %v7082, 0
        %v7472 = vsel %vm7089, %v7083, 0
        %vm7474 = vcmask 1043456
        %v7476 = vsel %vm7474, %v7088, 0
        %7478 = vmatprep.subr.mxu0 0.0
        %7479 = vmatpush1.msra.mxu0 %v7084
        %7480 = vmatprep.subr.mxu0 0.0
        %7481 = vmatpush1.msra.mxu0 %v7085
        %7482 = vmatprep.subr.mxu0 0.0
        %7483 = vmatpush1.msra.mxu0 %v7086
        %7484 = vmatprep.subr.mxu0 0.0
        %7485 = vmatpush1.msra.mxu0 %v7087
        %7486 = vmatprep.subr.mxu0 0.0
        %7487 = vmatpush1.msra.mxu0 %v7476
        %7488 = vmatprep.subr.mxu0 0.0
        %7489 = vmatpush1.msra.mxu0 0.0
        %7490 = vmatprep.subr.mxu0 0.0
        %7491 = vmatpush1.msra.mxu0 0.0
        %7492 = vmatprep.subr.mxu0 0.0
        %7493 = vmatpush1.msra.mxu0 0.0
        %7494 = vmatprep.subr.mxu0 0.0
        %7495 = vmatpush1.msra.mxu0 0.0
        %7496 = vmatprep.subr.mxu0 0.0
        %7497 = vmatpush1.msra.mxu0 0.0
        %7498 = vmatprep.subr.mxu0 0.0
        %7499 = vmatpush1.msra.mxu0 0.0
        %7500 = vmatprep.subr.mxu0 0.0
        %7501 = vmatpush1.msra.mxu0 0.0
        %7502 = vmatprep.subr.mxu0 0.0
        %7503 = vmatpush1.msra.mxu0 0.0
        %7504 = vmatprep.subr.mxu0 0.0
        %7505 = vmatpush1.msra.mxu0 0.0
        %7506 = vmatprep.subr.mxu0 0.0
        %7507 = vmatpush1.msra.mxu0 0.0
        %7508 = vmatprep.subr.mxu0 0.0
        %7509 = vmatpush1.msra.mxu0 0.0
        %7510 = vmatprep.subr.mxu0 0.0
        %7511 = vmatpush1.msra.mxu0 0.0
        %7512 = vmatprep.subr.mxu0 0.0
        %7513 = vmatpush1.msra.mxu0 0.0
        %7514 = vmatprep.subr.mxu0 0.0
        %7515 = vmatpush1.msra.mxu0 0.0
        %7516 = vmatprep.subr.mxu0 0.0
        %7517 = vmatpush1.msra.mxu0 0.0
        %7518 = vmatprep.subr.mxu0 0.0
        %7519 = vmatpush1.msra.mxu0 0.0
        %7520 = vmatprep.subr.mxu0 0.0
        %7521 = vmatpush1.msra.mxu0 0.0
        %7522 = vmatprep.subr.mxu0 0.0
        %7523 = vmatpush1.msra.mxu0 0.0
        %7524 = vmatprep.subr.mxu0 0.0
        %7525 = vmatpush1.msra.mxu0 0.0
        %7526 = vmatprep.subr.mxu0 0.0
        %7527 = vmatpush1.msra.mxu0 0.0
        %7528 = vmatprep.subr.mxu0 0.0
        %7529 = vmatpush1.msra.mxu0 0.0
        %7530 = vmatprep.subr.mxu0 0.0
        %7531 = vmatpush1.msra.mxu0 0.0
        %7532 = vmatprep.subr.mxu0 0.0
        %7533 = vmatpush1.msra.mxu0 0.0
        %7534 = vmatprep.subr.mxu0 0.0
        %7535 = vmatpush1.msra.mxu0 0.0
        %7536 = vmatprep.subr.mxu0 0.0
        %7537 = vmatpush1.msra.mxu0 0.0
        %7538 = vmatprep.subr.mxu0 0.0
        %7539 = vmatpush1.msra.mxu0 0.0
        %7540 = vmatprep.subr.mxu0 0.0
        %7541 = vmatpush1.msra.mxu0 0.0
        %7542 = vmatprep.mubr.f32.mxu0 0.0
        %7543 = vmatmul.mubr.f32.gmra.mrb[0].mxu0 %v7091
        %v7544 = vpop.f32.mrb[0].mxu0
        %v7545 = vadd.f32 0.0, %v7544
        %v7546 = vpop.f32.mrb[0].mxu0
        %7547 = vmatprep.mubr.f32.mxu0 0.0
        %7548 = vmatmul.mubr.f32.gmra.mrb[0].mxu0 %v7094
        %v7549 = vpop.f32.mrb[0].mxu0
        %v7550 = vadd.f32 0.0, %v7549
        %v7551 = vpop.f32.mrb[0].mxu0
        %7552 = vmatprep.mubr.f32.mxu0 0.0
        %7553 = vmatmul.mubr.f32.gmra.mrb[0].mxu0 %v7097
        %v7554 = vpop.f32.mrb[0].mxu0
        %v7555 = vadd.f32 0.0, %v7554
        %v7556 = vpop.f32.mrb[0].mxu0
        %7557 = vmatprep.mubr.f32.mxu0 0.0
        %7558 = vmatmul.mubr.f32.gmra.mrb[0].mxu0 %v7100
        %v7559 = vpop.f32.mrb[0].mxu0
        %v7560 = vadd.f32 0.0, %v7559
        %v7561 = vpop.f32.mrb[0].mxu0
        %7562 = vmatprep.mubr.f32.mxu0 0.0
        %7563 = vmatmul.mubr.f32.gmra.mrb[0].mxu0 %v7103
        %v7564 = vpop.f32.mrb[0].mxu0
        %v7565 = vadd.f32 0.0, %v7564
        %v7566 = vpop.f32.mrb[0].mxu0
        %7567 = vmatprep.mubr.f32.mxu0 0.0
        %7568 = vmatmul.mubr.f32.gmra.mrb[0].mxu0 %v7106
        %v7569 = vpop.f32.mrb[0].mxu0
        %v7570 = vadd.f32 0.0, %v7569
        %v7571 = vpop.f32.mrb[0].mxu0
        %7572 = vmatprep.mubr.f32.mxu0 0.0
        %7573 = vmatmul.mubr.f32.gmra.mrb[0].mxu0 %v7109
        %v7574 = vpop.f32.mrb[0].mxu0
        %v7575 = vadd.f32 0.0, %v7574
        %v7576 = vpop.f32.mrb[0].mxu0
        %7577 = vmatprep.mubr.f32.mxu0 0.0
        %7578 = vmatmul.mubr.f32.gmra.mrb[0].mxu0 %v7112
        %v7579 = vpop.f32.mrb[0].mxu0
        %v7580 = vadd.f32 0.0, %v7579
        %v7581 = vpop.f32.mrb[0].mxu0
        %7582 = vmatprep.mubr.f32.mxu0 0.0
        %7583 = vmatmul.mubr.f32.gmra.mrb[0].mxu0 %v7115
        %v7584 = vpop.f32.mrb[0].mxu0
        %v7585 = vadd.f32 0.0, %v7584
        %v7586 = vpop.f32.mrb[0].mxu0
        %7587 = vmatprep.mubr.f32.mxu0 0.0
        %7588 = vmatmul.mubr.f32.gmra.mrb[0].mxu0 %v7118
        %v7589 = vpop.f32.mrb[0].mxu0
        %v7590 = vadd.f32 0.0, %v7589
        %v7591 = vpop.f32.mrb[0].mxu0
        %7592 = vmatprep.mubr.f32.mxu0 0.0
        %7593 = vmatmul.mubr.f32.gmra.mrb[0].mxu0 %v7121
        %v7594 = vpop.f32.mrb[0].mxu0
        %v7595 = vadd.f32 0.0, %v7594
        %v7596 = vpop.f32.mrb[0].mxu0
        %7597 = vmatprep.mubr.f32.mxu0 0.0
        %7598 = vmatmul.mubr.f32.gmra.mrb[0].mxu0 %v7124
        %v7599 = vpop.f32.mrb[0].mxu0
        %v7600 = vadd.f32 0.0, %v7599
        %v7601 = vpop.f32.mrb[0].mxu0
        %7602 = vmatprep.mubr.f32.mxu0 0.0
        %7603 = vmatmul.mubr.f32.gmra.mrb[0].mxu0 %v7127
        %v7604 = vpop.f32.mrb[0].mxu0
        %v7605 = vadd.f32 0.0, %v7604
        %v7606 = vpop.f32.mrb[0].mxu0
        %7607 = vmatprep.mubr.f32.mxu0 0.0
        %7608 = vmatmul.mubr.f32.gmra.mrb[0].mxu0 %v7130
        %v7609 = vpop.f32.mrb[0].mxu0
        %v7610 = vadd.f32 0.0, %v7609
        %v7611 = vpop.f32.mrb[0].mxu0
        %7612 = vmatprep.mubr.f32.mxu0 0.0
        %7613 = vmatmul.mubr.f32.gmra.mrb[0].mxu0 %v7133
        %v7614 = vpop.f32.mrb[0].mxu0
        %v7615 = vadd.f32 0.0, %v7614
        %v7616 = vpop.f32.mrb[0].mxu0
        %7617 = vmatprep.mubr.f32.mxu0 0.0
        %7618 = vmatmul.mubr.f32.gmra.mrb[0].mxu0 %v7136
        %v7619 = vpop.f32.mrb[0].mxu0
        %v7620 = vadd.f32 0.0, %v7619
        %v7621 = vpop.f32.mrb[0].mxu0
        %7622 = vmatprep.mubr.f32.mxu0 0.0
        %7623 = vmatmul.mubr.f32.gmra.mrb[0].mxu0 %v7139
        %v7624 = vpop.f32.mrb[0].mxu0
        %v7625 = vadd.f32 0.0, %v7624
        %v7626 = vpop.f32.mrb[0].mxu0
        %7627 = vmatprep.mubr.f32.mxu0 0.0
        %7628 = vmatmul.mubr.f32.gmra.mrb[0].mxu0 %v7142
        %v7629 = vpop.f32.mrb[0].mxu0
        %v7630 = vadd.f32 0.0, %v7629
        %v7631 = vpop.f32.mrb[0].mxu0
        %7632 = vmatprep.mubr.f32.mxu0 0.0
        %7633 = vmatmul.mubr.f32.gmra.mrb[0].mxu0 %v7145
        %v7634 = vpop.f32.mrb[0].mxu0
        %v7635 = vadd.f32 0.0, %v7634
        %v7636 = vpop.f32.mrb[0].mxu0
        %7637 = vmatprep.mubr.f32.mxu0 0.0
        %7638 = vmatmul.mubr.f32.gmra.mrb[0].mxu0 %v7148
        %v7639 = vpop.f32.mrb[0].mxu0
        %v7640 = vadd.f32 0.0, %v7639
        %v7641 = vpop.f32.mrb[0].mxu0
        %7642 = vmatprep.mubr.f32.mxu0 0.0
        %7643 = vmatmul.mubr.f32.gmra.mrb[0].mxu0 %v7151
        %v7644 = vpop.f32.mrb[0].mxu0
        %v7645 = vadd.f32 0.0, %v7644
        %v7646 = vpop.f32.mrb[0].mxu0
        %7647 = vmatprep.mubr.f32.mxu0 0.0
        %7648 = vmatmul.mubr.f32.gmra.mrb[0].mxu0 %v7154
        %v7649 = vpop.f32.mrb[0].mxu0
        %v7650 = vadd.f32 0.0, %v7649
        %v7651 = vpop.f32.mrb[0].mxu0
        %7652 = vmatprep.mubr.f32.mxu0 0.0
        %7653 = vmatmul.mubr.f32.gmra.mrb[0].mxu0 %v7157
        %v7654 = vpop.f32.mrb[0].mxu0
        %v7655 = vadd.f32 0.0, %v7654
        %v7656 = vpop.f32.mrb[0].mxu0
        %7657 = vmatprep.mubr.f32.mxu0 0.0
        %7658 = vmatmul.mubr.f32.gmra.mrb[0].mxu0 %v7160
        %v7659 = vpop.f32.mrb[0].mxu0
        %v7660 = vadd.f32 0.0, %v7659
        %v7661 = vpop.f32.mrb[0].mxu0
        %7662 = vmatprep.mubr.f32.mxu0 0.0
        %7663 = vmatmul.mubr.f32.gmra.mrb[0].mxu0 %v7163
        %v7664 = vpop.f32.mrb[0].mxu0
        %v7665 = vadd.f32 0.0, %v7664
        %v7666 = vpop.f32.mrb[0].mxu0
        %7667 = vmatprep.mubr.f32.mxu0 0.0
        %7668 = vmatmul.mubr.f32.gmra.mrb[0].mxu0 %v7166
        %v7669 = vpop.f32.mrb[0].mxu0
        %v7670 = vadd.f32 0.0, %v7669
        %v7671 = vpop.f32.mrb[0].mxu0
        %7672 = vmatprep.mubr.f32.mxu0 0.0
        %7673 = vmatmul.mubr.f32.gmra.mrb[0].mxu0 %v7169
        %v7674 = vpop.f32.mrb[0].mxu0
        %v7675 = vadd.f32 0.0, %v7674
        %v7676 = vpop.f32.mrb[0].mxu0
        %7677 = vmatprep.mubr.f32.mxu0 0.0
        %7678 = vmatmul.mubr.f32.gmra.mrb[0].mxu0 %v7172
        %v7679 = vpop.f32.mrb[0].mxu0
        %v7680 = vadd.f32 0.0, %v7679
        %v7681 = vpop.f32.mrb[0].mxu0
        %7682 = vmatprep.mubr.f32.mxu0 0.0
        %7683 = vmatmul.mubr.f32.gmra.mrb[0].mxu0 %v7175
        %v7684 = vpop.f32.mrb[0].mxu0
        %v7685 = vadd.f32 0.0, %v7684
        %v7686 = vpop.f32.mrb[0].mxu0
        %7687 = vmatprep.mubr.f32.mxu0 0.0
        %7688 = vmatmul.mubr.f32.gmra.mrb[0].mxu0 %v7178
        %v7689 = vpop.f32.mrb[0].mxu0
        %v7690 = vadd.f32 0.0, %v7689
        %v7691 = vpop.f32.mrb[0].mxu0
        %7692 = vmatprep.mubr.f32.mxu0 0.0
        %7693 = vmatmul.mubr.f32.gmra.mrb[0].mxu0 %v7181
        %v7694 = vpop.f32.mrb[0].mxu0
        %v7695 = vadd.f32 0.0, %v7694
        %v7696 = vpop.f32.mrb[0].mxu0
        %7697 = vmatprep.mubr.f32.mxu0 0.0
        %7698 = vmatmul.mubr.f32.gmra.mrb[0].mxu0 %v7184
        %v7699 = vpop.f32.mrb[0].mxu0
        %v7700 = vadd.f32 0.0, %v7699
        %v7701 = vpop.f32.mrb[0].mxu0
        %7702 = vmatprep.mubr.f32.mxu0 0.0
        %7703 = vmatmul.mubr.f32.gmra.mrb[0].mxu0 %v7187
        %v7704 = vpop.f32.mrb[0].mxu0
        %v7705 = vadd.f32 0.0, %v7704
        %v7706 = vpop.f32.mrb[0].mxu0
        %7707 = vmatprep.mubr.f32.mxu0 0.0
        %7708 = vmatmul.mubr.f32.gmra.mrb[0].mxu0 %v7190
        %v7709 = vpop.f32.mrb[0].mxu0
        %v7710 = vadd.f32 0.0, %v7709
        %v7711 = vpop.f32.mrb[0].mxu0
        %7712 = vmatprep.mubr.f32.mxu0 0.0
        %7713 = vmatmul.mubr.f32.gmra.mrb[0].mxu0 %v7193
        %v7714 = vpop.f32.mrb[0].mxu0
        %v7715 = vadd.f32 0.0, %v7714
        %v7716 = vpop.f32.mrb[0].mxu0
        %7717 = vmatprep.mubr.f32.mxu0 0.0
        %7718 = vmatmul.mubr.f32.gmra.mrb[0].mxu0 %v7196
        %v7719 = vpop.f32.mrb[0].mxu0
        %v7720 = vadd.f32 0.0, %v7719
        %v7721 = vpop.f32.mrb[0].mxu0
        %7722 = vmatprep.mubr.f32.mxu0 0.0
        %7723 = vmatmul.mubr.f32.gmra.mrb[0].mxu0 %v7199
        %v7724 = vpop.f32.mrb[0].mxu0
        %v7725 = vadd.f32 0.0, %v7724
        %v7726 = vpop.f32.mrb[0].mxu0
        %7727 = vmatprep.mubr.f32.mxu0 0.0
        %7728 = vmatmul.mubr.f32.gmra.mrb[0].mxu0 %v7202
        %v7729 = vpop.f32.mrb[0].mxu0
        %v7730 = vadd.f32 0.0, %v7729
        %v7731 = vpop.f32.mrb[0].mxu0
        %7732 = vmatprep.mubr.f32.mxu0 0.0
        %7733 = vmatmul.mubr.f32.gmra.mrb[0].mxu0 %v7205
        %v7734 = vpop.f32.mrb[0].mxu0
        %v7735 = vadd.f32 0.0, %v7734
        %v7736 = vpop.f32.mrb[0].mxu0
        %7737 = vmatprep.mubr.f32.mxu0 0.0
        %7738 = vmatmul.mubr.f32.gmra.mrb[0].mxu0 %v7208
        %v7739 = vpop.f32.mrb[0].mxu0
        %v7740 = vadd.f32 0.0, %v7739
        %v7741 = vpop.f32.mrb[0].mxu0
        %7742 = vmatprep.mubr.f32.mxu0 0.0
        %7743 = vmatmul.mubr.f32.gmra.mrb[0].mxu0 %v7211
        %v7744 = vpop.f32.mrb[0].mxu0
        %v7745 = vadd.f32 0.0, %v7744
        %v7746 = vpop.f32.mrb[0].mxu0
        %7747 = vmatprep.mubr.f32.mxu0 0.0
        %7748 = vmatmul.mubr.f32.gmra.mrb[0].mxu0 %v7214
        %v7749 = vpop.f32.mrb[0].mxu0
        %v7750 = vadd.f32 0.0, %v7749
        %v7751 = vpop.f32.mrb[0].mxu0
        %7752 = vmatprep.mubr.f32.mxu0 0.0
        %7753 = vmatmul.mubr.f32.gmra.mrb[0].mxu0 %v7217
        %v7754 = vpop.f32.mrb[0].mxu0
        %v7755 = vadd.f32 0.0, %v7754
        %v7756 = vpop.f32.mrb[0].mxu0
        %7757 = vmatprep.mubr.f32.mxu0 0.0
        %7758 = vmatmul.mubr.f32.gmra.mrb[0].mxu0 %v7220
        %v7759 = vpop.f32.mrb[0].mxu0
        %v7760 = vadd.f32 0.0, %v7759
        %v7761 = vpop.f32.mrb[0].mxu0
        %7762 = vmatprep.mubr.f32.mxu0 0.0
        %7763 = vmatmul.mubr.f32.gmra.mrb[0].mxu0 %v7223
        %v7764 = vpop.f32.mrb[0].mxu0
        %v7765 = vadd.f32 0.0, %v7764
        %v7766 = vpop.f32.mrb[0].mxu0
        %7767 = vmatprep.mubr.f32.mxu0 0.0
        %7768 = vmatmul.mubr.f32.gmra.mrb[0].mxu0 %v7226
        %v7769 = vpop.f32.mrb[0].mxu0
        %v7770 = vadd.f32 0.0, %v7769
        %v7771 = vpop.f32.mrb[0].mxu0
        %7772 = vmatprep.mubr.f32.mxu0 0.0
        %7773 = vmatmul.mubr.f32.gmra.mrb[0].mxu0 %v7229
        %v7774 = vpop.f32.mrb[0].mxu0
        %v7775 = vadd.f32 0.0, %v7774
        %v7776 = vpop.f32.mrb[0].mxu0
        %7777 = vmatprep.mubr.f32.mxu0 0.0
        %7778 = vmatmul.mubr.f32.gmra.mrb[0].mxu0 %v7232
        %v7779 = vpop.f32.mrb[0].mxu0
        %v7780 = vadd.f32 0.0, %v7779
        %v7781 = vpop.f32.mrb[0].mxu0
        %7782 = vmatprep.mubr.f32.mxu0 0.0
        %7783 = vmatmul.mubr.f32.gmra.mrb[0].mxu0 %v7235
        %v7784 = vpop.f32.mrb[0].mxu0
        %v7785 = vadd.f32 0.0, %v7784
        %v7786 = vpop.f32.mrb[0].mxu0
        %7787 = vmatprep.mubr.f32.mxu0 0.0
        %7788 = vmatmul.mubr.f32.gmra.mrb[0].mxu0 %v7238
        %v7789 = vpop.f32.mrb[0].mxu0
        %v7790 = vadd.f32 0.0, %v7789
        %v7791 = vpop.f32.mrb[0].mxu0
        %7792 = vmatprep.mubr.f32.mxu0 0.0
        %7793 = vmatmul.mubr.f32.gmra.mrb[0].mxu0 %v7241
        %v7794 = vpop.f32.mrb[0].mxu0
        %v7795 = vadd.f32 0.0, %v7794
        %v7796 = vpop.f32.mrb[0].mxu0
        %7797 = vmatprep.mubr.f32.mxu0 0.0
        %7798 = vmatmul.mubr.f32.gmra.mrb[0].mxu0 %v7244
        %v7799 = vpop.f32.mrb[0].mxu0
        %v7800 = vadd.f32 0.0, %v7799
        %v7801 = vpop.f32.mrb[0].mxu0
        %7802 = vmatprep.mubr.f32.mxu0 0.0
        %7803 = vmatmul.mubr.f32.gmra.mrb[0].mxu0 %v7247
        %v7804 = vpop.f32.mrb[0].mxu0
        %v7805 = vadd.f32 0.0, %v7804
        %v7806 = vpop.f32.mrb[0].mxu0
        %7807 = vmatprep.mubr.f32.mxu0 0.0
        %7808 = vmatmul.mubr.f32.gmra.mrb[0].mxu0 %v7250
        %v7809 = vpop.f32.mrb[0].mxu0
        %v7810 = vadd.f32 0.0, %v7809
        %v7811 = vpop.f32.mrb[0].mxu0
        %7812 = vmatprep.mubr.f32.mxu0 0.0
        %7813 = vmatmul.mubr.f32.gmra.mrb[0].mxu0 %v7253
        %v7814 = vpop.f32.mrb[0].mxu0
        %v7815 = vadd.f32 0.0, %v7814
        %v7816 = vpop.f32.mrb[0].mxu0
        %7817 = vmatprep.mubr.f32.mxu0 0.0
        %7818 = vmatmul.mubr.f32.gmra.mrb[0].mxu0 %v7256
        %v7819 = vpop.f32.mrb[0].mxu0
        %v7820 = vadd.f32 0.0, %v7819
        %v7821 = vpop.f32.mrb[0].mxu0
        %7822 = vmatprep.mubr.f32.mxu0 0.0
        %7823 = vmatmul.mubr.f32.gmra.mrb[0].mxu0 %v7259
        %v7824 = vpop.f32.mrb[0].mxu0
        %v7825 = vadd.f32 0.0, %v7824
        %v7826 = vpop.f32.mrb[0].mxu0
        %7827 = vmatprep.mubr.f32.mxu0 0.0
        %7828 = vmatmul.mubr.f32.gmra.mrb[0].mxu0 %v7262
        %v7829 = vpop.f32.mrb[0].mxu0
        %v7830 = vadd.f32 0.0, %v7829
        %v7831 = vpop.f32.mrb[0].mxu0
        %7832 = vmatprep.mubr.f32.mxu0 0.0
        %7833 = vmatmul.mubr.f32.gmra.mrb[0].mxu0 %v7265
        %v7834 = vpop.f32.mrb[0].mxu0
        %v7835 = vadd.f32 0.0, %v7834
        %v7836 = vpop.f32.mrb[0].mxu0
        %7837 = vmatprep.mubr.f32.mxu0 0.0
        %7838 = vmatmul.mubr.f32.gmra.mrb[0].mxu0 %v7268
        %v7839 = vpop.f32.mrb[0].mxu0
        %v7840 = vadd.f32 0.0, %v7839
        %v7841 = vpop.f32.mrb[0].mxu0
        %7842 = vmatprep.mubr.f32.mxu0 0.0
        %7843 = vmatmul.mubr.f32.gmra.mrb[0].mxu0 %v7271
        %v7844 = vpop.f32.mrb[0].mxu0
        %v7845 = vadd.f32 0.0, %v7844
        %v7846 = vpop.f32.mrb[0].mxu0
        %7847 = vmatprep.mubr.f32.mxu0 0.0
        %7848 = vmatmul.mubr.f32.gmra.mrb[0].mxu0 %v7274
        %v7849 = vpop.f32.mrb[0].mxu0
        %v7850 = vadd.f32 0.0, %v7849
        %v7851 = vpop.f32.mrb[0].mxu0
        %7852 = vmatprep.mubr.f32.mxu0 0.0
        %7853 = vmatmul.mubr.f32.gmra.mrb[0].mxu0 %v7277
        %v7854 = vpop.f32.mrb[0].mxu0
        %v7855 = vadd.f32 0.0, %v7854
        %v7856 = vpop.f32.mrb[0].mxu0
        %7857 = vmatprep.mubr.f32.mxu0 0.0
        %7858 = vmatmul.mubr.f32.gmra.mrb[0].mxu0 %v7280
        %v7859 = vpop.f32.mrb[0].mxu0
        %v7860 = vadd.f32 0.0, %v7859
        %v7861 = vpop.f32.mrb[0].mxu0
        %7862 = vmatprep.mubr.f32.mxu0 0.0
        %7863 = vmatmul.mubr.f32.gmra.mrb[0].mxu0 %v7283
        %v7864 = vpop.f32.mrb[0].mxu0
        %v7865 = vadd.f32 0.0, %v7864
        %v7866 = vpop.f32.mrb[0].mxu0
        %7867 = vmatprep.mubr.f32.mxu0 0.0
        %7868 = vmatmul.mubr.f32.gmra.mrb[0].mxu0 %v7286
        %v7869 = vpop.f32.mrb[0].mxu0
        %v7870 = vadd.f32 0.0, %v7869
        %v7871 = vpop.f32.mrb[0].mxu0
        %7872 = vmatprep.mubr.f32.mxu0 0.0
        %7873 = vmatmul.mubr.f32.gmra.mrb[0].mxu0 %v7289
        %v7874 = vpop.f32.mrb[0].mxu0
        %v7875 = vadd.f32 0.0, %v7874
        %v7876 = vpop.f32.mrb[0].mxu0
        %7877 = vmatprep.mubr.f32.mxu0 0.0
        %7878 = vmatmul.mubr.f32.gmra.mrb[0].mxu0 %v7292
        %v7879 = vpop.f32.mrb[0].mxu0
        %v7880 = vadd.f32 0.0, %v7879
        %v7881 = vpop.f32.mrb[0].mxu0
        %7882 = vmatprep.mubr.f32.mxu0 0.0
        %7883 = vmatmul.mubr.f32.gmra.mrb[0].mxu0 %v7295
        %v7884 = vpop.f32.mrb[0].mxu0
        %v7885 = vadd.f32 0.0, %v7884
        %v7886 = vpop.f32.mrb[0].mxu0
        %7887 = vmatprep.mubr.f32.mxu0 0.0
        %7888 = vmatmul.mubr.f32.gmra.mrb[0].mxu0 %v7298
        %v7889 = vpop.f32.mrb[0].mxu0
        %v7890 = vadd.f32 0.0, %v7889
        %v7891 = vpop.f32.mrb[0].mxu0
        %7892 = vmatprep.mubr.f32.mxu0 0.0
        %7893 = vmatmul.mubr.f32.gmra.mrb[0].mxu0 %v7301
        %v7894 = vpop.f32.mrb[0].mxu0
        %v7895 = vadd.f32 0.0, %v7894
        %v7896 = vpop.f32.mrb[0].mxu0
        %7897 = vmatprep.mubr.f32.mxu0 0.0
        %7898 = vmatmul.mubr.f32.gmra.mrb[0].mxu0 %v7304
        %v7899 = vpop.f32.mrb[0].mxu0
        %v7900 = vadd.f32 0.0, %v7899
        %v7901 = vpop.f32.mrb[0].mxu0
        %7902 = vmatprep.mubr.f32.mxu0 0.0
        %7903 = vmatmul.mubr.f32.gmra.mrb[0].mxu0 %v7307
        %v7904 = vpop.f32.mrb[0].mxu0
        %v7905 = vadd.f32 0.0, %v7904
        %v7906 = vpop.f32.mrb[0].mxu0
        %7907 = vmatprep.mubr.f32.mxu0 0.0
        %7908 = vmatmul.mubr.f32.gmra.mrb[0].mxu0 %v7310
        %v7909 = vpop.f32.mrb[0].mxu0
        %v7910 = vadd.f32 0.0, %v7909
        %v7911 = vpop.f32.mrb[0].mxu0
        %7912 = vmatprep.mubr.f32.mxu0 0.0
        %7913 = vmatmul.mubr.f32.gmra.mrb[0].mxu0 %v7313
        %v7914 = vpop.f32.mrb[0].mxu0
        %v7915 = vadd.f32 0.0, %v7914
        %v7916 = vpop.f32.mrb[0].mxu0
        %7917 = vmatprep.mubr.f32.mxu0 0.0
        %7918 = vmatmul.mubr.f32.gmra.mrb[0].mxu0 %v7316
        %v7919 = vpop.f32.mrb[0].mxu0
        %v7920 = vadd.f32 0.0, %v7919
        %v7921 = vpop.f32.mrb[0].mxu0
        %7922 = vmatprep.mubr.f32.mxu0 0.0
        %7923 = vmatmul.mubr.f32.gmra.mrb[0].mxu0 %v7319
        %v7924 = vpop.f32.mrb[0].mxu0
        %v7925 = vadd.f32 0.0, %v7924
        %v7926 = vpop.f32.mrb[0].mxu0
        %7927 = vmatprep.mubr.f32.mxu0 0.0
        %7928 = vmatmul.mubr.f32.gmra.mrb[0].mxu0 %v7322
        %v7929 = vpop.f32.mrb[0].mxu0
        %v7930 = vadd.f32 0.0, %v7929
        %v7931 = vpop.f32.mrb[0].mxu0
        %7932 = vmatprep.mubr.f32.mxu0 0.0
        %7933 = vmatmul.mubr.f32.gmra.mrb[0].mxu0 %v7325
        %v7934 = vpop.f32.mrb[0].mxu0
        %v7935 = vadd.f32 0.0, %v7934
        %v7936 = vpop.f32.mrb[0].mxu0
        %7937 = vmatprep.mubr.f32.mxu0 0.0
        %7938 = vmatmul.mubr.f32.gmra.mrb[0].mxu0 %v7328
        %v7939 = vpop.f32.mrb[0].mxu0
        %v7940 = vadd.f32 0.0, %v7939
        %v7941 = vpop.f32.mrb[0].mxu0
        %7942 = vmatprep.mubr.f32.mxu0 0.0
        %7943 = vmatmul.mubr.f32.gmra.mrb[0].mxu0 %v7331
        %v7944 = vpop.f32.mrb[0].mxu0
        %v7945 = vadd.f32 0.0, %v7944
        %v7946 = vpop.f32.mrb[0].mxu0
        %7947 = vmatprep.mubr.f32.mxu0 0.0
        %7948 = vmatmul.mubr.f32.gmra.mrb[0].mxu0 %v7334
        %v7949 = vpop.f32.mrb[0].mxu0
        %v7950 = vadd.f32 0.0, %v7949
        %v7951 = vpop.f32.mrb[0].mxu0
        %7952 = vmatprep.mubr.f32.mxu0 0.0
        %7953 = vmatmul.mubr.f32.gmra.mrb[0].mxu0 %v7337
        %v7954 = vpop.f32.mrb[0].mxu0
        %v7955 = vadd.f32 0.0, %v7954
        %v7956 = vpop.f32.mrb[0].mxu0
        %7957 = vmatprep.mubr.f32.mxu0 0.0
        %7958 = vmatmul.mubr.f32.gmra.mrb[0].mxu0 %v7340
        %v7959 = vpop.f32.mrb[0].mxu0
        %v7960 = vadd.f32 0.0, %v7959
        %v7961 = vpop.f32.mrb[0].mxu0
        %7962 = vmatprep.mubr.f32.mxu0 0.0
        %7963 = vmatmul.mubr.f32.gmra.mrb[0].mxu0 %v7343
        %v7964 = vpop.f32.mrb[0].mxu0
        %v7965 = vadd.f32 0.0, %v7964
        %v7966 = vpop.f32.mrb[0].mxu0
        %7967 = vmatprep.mubr.f32.mxu0 0.0
        %7968 = vmatmul.mubr.f32.gmra.mrb[0].mxu0 %v7346
        %v7969 = vpop.f32.mrb[0].mxu0
        %v7970 = vadd.f32 0.0, %v7969
        %v7971 = vpop.f32.mrb[0].mxu0
        %7972 = vmatprep.mubr.f32.mxu0 0.0
        %7973 = vmatmul.mubr.f32.gmra.mrb[0].mxu0 %v7349
        %v7974 = vpop.f32.mrb[0].mxu0
        %v7975 = vadd.f32 0.0, %v7974
        %v7976 = vpop.f32.mrb[0].mxu0
        %7977 = vmatprep.mubr.f32.mxu0 0.0
        %7978 = vmatmul.mubr.f32.gmra.mrb[0].mxu0 %v7352
        %v7979 = vpop.f32.mrb[0].mxu0
        %v7980 = vadd.f32 0.0, %v7979
        %v7981 = vpop.f32.mrb[0].mxu0
        %7982 = vmatprep.mubr.f32.mxu0 0.0
        %7983 = vmatmul.mubr.f32.gmra.mrb[0].mxu0 %v7355
        %v7984 = vpop.f32.mrb[0].mxu0
        %v7985 = vadd.f32 0.0, %v7984
        %v7986 = vpop.f32.mrb[0].mxu0
        %7987 = vmatprep.mubr.f32.mxu0 0.0
        %7988 = vmatmul.mubr.f32.gmra.mrb[0].mxu0 %v7358
        %v7989 = vpop.f32.mrb[0].mxu0
        %v7990 = vadd.f32 0.0, %v7989
        %v7991 = vpop.f32.mrb[0].mxu0
        %7992 = vmatprep.mubr.f32.mxu0 0.0
        %7993 = vmatmul.mubr.f32.gmra.mrb[0].mxu0 %v7361
        %v7994 = vpop.f32.mrb[0].mxu0
        %v7995 = vadd.f32 0.0, %v7994
        %v7996 = vpop.f32.mrb[0].mxu0
        %7997 = vmatprep.mubr.f32.mxu0 0.0
        %7998 = vmatmul.mubr.f32.gmra.mrb[0].mxu0 %v7364
        %v7999 = vpop.f32.mrb[0].mxu0
        %v8000 = vadd.f32 0.0, %v7999
        %v8001 = vpop.f32.mrb[0].mxu0
        %8002 = vmatprep.mubr.f32.mxu0 0.0
        %8003 = vmatmul.mubr.f32.gmra.mrb[0].mxu0 %v7367
        %v8004 = vpop.f32.mrb[0].mxu0
        %v8005 = vadd.f32 0.0, %v8004
        %v8006 = vpop.f32.mrb[0].mxu0
        %8007 = vmatprep.mubr.f32.mxu0 0.0
        %8008 = vmatmul.mubr.f32.gmra.mrb[0].mxu0 %v7370
        %v8009 = vpop.f32.mrb[0].mxu0
        %v8010 = vadd.f32 0.0, %v8009
        %v8011 = vpop.f32.mrb[0].mxu0
        %8012 = vmatprep.mubr.f32.mxu0 0.0
        %8013 = vmatmul.mubr.f32.gmra.mrb[0].mxu0 %v7373
        %v8014 = vpop.f32.mrb[0].mxu0
        %v8015 = vadd.f32 0.0, %v8014
        %v8016 = vpop.f32.mrb[0].mxu0
        %8017 = vmatprep.mubr.f32.mxu0 0.0
        %8018 = vmatmul.mubr.f32.gmra.mrb[0].mxu0 %v7376
        %v8019 = vpop.f32.mrb[0].mxu0
        %v8020 = vadd.f32 0.0, %v8019
        %v8021 = vpop.f32.mrb[0].mxu0
        %8022 = vmatprep.mubr.f32.mxu0 0.0
        %8023 = vmatmul.mubr.f32.gmra.mrb[0].mxu0 %v7379
        %v8024 = vpop.f32.mrb[0].mxu0
        %v8025 = vadd.f32 0.0, %v8024
        %v8026 = vpop.f32.mrb[0].mxu0
        %8027 = vmatprep.mubr.f32.mxu0 0.0
        %8028 = vmatmul.mubr.f32.gmra.mrb[0].mxu0 %v7382
        %v8029 = vpop.f32.mrb[0].mxu0
        %v8030 = vadd.f32 0.0, %v8029
        %v8031 = vpop.f32.mrb[0].mxu0
        %8032 = vmatprep.mubr.f32.mxu0 0.0
        %8033 = vmatmul.mubr.f32.gmra.mrb[0].mxu0 %v7385
        %v8034 = vpop.f32.mrb[0].mxu0
        %v8035 = vadd.f32 0.0, %v8034
        %v8036 = vpop.f32.mrb[0].mxu0
        %8037 = vmatprep.mubr.f32.mxu0 0.0
        %8038 = vmatmul.mubr.f32.gmra.mrb[0].mxu0 %v7388
        %v8039 = vpop.f32.mrb[0].mxu0
        %v8040 = vadd.f32 0.0, %v8039
        %v8041 = vpop.f32.mrb[0].mxu0
        %8042 = vmatprep.mubr.f32.mxu0 0.0
        %8043 = vmatmul.mubr.f32.gmra.mrb[0].mxu0 %v7391
        %v8044 = vpop.f32.mrb[0].mxu0
        %v8045 = vadd.f32 0.0, %v8044
        %v8046 = vpop.f32.mrb[0].mxu0
        %8047 = vmatprep.mubr.f32.mxu0 0.0
        %8048 = vmatmul.mubr.f32.gmra.mrb[0].mxu0 %v7394
        %v8049 = vpop.f32.mrb[0].mxu0
        %v8050 = vadd.f32 0.0, %v8049
        %v8051 = vpop.f32.mrb[0].mxu0
        %8052 = vmatprep.mubr.f32.mxu0 0.0
        %8053 = vmatmul.mubr.f32.gmra.mrb[0].mxu0 %v7397
        %v8054 = vpop.f32.mrb[0].mxu0
        %v8055 = vadd.f32 0.0, %v8054
        %v8056 = vpop.f32.mrb[0].mxu0
        %8057 = vmatprep.mubr.f32.mxu0 0.0
        %8058 = vmatmul.mubr.f32.gmra.mrb[0].mxu0 %v7400
        %v8059 = vpop.f32.mrb[0].mxu0
        %v8060 = vadd.f32 0.0, %v8059
        %v8061 = vpop.f32.mrb[0].mxu0
        %8062 = vmatprep.mubr.f32.mxu0 0.0
        %8063 = vmatmul.mubr.f32.gmra.mrb[0].mxu0 %v7403
        %v8064 = vpop.f32.mrb[0].mxu0
        %v8065 = vadd.f32 0.0, %v8064
        %v8066 = vpop.f32.mrb[0].mxu0
        %8067 = vmatprep.mubr.f32.mxu0 0.0
        %8068 = vmatmul.mubr.f32.gmra.mrb[0].mxu0 %v7406
        %v8069 = vpop.f32.mrb[0].mxu0
        %v8070 = vadd.f32 0.0, %v8069
        %v8071 = vpop.f32.mrb[0].mxu0
        %8072 = vmatprep.mubr.f32.mxu0 0.0
        %8073 = vmatmul.mubr.f32.gmra.mrb[0].mxu0 %v7409
        %v8074 = vpop.f32.mrb[0].mxu0
        %v8075 = vadd.f32 0.0, %v8074
        %v8076 = vpop.f32.mrb[0].mxu0
        %8077 = vmatprep.mubr.f32.mxu0 0.0
        %8078 = vmatmul.mubr.f32.gmra.mrb[0].mxu0 %v7412
        %v8079 = vpop.f32.mrb[0].mxu0
        %v8080 = vadd.f32 0.0, %v8079
        %v8081 = vpop.f32.mrb[0].mxu0
        %8082 = vmatprep.mubr.f32.mxu0 0.0
        %8083 = vmatmul.mubr.f32.gmra.mrb[0].mxu0 %v7415
        %v8084 = vpop.f32.mrb[0].mxu0
        %v8085 = vadd.f32 0.0, %v8084
        %v8086 = vpop.f32.mrb[0].mxu0
        %8087 = vmatprep.mubr.f32.mxu0 0.0
        %8088 = vmatmul.mubr.f32.gmra.mrb[0].mxu0 %v7418
        %v8089 = vpop.f32.mrb[0].mxu0
        %v8090 = vadd.f32 0.0, %v8089
        %v8091 = vpop.f32.mrb[0].mxu0
        %8092 = vmatprep.mubr.f32.mxu0 0.0
        %8093 = vmatmul.mubr.f32.gmra.mrb[0].mxu0 %v7421
        %v8094 = vpop.f32.mrb[0].mxu0
        %v8095 = vadd.f32 0.0, %v8094
        %v8096 = vpop.f32.mrb[0].mxu0
        %8097 = vmatprep.mubr.f32.mxu0 0.0
        %8098 = vmatmul.mubr.f32.gmra.mrb[0].mxu0 %v7424
        %v8099 = vpop.f32.mrb[0].mxu0
        %v8100 = vadd.f32 0.0, %v8099
        %v8101 = vpop.f32.mrb[0].mxu0
        %8102 = vmatprep.mubr.f32.mxu0 0.0
        %8103 = vmatmul.mubr.f32.gmra.mrb[0].mxu0 %v7427
        %v8104 = vpop.f32.mrb[0].mxu0
        %v8105 = vadd.f32 0.0, %v8104
        %v8106 = vpop.f32.mrb[0].mxu0
        %8107 = vmatprep.mubr.f32.mxu0 0.0
        %8108 = vmatmul.mubr.f32.gmra.mrb[0].mxu0 %v7430
        %v8109 = vpop.f32.mrb[0].mxu0
        %v8110 = vadd.f32 0.0, %v8109
        %v8111 = vpop.f32.mrb[0].mxu0
        %8112 = vmatprep.mubr.f32.mxu0 0.0
        %8113 = vmatmul.mubr.f32.gmra.mrb[0].mxu0 %v7433
        %v8114 = vpop.f32.mrb[0].mxu0
        %v8115 = vadd.f32 0.0, %v8114
        %v8116 = vpop.f32.mrb[0].mxu0
        %8117 = vmatprep.mubr.f32.mxu0 0.0
        %8118 = vmatmul.mubr.f32.gmra.mrb[0].mxu0 %v7436
        %v8119 = vpop.f32.mrb[0].mxu0
        %v8120 = vadd.f32 0.0, %v8119
        %v8121 = vpop.f32.mrb[0].mxu0
        %8122 = vmatprep.mubr.f32.mxu0 0.0
        %8123 = vmatmul.mubr.f32.gmra.mrb[0].mxu0 %v7439
        %v8124 = vpop.f32.mrb[0].mxu0
        %v8125 = vadd.f32 0.0, %v8124
        %v8126 = vpop.f32.mrb[0].mxu0
        %8127 = vmatprep.mubr.f32.mxu0 0.0
        %8128 = vmatmul.mubr.f32.gmra.mrb[0].mxu0 %v7442
        %v8129 = vpop.f32.mrb[0].mxu0
        %v8130 = vadd.f32 0.0, %v8129
        %v8131 = vpop.f32.mrb[0].mxu0
        %8132 = vmatprep.mubr.f32.mxu0 0.0
        %8133 = vmatmul.mubr.f32.gmra.mrb[0].mxu0 %v7445
        %v8134 = vpop.f32.mrb[0].mxu0
        %v8135 = vadd.f32 0.0, %v8134
        %v8136 = vpop.f32.mrb[0].mxu0
        %8137 = vmatprep.mubr.f32.mxu0 0.0
        %8138 = vmatmul.mubr.f32.gmra.mrb[0].mxu0 %v7448
        %v8139 = vpop.f32.mrb[0].mxu0
        %v8140 = vadd.f32 0.0, %v8139
        %v8141 = vpop.f32.mrb[0].mxu0
        %8142 = vmatprep.mubr.f32.mxu0 0.0
        %8143 = vmatmul.mubr.f32.gmra.mrb[0].mxu0 %v7451
        %v8144 = vpop.f32.mrb[0].mxu0
        %v8145 = vadd.f32 0.0, %v8144
        %v8146 = vpop.f32.mrb[0].mxu0
        %8147 = vmatprep.mubr.f32.mxu0 0.0
        %8148 = vmatmul.mubr.f32.gmra.mrb[0].mxu0 %v7454
        %v8149 = vpop.f32.mrb[0].mxu0
        %v8150 = vadd.f32 0.0, %v8149
        %v8151 = vpop.f32.mrb[0].mxu0
        %8152 = vmatprep.mubr.f32.mxu0 0.0
        %8153 = vmatmul.mubr.f32.gmra.mrb[0].mxu0 %v7457
        %v8154 = vpop.f32.mrb[0].mxu0
        %v8155 = vadd.f32 0.0, %v8154
        %v8156 = vpop.f32.mrb[0].mxu0
        %8157 = vmatprep.mubr.f32.mxu0 0.0
        %8158 = vmatmul.mubr.f32.gmra.mrb[0].mxu0 %v7460
        %v8159 = vpop.f32.mrb[0].mxu0
        %v8160 = vadd.f32 0.0, %v8159
        %v8161 = vpop.f32.mrb[0].mxu0
        %8162 = vmatprep.mubr.f32.mxu0 0.0
        %8163 = vmatmul.mubr.f32.gmra.mrb[0].mxu0 %v7463
        %v8164 = vpop.f32.mrb[0].mxu0
        %v8165 = vadd.f32 0.0, %v8164
        %v8166 = vpop.f32.mrb[0].mxu0
        %8167 = vmatprep.mubr.f32.mxu0 0.0
        %8168 = vmatmul.mubr.f32.gmra.mrb[0].mxu0 %v7466
        %v8169 = vpop.f32.mrb[0].mxu0
        %v8170 = vadd.f32 0.0, %v8169
        %v8171 = vpop.f32.mrb[0].mxu0
        %8172 = vmatprep.mubr.f32.mxu0 0.0
        %8173 = vmatmul.mubr.f32.gmra.mrb[0].mxu0 %v7469
        %v8174 = vpop.f32.mrb[0].mxu0
        %v8175 = vadd.f32 0.0, %v8174
        %v8176 = vpop.f32.mrb[0].mxu0
        %8177 = vmatprep.mubr.f32.mxu0 0.0
        %8178 = vmatmul.mubr.f32.gmra.mrb[0].mxu0 %v7472
        %v8179 = vpop.f32.mrb[0].mxu0
        %v8180 = vadd.f32 0.0, %v8179
        %v8181 = vpop.f32.mrb[0].mxu0
        %8182 = vdwg.mxu0
        %8183 = vxpose.xlu0.b32.start [1/16] %v7545, 128
        %8184 = vxpose.xlu0.b32.cont [2/16] %v7550, 128
        %8185 = vxpose.xlu0.b32.cont [3/16] %v7555, 128
        %8186 = vxpose.xlu0.b32.cont [4/16] %v7560, 128
        %8187 = vxpose.xlu0.b32.cont [5/16] %v7565, 128
        %8188 = vxpose.xlu0.b32.cont [6/16] %v7570, 128
        %8189 = vxpose.xlu0.b32.cont [7/16] %v7575, 128
        %8190 = vxpose.xlu0.b32.cont [8/16] %v7580, 128
        %8191 = vxpose.xlu0.b32.cont [9/16] %v7585, 128
        %8192 = vxpose.xlu0.b32.cont [10/16] %v7590, 128
        %8193 = vxpose.xlu0.b32.cont [11/16] %v7595, 128
        %8194 = vxpose.xlu0.b32.cont [12/16] %v7600, 128
        %8195 = vxpose.xlu0.b32.cont [13/16] %v7605, 128
        %8196 = vxpose.xlu0.b32.cont [14/16] %v7610, 128
        %8197 = vxpose.xlu0.b32.cont [15/16] %v7615, 128
        %8198 = vxpose.xlu0.b32.end [16/16] %v7620, 128
        %v8199 = vpop.trf.xlu0
        %v8200 = vpop.trf.xlu0
        %v8201 = vpop.trf.xlu0
        %v8202 = vpop.trf.xlu0
        %v8203 = vpop.trf.xlu0
        %v8204 = vpop.trf.xlu0
        %v8205 = vpop.trf.xlu0
        %v8206 = vpop.trf.xlu0
        %v8207 = vpop.trf.xlu0
        %v8208 = vpop.trf.xlu0
        %v8209 = vpop.trf.xlu0
        %v8210 = vpop.trf.xlu0
        %v8211 = vpop.trf.xlu0
        %v8212 = vpop.trf.xlu0
        %v8213 = vpop.trf.xlu0
        %v8214 = vpop.trf.xlu0
        %8215 = vxpose.xlu0.b32.start [1/16] %v7625, 128
        %8216 = vxpose.xlu0.b32.cont [2/16] %v7630, 128
        %8217 = vxpose.xlu0.b32.cont [3/16] %v7635, 128
        %8218 = vxpose.xlu0.b32.cont [4/16] %v7640, 128
        %8219 = vxpose.xlu0.b32.cont [5/16] %v7645, 128
        %8220 = vxpose.xlu0.b32.cont [6/16] %v7650, 128
        %8221 = vxpose.xlu0.b32.cont [7/16] %v7655, 128
        %8222 = vxpose.xlu0.b32.cont [8/16] %v7660, 128
        %8223 = vxpose.xlu0.b32.cont [9/16] %v7665, 128
        %8224 = vxpose.xlu0.b32.cont [10/16] %v7670, 128
        %8225 = vxpose.xlu0.b32.cont [11/16] %v7675, 128
        %8226 = vxpose.xlu0.b32.cont [12/16] %v7680, 128
        %8227 = vxpose.xlu0.b32.cont [13/16] %v7685, 128
        %8228 = vxpose.xlu0.b32.cont [14/16] %v7690, 128
        %8229 = vxpose.xlu0.b32.cont [15/16] %v7695, 128
        %8230 = vxpose.xlu0.b32.end [16/16] %v7700, 128
        %v8231 = vpop.trf.xlu0
        %v8232 = vpop.trf.xlu0
        %v8233 = vpop.trf.xlu0
        %v8234 = vpop.trf.xlu0
        %v8235 = vpop.trf.xlu0
        %v8236 = vpop.trf.xlu0
        %v8237 = vpop.trf.xlu0
        %v8238 = vpop.trf.xlu0
        %v8239 = vpop.trf.xlu0
        %v8240 = vpop.trf.xlu0
        %v8241 = vpop.trf.xlu0
        %v8242 = vpop.trf.xlu0
        %v8243 = vpop.trf.xlu0
        %v8244 = vpop.trf.xlu0
        %v8245 = vpop.trf.xlu0
        %v8246 = vpop.trf.xlu0
        %8247 = vxpose.xlu0.b32.start [1/16] %v7705, 128
        %8248 = vxpose.xlu0.b32.cont [2/16] %v7710, 128
        %8249 = vxpose.xlu0.b32.cont [3/16] %v7715, 128
        %8250 = vxpose.xlu0.b32.cont [4/16] %v7720, 128
        %8251 = vxpose.xlu0.b32.cont [5/16] %v7725, 128
        %8252 = vxpose.xlu0.b32.cont [6/16] %v7730, 128
        %8253 = vxpose.xlu0.b32.cont [7/16] %v7735, 128
        %8254 = vxpose.xlu0.b32.cont [8/16] %v7740, 128
        %8255 = vxpose.xlu0.b32.cont [9/16] %v7745, 128
        %8256 = vxpose.xlu0.b32.cont [10/16] %v7750, 128
        %8257 = vxpose.xlu0.b32.cont [11/16] %v7755, 128
        %8258 = vxpose.xlu0.b32.cont [12/16] %v7760, 128
        %8259 = vxpose.xlu0.b32.cont [13/16] %v7765, 128
        %8260 = vxpose.xlu0.b32.cont [14/16] %v7770, 128
        %8261 = vxpose.xlu0.b32.cont [15/16] %v7775, 128
        %8262 = vxpose.xlu0.b32.end [16/16] %v7780, 128
        %v8263 = vpop.trf.xlu0
        %v8264 = vpop.trf.xlu0
        %v8265 = vpop.trf.xlu0
        %v8266 = vpop.trf.xlu0
        %v8267 = vpop.trf.xlu0
        %v8268 = vpop.trf.xlu0
        %v8269 = vpop.trf.xlu0
        %v8270 = vpop.trf.xlu0
        %v8271 = vpop.trf.xlu0
        %v8272 = vpop.trf.xlu0
        %v8273 = vpop.trf.xlu0
        %v8274 = vpop.trf.xlu0
        %v8275 = vpop.trf.xlu0
        %v8276 = vpop.trf.xlu0
        %v8277 = vpop.trf.xlu0
        %v8278 = vpop.trf.xlu0
        %8279 = vxpose.xlu0.b32.start [1/16] %v7785, 128
        %8280 = vxpose.xlu0.b32.cont [2/16] %v7790, 128
        %8281 = vxpose.xlu0.b32.cont [3/16] %v7795, 128
        %8282 = vxpose.xlu0.b32.cont [4/16] %v7800, 128
        %8283 = vxpose.xlu0.b32.cont [5/16] %v7805, 128
        %8284 = vxpose.xlu0.b32.cont [6/16] %v7810, 128
        %8285 = vxpose.xlu0.b32.cont [7/16] %v7815, 128
        %8286 = vxpose.xlu0.b32.cont [8/16] %v7820, 128
        %8287 = vxpose.xlu0.b32.cont [9/16] %v7825, 128
        %8288 = vxpose.xlu0.b32.cont [10/16] %v7830, 128
        %8289 = vxpose.xlu0.b32.cont [11/16] %v7835, 128
        %8290 = vxpose.xlu0.b32.cont [12/16] %v7840, 128
        %8291 = vxpose.xlu0.b32.cont [13/16] %v7845, 128
        %8292 = vxpose.xlu0.b32.cont [14/16] %v7850, 128
        %8293 = vxpose.xlu0.b32.cont [15/16] %v7855, 128
        %8294 = vxpose.xlu0.b32.end [16/16] %v7860, 128
        %v8295 = vpop.trf.xlu0
        %v8296 = vpop.trf.xlu0
        %v8297 = vpop.trf.xlu0
        %v8298 = vpop.trf.xlu0
        %v8299 = vpop.trf.xlu0
        %v8300 = vpop.trf.xlu0
        %v8301 = vpop.trf.xlu0
        %v8302 = vpop.trf.xlu0
        %v8303 = vpop.trf.xlu0
        %v8304 = vpop.trf.xlu0
        %v8305 = vpop.trf.xlu0
        %v8306 = vpop.trf.xlu0
        %v8307 = vpop.trf.xlu0
        %v8308 = vpop.trf.xlu0
        %v8309 = vpop.trf.xlu0
        %v8310 = vpop.trf.xlu0
        %8311 = vxpose.xlu0.b32.start [1/16] %v7865, 128
        %8312 = vxpose.xlu0.b32.cont [2/16] %v7870, 128
        %8313 = vxpose.xlu0.b32.cont [3/16] %v7875, 128
        %8314 = vxpose.xlu0.b32.cont [4/16] %v7880, 128
        %8315 = vxpose.xlu0.b32.cont [5/16] %v7885, 128
        %8316 = vxpose.xlu0.b32.cont [6/16] %v7890, 128
        %8317 = vxpose.xlu0.b32.cont [7/16] %v7895, 128
        %8318 = vxpose.xlu0.b32.cont [8/16] %v7900, 128
        %8319 = vxpose.xlu0.b32.cont [9/16] %v7905, 128
        %8320 = vxpose.xlu0.b32.cont [10/16] %v7910, 128
        %8321 = vxpose.xlu0.b32.cont [11/16] %v7915, 128
        %8322 = vxpose.xlu0.b32.cont [12/16] %v7920, 128
        %8323 = vxpose.xlu0.b32.cont [13/16] %v7925, 128
        %8324 = vxpose.xlu0.b32.cont [14/16] %v7930, 128
        %8325 = vxpose.xlu0.b32.cont [15/16] %v7935, 128
        %8326 = vxpose.xlu0.b32.end [16/16] %v7940, 128
        %v8327 = vpop.trf.xlu0
        %v8328 = vpop.trf.xlu0
        %v8329 = vpop.trf.xlu0
        %v8330 = vpop.trf.xlu0
        %v8331 = vpop.trf.xlu0
        %v8332 = vpop.trf.xlu0
        %v8333 = vpop.trf.xlu0
        %v8334 = vpop.trf.xlu0
        %v8335 = vpop.trf.xlu0
        %v8336 = vpop.trf.xlu0
        %v8337 = vpop.trf.xlu0
        %v8338 = vpop.trf.xlu0
        %v8339 = vpop.trf.xlu0
        %v8340 = vpop.trf.xlu0
        %v8341 = vpop.trf.xlu0
        %v8342 = vpop.trf.xlu0
        %8343 = vxpose.xlu0.b32.start [1/16] %v7945, 128
        %8344 = vxpose.xlu0.b32.cont [2/16] %v7950, 128
        %8345 = vxpose.xlu0.b32.cont [3/16] %v7955, 128
        %8346 = vxpose.xlu0.b32.cont [4/16] %v7960, 128
        %8347 = vxpose.xlu0.b32.cont [5/16] %v7965, 128
        %8348 = vxpose.xlu0.b32.cont [6/16] %v7970, 128
        %8349 = vxpose.xlu0.b32.cont [7/16] %v7975, 128
        %8350 = vxpose.xlu0.b32.cont [8/16] %v7980, 128
        %8351 = vxpose.xlu0.b32.cont [9/16] %v7985, 128
        %8352 = vxpose.xlu0.b32.cont [10/16] %v7990, 128
        %8353 = vxpose.xlu0.b32.cont [11/16] %v7995, 128
        %8354 = vxpose.xlu0.b32.cont [12/16] %v8000, 128
        %8355 = vxpose.xlu0.b32.cont [13/16] %v8005, 128
        %8356 = vxpose.xlu0.b32.cont [14/16] %v8010, 128
        %8357 = vxpose.xlu0.b32.cont [15/16] %v8015, 128
        %8358 = vxpose.xlu0.b32.end [16/16] %v8020, 128
        %v8359 = vpop.trf.xlu0
        %v8360 = vpop.trf.xlu0
        %v8361 = vpop.trf.xlu0
        %v8362 = vpop.trf.xlu0
        %v8363 = vpop.trf.xlu0
        %v8364 = vpop.trf.xlu0
        %v8365 = vpop.trf.xlu0
        %v8366 = vpop.trf.xlu0
        %v8367 = vpop.trf.xlu0
        %v8368 = vpop.trf.xlu0
        %v8369 = vpop.trf.xlu0
        %v8370 = vpop.trf.xlu0
        %v8371 = vpop.trf.xlu0
        %v8372 = vpop.trf.xlu0
        %v8373 = vpop.trf.xlu0
        %v8374 = vpop.trf.xlu0
        %8375 = vxpose.xlu0.b32.start [1/16] %v8025, 128
        %8376 = vxpose.xlu0.b32.cont [2/16] %v8030, 128
        %8377 = vxpose.xlu0.b32.cont [3/16] %v8035, 128
        %8378 = vxpose.xlu0.b32.cont [4/16] %v8040, 128
        %8379 = vxpose.xlu0.b32.cont [5/16] %v8045, 128
        %8380 = vxpose.xlu0.b32.cont [6/16] %v8050, 128
        %8381 = vxpose.xlu0.b32.cont [7/16] %v8055, 128
        %8382 = vxpose.xlu0.b32.cont [8/16] %v8060, 128
        %8383 = vxpose.xlu0.b32.cont [9/16] %v8065, 128
        %8384 = vxpose.xlu0.b32.cont [10/16] %v8070, 128
        %8385 = vxpose.xlu0.b32.cont [11/16] %v8075, 128
        %8386 = vxpose.xlu0.b32.cont [12/16] %v8080, 128
        %8387 = vxpose.xlu0.b32.cont [13/16] %v8085, 128
        %8388 = vxpose.xlu0.b32.cont [14/16] %v8090, 128
        %8389 = vxpose.xlu0.b32.cont [15/16] %v8095, 128
        %8390 = vxpose.xlu0.b32.end [16/16] %v8100, 128
        %v8391 = vpop.trf.xlu0
        %v8392 = vpop.trf.xlu0
        %v8393 = vpop.trf.xlu0
        %v8394 = vpop.trf.xlu0
        %v8395 = vpop.trf.xlu0
        %v8396 = vpop.trf.xlu0
        %v8397 = vpop.trf.xlu0
        %v8398 = vpop.trf.xlu0
        %v8399 = vpop.trf.xlu0
        %v8400 = vpop.trf.xlu0
        %v8401 = vpop.trf.xlu0
        %v8402 = vpop.trf.xlu0
        %v8403 = vpop.trf.xlu0
        %v8404 = vpop.trf.xlu0
        %v8405 = vpop.trf.xlu0
        %v8406 = vpop.trf.xlu0
        %8407 = vxpose.xlu0.b32.start [1/16] %v8105, 128
        %8408 = vxpose.xlu0.b32.cont [2/16] %v8110, 128
        %8409 = vxpose.xlu0.b32.cont [3/16] %v8115, 128
        %8410 = vxpose.xlu0.b32.cont [4/16] %v8120, 128
        %8411 = vxpose.xlu0.b32.cont [5/16] %v8125, 128
        %8412 = vxpose.xlu0.b32.cont [6/16] %v8130, 128
        %8413 = vxpose.xlu0.b32.cont [7/16] %v8135, 128
        %8414 = vxpose.xlu0.b32.cont [8/16] %v8140, 128
        %8415 = vxpose.xlu0.b32.cont [9/16] %v8145, 128
        %8416 = vxpose.xlu0.b32.cont [10/16] %v8150, 128
        %8417 = vxpose.xlu0.b32.cont [11/16] %v8155, 128
        %8418 = vxpose.xlu0.b32.cont [12/16] %v8160, 128
        %8419 = vxpose.xlu0.b32.cont [13/16] %v8165, 128
        %8420 = vxpose.xlu0.b32.cont [14/16] %v8170, 128
        %8421 = vxpose.xlu0.b32.cont [15/16] %v8175, 128
        %8422 = vxpose.xlu0.b32.end [16/16] %v8180, 128
        %v8423 = vpop.trf.xlu0
        %v8424 = vpop.trf.xlu0
        %v8425 = vpop.trf.xlu0
        %v8426 = vpop.trf.xlu0
        %v8427 = vpop.trf.xlu0
        %v8428 = vpop.trf.xlu0
        %v8429 = vpop.trf.xlu0
        %v8430 = vpop.trf.xlu0
        %v8431 = vpop.trf.xlu0
        %v8432 = vpop.trf.xlu0
        %v8433 = vpop.trf.xlu0
        %v8434 = vpop.trf.xlu0
        %v8435 = vpop.trf.xlu0
        %v8436 = vpop.trf.xlu0
        %v8437 = vpop.trf.xlu0
        %v8438 = vpop.trf.xlu0
        %v8439 = vld [vmem:[%s2] sm:$0xff]
        %8441 = vset.pattern.permute.xlu0 0
        %8442 = vperm.xlu0 %8441, %v8439
        %v8443 = vpop.permute.xlu0 %8442
        %v8445 = vadd.f32 %v8199, %v8443
        %v8446 = vadd.f32 %v8231, %v8443
        %v8447 = vadd.f32 %v8263, %v8443
        %v8448 = vadd.f32 %v8295, %v8443
        %v8449 = vadd.f32 %v8327, %v8443
        %v8450 = vadd.f32 %v8359, %v8443
        %v8451 = vadd.f32 %v8391, %v8443
        %v8452 = vadd.f32 %v8423, %v8443
        %8453 = vst [vmem:[%s163] sm:$0xff] %v8445
        %8454 = vst [vmem:[%s163 + $0x8] sm:$0xff] %v8446
        %8455 = vst [vmem:[%s163 + $0x10] sm:$0xff] %v8447
        %8456 = vst [vmem:[%s163 + $0x18] sm:$0xff] %v8448
        %8457 = vst [vmem:[%s163 + $0x20] sm:$0xff] %v8449
        %8458 = vst [vmem:[%s163 + $0x28] sm:$0xff] %v8450
        %8459 = vst [vmem:[%s163 + $0x30] sm:$0xff] %v8451
        %8460 = vst [vmem:[%s163 + $0x38] sm:$0xff] %v8452
        %s8461 = sand.u32 %s93, 1
        %s8462 = scalar_lea.sflag [#allocation3], %s8461
        %s8463 = sand.u32 %s93, 1
        %s8464 = smul.addr %s8463, 64
        %s8465 = scalar_lea.vmem [#allocation2], %s8464
        // Predicated region
        $region33: #{tpu_custom_call.1} parent=31 // pred_check
          %p8466 = pneg %p103
        $region34: #{tpu_custom_call.1} parent=31 // pred_check_branch
          %8468 = sbr.rel (%p8466) target = $region36
        $region35: #{tpu_custom_call.1} parent=31 // pred_region
          %s8470 = ssub.s32 1024, 1024
          %8471 = vsyncadd %s8462, %s8470
          %s8472 = smul.addr %s17, 8
          %s8473 = smul.addr %s8472, 128
          %s8474 = scalar_lea.hbm %s3, %s8473
          %s8476 = sshll.u32 %s8465, 4
          %s8477 = int_to_ptr.vmem [resolvable:$true] %s8476
          %8479 = dma.vmem_to_hbm [thread:$0]  %s8477, 1024, %s8474, %s8462
        $region36: #{tpu_custom_call.1} parent=31 // pred_fallthru
          _
      $region32: #{tpu_custom_call.1} parent=5 // pred_fallthru
        _
      %p8480 = scmp.le.s32.totalorder 2, %s12
      // Predicated region
      $region37: #{tpu_custom_call.1} parent=5 // pred_check
        %p8481 = pneg %p8480
      $region38: #{tpu_custom_call.1} parent=5 // pred_check_branch
        %8483 = sbr.rel (%p8481) target = $region40
      $region39: #{tpu_custom_call.1} parent=5 // pred_region
        %s8484 = ssub.s32 %s12, 2
        // Predicated region
        $region41: #{tpu_custom_call.1} parent=39 // pred_check
          %p8485 = pneg %p109
        $region42: #{tpu_custom_call.1} parent=39 // pred_check_branch
          %8487 = sbr.rel (%p8485) target = $region44
        $region43: #{tpu_custom_call.1} parent=39 // pred_region
          %s8488 = sand.u32 %s94, 1
          %s8489 = scalar_lea.sflag [#allocation3], %s8488
          %s8490 = sand.u32 %s94, 1
          %s8491 = smul.addr %s8490, 64
          %s8492 = scalar_lea.vmem [#allocation2], %s8491
          %8493 = dma.done %s8489, 1024
        $region44: #{tpu_custom_call.1} parent=39 // pred_fallthru
          _
      $region40: #{tpu_custom_call.1} parent=5 // pred_fallthru
        _
    $region6: #{tpu_custom_call.1} parent=1 // loop_footer
      %s16 = sadd.s32 1, %s12
    $region7: #{tpu_custom_call.1} parent=1 // loop_footer_branch
      %11 = sbr.rel target = $region3
    $region8: #{tpu_custom_call.1} parent=1 // loop_exit
      _
    %8494 = vsyncpa [#allocation3], 1
    %s8495 = scalar_lea.sflag [#allocation3], 1
    %8496 = vsyncpa %s8495, 1

</llo_original>
